<compile_context>
chip_gen: v5e
topology: v5e:2x2
jax: 0.10.0
libtpu: 0.0.40
codegen_flags: <defaults>
</compile_context>

<pallas_src>
import functools

import jax
import jax.numpy as jnp
from jax.experimental import pallas as pl
from jax.experimental.pallas import tpu as pltpu


def _pick_tm_big():
    """Static (trace-time) M-tile for the M=512 layers, chosen per generation."""
    try:
        kind = jax.devices()[0].device_kind.lower()
    except Exception:
        return 256
    if "v7" in kind:
        return 128   # 2 TensorCores/chip: >=4 grid steps -> both cores busy
    return 512       # single-TC v5e/v6e: biggest tile (fewer, larger steps)


_TM_BIG = _pick_tm_big()


# ---------------------------------------------------------------------------
# Pallas kernels
# ---------------------------------------------------------------------------
def _fused_matmul_kernel(x_ref, w_ref, t_ref, o_ref, *, act):
    """One M-tile of: act(X @ W + shift).  BN scale & conv bias pre-folded."""
    y = jnp.dot(x_ref[...], w_ref[...], preferred_element_type=jnp.float32)
    y = y + t_ref[...]
    if act == "leaky":
        y = jnp.maximum(y, 0.2 * y)
    elif act == "relu":
        y = jnp.maximum(y, 0.0)
    elif act == "tanh2":                  # sigmoid(x)*2 - 1 == tanh(x/2)
        y = jnp.tanh(0.5 * y)
    o_ref[...] = y.astype(o_ref.dtype)


def _final_m2b_kernel(x_ref, w0_ref, w1_ref, t0_ref, t1_ref, a0_ref, a1_ref,
                      real_ref, imag_ref):
    """Outermost ConvT + sigmoid*2-1 mask + mono2binaural complex mix, fused.

    w0/w1 columns are the 4 sub-pixel parities of mask channel 0 / 1; a0/a1
    are the two input-audio channels gathered to the same (row, parity) layout.
    Two small matmuls avoid any in-kernel lane slicing of the result.
    """
    x = x_ref[...]
    m0 = jnp.tanh(0.5 * (jnp.dot(x, w0_ref[...],
                                 preferred_element_type=jnp.float32) + t0_ref[...]))
    m1 = jnp.tanh(0.5 * (jnp.dot(x, w1_ref[...],
                                 preferred_element_type=jnp.float32) + t1_ref[...]))
    a0 = a0_ref[...]
    a1 = a1_ref[...]
    real_ref[...] = a0 * m0 - a1 * m1
    imag_ref[...] = a0 * m1 + a1 * m0


# ---------------------------------------------------------------------------
# pallas_call wrappers
# ---------------------------------------------------------------------------
def _choose_tm(M):
    if M > _TM_BIG and M % _TM_BIG == 0:
        return _TM_BIG
    return M


def fused_matmul(patches, w, shift, act, out_dtype):
    """patches: (M, K) bf16; w: (K, C) bf16; shift: (1, C) f32 -> (M, C)."""
    M, K = patches.shape
    C = w.shape[1]
    tm = _choose_tm(M)
    return pl.pallas_call(
        functools.partial(_fused_matmul_kernel, act=act),
        out_shape=jax.ShapeDtypeStruct((M, C), out_dtype),
        grid=(M // tm,),
        in_specs=[
            pl.BlockSpec((tm, K), lambda i: (i, 0)),
            pl.BlockSpec((K, C), lambda i: (0, 0)),
            pl.BlockSpec((1, C), lambda i: (0, 0)),
        ],
        out_specs=pl.BlockSpec((tm, C), lambda i: (i, 0)),
        compiler_params=pltpu.CompilerParams(
            dimension_semantics=("parallel",)),
    )(patches, w, shift)


def final_m2b_matmul(patches, lp, a0, a1):
    """Fused outermost up-conv + mask + complex mix.  Returns (real, imag) (M, 4)."""
    M, K = patches.shape
    tm = _choose_tm(M)
    return pl.pallas_call(
        _final_m2b_kernel,
        out_shape=(jax.ShapeDtypeStruct((M, 4), jnp.float32),
                   jax.ShapeDtypeStruct((M, 4), jnp.float32)),
        grid=(M // tm,),
        in_specs=[
            pl.BlockSpec((tm, K), lambda i: (i, 0)),
            pl.BlockSpec((K, 4), lambda i: (0, 0)),
            pl.BlockSpec((K, 4), lambda i: (0, 0)),
            pl.BlockSpec((1, 4), lambda i: (0, 0)),
            pl.BlockSpec((1, 4), lambda i: (0, 0)),
            pl.BlockSpec((tm, 4), lambda i: (i, 0)),
            pl.BlockSpec((tm, 4), lambda i: (i, 0)),
        ],
        out_specs=(pl.BlockSpec((tm, 4), lambda i: (i, 0)),
                   pl.BlockSpec((tm, 4), lambda i: (i, 0))),
        compiler_params=pltpu.CompilerParams(
            dimension_semantics=("parallel",)),
    )(patches, lp["W0"], lp["W1"], lp["t0"], lp["t1"], a0, a1)


# ---------------------------------------------------------------------------
# im2col glue + layer helpers (NHWC), inside the jitted forward
# ---------------------------------------------------------------------------
def _im2col_down(x):
    """Conv2d(k=4,s=2,p=1) patches: (N,H,W,C) -> (N*H/2*W/2, 16*C), cols (kh,kw,c)."""
    N, H, W, C = x.shape
    Ho, Wo = H // 2, W // 2
    xp = jnp.pad(x, ((0, 0), (1, 1), (1, 1), (0, 0)))
    cols = [xp[:, a:a + 2 * Ho:2, b:b + 2 * Wo:2, :]
            for a in range(4) for b in range(4)]
    return jnp.stack(cols, axis=3).reshape(N * Ho * Wo, 16 * C), Ho, Wo


def _im2col_up(x):
    """3x3 stride-1 patches over the 1-padded input (sub-pixel ConvT), cols (ah,aw,c)."""
    N, H, W, C = x.shape
    xp = jnp.pad(x, ((0, 0), (1, 1), (1, 1), (0, 0)))
    cols = [xp[:, a:a + H, b:b + W, :] for a in range(3) for b in range(3)]
    return jnp.stack(cols, axis=3).reshape(N * H * W, 9 * C)


def conv_down_layer(x, lp, act):
    """Conv2d(k=4,s=2,p=1) [+ BN + LeakyReLU(0.2)] with prepacked weights."""
    N = x.shape[0]
    patches, Ho, Wo = _im2col_down(x)
    y = fused_matmul(patches, lp["W"], lp["shift"], act, jnp.bfloat16)
    return y.reshape(N, Ho, Wo, -1)


def conv_up_layer(x, lp, act="relu", out_dtype=jnp.bfloat16):
    """ConvTranspose2d(k=4,s=2,p=1) [+ BN + ReLU] via sub-pixel decomposition."""
    N, H, W, _ = x.shape
    patches = _im2col_up(x)
    y = fused_matmul(patches, lp["W"], lp["shift"], act, out_dtype)
    Cout = y.shape[-1] // 4
    # columns are (ph, pw, cout) -> interleave to (N, 2H, 2W, Cout)
    y = y.reshape(N, H, W, 2, 2, Cout).transpose(0, 1, 3, 2, 4, 5)
    return y.reshape(N, 2 * H, 2 * W, Cout)


# ---------------------------------------------------------------------------
# One-time weight packing (run OUTSIDE the jitted forward)
# ---------------------------------------------------------------------------
def _fold_scale_shift(p, outermost):
    """Fold conv bias + eval-mode BN into a (scale, shift) pair (f32)."""
    b = p["b"].astype(jnp.float32)
    if outermost:
        return jnp.ones_like(b), b
    scale = p["gamma"] / jnp.sqrt(p["var"] + 1e-5)
    shift = p["beta"] + (b - p["mean"]) * scale
    return scale, shift


def _build_subpixel_weight(W, channel_major=False):
    """ConvTranspose2d(k=4,s=2,p=1) weight (Cin,Cout,4,4) -> sub-pixel matmul weight.

    Rows ordered (ah, aw, cin) over the 3x3 stride-1 window of the 1-padded
    input; columns ordered (ph, pw, cout) (parity-major, default) or
    (cout, ph, pw) (channel-major, used by the fused mono2binaural kernel).
    Parity/tap mapping:  ph=0: ah=0->kh=3, ah=1->kh=1;  ph=1: ah=1->kh=2, ah=2->kh=0.
    """
    Cin, Cout = W.shape[0], W.shape[1]
    kmap = {(0, 0): 3, (0, 1): 1, (1, 1): 2, (1, 2): 0}
    Keff = jnp.zeros((2, 2, 3, 3, Cin, Cout), W.dtype)
    for ph in range(2):
        for ah in range(3):
            kh = kmap.get((ph, ah))
            if kh is None:
                continue
            for pw in range(2):
                for aw in range(3):
                    kw = kmap.get((pw, aw))
                    if kw is None:
                        continue
                    Keff = Keff.at[ph, pw, ah, aw].set(W[:, :, kh, kw])
    if channel_major:
        return Keff.transpose(2, 3, 4, 5, 0, 1).reshape(9 * Cin, Cout * 4)
    return Keff.transpose(2, 3, 4, 0, 1, 5).reshape(9 * Cin, 4 * Cout)


def pack_params(params):
    """Fold BN/bias into weights & shifts and pre-pack all matmul layouts (once)."""
    packed = {"down": [], "up": []}
    for li, p in enumerate(params["down"]):
        scale, shift = _fold_scale_shift(p, outermost=(li == 0))
        Wf = p["W"].astype(jnp.float32) * scale[:, None, None, None]   # (Cout,Cin,4,4)
        Wm = Wf.transpose(2, 3, 1, 0).reshape(-1, Wf.shape[0])         # (16*Cin, Cout)
        packed["down"].append({
            "W": Wm.astype(jnp.bfloat16),
            "shift": shift.reshape(1, -1).astype(jnp.float32),
        })
    n_up = len(params["up"])
    for li, p in enumerate(params["up"]):
        outermost = (li == n_up - 1)
        scale, shift = _fold_scale_shift(p, outermost=outermost)
        Wf = p["W"].astype(jnp.float32) * scale[None, :, None, None]   # (Cin,Cout,4,4)
        lp = {
            "W": _build_subpixel_weight(Wf).astype(jnp.bfloat16),      # (9Cin, 4Cout)
            "shift": jnp.tile(shift, 4).reshape(1, -1).astype(jnp.float32),
        }
        if outermost and Wf.shape[1] == 2:
            Wcm = _build_subpixel_weight(Wf, channel_major=True)       # (9Cin, 8)
            lp["W0"] = Wcm[:, 0:4].astype(jnp.bfloat16)
            lp["W1"] = Wcm[:, 4:8].astype(jnp.bfloat16)
            lp["t0"] = jnp.full((1, 4), shift[0], jnp.float32)
            lp["t1"] = jnp.full((1, 4), shift[1], jnp.float32)
        packed["up"].append(lp)
    return packed


# ---------------------------------------------------------------------------
# Parameter init (deterministic, synthetic, PyTorch layouts)
# ---------------------------------------------------------------------------
def _init_layer(key, w_shape, cout):
    k1, k2, k3, k4, k5, k6 = jax.random.split(key, 6)
    return dict(
        W=jax.random.normal(k1, w_shape, jnp.float32) * 0.05,
        b=jax.random.normal(k2, (cout,), jnp.float32) * 0.05,
        gamma=1.0 + 0.1 * jax.random.normal(k3, (cout,), jnp.float32),
        beta=0.1 * jax.random.normal(k4, (cout,), jnp.float32),
        mean=0.1 * jax.random.normal(k5, (cout,), jnp.float32),
        var=1.0 + 0.1 * jnp.abs(jax.random.normal(k6, (cout,), jnp.float32)),
    )


def init_params(key, ngf, input_nc, output_nc, cond_dim):
    down_specs = [(input_nc, ngf), (ngf, ngf * 2), (ngf * 2, ngf * 4),
                  (ngf * 4, ngf * 8), (ngf * 8, ngf * 8)]
    up_specs = [(ngf * 8 + cond_dim, ngf * 8), (ngf * 16, ngf * 4),
                (ngf * 8, ngf * 2), (ngf * 4, ngf), (ngf * 2, output_nc)]
    params = {"down": [], "up": []}
    for cin, cout in down_specs:
        key, sub = jax.random.split(key)
        params["down"].append(_init_layer(sub, (cout, cin, 4, 4), cout))  # Conv2d
    for cin, cout in up_specs:
        key, sub = jax.random.split(key)
        params["up"].append(_init_layer(sub, (cin, cout, 4, 4), cout))    # ConvT
    return params


# ---------------------------------------------------------------------------
# Full forward pass (jitted; `packed` comes from pack_params, run once)
# ---------------------------------------------------------------------------
def audio_cond_unet_forward(packed, input_audio, cond_feats, mono2binaural=True):
    d, u = packed["down"], packed["up"]
    N, _, Fq, Tq = input_audio.shape

    # single layout change: NCHW -> NHWC; bf16 activations from here on
    x = jnp.transpose(input_audio, (0, 2, 3, 1)).astype(jnp.bfloat16)

    c1 = conv_down_layer(x, d[0], act="none")       # outermost: conv only
    c2 = conv_down_layer(c1, d[1], act="leaky")
    c3 = conv_down_layer(c2, d[2], act="leaky")
    c4 = conv_down_layer(c3, d[3], act="leaky")
    c5 = conv_down_layer(c4, d[4], act="leaky")

    # conditional features broadcast over bottleneck spatial dims, concat FIRST
    # (matches torch.cat((cond_feats, audioVisual_feature), dim=1))
    cf = cond_feats.reshape(N, 1, 1, -1).astype(c5.dtype)
    cf = jnp.broadcast_to(cf, (N, c5.shape[1], c5.shape[2], cf.shape[-1]))
    feat = jnp.concatenate([cf, c5], axis=-1)

    u1 = conv_up_layer(feat, u[0])
    u2 = conv_up_layer(jnp.concatenate([u1, c4], axis=-1), u[1])
    u3 = conv_up_layer(jnp.concatenate([u2, c3], axis=-1), u[2])
    u4 = conv_up_layer(jnp.concatenate([u3, c2], axis=-1), u[3])
    last_in = jnp.concatenate([u4, c1], axis=-1)     # (N, Fq/2, Tq/2, 2*ngf)

    if mono2binaural and "W0" in u[4]:
        # fused outermost ConvT + sigmoid*2-1 mask + complex mix
        Hq, Wq = Fq // 2, Tq // 2
        a = input_audio.reshape(N, 2, Hq, 2, Wq, 2)          # (n, c, h, ph, w, pw)
        a = a.transpose(0, 2, 4, 1, 3, 5).reshape(N * Hq * Wq, 2, 4)
        a0 = a[:, 0, :]                                      # (M, 4) f32
        a1 = a[:, 1, :]
        patches = _im2col_up(last_in)
        real, imag = final_m2b_matmul(patches, u[4], a0, a1)  # (M, 4) each
        real = real.reshape(N, Hq, Wq, 2, 2).transpose(0, 1, 3, 2, 4).reshape(N, Fq, Tq)
        imag = imag.reshape(N, Hq, Wq, 2, 2).transpose(0, 1, 3, 2, 4).reshape(N, Fq, Tq)
        return jnp.stack([real, imag], axis=1)                # (N, 2, Fq, Tq)

    # non-mono2binaural: sigmoid(x)*2-1 == tanh(x/2) fused into the epilogue
    mask = conv_up_layer(last_in, u[4], act="tanh2", out_dtype=jnp.float32)
    return jnp.transpose(mask, (0, 3, 1, 2))                  # (N, Cout, Fq, Tq)


# ---------------------------------------------------------------------------
if __name__ == "__main__":
    # small config consistent with the module:
    #   args.unet_input_nc = 2, args.unet_output_nc = 2, mono2binaural = True,
    #   no_vision = False, no_cond_audio = False,
    #   pr.visual_feature_dim = 16, pr.audio_feature_dim = 16, ngf = 8
    N, C, F, T = 2, 2, 32, 32
    ngf = 8
    cond_dim = 16 + 16

    key = jax.random.PRNGKey(0)
    k_x, k_c, k_p = jax.random.split(key, 3)
    input_audio = jax.random.normal(k_x, (N, C, F, T), jnp.float32)
    cond_feats = jax.random.normal(k_c, (N, cond_dim), jnp.float32)
    params = init_params(k_p, ngf=ngf, input_nc=C, output_nc=C, cond_dim=cond_dim)
    packed = pack_params(params)        # one-time packing, outside the jit

    fwd = jax.jit(functools.partial(audio_cond_unet_forward, mono2binaural=True))
    out = jax.block_until_ready(fwd(packed, input_audio, cond_feats))
    assert out.shape == (N, 2, F, T), out.shape
    assert bool(jnp.all(jnp.isfinite(out)))
    print("KERNEL_OK")
</pallas_src>

<mosaic_0001>
module attributes {stable_mosaic.version = 11 : i64} {
  func.func @_fused_matmul_kernel(%arg0: i32, %arg1: memref<512x32xbf16, #tpu.memory_space<vmem>>, %arg2: memref<32x8xbf16, #tpu.memory_space<vmem>>, %arg3: memref<1x8xf32, #tpu.memory_space<vmem>>, %arg4: memref<512x8xbf16, #tpu.memory_space<vmem>>) attributes {dimension_semantics = [#tpu.dimension_semantics<parallel>], iteration_bounds = array<i64: 1>, scalar_prefetch = 0 : i64, scratch_operands = 0 : i64, tpu.core_type = #tpu.core_type<tc>, window_params = [{transform_indices = @transform_0, window_bounds = array<i64: 512, 32>}, {pipeline_mode = #tpu.pipeline_mode<synchronous>, transform_indices = @transform_1, window_bounds = array<i64: 32, 8>}, {pipeline_mode = #tpu.pipeline_mode<synchronous>, transform_indices = @transform_2, window_bounds = array<i64: 1, 8>}, {transform_indices = @transform_3, window_bounds = array<i64: 512, 8>}]} {
    %c0 = arith.constant 0 : index
    %c0_0 = arith.constant 0 : index
    %0 = vector.load %arg1[%c0, %c0_0] : memref<512x32xbf16, #tpu.memory_space<vmem>>, vector<512x32xbf16>
    %c0_1 = arith.constant 0 : index
    %c0_2 = arith.constant 0 : index
    %1 = vector.load %arg2[%c0_1, %c0_2] : memref<32x8xbf16, #tpu.memory_space<vmem>>, vector<32x8xbf16>
    %cst = arith.constant dense<0.000000e+00> : vector<512x8xf32>
    %2 = tpu.matmul %0, %1, %cst {dimension_numbers = #tpu.dot_dimension_numbers<[1], [0], [0], [1], [0, 0, 1, 1], [], []>} : vector<512x32xbf16>, vector<32x8xbf16>, vector<512x8xf32> -> vector<512x8xf32>
    %c0_3 = arith.constant 0 : index
    %c0_4 = arith.constant 0 : index
    %3 = vector.load %arg3[%c0_3, %c0_4] : memref<1x8xf32, #tpu.memory_space<vmem>>, vector<1x8xf32>
    %4 = vector.broadcast %3 : vector<1x8xf32> to vector<512x8xf32>
    %5 = arith.addf %2, %4 : vector<512x8xf32>
    %6 = arith.truncf %5 : vector<512x8xf32> to vector<512x8xbf16>
    %c0_5 = arith.constant 0 : index
    %c0_6 = arith.constant 0 : index
    %7 = vector.load %arg4[%c0_5, %c0_6] : memref<512x8xbf16, #tpu.memory_space<vmem>>, vector<512x8xbf16>
    tpu.vector_store %arg4[%c0_5, %c0_6], %6 {strides = array<i32>} : memref<512x8xbf16, #tpu.memory_space<vmem>>, vector<512x8xbf16>,
    return
  }
  func.func @transform_0(%arg0: i32) -> (i32, i32) {
    %c0_i32 = arith.constant 0 : i32
    %c0_i32_0 = arith.constant 0 : i32
    return %arg0, %c0_i32 : i32, i32
  }
  func.func @transform_1(%arg0: i32) -> (i32, i32) {
    %c0_i32 = arith.constant 0 : i32
    %c0_i32_0 = arith.constant 0 : i32
    %c0_i32_1 = arith.constant 0 : i32
    return %c0_i32, %c0_i32_0 : i32, i32
  }
  func.func @transform_2(%arg0: i32) -> (i32, i32) {
    %c0_i32 = arith.constant 0 : i32
    %c0_i32_0 = arith.constant 0 : i32
    %c0_i32_1 = arith.constant 0 : i32
    return %c0_i32, %c0_i32_0 : i32, i32
  }
  func.func @transform_3(%arg0: i32) -> (i32, i32) {
    %c0_i32 = arith.constant 0 : i32
    %c0_i32_0 = arith.constant 0 : i32
    return %arg0, %c0_i32 : i32, i32
  }
}

module attributes {stable_mosaic.version = 11 : i64} {
  func.func @_fused_matmul_kernel(%arg0: i32, %arg1: memref<128x128xbf16, #tpu.memory_space<vmem>>, %arg2: memref<128x16xbf16, #tpu.memory_space<vmem>>, %arg3: memref<1x16xf32, #tpu.memory_space<vmem>>, %arg4: memref<128x16xbf16, #tpu.memory_space<vmem>>) attributes {dimension_semantics = [#tpu.dimension_semantics<parallel>], iteration_bounds = array<i64: 1>, scalar_prefetch = 0 : i64, scratch_operands = 0 : i64, tpu.core_type = #tpu.core_type<tc>, window_params = [{transform_indices = @transform_0, window_bounds = array<i64: 128, 128>}, {pipeline_mode = #tpu.pipeline_mode<synchronous>, transform_indices = @transform_1, window_bounds = array<i64: 128, 16>}, {pipeline_mode = #tpu.pipeline_mode<synchronous>, transform_indices = @transform_2, window_bounds = array<i64: 1, 16>}, {transform_indices = @transform_3, window_bounds = array<i64: 128, 16>}]} {
    %c0 = arith.constant 0 : index
    %c0_0 = arith.constant 0 : index
    %0 = vector.load %arg1[%c0, %c0_0] : memref<128x128xbf16, #tpu.memory_space<vmem>>, vector<128x128xbf16>
    %c0_1 = arith.constant 0 : index
    %c0_2 = arith.constant 0 : index
    %1 = vector.load %arg2[%c0_1, %c0_2] : memref<128x16xbf16, #tpu.memory_space<vmem>>, vector<128x16xbf16>
    %cst = arith.constant dense<0.000000e+00> : vector<128x16xf32>
    %2 = tpu.matmul %0, %1, %cst {dimension_numbers = #tpu.dot_dimension_numbers<[1], [0], [0], [1], [0, 0, 1, 1], [], []>} : vector<128x128xbf16>, vector<128x16xbf16>, vector<128x16xf32> -> vector<128x16xf32>
    %c0_3 = arith.constant 0 : index
    %c0_4 = arith.constant 0 : index
    %3 = vector.load %arg3[%c0_3, %c0_4] : memref<1x16xf32, #tpu.memory_space<vmem>>, vector<1x16xf32>
    %4 = vector.broadcast %3 : vector<1x16xf32> to vector<128x16xf32>
    %5 = arith.addf %2, %4 : vector<128x16xf32>
    %cst_5 = arith.constant 2.000000e-01 : f32
    %6 = vector.broadcast %cst_5 : f32 to vector<128x16xf32>
    %7 = arith.mulf %6, %5 : vector<128x16xf32>
    %8 = arith.maximumf %5, %7 : vector<128x16xf32>
    %9 = arith.truncf %8 : vector<128x16xf32> to vector<128x16xbf16>
    %c0_6 = arith.constant 0 : index
    %c0_7 = arith.constant 0 : index
    %10 = vector.load %arg4[%c0_6, %c0_7] : memref<128x16xbf16, #tpu.memory_space<vmem>>, vector<128x16xbf16>
    tpu.vector_store %arg4[%c0_6, %c0_7], %9 {strides = array<i32>} : memref<128x16xbf16, #tpu.memory_space<vmem>>, vector<128x16xbf16>,
    return
  }
  func.func @transform_0(%arg0: i32) -> (i32, i32) {
    %c0_i32 = arith.constant 0 : i32
    %c0_i32_0 = arith.constant 0 : i32
    return %arg0, %c0_i32 : i32, i32
  }
  func.func @transform_1(%arg0: i32) -> (i32, i32) {
    %c0_i32 = arith.constant 0 : i32
    %c0_i32_0 = arith.constant 0 : i32
    %c0_i32_1 = arith.constant 0 : i32
    return %c0_i32, %c0_i32_0 : i32, i32
  }
  func.func @transform_2(%arg0: i32) -> (i32, i32) {
    %c0_i32 = arith.constant 0 : i32
    %c0_i32_0 = arith.constant 0 : i32
    %c0_i32_1 = arith.constant 0 : i32
    return %c0_i32, %c0_i32_0 : i32, i32
  }
  func.func @transform_3(%arg0: i32) -> (i32, i32) {
    %c0_i32 = arith.constant 0 : i32
    %c0_i32_0 = arith.constant 0 : i32
    return %arg0, %c0_i32 : i32, i32
  }
}

module attributes {stable_mosaic.version = 11 : i64} {
  func.func @_fused_matmul_kernel(%arg0: i32, %arg1: memref<32x256xbf16, #tpu.memory_space<vmem>>, %arg2: memref<256x32xbf16, #tpu.memory_space<vmem>>, %arg3: memref<1x32xf32, #tpu.memory_space<vmem>>, %arg4: memref<32x32xbf16, #tpu.memory_space<vmem>>) attributes {dimension_semantics = [#tpu.dimension_semantics<parallel>], iteration_bounds = array<i64: 1>, scalar_prefetch = 0 : i64, scratch_operands = 0 : i64, tpu.core_type = #tpu.core_type<tc>, window_params = [{transform_indices = @transform_0, window_bounds = array<i64: 32, 256>}, {pipeline_mode = #tpu.pipeline_mode<synchronous>, transform_indices = @transform_1, window_bounds = array<i64: 256, 32>}, {pipeline_mode = #tpu.pipeline_mode<synchronous>, transform_indices = @transform_2, window_bounds = array<i64: 1, 32>}, {transform_indices = @transform_3, window_bounds = array<i64: 32, 32>}]} {
    %c0 = arith.constant 0 : index
    %c0_0 = arith.constant 0 : index
    %0 = vector.load %arg1[%c0, %c0_0] : memref<32x256xbf16, #tpu.memory_space<vmem>>, vector<32x256xbf16>
    %c0_1 = arith.constant 0 : index
    %c0_2 = arith.constant 0 : index
    %1 = vector.load %arg2[%c0_1, %c0_2] : memref<256x32xbf16, #tpu.memory_space<vmem>>, vector<256x32xbf16>
    %cst = arith.constant dense<0.000000e+00> : vector<32x32xf32>
    %2 = tpu.matmul %0, %1, %cst {dimension_numbers = #tpu.dot_dimension_numbers<[1], [0], [0], [1], [0, 0, 1, 1], [], []>} : vector<32x256xbf16>, vector<256x32xbf16>, vector<32x32xf32> -> vector<32x32xf32>
    %c0_3 = arith.constant 0 : index
    %c0_4 = arith.constant 0 : index
    %3 = vector.load %arg3[%c0_3, %c0_4] : memref<1x32xf32, #tpu.memory_space<vmem>>, vector<1x32xf32>
    %4 = vector.broadcast %3 : vector<1x32xf32> to vector<32x32xf32>
    %5 = arith.addf %2, %4 : vector<32x32xf32>
    %cst_5 = arith.constant 2.000000e-01 : f32
    %6 = vector.broadcast %cst_5 : f32 to vector<32x32xf32>
    %7 = arith.mulf %6, %5 : vector<32x32xf32>
    %8 = arith.maximumf %5, %7 : vector<32x32xf32>
    %9 = arith.truncf %8 : vector<32x32xf32> to vector<32x32xbf16>
    %c0_6 = arith.constant 0 : index
    %c0_7 = arith.constant 0 : index
    %10 = vector.load %arg4[%c0_6, %c0_7] : memref<32x32xbf16, #tpu.memory_space<vmem>>, vector<32x32xbf16>
    tpu.vector_store %arg4[%c0_6, %c0_7], %9 {strides = array<i32>} : memref<32x32xbf16, #tpu.memory_space<vmem>>, vector<32x32xbf16>,
    return
  }
  func.func @transform_0(%arg0: i32) -> (i32, i32) {
    %c0_i32 = arith.constant 0 : i32
    %c0_i32_0 = arith.constant 0 : i32
    return %arg0, %c0_i32 : i32, i32
  }
  func.func @transform_1(%arg0: i32) -> (i32, i32) {
    %c0_i32 = arith.constant 0 : i32
    %c0_i32_0 = arith.constant 0 : i32
    %c0_i32_1 = arith.constant 0 : i32
    return %c0_i32, %c0_i32_0 : i32, i32
  }
  func.func @transform_2(%arg0: i32) -> (i32, i32) {
    %c0_i32 = arith.constant 0 : i32
    %c0_i32_0 = arith.constant 0 : i32
    %c0_i32_1 = arith.constant 0 : i32
    return %c0_i32, %c0_i32_0 : i32, i32
  }
  func.func @transform_3(%arg0: i32) -> (i32, i32) {
    %c0_i32 = arith.constant 0 : i32
    %c0_i32_0 = arith.constant 0 : i32
    return %arg0, %c0_i32 : i32, i32
  }
}

module attributes {stable_mosaic.version = 11 : i64} {
  func.func @_fused_matmul_kernel(%arg0: i32, %arg1: memref<8x512xbf16, #tpu.memory_space<vmem>>, %arg2: memref<512x64xbf16, #tpu.memory_space<vmem>>, %arg3: memref<1x64xf32, #tpu.memory_space<vmem>>, %arg4: memref<8x64xbf16, #tpu.memory_space<vmem>>) attributes {dimension_semantics = [#tpu.dimension_semantics<parallel>], iteration_bounds = array<i64: 1>, scalar_prefetch = 0 : i64, scratch_operands = 0 : i64, tpu.core_type = #tpu.core_type<tc>, window_params = [{transform_indices = @transform_0, window_bounds = array<i64: 8, 512>}, {pipeline_mode = #tpu.pipeline_mode<synchronous>, transform_indices = @transform_1, window_bounds = array<i64: 512, 64>}, {pipeline_mode = #tpu.pipeline_mode<synchronous>, transform_indices = @transform_2, window_bounds = array<i64: 1, 64>}, {transform_indices = @transform_3, window_bounds = array<i64: 8, 64>}]} {
    %c0 = arith.constant 0 : index
    %c0_0 = arith.constant 0 : index
    %0 = vector.load %arg1[%c0, %c0_0] : memref<8x512xbf16, #tpu.memory_space<vmem>>, vector<8x512xbf16>
    %c0_1 = arith.constant 0 : index
    %c0_2 = arith.constant 0 : index
    %1 = vector.load %arg2[%c0_1, %c0_2] : memref<512x64xbf16, #tpu.memory_space<vmem>>, vector<512x64xbf16>
    %cst = arith.constant dense<0.000000e+00> : vector<8x64xf32>
    %2 = tpu.matmul %0, %1, %cst {dimension_numbers = #tpu.dot_dimension_numbers<[1], [0], [0], [1], [0, 0, 1, 1], [], []>} : vector<8x512xbf16>, vector<512x64xbf16>, vector<8x64xf32> -> vector<8x64xf32>
    %c0_3 = arith.constant 0 : index
    %c0_4 = arith.constant 0 : index
    %3 = vector.load %arg3[%c0_3, %c0_4] : memref<1x64xf32, #tpu.memory_space<vmem>>, vector<1x64xf32>
    %4 = vector.broadcast %3 : vector<1x64xf32> to vector<8x64xf32>
    %5 = arith.addf %2, %4 : vector<8x64xf32>
    %cst_5 = arith.constant 2.000000e-01 : f32
    %6 = vector.broadcast %cst_5 : f32 to vector<8x64xf32>
    %7 = arith.mulf %6, %5 : vector<8x64xf32>
    %8 = arith.maximumf %5, %7 : vector<8x64xf32>
    %9 = arith.truncf %8 : vector<8x64xf32> to vector<8x64xbf16>
    %c0_6 = arith.constant 0 : index
    %c0_7 = arith.constant 0 : index
    %10 = vector.load %arg4[%c0_6, %c0_7] : memref<8x64xbf16, #tpu.memory_space<vmem>>, vector<8x64xbf16>
    tpu.vector_store %arg4[%c0_6, %c0_7], %9 {strides = array<i32>} : memref<8x64xbf16, #tpu.memory_space<vmem>>, vector<8x64xbf16>,
    return
  }
  func.func @transform_0(%arg0: i32) -> (i32, i32) {
    %c0_i32 = arith.constant 0 : i32
    %c0_i32_0 = arith.constant 0 : i32
    return %arg0, %c0_i32 : i32, i32
  }
  func.func @transform_1(%arg0: i32) -> (i32, i32) {
    %c0_i32 = arith.constant 0 : i32
    %c0_i32_0 = arith.constant 0 : i32
    %c0_i32_1 = arith.constant 0 : i32
    return %c0_i32, %c0_i32_0 : i32, i32
  }
  func.func @transform_2(%arg0: i32) -> (i32, i32) {
    %c0_i32 = arith.constant 0 : i32
    %c0_i32_0 = arith.constant 0 : i32
    %c0_i32_1 = arith.constant 0 : i32
    return %c0_i32, %c0_i32_0 : i32, i32
  }
  func.func @transform_3(%arg0: i32) -> (i32, i32) {
    %c0_i32 = arith.constant 0 : i32
    %c0_i32_0 = arith.constant 0 : i32
    return %arg0, %c0_i32 : i32, i32
  }
}

module attributes {stable_mosaic.version = 11 : i64} {
  func.func @_fused_matmul_kernel(%arg0: i32, %arg1: memref<2x1024xbf16, #tpu.memory_space<vmem>>, %arg2: memref<1024x64xbf16, #tpu.memory_space<vmem>>, %arg3: memref<1x64xf32, #tpu.memory_space<vmem>>, %arg4: memref<2x64xbf16, #tpu.memory_space<vmem>>) attributes {dimension_semantics = [#tpu.dimension_semantics<parallel>], iteration_bounds = array<i64: 1>, scalar_prefetch = 0 : i64, scratch_operands = 0 : i64, tpu.core_type = #tpu.core_type<tc>, window_params = [{transform_indices = @transform_0, window_bounds = array<i64: 2, 1024>}, {pipeline_mode = #tpu.pipeline_mode<synchronous>, transform_indices = @transform_1, window_bounds = array<i64: 1024, 64>}, {pipeline_mode = #tpu.pipeline_mode<synchronous>, transform_indices = @transform_2, window_bounds = array<i64: 1, 64>}, {transform_indices = @transform_3, window_bounds = array<i64: 2, 64>}]} {
    %c0 = arith.constant 0 : index
    %c0_0 = arith.constant 0 : index
    %0 = vector.load %arg1[%c0, %c0_0] : memref<2x1024xbf16, #tpu.memory_space<vmem>>, vector<2x1024xbf16>
    %c0_1 = arith.constant 0 : index
    %c0_2 = arith.constant 0 : index
    %1 = vector.load %arg2[%c0_1, %c0_2] : memref<1024x64xbf16, #tpu.memory_space<vmem>>, vector<1024x64xbf16>
    %cst = arith.constant dense<0.000000e+00> : vector<2x64xf32>
    %2 = tpu.matmul %0, %1, %cst {dimension_numbers = #tpu.dot_dimension_numbers<[1], [0], [0], [1], [0, 0, 1, 1], [], []>} : vector<2x1024xbf16>, vector<1024x64xbf16>, vector<2x64xf32> -> vector<2x64xf32>
    %c0_3 = arith.constant 0 : index
    %c0_4 = arith.constant 0 : index
    %3 = vector.load %arg3[%c0_3, %c0_4] : memref<1x64xf32, #tpu.memory_space<vmem>>, vector<1x64xf32>
    %4 = vector.broadcast %3 : vector<1x64xf32> to vector<2x64xf32>
    %5 = arith.addf %2, %4 : vector<2x64xf32>
    %cst_5 = arith.constant 2.000000e-01 : f32
    %6 = vector.broadcast %cst_5 : f32 to vector<2x64xf32>
    %7 = arith.mulf %6, %5 : vector<2x64xf32>
    %8 = arith.maximumf %5, %7 : vector<2x64xf32>
    %9 = arith.truncf %8 : vector<2x64xf32> to vector<2x64xbf16>
    %c0_6 = arith.constant 0 : index
    %c0_7 = arith.constant 0 : index
    %10 = vector.load %arg4[%c0_6, %c0_7] : memref<2x64xbf16, #tpu.memory_space<vmem>>, vector<2x64xbf16>
    tpu.vector_store %arg4[%c0_6, %c0_7], %9 {strides = array<i32>} : memref<2x64xbf16, #tpu.memory_space<vmem>>, vector<2x64xbf16>,
    return
  }
  func.func @transform_0(%arg0: i32) -> (i32, i32) {
    %c0_i32 = arith.constant 0 : i32
    %c0_i32_0 = arith.constant 0 : i32
    return %arg0, %c0_i32 : i32, i32
  }
  func.func @transform_1(%arg0: i32) -> (i32, i32) {
    %c0_i32 = arith.constant 0 : i32
    %c0_i32_0 = arith.constant 0 : i32
    %c0_i32_1 = arith.constant 0 : i32
    return %c0_i32, %c0_i32_0 : i32, i32
  }
  func.func @transform_2(%arg0: i32) -> (i32, i32) {
    %c0_i32 = arith.constant 0 : i32
    %c0_i32_0 = arith.constant 0 : i32
    %c0_i32_1 = arith.constant 0 : i32
    return %c0_i32, %c0_i32_0 : i32, i32
  }
  func.func @transform_3(%arg0: i32) -> (i32, i32) {
    %c0_i32 = arith.constant 0 : i32
    %c0_i32_0 = arith.constant 0 : i32
    return %arg0, %c0_i32 : i32, i32
  }
}

module attributes {stable_mosaic.version = 11 : i64} {
  func.func @_fused_matmul_kernel(%arg0: i32, %arg1: memref<8x1152xbf16, #tpu.memory_space<vmem>>, %arg2: memref<1152x128xbf16, #tpu.memory_space<vmem>>, %arg3: memref<1x128xf32, #tpu.memory_space<vmem>>, %arg4: memref<8x128xbf16, #tpu.memory_space<vmem>>) attributes {dimension_semantics = [#tpu.dimension_semantics<parallel>], iteration_bounds = array<i64: 1>, scalar_prefetch = 0 : i64, scratch_operands = 0 : i64, tpu.core_type = #tpu.core_type<tc>, window_params = [{transform_indices = @transform_0, window_bounds = array<i64: 8, 1152>}, {pipeline_mode = #tpu.pipeline_mode<synchronous>, transform_indices = @transform_1, window_bounds = array<i64: 1152, 128>}, {pipeline_mode = #tpu.pipeline_mode<synchronous>, transform_indices = @transform_2, window_bounds = array<i64: 1, 128>}, {transform_indices = @transform_3, window_bounds = array<i64: 8, 128>}]} {
    %c0 = arith.constant 0 : index
    %c0_0 = arith.constant 0 : index
    %0 = vector.load %arg1[%c0, %c0_0] : memref<8x1152xbf16, #tpu.memory_space<vmem>>, vector<8x1152xbf16>
    %c0_1 = arith.constant 0 : index
    %c0_2 = arith.constant 0 : index
    %1 = vector.load %arg2[%c0_1, %c0_2] : memref<1152x128xbf16, #tpu.memory_space<vmem>>, vector<1152x128xbf16>
    %cst = arith.constant dense<0.000000e+00> : vector<8x128xf32>
    %2 = tpu.matmul %0, %1, %cst {dimension_numbers = #tpu.dot_dimension_numbers<[1], [0], [0], [1], [0, 0, 1, 1], [], []>} : vector<8x1152xbf16>, vector<1152x128xbf16>, vector<8x128xf32> -> vector<8x128xf32>
    %c0_3 = arith.constant 0 : index
    %c0_4 = arith.constant 0 : index
    %3 = vector.load %arg3[%c0_3, %c0_4] : memref<1x128xf32, #tpu.memory_space<vmem>>, vector<1x128xf32>
    %4 = vector.broadcast %3 : vector<1x128xf32> to vector<8x128xf32>
    %5 = arith.addf %2, %4 : vector<8x128xf32>
    %cst_5 = arith.constant 0.000000e+00 : f32
    %6 = vector.broadcast %cst_5 : f32 to vector<8x128xf32>
    %7 = arith.maximumf %5, %6 : vector<8x128xf32>
    %8 = arith.truncf %7 : vector<8x128xf32> to vector<8x128xbf16>
    %c0_6 = arith.constant 0 : index
    %c0_7 = arith.constant 0 : index
    %9 = vector.load %arg4[%c0_6, %c0_7] : memref<8x128xbf16, #tpu.memory_space<vmem>>, vector<8x128xbf16>
    tpu.vector_store %arg4[%c0_6, %c0_7], %8 {strides = array<i32>} : memref<8x128xbf16, #tpu.memory_space<vmem>>, vector<8x128xbf16>,
    return
  }
  func.func @transform_0(%arg0: i32) -> (i32, i32) {
    %c0_i32 = arith.constant 0 : i32
    %c0_i32_0 = arith.constant 0 : i32
    return %arg0, %c0_i32 : i32, i32
  }
  func.func @transform_1(%arg0: i32) -> (i32, i32) {
    %c0_i32 = arith.constant 0 : i32
    %c0_i32_0 = arith.constant 0 : i32
    %c0_i32_1 = arith.constant 0 : i32
    return %c0_i32, %c0_i32_0 : i32, i32
  }
  func.func @transform_2(%arg0: i32) -> (i32, i32) {
    %c0_i32 = arith.constant 0 : i32
    %c0_i32_0 = arith.constant 0 : i32
    %c0_i32_1 = arith.constant 0 : i32
    return %c0_i32, %c0_i32_0 : i32, i32
  }
  func.func @transform_3(%arg0: i32) -> (i32, i32) {
    %c0_i32 = arith.constant 0 : i32
    %c0_i32_0 = arith.constant 0 : i32
    return %arg0, %c0_i32 : i32, i32
  }
}

module attributes {stable_mosaic.version = 11 : i64} {
  func.func @_fused_matmul_kernel(%arg0: i32, %arg1: memref<2x864xbf16, #tpu.memory_space<vmem>>, %arg2: memref<864x256xbf16, #tpu.memory_space<vmem>>, %arg3: memref<1x256xf32, #tpu.memory_space<vmem>>, %arg4: memref<2x256xbf16, #tpu.memory_space<vmem>>) attributes {dimension_semantics = [#tpu.dimension_semantics<parallel>], iteration_bounds = array<i64: 1>, scalar_prefetch = 0 : i64, scratch_operands = 0 : i64, tpu.core_type = #tpu.core_type<tc>, window_params = [{transform_indices = @transform_0, window_bounds = array<i64: 2, 864>}, {pipeline_mode = #tpu.pipeline_mode<synchronous>, transform_indices = @transform_1, window_bounds = array<i64: 864, 256>}, {pipeline_mode = #tpu.pipeline_mode<synchronous>, transform_indices = @transform_2, window_bounds = array<i64: 1, 256>}, {transform_indices = @transform_3, window_bounds = array<i64: 2, 256>}]} {
    %c0 = arith.constant 0 : index
    %c0_0 = arith.constant 0 : index
    %0 = vector.load %arg1[%c0, %c0_0] : memref<2x864xbf16, #tpu.memory_space<vmem>>, vector<2x864xbf16>
    %c0_1 = arith.constant 0 : index
    %c0_2 = arith.constant 0 : index
    %1 = vector.load %arg2[%c0_1, %c0_2] : memref<864x256xbf16, #tpu.memory_space<vmem>>, vector<864x256xbf16>
    %cst = arith.constant dense<0.000000e+00> : vector<2x256xf32>
    %2 = tpu.matmul %0, %1, %cst {dimension_numbers = #tpu.dot_dimension_numbers<[1], [0], [0], [1], [0, 0, 1, 1], [], []>} : vector<2x864xbf16>, vector<864x256xbf16>, vector<2x256xf32> -> vector<2x256xf32>
    %c0_3 = arith.constant 0 : index
    %c0_4 = arith.constant 0 : index
    %3 = vector.load %arg3[%c0_3, %c0_4] : memref<1x256xf32, #tpu.memory_space<vmem>>, vector<1x256xf32>
    %4 = vector.broadcast %3 : vector<1x256xf32> to vector<2x256xf32>
    %5 = arith.addf %2, %4 : vector<2x256xf32>
    %cst_5 = arith.constant 0.000000e+00 : f32
    %6 = vector.broadcast %cst_5 : f32 to vector<2x256xf32>
    %7 = arith.maximumf %5, %6 : vector<2x256xf32>
    %8 = arith.truncf %7 : vector<2x256xf32> to vector<2x256xbf16>
    %c0_6 = arith.constant 0 : index
    %c0_7 = arith.constant 0 : index
    %9 = vector.load %arg4[%c0_6, %c0_7] : memref<2x256xbf16, #tpu.memory_space<vmem>>, vector<2x256xbf16>
    tpu.vector_store %arg4[%c0_6, %c0_7], %8 {strides = array<i32>} : memref<2x256xbf16, #tpu.memory_space<vmem>>, vector<2x256xbf16>,
    return
  }
  func.func @transform_0(%arg0: i32) -> (i32, i32) {
    %c0_i32 = arith.constant 0 : i32
    %c0_i32_0 = arith.constant 0 : i32
    return %arg0, %c0_i32 : i32, i32
  }
  func.func @transform_1(%arg0: i32) -> (i32, i32) {
    %c0_i32 = arith.constant 0 : i32
    %c0_i32_0 = arith.constant 0 : i32
    %c0_i32_1 = arith.constant 0 : i32
    return %c0_i32, %c0_i32_0 : i32, i32
  }
  func.func @transform_2(%arg0: i32) -> (i32, i32) {
    %c0_i32 = arith.constant 0 : i32
    %c0_i32_0 = arith.constant 0 : i32
    %c0_i32_1 = arith.constant 0 : i32
    return %c0_i32, %c0_i32_0 : i32, i32
  }
  func.func @transform_3(%arg0: i32) -> (i32, i32) {
    %c0_i32 = arith.constant 0 : i32
    %c0_i32_0 = arith.constant 0 : i32
    return %arg0, %c0_i32 : i32, i32
  }
}

module attributes {stable_mosaic.version = 11 : i64} {
  func.func @_fused_matmul_kernel(%arg0: i32, %arg1: memref<32x576xbf16, #tpu.memory_space<vmem>>, %arg2: memref<576x64xbf16, #tpu.memory_space<vmem>>, %arg3: memref<1x64xf32, #tpu.memory_space<vmem>>, %arg4: memref<32x64xbf16, #tpu.memory_space<vmem>>) attributes {dimension_semantics = [#tpu.dimension_semantics<parallel>], iteration_bounds = array<i64: 1>, scalar_prefetch = 0 : i64, scratch_operands = 0 : i64, tpu.core_type = #tpu.core_type<tc>, window_params = [{transform_indices = @transform_0, window_bounds = array<i64: 32, 576>}, {pipeline_mode = #tpu.pipeline_mode<synchronous>, transform_indices = @transform_1, window_bounds = array<i64: 576, 64>}, {pipeline_mode = #tpu.pipeline_mode<synchronous>, transform_indices = @transform_2, window_bounds = array<i64: 1, 64>}, {transform_indices = @transform_3, window_bounds = array<i64: 32, 64>}]} {
    %c0 = arith.constant 0 : index
    %c0_0 = arith.constant 0 : index
    %0 = vector.load %arg1[%c0, %c0_0] : memref<32x576xbf16, #tpu.memory_space<vmem>>, vector<32x576xbf16>
    %c0_1 = arith.constant 0 : index
    %c0_2 = arith.constant 0 : index
    %1 = vector.load %arg2[%c0_1, %c0_2] : memref<576x64xbf16, #tpu.memory_space<vmem>>, vector<576x64xbf16>
    %cst = arith.constant dense<0.000000e+00> : vector<32x64xf32>
    %2 = tpu.matmul %0, %1, %cst {dimension_numbers = #tpu.dot_dimension_numbers<[1], [0], [0], [1], [0, 0, 1, 1], [], []>} : vector<32x576xbf16>, vector<576x64xbf16>, vector<32x64xf32> -> vector<32x64xf32>
    %c0_3 = arith.constant 0 : index
    %c0_4 = arith.constant 0 : index
    %3 = vector.load %arg3[%c0_3, %c0_4] : memref<1x64xf32, #tpu.memory_space<vmem>>, vector<1x64xf32>
    %4 = vector.broadcast %3 : vector<1x64xf32> to vector<32x64xf32>
    %5 = arith.addf %2, %4 : vector<32x64xf32>
    %cst_5 = arith.constant 0.000000e+00 : f32
    %6 = vector.broadcast %cst_5 : f32 to vector<32x64xf32>
    %7 = arith.maximumf %5, %6 : vector<32x64xf32>
    %8 = arith.truncf %7 : vector<32x64xf32> to vector<32x64xbf16>
    %c0_6 = arith.constant 0 : index
    %c0_7 = arith.constant 0 : index
    %9 = vector.load %arg4[%c0_6, %c0_7] : memref<32x64xbf16, #tpu.memory_space<vmem>>, vector<32x64xbf16>
    tpu.vector_store %arg4[%c0_6, %c0_7], %8 {strides = array<i32>} : memref<32x64xbf16, #tpu.memory_space<vmem>>, vector<32x64xbf16>,
    return
  }
  func.func @transform_0(%arg0: i32) -> (i32, i32) {
    %c0_i32 = arith.constant 0 : i32
    %c0_i32_0 = arith.constant 0 : i32
    return %arg0, %c0_i32 : i32, i32
  }
  func.func @transform_1(%arg0: i32) -> (i32, i32) {
    %c0_i32 = arith.constant 0 : i32
    %c0_i32_0 = arith.constant 0 : i32
    %c0_i32_1 = arith.constant 0 : i32
    return %c0_i32, %c0_i32_0 : i32, i32
  }
  func.func @transform_2(%arg0: i32) -> (i32, i32) {
    %c0_i32 = arith.constant 0 : i32
    %c0_i32_0 = arith.constant 0 : i32
    %c0_i32_1 = arith.constant 0 : i32
    return %c0_i32, %c0_i32_0 : i32, i32
  }
  func.func @transform_3(%arg0: i32) -> (i32, i32) {
    %c0_i32 = arith.constant 0 : i32
    %c0_i32_0 = arith.constant 0 : i32
    return %arg0, %c0_i32 : i32, i32
  }
}

module attributes {stable_mosaic.version = 11 : i64} {
  func.func @_fused_matmul_kernel(%arg0: i32, %arg1: memref<128x288xbf16, #tpu.memory_space<vmem>>, %arg2: memref<288x32xbf16, #tpu.memory_space<vmem>>, %arg3: memref<1x32xf32, #tpu.memory_space<vmem>>, %arg4: memref<128x32xbf16, #tpu.memory_space<vmem>>) attributes {dimension_semantics = [#tpu.dimension_semantics<parallel>], iteration_bounds = array<i64: 1>, scalar_prefetch = 0 : i64, scratch_operands = 0 : i64, tpu.core_type = #tpu.core_type<tc>, window_params = [{transform_indices = @transform_0, window_bounds = array<i64: 128, 288>}, {pipeline_mode = #tpu.pipeline_mode<synchronous>, transform_indices = @transform_1, window_bounds = array<i64: 288, 32>}, {pipeline_mode = #tpu.pipeline_mode<synchronous>, transform_indices = @transform_2, window_bounds = array<i64: 1, 32>}, {transform_indices = @transform_3, window_bounds = array<i64: 128, 32>}]} {
    %c0 = arith.constant 0 : index
    %c0_0 = arith.constant 0 : index
    %0 = vector.load %arg1[%c0, %c0_0] : memref<128x288xbf16, #tpu.memory_space<vmem>>, vector<128x288xbf16>
    %c0_1 = arith.constant 0 : index
    %c0_2 = arith.constant 0 : index
    %1 = vector.load %arg2[%c0_1, %c0_2] : memref<288x32xbf16, #tpu.memory_space<vmem>>, vector<288x32xbf16>
    %cst = arith.constant dense<0.000000e+00> : vector<128x32xf32>
    %2 = tpu.matmul %0, %1, %cst {dimension_numbers = #tpu.dot_dimension_numbers<[1], [0], [0], [1], [0, 0, 1, 1], [], []>} : vector<128x288xbf16>, vector<288x32xbf16>, vector<128x32xf32> -> vector<128x32xf32>
    %c0_3 = arith.constant 0 : index
    %c0_4 = arith.constant 0 : index
    %3 = vector.load %arg3[%c0_3, %c0_4] : memref<1x32xf32, #tpu.memory_space<vmem>>, vector<1x32xf32>
    %4 = vector.broadcast %3 : vector<1x32xf32> to vector<128x32xf32>
    %5 = arith.addf %2, %4 : vector<128x32xf32>
    %cst_5 = arith.constant 0.000000e+00 : f32
    %6 = vector.broadcast %cst_5 : f32 to vector<128x32xf32>
    %7 = arith.maximumf %5, %6 : vector<128x32xf32>
    %8 = arith.truncf %7 : vector<128x32xf32> to vector<128x32xbf16>
    %c0_6 = arith.constant 0 : index
    %c0_7 = arith.constant 0 : index
    %9 = vector.load %arg4[%c0_6, %c0_7] : memref<128x32xbf16, #tpu.memory_space<vmem>>, vector<128x32xbf16>
    tpu.vector_store %arg4[%c0_6, %c0_7], %8 {strides = array<i32>} : memref<128x32xbf16, #tpu.memory_space<vmem>>, vector<128x32xbf16>,
    return
  }
  func.func @transform_0(%arg0: i32) -> (i32, i32) {
    %c0_i32 = arith.constant 0 : i32
    %c0_i32_0 = arith.constant 0 : i32
    return %arg0, %c0_i32 : i32, i32
  }
  func.func @transform_1(%arg0: i32) -> (i32, i32) {
    %c0_i32 = arith.constant 0 : i32
    %c0_i32_0 = arith.constant 0 : i32
    %c0_i32_1 = arith.constant 0 : i32
    return %c0_i32, %c0_i32_0 : i32, i32
  }
  func.func @transform_2(%arg0: i32) -> (i32, i32) {
    %c0_i32 = arith.constant 0 : i32
    %c0_i32_0 = arith.constant 0 : i32
    %c0_i32_1 = arith.constant 0 : i32
    return %c0_i32, %c0_i32_0 : i32, i32
  }
  func.func @transform_3(%arg0: i32) -> (i32, i32) {
    %c0_i32 = arith.constant 0 : i32
    %c0_i32_0 = arith.constant 0 : i32
    return %arg0, %c0_i32 : i32, i32
  }
}

module attributes {stable_mosaic.version = 11 : i64} {
  func.func @_final_m2b_kernel(%arg0: i32, %arg1: memref<512x144xbf16, #tpu.memory_space<vmem>>, %arg2: memref<144x4xbf16, #tpu.memory_space<vmem>>, %arg3: memref<144x4xbf16, #tpu.memory_space<vmem>>, %arg4: memref<1x4xf32, #tpu.memory_space<vmem>>, %arg5: memref<1x4xf32, #tpu.memory_space<vmem>>, %arg6: memref<512x4xf32, #tpu.memory_space<vmem>>, %arg7: memref<512x4xf32, #tpu.memory_space<vmem>>, %arg8: memref<512x4xf32, #tpu.memory_space<vmem>>, %arg9: memref<512x4xf32, #tpu.memory_space<vmem>>) attributes {dimension_semantics = [#tpu.dimension_semantics<parallel>], iteration_bounds = array<i64: 1>, scalar_prefetch = 0 : i64, scratch_operands = 0 : i64, tpu.core_type = #tpu.core_type<tc>, window_params = [{transform_indices = @transform_0, window_bounds = array<i64: 512, 144>}, {pipeline_mode = #tpu.pipeline_mode<synchronous>, transform_indices = @transform_1, window_bounds = array<i64: 144, 4>}, {pipeline_mode = #tpu.pipeline_mode<synchronous>, transform_indices = @transform_2, window_bounds = array<i64: 144, 4>}, {pipeline_mode = #tpu.pipeline_mode<synchronous>, transform_indices = @transform_3, window_bounds = array<i64: 1, 4>}, {pipeline_mode = #tpu.pipeline_mode<synchronous>, transform_indices = @transform_4, window_bounds = array<i64: 1, 4>}, {transform_indices = @transform_5, window_bounds = array<i64: 512, 4>}, {transform_indices = @transform_6, window_bounds = array<i64: 512, 4>}, {transform_indices = @transform_7, window_bounds = array<i64: 512, 4>}, {transform_indices = @transform_8, window_bounds = array<i64: 512, 4>}]} {
    %c0 = arith.constant 0 : index
    %c0_0 = arith.constant 0 : index
    %0 = vector.load %arg1[%c0, %c0_0] : memref<512x144xbf16, #tpu.memory_space<vmem>>, vector<512x144xbf16>
    %c0_1 = arith.constant 0 : index
    %c0_2 = arith.constant 0 : index
    %1 = vector.load %arg2[%c0_1, %c0_2] : memref<144x4xbf16, #tpu.memory_space<vmem>>, vector<144x4xbf16>
    %cst = arith.constant dense<0.000000e+00> : vector<512x4xf32>
    %2 = tpu.matmul %0, %1, %cst {dimension_numbers = #tpu.dot_dimension_numbers<[1], [0], [0], [1], [0, 0, 1, 1], [], []>} : vector<512x144xbf16>, vector<144x4xbf16>, vector<512x4xf32> -> vector<512x4xf32>
    %c0_3 = arith.constant 0 : index
    %c0_4 = arith.constant 0 : index
    %3 = vector.load %arg4[%c0_3, %c0_4] : memref<1x4xf32, #tpu.memory_space<vmem>>, vector<1x4xf32>
    %4 = vector.broadcast %3 : vector<1x4xf32> to vector<512x4xf32>
    %5 = arith.addf %2, %4 : vector<512x4xf32>
    %cst_5 = arith.constant 5.000000e-01 : f32
    %6 = vector.broadcast %cst_5 : f32 to vector<512x4xf32>
    %7 = arith.mulf %6, %5 : vector<512x4xf32>
    %8 = math.tanh %7 : vector<512x4xf32>
    %c0_6 = arith.constant 0 : index
    %c0_7 = arith.constant 0 : index
    %9 = vector.load %arg3[%c0_6, %c0_7] : memref<144x4xbf16, #tpu.memory_space<vmem>>, vector<144x4xbf16>
    %cst_8 = arith.constant dense<0.000000e+00> : vector<512x4xf32>
    %10 = tpu.matmul %0, %9, %cst_8 {dimension_numbers = #tpu.dot_dimension_numbers<[1], [0], [0], [1], [0, 0, 1, 1], [], []>} : vector<512x144xbf16>, vector<144x4xbf16>, vector<512x4xf32> -> vector<512x4xf32>
    %c0_9 = arith.constant 0 : index
    %c0_10 = arith.constant 0 : index
    %11 = vector.load %arg5[%c0_9, %c0_10] : memref<1x4xf32, #tpu.memory_space<vmem>>, vector<1x4xf32>
    %12 = vector.broadcast %11 : vector<1x4xf32> to vector<512x4xf32>
    %13 = arith.addf %10, %12 : vector<512x4xf32>
    %cst_11 = arith.constant 5.000000e-01 : f32
    %14 = vector.broadcast %cst_11 : f32 to vector<512x4xf32>
    %15 = arith.mulf %14, %13 : vector<512x4xf32>
    %16 = math.tanh %15 : vector<512x4xf32>
    %c0_12 = arith.constant 0 : index
    %c0_13 = arith.constant 0 : index
    %17 = vector.load %arg6[%c0_12, %c0_13] : memref<512x4xf32, #tpu.memory_space<vmem>>, vector<512x4xf32>
    %c0_14 = arith.constant 0 : index
    %c0_15 = arith.constant 0 : index
    %18 = vector.load %arg7[%c0_14, %c0_15] : memref<512x4xf32, #tpu.memory_space<vmem>>, vector<512x4xf32>
    %19 = arith.mulf %17, %8 : vector<512x4xf32>
    %20 = arith.mulf %18, %16 : vector<512x4xf32>
    %21 = arith.subf %19, %20 : vector<512x4xf32>
    %c0_16 = arith.constant 0 : index
    %c0_17 = arith.constant 0 : index
    %22 = vector.load %arg8[%c0_16, %c0_17] : memref<512x4xf32, #tpu.memory_space<vmem>>, vector<512x4xf32>
    tpu.vector_store %arg8[%c0_16, %c0_17], %21 {strides = array<i32>} : memref<512x4xf32, #tpu.memory_space<vmem>>, vector<512x4xf32>,
    %23 = arith.mulf %17, %16 : vector<512x4xf32>
    %24 = arith.mulf %18, %8 : vector<512x4xf32>
    %25 = arith.addf %23, %24 : vector<512x4xf32>
    %c0_18 = arith.constant 0 : index
    %c0_19 = arith.constant 0 : index
    %26 = vector.load %arg9[%c0_18, %c0_19] : memref<512x4xf32, #tpu.memory_space<vmem>>, vector<512x4xf32>
    tpu.vector_store %arg9[%c0_18, %c0_19], %25 {strides = array<i32>} : memref<512x4xf32, #tpu.memory_space<vmem>>, vector<512x4xf32>,
    return
  }
  func.func @transform_0(%arg0: i32) -> (i32, i32) {
    %c0_i32 = arith.constant 0 : i32
    %c0_i32_0 = arith.constant 0 : i32
    return %arg0, %c0_i32 : i32, i32
  }
  func.func @transform_1(%arg0: i32) -> (i32, i32) {
    %c0_i32 = arith.constant 0 : i32
    %c0_i32_0 = arith.constant 0 : i32
    %c0_i32_1 = arith.constant 0 : i32
    return %c0_i32, %c0_i32_0 : i32, i32
  }
  func.func @transform_2(%arg0: i32) -> (i32, i32) {
    %c0_i32 = arith.constant 0 : i32
    %c0_i32_0 = arith.constant 0 : i32
    %c0_i32_1 = arith.constant 0 : i32
    return %c0_i32, %c0_i32_0 : i32, i32
  }
  func.func @transform_3(%arg0: i32) -> (i32, i32) {
    %c0_i32 = arith.constant 0 : i32
    %c0_i32_0 = arith.constant 0 : i32
    %c0_i32_1 = arith.constant 0 : i32
    return %c0_i32, %c0_i32_0 : i32, i32
  }
  func.func @transform_4(%arg0: i32) -> (i32, i32) {
    %c0_i32 = arith.constant 0 : i32
    %c0_i32_0 = arith.constant 0 : i32
    %c0_i32_1 = arith.constant 0 : i32
    return %c0_i32, %c0_i32_0 : i32, i32
  }
  func.func @transform_5(%arg0: i32) -> (i32, i32) {
    %c0_i32 = arith.constant 0 : i32
    %c0_i32_0 = arith.constant 0 : i32
    return %arg0, %c0_i32 : i32, i32
  }
  func.func @transform_6(%arg0: i32) -> (i32, i32) {
    %c0_i32 = arith.constant 0 : i32
    %c0_i32_0 = arith.constant 0 : i32
    return %arg0, %c0_i32 : i32, i32
  }
  func.func @transform_7(%arg0: i32) -> (i32, i32) {
    %c0_i32 = arith.constant 0 : i32
    %c0_i32_0 = arith.constant 0 : i32
    return %arg0, %c0_i32 : i32, i32
  }
  func.func @transform_8(%arg0: i32) -> (i32, i32) {
    %c0_i32 = arith.constant 0 : i32
    %c0_i32_0 = arith.constant 0 : i32
    return %arg0, %c0_i32 : i32, i32
  }
}

</mosaic_0001>

<llo_original>
// kernel: audio_cond_unet_forward.10
$region0: #{audio_cond_unet_forward.10}
  #allocation0 [shape = 'u32[]', space=smem, size = 0x4, offset = 0x4, fixed_abs, tag = 'smem constant byte address 0x4 - core index']
  #allocation1 [shape = 'u32[72,128]{1,0:T(1,128)}', space=vmem, size = 0x9000, scoped, tag = 'internal scratch']
  %s0 = inlined_call_operand.vmem [shape: bf16[512,32], index: 0, kind: input, shape index: {}]
  %s1 = inlined_call_operand.vmem [shape: bf16[32,8], index: 1, kind: input, shape index: {}]
  %s2 = inlined_call_operand.vmem [shape: f32[1,8], index: 2, kind: input, shape index: {}]
  %s3 = inlined_call_operand.vmem [shape: bf16[512,8], index: 3, kind: output, shape index: {}]
  %s4 = sld [smem:[#allocation0]]
  $region22: #{audio_cond_unet_forward.10} parent=0
    _
  %s6 = ssub.s32 1, %s4
  %s7 = scalar_select 0, %s6, %s4
  // Predicated region
  $region2: #{audio_cond_unet_forward.10} parent=0 // pred_check
    _
  $region3: #{audio_cond_unet_forward.10} parent=0 // pred_check_branch
    %9 = sbr.rel (0) target = $region5
  $region4: #{audio_cond_unet_forward.10} parent=0 // pred_region
    _
  $region5: #{audio_cond_unet_forward.10} parent=0 // pred_fallthru
    _
  // Predicated region
  $region6: #{audio_cond_unet_forward.10} parent=0 // pred_check
    _
  $region7: #{audio_cond_unet_forward.10} parent=0 // pred_check_branch
    %11 = sbr.rel (0) target = $region9
  $region8: #{audio_cond_unet_forward.10} parent=0 // pred_region
    _
  $region9: #{audio_cond_unet_forward.10} parent=0 // pred_fallthru
    _
  // Predicated region
  $region10: #{audio_cond_unet_forward.10} parent=0 // pred_check
    _
  $region11: #{audio_cond_unet_forward.10} parent=0 // pred_check_branch
    %13 = sbr.rel (0) target = $region13
  $region12: #{audio_cond_unet_forward.10} parent=0 // pred_region
    _
  $region13: #{audio_cond_unet_forward.10} parent=0 // pred_fallthru
    _
  %v15 = vld [vmem:[%s0] sm:$0xf]
  %v16 = vld [vmem:[%s0 + $0x4] sm:$0xf]
  %v17 = vld [vmem:[%s0 + $0x8] sm:$0xf]
  %v18 = vld [vmem:[%s0 + $0xc] sm:$0xf]
  %v19 = vld [vmem:[%s0 + $0x10] sm:$0xf]
  %v20 = vld [vmem:[%s0 + $0x14] sm:$0xf]
  %v21 = vld [vmem:[%s0 + $0x18] sm:$0xf]
  %v22 = vld [vmem:[%s0 + $0x1c] sm:$0xf]
  %v23 = vld [vmem:[%s0 + $0x20] sm:$0xf]
  %v24 = vld [vmem:[%s0 + $0x24] sm:$0xf]
  %v25 = vld [vmem:[%s0 + $0x28] sm:$0xf]
  %v26 = vld [vmem:[%s0 + $0x2c] sm:$0xf]
  %v27 = vld [vmem:[%s0 + $0x30] sm:$0xf]
  %v28 = vld [vmem:[%s0 + $0x34] sm:$0xf]
  %v29 = vld [vmem:[%s0 + $0x38] sm:$0xf]
  %v30 = vld [vmem:[%s0 + $0x3c] sm:$0xf]
  %v31 = vld [vmem:[%s0 + $0x40] sm:$0xf]
  %v32 = vld [vmem:[%s0 + $0x44] sm:$0xf]
  %v33 = vld [vmem:[%s0 + $0x48] sm:$0xf]
  %v34 = vld [vmem:[%s0 + $0x4c] sm:$0xf]
  %v35 = vld [vmem:[%s0 + $0x50] sm:$0xf]
  %v36 = vld [vmem:[%s0 + $0x54] sm:$0xf]
  %v37 = vld [vmem:[%s0 + $0x58] sm:$0xf]
  %v38 = vld [vmem:[%s0 + $0x5c] sm:$0xf]
  %v39 = vld [vmem:[%s0 + $0x60] sm:$0xf]
  %v40 = vld [vmem:[%s0 + $0x64] sm:$0xf]
  %v41 = vld [vmem:[%s0 + $0x68] sm:$0xf]
  %v42 = vld [vmem:[%s0 + $0x6c] sm:$0xf]
  %v43 = vld [vmem:[%s0 + $0x70] sm:$0xf]
  %v44 = vld [vmem:[%s0 + $0x74] sm:$0xf]
  %v45 = vld [vmem:[%s0 + $0x78] sm:$0xf]
  %v46 = vld [vmem:[%s0 + $0x7c] sm:$0xf]
  %v47 = vld [vmem:[%s0 + $0x80] sm:$0xf]
  %v48 = vld [vmem:[%s0 + $0x84] sm:$0xf]
  %v49 = vld [vmem:[%s0 + $0x88] sm:$0xf]
  %v50 = vld [vmem:[%s0 + $0x8c] sm:$0xf]
  %v51 = vld [vmem:[%s0 + $0x90] sm:$0xf]
  %v52 = vld [vmem:[%s0 + $0x94] sm:$0xf]
  %v53 = vld [vmem:[%s0 + $0x98] sm:$0xf]
  %v54 = vld [vmem:[%s0 + $0x9c] sm:$0xf]
  %v55 = vld [vmem:[%s0 + $0xa0] sm:$0xf]
  %v56 = vld [vmem:[%s0 + $0xa4] sm:$0xf]
  %v57 = vld [vmem:[%s0 + $0xa8] sm:$0xf]
  %v58 = vld [vmem:[%s0 + $0xac] sm:$0xf]
  %v59 = vld [vmem:[%s0 + $0xb0] sm:$0xf]
  %v60 = vld [vmem:[%s0 + $0xb4] sm:$0xf]
  %v61 = vld [vmem:[%s0 + $0xb8] sm:$0xf]
  %v62 = vld [vmem:[%s0 + $0xbc] sm:$0xf]
  %v63 = vld [vmem:[%s0 + $0xc0] sm:$0xf]
  %v64 = vld [vmem:[%s0 + $0xc4] sm:$0xf]
  %v65 = vld [vmem:[%s0 + $0xc8] sm:$0xf]
  %v66 = vld [vmem:[%s0 + $0xcc] sm:$0xf]
  %v67 = vld [vmem:[%s0 + $0xd0] sm:$0xf]
  %v68 = vld [vmem:[%s0 + $0xd4] sm:$0xf]
  %v69 = vld [vmem:[%s0 + $0xd8] sm:$0xf]
  %v70 = vld [vmem:[%s0 + $0xdc] sm:$0xf]
  %v71 = vld [vmem:[%s0 + $0xe0] sm:$0xf]
  %v72 = vld [vmem:[%s0 + $0xe4] sm:$0xf]
  %v73 = vld [vmem:[%s0 + $0xe8] sm:$0xf]
  %v74 = vld [vmem:[%s0 + $0xec] sm:$0xf]
  %v75 = vld [vmem:[%s0 + $0xf0] sm:$0xf]
  %v76 = vld [vmem:[%s0 + $0xf4] sm:$0xf]
  %v77 = vld [vmem:[%s0 + $0xf8] sm:$0xf]
  %v78 = vld [vmem:[%s0 + $0xfc] sm:$0xf]
  %v79 = vld [vmem:[%s1] sm:$0xf]
  %v80 = vld [vmem:[%s1 + $0x4] sm:$0xf]
  %v81 = vld [vmem:[%s1 + $0x8] sm:$0xf]
  %v82 = vld [vmem:[%s1 + $0xc] sm:$0xf]
  %v83 = vld [vmem:[%s2] sm:$0x1]
  %v85 = vperm.slane %v83, 0
  %v151 = vunpack.c.l.b16 %v15
  %v152 = vunpack.c.l.b16 %v16
  %v153 = vunpack.c.l.b16 %v17
  %v154 = vunpack.c.l.b16 %v18
  %v155 = vunpack.c.l.b16 %v19
  %v156 = vunpack.c.l.b16 %v20
  %v157 = vunpack.c.l.b16 %v21
  %v158 = vunpack.c.l.b16 %v22
  %v159 = vunpack.c.l.b16 %v23
  %v160 = vunpack.c.l.b16 %v24
  %v161 = vunpack.c.l.b16 %v25
  %v162 = vunpack.c.l.b16 %v26
  %v163 = vunpack.c.l.b16 %v27
  %v164 = vunpack.c.l.b16 %v28
  %v165 = vunpack.c.l.b16 %v29
  %v166 = vunpack.c.l.b16 %v30
  %v167 = vunpack.c.l.b16 %v31
  %v168 = vunpack.c.l.b16 %v32
  %v169 = vunpack.c.l.b16 %v33
  %v170 = vunpack.c.l.b16 %v34
  %v171 = vunpack.c.l.b16 %v35
  %v172 = vunpack.c.l.b16 %v36
  %v173 = vunpack.c.l.b16 %v37
  %v174 = vunpack.c.l.b16 %v38
  %v175 = vunpack.c.l.b16 %v39
  %v176 = vunpack.c.l.b16 %v40
  %v177 = vunpack.c.l.b16 %v41
  %v178 = vunpack.c.l.b16 %v42
  %v179 = vunpack.c.l.b16 %v43
  %v180 = vunpack.c.l.b16 %v44
  %v181 = vunpack.c.l.b16 %v45
  %v182 = vunpack.c.l.b16 %v46
  %v183 = vunpack.c.l.b16 %v47
  %v184 = vunpack.c.l.b16 %v48
  %v185 = vunpack.c.l.b16 %v49
  %v186 = vunpack.c.l.b16 %v50
  %v187 = vunpack.c.l.b16 %v51
  %v188 = vunpack.c.l.b16 %v52
  %v189 = vunpack.c.l.b16 %v53
  %v190 = vunpack.c.l.b16 %v54
  %v191 = vunpack.c.l.b16 %v55
  %v192 = vunpack.c.l.b16 %v56
  %v193 = vunpack.c.l.b16 %v57
  %v194 = vunpack.c.l.b16 %v58
  %v195 = vunpack.c.l.b16 %v59
  %v196 = vunpack.c.l.b16 %v60
  %v197 = vunpack.c.l.b16 %v61
  %v198 = vunpack.c.l.b16 %v62
  %v199 = vunpack.c.l.b16 %v63
  %v200 = vunpack.c.l.b16 %v64
  %v201 = vunpack.c.l.b16 %v65
  %v202 = vunpack.c.l.b16 %v66
  %v203 = vunpack.c.l.b16 %v67
  %v204 = vunpack.c.l.b16 %v68
  %v205 = vunpack.c.l.b16 %v69
  %v206 = vunpack.c.l.b16 %v70
  %v207 = vunpack.c.l.b16 %v71
  %v208 = vunpack.c.l.b16 %v72
  %v209 = vunpack.c.l.b16 %v73
  %v210 = vunpack.c.l.b16 %v74
  %v211 = vunpack.c.l.b16 %v75
  %v212 = vunpack.c.l.b16 %v76
  %v213 = vunpack.c.l.b16 %v77
  %v214 = vunpack.c.l.b16 %v78
  %v215 = vpack.c.b16 %v152, %v151
  %v216 = vpack.c.b16 %v154, %v153
  %v217 = vpack.c.b16 %v156, %v155
  %v218 = vpack.c.b16 %v158, %v157
  %v219 = vpack.c.b16 %v160, %v159
  %v220 = vpack.c.b16 %v162, %v161
  %v221 = vpack.c.b16 %v164, %v163
  %v222 = vpack.c.b16 %v166, %v165
  %v223 = vpack.c.b16 %v168, %v167
  %v224 = vpack.c.b16 %v170, %v169
  %v225 = vpack.c.b16 %v172, %v171
  %v226 = vpack.c.b16 %v174, %v173
  %v227 = vpack.c.b16 %v176, %v175
  %v228 = vpack.c.b16 %v178, %v177
  %v229 = vpack.c.b16 %v180, %v179
  %v230 = vpack.c.b16 %v182, %v181
  %v231 = vpack.c.b16 %v184, %v183
  %v232 = vpack.c.b16 %v186, %v185
  %v233 = vpack.c.b16 %v188, %v187
  %v234 = vpack.c.b16 %v190, %v189
  %v235 = vpack.c.b16 %v192, %v191
  %v236 = vpack.c.b16 %v194, %v193
  %v237 = vpack.c.b16 %v196, %v195
  %v238 = vpack.c.b16 %v198, %v197
  %v239 = vpack.c.b16 %v200, %v199
  %v240 = vpack.c.b16 %v202, %v201
  %v241 = vpack.c.b16 %v204, %v203
  %v242 = vpack.c.b16 %v206, %v205
  %v243 = vpack.c.b16 %v208, %v207
  %v244 = vpack.c.b16 %v210, %v209
  %v245 = vpack.c.b16 %v212, %v211
  %v246 = vpack.c.b16 %v214, %v213
  %v251 = vunpack.c.l.b16 %v79
  %v252 = vunpack.c.l.b16 %v80
  %v253 = vunpack.c.l.b16 %v81
  %v254 = vunpack.c.l.b16 %v82
  %v255 = vpack.c.b16 %v252, %v251
  %v256 = vpack.c.b16 %v254, %v253
  %vm259 = vcmask 261120
  %v261 = vsel %vm259, %v215, 0
  %v264 = vsel %vm259, %v216, 0
  %v267 = vsel %vm259, %v217, 0
  %v270 = vsel %vm259, %v218, 0
  %v273 = vsel %vm259, %v219, 0
  %v276 = vsel %vm259, %v220, 0
  %v279 = vsel %vm259, %v221, 0
  %v282 = vsel %vm259, %v222, 0
  %v285 = vsel %vm259, %v223, 0
  %v288 = vsel %vm259, %v224, 0
  %v291 = vsel %vm259, %v225, 0
  %v294 = vsel %vm259, %v226, 0
  %v297 = vsel %vm259, %v227, 0
  %v300 = vsel %vm259, %v228, 0
  %v303 = vsel %vm259, %v229, 0
  %v306 = vsel %vm259, %v230, 0
  %v309 = vsel %vm259, %v231, 0
  %v312 = vsel %vm259, %v232, 0
  %v315 = vsel %vm259, %v233, 0
  %v318 = vsel %vm259, %v234, 0
  %v321 = vsel %vm259, %v235, 0
  %v324 = vsel %vm259, %v236, 0
  %v327 = vsel %vm259, %v237, 0
  %v330 = vsel %vm259, %v238, 0
  %v333 = vsel %vm259, %v239, 0
  %v336 = vsel %vm259, %v240, 0
  %v339 = vsel %vm259, %v241, 0
  %v342 = vsel %vm259, %v242, 0
  %v345 = vsel %vm259, %v243, 0
  %v348 = vsel %vm259, %v244, 0
  %v351 = vsel %vm259, %v245, 0
  %v354 = vsel %vm259, %v246, 0
  %356 = vmatpush.bf16.msra.mxu0 0
  %357 = vmatpush.bf16.msra.mxu0 0
  %358 = vmatpush.bf16.msra.mxu0 0
  %359 = vmatpush.bf16.msra.mxu0 0
  %360 = vmatpush.bf16.msra.mxu0 0
  %361 = vmatpush.bf16.msra.mxu0 0
  %362 = vmatpush.bf16.msra.mxu0 %v256
  %363 = vmatpush.bf16.msra.mxu0 %v255
  %364 = vmatmul.bf16.gmra.mxu0 %v261
  %v365 = vpop.f32.mrf.mxu0
  %v366 = vadd.f32 %v85, %v365
  %v367 = vpop.f32.mrf.mxu0
  %v368 = vadd.f32 %v85, %v367
  %369 = vmatmul.bf16.gmra.mxu0 %v264
  %v370 = vpop.f32.mrf.mxu0
  %v371 = vadd.f32 %v85, %v370
  %v372 = vpop.f32.mrf.mxu0
  %v373 = vadd.f32 %v85, %v372
  %374 = vmatmul.bf16.gmra.mxu0 %v267
  %v375 = vpop.f32.mrf.mxu0
  %v376 = vadd.f32 %v85, %v375
  %v377 = vpop.f32.mrf.mxu0
  %v378 = vadd.f32 %v85, %v377
  %379 = vmatmul.bf16.gmra.mxu0 %v270
  %v380 = vpop.f32.mrf.mxu0
  %v381 = vadd.f32 %v85, %v380
  %v382 = vpop.f32.mrf.mxu0
  %v383 = vadd.f32 %v85, %v382
  %384 = vmatmul.bf16.gmra.mxu0 %v273
  %v385 = vpop.f32.mrf.mxu0
  %v386 = vadd.f32 %v85, %v385
  %v387 = vpop.f32.mrf.mxu0
  %v388 = vadd.f32 %v85, %v387
  %389 = vmatmul.bf16.gmra.mxu0 %v276
  %v390 = vpop.f32.mrf.mxu0
  %v391 = vadd.f32 %v85, %v390
  %v392 = vpop.f32.mrf.mxu0
  %v393 = vadd.f32 %v85, %v392
  %394 = vmatmul.bf16.gmra.mxu0 %v279
  %v395 = vpop.f32.mrf.mxu0
  %v396 = vadd.f32 %v85, %v395
  %v397 = vpop.f32.mrf.mxu0
  %v398 = vadd.f32 %v85, %v397
  %399 = vmatmul.bf16.gmra.mxu0 %v282
  %v400 = vpop.f32.mrf.mxu0
  %v401 = vadd.f32 %v85, %v400
  %v402 = vpop.f32.mrf.mxu0
  %v403 = vadd.f32 %v85, %v402
  %404 = vmatmul.bf16.gmra.mxu0 %v285
  %v405 = vpop.f32.mrf.mxu0
  %v406 = vadd.f32 %v85, %v405
  %v407 = vpop.f32.mrf.mxu0
  %v408 = vadd.f32 %v85, %v407
  %409 = vmatmul.bf16.gmra.mxu0 %v288
  %v410 = vpop.f32.mrf.mxu0
  %v411 = vadd.f32 %v85, %v410
  %v412 = vpop.f32.mrf.mxu0
  %v413 = vadd.f32 %v85, %v412
  %414 = vmatmul.bf16.gmra.mxu0 %v291
  %v415 = vpop.f32.mrf.mxu0
  %v416 = vadd.f32 %v85, %v415
  %v417 = vpop.f32.mrf.mxu0
  %v418 = vadd.f32 %v85, %v417
  %419 = vmatmul.bf16.gmra.mxu0 %v294
  %v420 = vpop.f32.mrf.mxu0
  %v421 = vadd.f32 %v85, %v420
  %v422 = vpop.f32.mrf.mxu0
  %v423 = vadd.f32 %v85, %v422
  %424 = vmatmul.bf16.gmra.mxu0 %v297
  %v425 = vpop.f32.mrf.mxu0
  %v426 = vadd.f32 %v85, %v425
  %v427 = vpop.f32.mrf.mxu0
  %v428 = vadd.f32 %v85, %v427
  %429 = vmatmul.bf16.gmra.mxu0 %v300
  %v430 = vpop.f32.mrf.mxu0
  %v431 = vadd.f32 %v85, %v430
  %v432 = vpop.f32.mrf.mxu0
  %v433 = vadd.f32 %v85, %v432
  %434 = vmatmul.bf16.gmra.mxu0 %v303
  %v435 = vpop.f32.mrf.mxu0
  %v436 = vadd.f32 %v85, %v435
  %v437 = vpop.f32.mrf.mxu0
  %v438 = vadd.f32 %v85, %v437
  %439 = vmatmul.bf16.gmra.mxu0 %v306
  %v440 = vpop.f32.mrf.mxu0
  %v441 = vadd.f32 %v85, %v440
  %v442 = vpop.f32.mrf.mxu0
  %v443 = vadd.f32 %v85, %v442
  %444 = vmatmul.bf16.gmra.mxu0 %v309
  %v445 = vpop.f32.mrf.mxu0
  %v446 = vadd.f32 %v85, %v445
  %v447 = vpop.f32.mrf.mxu0
  %v448 = vadd.f32 %v85, %v447
  %449 = vmatmul.bf16.gmra.mxu0 %v312
  %v450 = vpop.f32.mrf.mxu0
  %v451 = vadd.f32 %v85, %v450
  %v452 = vpop.f32.mrf.mxu0
  %v453 = vadd.f32 %v85, %v452
  %454 = vmatmul.bf16.gmra.mxu0 %v315
  %v455 = vpop.f32.mrf.mxu0
  %v456 = vadd.f32 %v85, %v455
  %v457 = vpop.f32.mrf.mxu0
  %v458 = vadd.f32 %v85, %v457
  %459 = vmatmul.bf16.gmra.mxu0 %v318
  %v460 = vpop.f32.mrf.mxu0
  %v461 = vadd.f32 %v85, %v460
  %v462 = vpop.f32.mrf.mxu0
  %v463 = vadd.f32 %v85, %v462
  %464 = vmatmul.bf16.gmra.mxu0 %v321
  %v465 = vpop.f32.mrf.mxu0
  %v466 = vadd.f32 %v85, %v465
  %v467 = vpop.f32.mrf.mxu0
  %v468 = vadd.f32 %v85, %v467
  %469 = vmatmul.bf16.gmra.mxu0 %v324
  %v470 = vpop.f32.mrf.mxu0
  %v471 = vadd.f32 %v85, %v470
  %v472 = vpop.f32.mrf.mxu0
  %v473 = vadd.f32 %v85, %v472
  %474 = vmatmul.bf16.gmra.mxu0 %v327
  %v475 = vpop.f32.mrf.mxu0
  %v476 = vadd.f32 %v85, %v475
  %v477 = vpop.f32.mrf.mxu0
  %v478 = vadd.f32 %v85, %v477
  %479 = vmatmul.bf16.gmra.mxu0 %v330
  %v480 = vpop.f32.mrf.mxu0
  %v481 = vadd.f32 %v85, %v480
  %v482 = vpop.f32.mrf.mxu0
  %v483 = vadd.f32 %v85, %v482
  %484 = vmatmul.bf16.gmra.mxu0 %v333
  %v485 = vpop.f32.mrf.mxu0
  %v486 = vadd.f32 %v85, %v485
  %v487 = vpop.f32.mrf.mxu0
  %v488 = vadd.f32 %v85, %v487
  %489 = vmatmul.bf16.gmra.mxu0 %v336
  %v490 = vpop.f32.mrf.mxu0
  %v491 = vadd.f32 %v85, %v490
  %v492 = vpop.f32.mrf.mxu0
  %v493 = vadd.f32 %v85, %v492
  %494 = vmatmul.bf16.gmra.mxu0 %v339
  %v495 = vpop.f32.mrf.mxu0
  %v496 = vadd.f32 %v85, %v495
  %v497 = vpop.f32.mrf.mxu0
  %v498 = vadd.f32 %v85, %v497
  %499 = vmatmul.bf16.gmra.mxu0 %v342
  %v500 = vpop.f32.mrf.mxu0
  %v501 = vadd.f32 %v85, %v500
  %v502 = vpop.f32.mrf.mxu0
  %v503 = vadd.f32 %v85, %v502
  %504 = vmatmul.bf16.gmra.mxu0 %v345
  %v505 = vpop.f32.mrf.mxu0
  %v506 = vadd.f32 %v85, %v505
  %v507 = vpop.f32.mrf.mxu0
  %v508 = vadd.f32 %v85, %v507
  %509 = vmatmul.bf16.gmra.mxu0 %v348
  %v510 = vpop.f32.mrf.mxu0
  %v511 = vadd.f32 %v85, %v510
  %v512 = vpop.f32.mrf.mxu0
  %v513 = vadd.f32 %v85, %v512
  %514 = vmatmul.bf16.gmra.mxu0 %v351
  %v515 = vpop.f32.mrf.mxu0
  %v516 = vadd.f32 %v85, %v515
  %v517 = vpop.f32.mrf.mxu0
  %v518 = vadd.f32 %v85, %v517
  %519 = vmatmul.bf16.gmra.mxu0 %v354
  %v520 = vpop.f32.mrf.mxu0
  %v521 = vadd.f32 %v85, %v520
  %v522 = vpop.f32.mrf.mxu0
  %v523 = vadd.f32 %v85, %v522
  %524 = vdwg.mxu0
  %v525 = vpack.c.bf16 %v366, %v366
  %v526 = vpack.c.bf16 %v368, %v368
  %v527 = vpack.c.bf16 %v371, %v371
  %v528 = vpack.c.bf16 %v373, %v373
  %v529 = vpack.c.bf16 %v376, %v376
  %v530 = vpack.c.bf16 %v378, %v378
  %v531 = vpack.c.bf16 %v381, %v381
  %v532 = vpack.c.bf16 %v383, %v383
  %v533 = vpack.c.bf16 %v386, %v386
  %v534 = vpack.c.bf16 %v388, %v388
  %v535 = vpack.c.bf16 %v391, %v391
  %v536 = vpack.c.bf16 %v393, %v393
  %v537 = vpack.c.bf16 %v396, %v396
  %v538 = vpack.c.bf16 %v398, %v398
  %v539 = vpack.c.bf16 %v401, %v401
  %v540 = vpack.c.bf16 %v403, %v403
  %v541 = vpack.c.bf16 %v406, %v406
  %v542 = vpack.c.bf16 %v408, %v408
  %v543 = vpack.c.bf16 %v411, %v411
  %v544 = vpack.c.bf16 %v413, %v413
  %v545 = vpack.c.bf16 %v416, %v416
  %v546 = vpack.c.bf16 %v418, %v418
  %v547 = vpack.c.bf16 %v421, %v421
  %v548 = vpack.c.bf16 %v423, %v423
  %v549 = vpack.c.bf16 %v426, %v426
  %v550 = vpack.c.bf16 %v428, %v428
  %v551 = vpack.c.bf16 %v431, %v431
  %v552 = vpack.c.bf16 %v433, %v433
  %v553 = vpack.c.bf16 %v436, %v436
  %v554 = vpack.c.bf16 %v438, %v438
  %v555 = vpack.c.bf16 %v441, %v441
  %v556 = vpack.c.bf16 %v443, %v443
  %v557 = vpack.c.bf16 %v446, %v446
  %v558 = vpack.c.bf16 %v448, %v448
  %v559 = vpack.c.bf16 %v451, %v451
  %v560 = vpack.c.bf16 %v453, %v453
  %v561 = vpack.c.bf16 %v456, %v456
  %v562 = vpack.c.bf16 %v458, %v458
  %v563 = vpack.c.bf16 %v461, %v461
  %v564 = vpack.c.bf16 %v463, %v463
  %v565 = vpack.c.bf16 %v466, %v466
  %v566 = vpack.c.bf16 %v468, %v468
  %v567 = vpack.c.bf16 %v471, %v471
  %v568 = vpack.c.bf16 %v473, %v473
  %v569 = vpack.c.bf16 %v476, %v476
  %v570 = vpack.c.bf16 %v478, %v478
  %v571 = vpack.c.bf16 %v481, %v481
  %v572 = vpack.c.bf16 %v483, %v483
  %v573 = vpack.c.bf16 %v486, %v486
  %v574 = vpack.c.bf16 %v488, %v488
  %v575 = vpack.c.bf16 %v491, %v491
  %v576 = vpack.c.bf16 %v493, %v493
  %v577 = vpack.c.bf16 %v496, %v496
  %v578 = vpack.c.bf16 %v498, %v498
  %v579 = vpack.c.bf16 %v501, %v501
  %v580 = vpack.c.bf16 %v503, %v503
  %v581 = vpack.c.bf16 %v506, %v506
  %v582 = vpack.c.bf16 %v508, %v508
  %v583 = vpack.c.bf16 %v511, %v511
  %v584 = vpack.c.bf16 %v513, %v513
  %v585 = vpack.c.bf16 %v516, %v516
  %v586 = vpack.c.bf16 %v518, %v518
  %v587 = vpack.c.bf16 %v521, %v521
  %v588 = vpack.c.bf16 %v523, %v523
  %vm589 = vcmask 60416
  %590 = vst.msk [vmem:[%s3] sm:$0xf] %vm589, %v525
  %591 = vst.msk [vmem:[%s3 + $0x4] sm:$0xf] %vm589, %v526
  %592 = vst.msk [vmem:[%s3 + $0x8] sm:$0xf] %vm589, %v527
  %593 = vst.msk [vmem:[%s3 + $0xc] sm:$0xf] %vm589, %v528
  %594 = vst.msk [vmem:[%s3 + $0x10] sm:$0xf] %vm589, %v529
  %595 = vst.msk [vmem:[%s3 + $0x14] sm:$0xf] %vm589, %v530
  %596 = vst.msk [vmem:[%s3 + $0x18] sm:$0xf] %vm589, %v531
  %597 = vst.msk [vmem:[%s3 + $0x1c] sm:$0xf] %vm589, %v532
  %598 = vst.msk [vmem:[%s3 + $0x20] sm:$0xf] %vm589, %v533
  %599 = vst.msk [vmem:[%s3 + $0x24] sm:$0xf] %vm589, %v534
  %600 = vst.msk [vmem:[%s3 + $0x28] sm:$0xf] %vm589, %v535
  %601 = vst.msk [vmem:[%s3 + $0x2c] sm:$0xf] %vm589, %v536
  %602 = vst.msk [vmem:[%s3 + $0x30] sm:$0xf] %vm589, %v537
  %603 = vst.msk [vmem:[%s3 + $0x34] sm:$0xf] %vm589, %v538
  %604 = vst.msk [vmem:[%s3 + $0x38] sm:$0xf] %vm589, %v539
  %605 = vst.msk [vmem:[%s3 + $0x3c] sm:$0xf] %vm589, %v540
  %606 = vst.msk [vmem:[%s3 + $0x40] sm:$0xf] %vm589, %v541
  %607 = vst.msk [vmem:[%s3 + $0x44] sm:$0xf] %vm589, %v542
  %608 = vst.msk [vmem:[%s3 + $0x48] sm:$0xf] %vm589, %v543
  %609 = vst.msk [vmem:[%s3 + $0x4c] sm:$0xf] %vm589, %v544
  %610 = vst.msk [vmem:[%s3 + $0x50] sm:$0xf] %vm589, %v545
  %611 = vst.msk [vmem:[%s3 + $0x54] sm:$0xf] %vm589, %v546
  %612 = vst.msk [vmem:[%s3 + $0x58] sm:$0xf] %vm589, %v547
  %613 = vst.msk [vmem:[%s3 + $0x5c] sm:$0xf] %vm589, %v548
  %614 = vst.msk [vmem:[%s3 + $0x60] sm:$0xf] %vm589, %v549
  %615 = vst.msk [vmem:[%s3 + $0x64] sm:$0xf] %vm589, %v550
  %616 = vst.msk [vmem:[%s3 + $0x68] sm:$0xf] %vm589, %v551
  %617 = vst.msk [vmem:[%s3 + $0x6c] sm:$0xf] %vm589, %v552
  %618 = vst.msk [vmem:[%s3 + $0x70] sm:$0xf] %vm589, %v553
  %619 = vst.msk [vmem:[%s3 + $0x74] sm:$0xf] %vm589, %v554
  %620 = vst.msk [vmem:[%s3 + $0x78] sm:$0xf] %vm589, %v555
  %621 = vst.msk [vmem:[%s3 + $0x7c] sm:$0xf] %vm589, %v556
  %622 = vst.msk [vmem:[%s3 + $0x80] sm:$0xf] %vm589, %v557
  %623 = vst.msk [vmem:[%s3 + $0x84] sm:$0xf] %vm589, %v558
  %624 = vst.msk [vmem:[%s3 + $0x88] sm:$0xf] %vm589, %v559
  %625 = vst.msk [vmem:[%s3 + $0x8c] sm:$0xf] %vm589, %v560
  %626 = vst.msk [vmem:[%s3 + $0x90] sm:$0xf] %vm589, %v561
  %627 = vst.msk [vmem:[%s3 + $0x94] sm:$0xf] %vm589, %v562
  %628 = vst.msk [vmem:[%s3 + $0x98] sm:$0xf] %vm589, %v563
  %629 = vst.msk [vmem:[%s3 + $0x9c] sm:$0xf] %vm589, %v564
  %630 = vst.msk [vmem:[%s3 + $0xa0] sm:$0xf] %vm589, %v565
  %631 = vst.msk [vmem:[%s3 + $0xa4] sm:$0xf] %vm589, %v566
  %632 = vst.msk [vmem:[%s3 + $0xa8] sm:$0xf] %vm589, %v567
  %633 = vst.msk [vmem:[%s3 + $0xac] sm:$0xf] %vm589, %v568
  %634 = vst.msk [vmem:[%s3 + $0xb0] sm:$0xf] %vm589, %v569
  %635 = vst.msk [vmem:[%s3 + $0xb4] sm:$0xf] %vm589, %v570
  %636 = vst.msk [vmem:[%s3 + $0xb8] sm:$0xf] %vm589, %v571
  %637 = vst.msk [vmem:[%s3 + $0xbc] sm:$0xf] %vm589, %v572
  %638 = vst.msk [vmem:[%s3 + $0xc0] sm:$0xf] %vm589, %v573
  %639 = vst.msk [vmem:[%s3 + $0xc4] sm:$0xf] %vm589, %v574
  %640 = vst.msk [vmem:[%s3 + $0xc8] sm:$0xf] %vm589, %v575
  %641 = vst.msk [vmem:[%s3 + $0xcc] sm:$0xf] %vm589, %v576
  %642 = vst.msk [vmem:[%s3 + $0xd0] sm:$0xf] %vm589, %v577
  %643 = vst.msk [vmem:[%s3 + $0xd4] sm:$0xf] %vm589, %v578
  %644 = vst.msk [vmem:[%s3 + $0xd8] sm:$0xf] %vm589, %v579
  %645 = vst.msk [vmem:[%s3 + $0xdc] sm:$0xf] %vm589, %v580
  %646 = vst.msk [vmem:[%s3 + $0xe0] sm:$0xf] %vm589, %v581
  %647 = vst.msk [vmem:[%s3 + $0xe4] sm:$0xf] %vm589, %v582
  %648 = vst.msk [vmem:[%s3 + $0xe8] sm:$0xf] %vm589, %v583
  %649 = vst.msk [vmem:[%s3 + $0xec] sm:$0xf] %vm589, %v584
  %650 = vst.msk [vmem:[%s3 + $0xf0] sm:$0xf] %vm589, %v585
  %651 = vst.msk [vmem:[%s3 + $0xf4] sm:$0xf] %vm589, %v586
  %652 = vst.msk [vmem:[%s3 + $0xf8] sm:$0xf] %vm589, %v587
  %653 = vst.msk [vmem:[%s3 + $0xfc] sm:$0xf] %vm589, %v588
  // Predicated region
  $region14: #{audio_cond_unet_forward.10} parent=0 // pred_check
    _
  $region15: #{audio_cond_unet_forward.10} parent=0 // pred_check_branch
    %655 = sbr.rel (0) target = $region17
  $region16: #{audio_cond_unet_forward.10} parent=0 // pred_region
    _
  $region17: #{audio_cond_unet_forward.10} parent=0 // pred_fallthru
    _
  // Predicated region
  $region18: #{audio_cond_unet_forward.10} parent=0 // pred_check
    _
  $region19: #{audio_cond_unet_forward.10} parent=0 // pred_check_branch
    %657 = sbr.rel (0) target = $region21
  $region20: #{audio_cond_unet_forward.10} parent=0 // pred_region
    _
  $region21: #{audio_cond_unet_forward.10} parent=0 // pred_fallthru
    _

// kernel: audio_cond_unet_forward.11
$region0: #{audio_cond_unet_forward.11}
  #allocation0 [shape = 'u32[]', space=smem, size = 0x4, offset = 0x4, fixed_abs, tag = 'smem constant byte address 0x4 - core index']
  #allocation1 [shape = 'u32[72,128]{1,0:T(1,128)}', space=vmem, size = 0x9000, scoped, tag = 'internal scratch']
  %s0 = inlined_call_operand.vmem [shape: bf16[128,128], index: 0, kind: input, shape index: {}]
  %s1 = inlined_call_operand.vmem [shape: bf16[128,16], index: 1, kind: input, shape index: {}]
  %s2 = inlined_call_operand.vmem [shape: f32[1,16], index: 2, kind: input, shape index: {}]
  %s3 = inlined_call_operand.vmem [shape: bf16[128,16], index: 3, kind: output, shape index: {}]
  %s4 = sld [smem:[#allocation0]]
  $region22: #{audio_cond_unet_forward.11} parent=0
    _
  %s6 = ssub.s32 1, %s4
  %s7 = scalar_select 0, %s6, %s4
  // Predicated region
  $region2: #{audio_cond_unet_forward.11} parent=0 // pred_check
    _
  $region3: #{audio_cond_unet_forward.11} parent=0 // pred_check_branch
    %9 = sbr.rel (0) target = $region5
  $region4: #{audio_cond_unet_forward.11} parent=0 // pred_region
    _
  $region5: #{audio_cond_unet_forward.11} parent=0 // pred_fallthru
    _
  // Predicated region
  $region6: #{audio_cond_unet_forward.11} parent=0 // pred_check
    _
  $region7: #{audio_cond_unet_forward.11} parent=0 // pred_check_branch
    %11 = sbr.rel (0) target = $region9
  $region8: #{audio_cond_unet_forward.11} parent=0 // pred_region
    _
  $region9: #{audio_cond_unet_forward.11} parent=0 // pred_fallthru
    _
  // Predicated region
  $region10: #{audio_cond_unet_forward.11} parent=0 // pred_check
    _
  $region11: #{audio_cond_unet_forward.11} parent=0 // pred_check_branch
    %13 = sbr.rel (0) target = $region13
  $region12: #{audio_cond_unet_forward.11} parent=0 // pred_region
    _
  $region13: #{audio_cond_unet_forward.11} parent=0 // pred_fallthru
    _
  %v14 = vld [vmem:[%s0] sm:$0xf]
  %v15 = vld [vmem:[%s0 + $0x4] sm:$0xf]
  %v16 = vld [vmem:[%s0 + $0x8] sm:$0xf]
  %v17 = vld [vmem:[%s0 + $0xc] sm:$0xf]
  %v18 = vld [vmem:[%s0 + $0x10] sm:$0xf]
  %v19 = vld [vmem:[%s0 + $0x14] sm:$0xf]
  %v20 = vld [vmem:[%s0 + $0x18] sm:$0xf]
  %v21 = vld [vmem:[%s0 + $0x1c] sm:$0xf]
  %v22 = vld [vmem:[%s0 + $0x20] sm:$0xf]
  %v23 = vld [vmem:[%s0 + $0x24] sm:$0xf]
  %v24 = vld [vmem:[%s0 + $0x28] sm:$0xf]
  %v25 = vld [vmem:[%s0 + $0x2c] sm:$0xf]
  %v26 = vld [vmem:[%s0 + $0x30] sm:$0xf]
  %v27 = vld [vmem:[%s0 + $0x34] sm:$0xf]
  %v28 = vld [vmem:[%s0 + $0x38] sm:$0xf]
  %v29 = vld [vmem:[%s0 + $0x3c] sm:$0xf]
  %v30 = vld [vmem:[%s1] sm:$0xf]
  %v31 = vld [vmem:[%s1 + $0x4] sm:$0xf]
  %v32 = vld [vmem:[%s1 + $0x8] sm:$0xf]
  %v33 = vld [vmem:[%s1 + $0xc] sm:$0xf]
  %v34 = vld [vmem:[%s1 + $0x10] sm:$0xf]
  %v35 = vld [vmem:[%s1 + $0x14] sm:$0xf]
  %v36 = vld [vmem:[%s1 + $0x18] sm:$0xf]
  %v37 = vld [vmem:[%s1 + $0x1c] sm:$0xf]
  %v38 = vld [vmem:[%s1 + $0x20] sm:$0xf]
  %v39 = vld [vmem:[%s1 + $0x24] sm:$0xf]
  %v40 = vld [vmem:[%s1 + $0x28] sm:$0xf]
  %v41 = vld [vmem:[%s1 + $0x2c] sm:$0xf]
  %v42 = vld [vmem:[%s1 + $0x30] sm:$0xf]
  %v43 = vld [vmem:[%s1 + $0x34] sm:$0xf]
  %v44 = vld [vmem:[%s1 + $0x38] sm:$0xf]
  %v45 = vld [vmem:[%s1 + $0x3c] sm:$0xf]
  %v46 = vld [vmem:[%s2] sm:$0x1]
  %v48 = vperm.slane %v46, 0
  %v66 = vunpack.c.l.b16 %v14
  %v67 = vunpack.c.l.b16 %v15
  %v68 = vunpack.c.l.b16 %v16
  %v69 = vunpack.c.l.b16 %v17
  %v70 = vunpack.c.l.b16 %v18
  %v71 = vunpack.c.l.b16 %v19
  %v72 = vunpack.c.l.b16 %v20
  %v73 = vunpack.c.l.b16 %v21
  %v74 = vunpack.c.l.b16 %v22
  %v75 = vunpack.c.l.b16 %v23
  %v76 = vunpack.c.l.b16 %v24
  %v77 = vunpack.c.l.b16 %v25
  %v78 = vunpack.c.l.b16 %v26
  %v79 = vunpack.c.l.b16 %v27
  %v80 = vunpack.c.l.b16 %v28
  %v81 = vunpack.c.l.b16 %v29
  %v82 = vpack.c.b16 %v67, %v66
  %v83 = vpack.c.b16 %v69, %v68
  %v84 = vpack.c.b16 %v71, %v70
  %v85 = vpack.c.b16 %v73, %v72
  %v86 = vpack.c.b16 %v75, %v74
  %v87 = vpack.c.b16 %v77, %v76
  %v88 = vpack.c.b16 %v79, %v78
  %v89 = vpack.c.b16 %v81, %v80
  %v114 = vunpack.c.l.b16 %v30
  %v115 = vunpack.c.l.b16 %v31
  %v116 = vunpack.c.l.b16 %v32
  %v117 = vunpack.c.l.b16 %v33
  %v118 = vunpack.c.l.b16 %v34
  %v119 = vunpack.c.l.b16 %v35
  %v120 = vunpack.c.l.b16 %v36
  %v121 = vunpack.c.l.b16 %v37
  %v122 = vunpack.c.l.b16 %v38
  %v123 = vunpack.c.l.b16 %v39
  %v124 = vunpack.c.l.b16 %v40
  %v125 = vunpack.c.l.b16 %v41
  %v126 = vunpack.c.l.b16 %v42
  %v127 = vunpack.c.l.b16 %v43
  %v128 = vunpack.c.l.b16 %v44
  %v129 = vunpack.c.l.b16 %v45
  %v130 = vpack.c.b16 %v115, %v114
  %v131 = vpack.c.b16 %v117, %v116
  %v132 = vpack.c.b16 %v119, %v118
  %v133 = vpack.c.b16 %v121, %v120
  %v134 = vpack.c.b16 %v123, %v122
  %v135 = vpack.c.b16 %v125, %v124
  %v136 = vpack.c.b16 %v127, %v126
  %v137 = vpack.c.b16 %v129, %v128
  %146 = vmatpush.bf16.msra.mxu0 %v137
  %147 = vmatpush.bf16.msra.mxu0 %v136
  %148 = vmatpush.bf16.msra.mxu0 %v135
  %149 = vmatpush.bf16.msra.mxu0 %v134
  %150 = vmatpush.bf16.msra.mxu0 %v133
  %151 = vmatpush.bf16.msra.mxu0 %v132
  %152 = vmatpush.bf16.msra.mxu0 %v131
  %153 = vmatpush.bf16.msra.mxu0 %v130
  %154 = vmatmul.bf16.gmra.mxu0 %v82
  %v155 = vpop.f32.mrf.mxu0
  %v156 = vadd.f32 %v48, %v155
  %v157 = vpop.f32.mrf.mxu0
  %v158 = vadd.f32 %v48, %v157
  %159 = vmatmul.bf16.gmra.mxu0 %v83
  %v160 = vpop.f32.mrf.mxu0
  %v161 = vadd.f32 %v48, %v160
  %v162 = vpop.f32.mrf.mxu0
  %v163 = vadd.f32 %v48, %v162
  %164 = vmatmul.bf16.gmra.mxu0 %v84
  %v165 = vpop.f32.mrf.mxu0
  %v166 = vadd.f32 %v48, %v165
  %v167 = vpop.f32.mrf.mxu0
  %v168 = vadd.f32 %v48, %v167
  %169 = vmatmul.bf16.gmra.mxu0 %v85
  %v170 = vpop.f32.mrf.mxu0
  %v171 = vadd.f32 %v48, %v170
  %v172 = vpop.f32.mrf.mxu0
  %v173 = vadd.f32 %v48, %v172
  %174 = vmatmul.bf16.gmra.mxu0 %v86
  %v175 = vpop.f32.mrf.mxu0
  %v176 = vadd.f32 %v48, %v175
  %v177 = vpop.f32.mrf.mxu0
  %v178 = vadd.f32 %v48, %v177
  %179 = vmatmul.bf16.gmra.mxu0 %v87
  %v180 = vpop.f32.mrf.mxu0
  %v181 = vadd.f32 %v48, %v180
  %v182 = vpop.f32.mrf.mxu0
  %v183 = vadd.f32 %v48, %v182
  %184 = vmatmul.bf16.gmra.mxu0 %v88
  %v185 = vpop.f32.mrf.mxu0
  %v186 = vadd.f32 %v48, %v185
  %v187 = vpop.f32.mrf.mxu0
  %v188 = vadd.f32 %v48, %v187
  %189 = vmatmul.bf16.gmra.mxu0 %v89
  %v190 = vpop.f32.mrf.mxu0
  %v191 = vadd.f32 %v48, %v190
  %v192 = vpop.f32.mrf.mxu0
  %v193 = vadd.f32 %v48, %v192
  %194 = vdwg.mxu0
  %v195 = vmul.f32 %v156, 0.2
  %v196 = vmul.f32 %v158, 0.2
  %v197 = vmul.f32 %v161, 0.2
  %v198 = vmul.f32 %v163, 0.2
  %v199 = vmul.f32 %v166, 0.2
  %v200 = vmul.f32 %v168, 0.2
  %v201 = vmul.f32 %v171, 0.2
  %v202 = vmul.f32 %v173, 0.2
  %v203 = vmul.f32 %v176, 0.2
  %v204 = vmul.f32 %v178, 0.2
  %v205 = vmul.f32 %v181, 0.2
  %v206 = vmul.f32 %v183, 0.2
  %v207 = vmul.f32 %v186, 0.2
  %v208 = vmul.f32 %v188, 0.2
  %v209 = vmul.f32 %v191, 0.2
  %v210 = vmul.f32 %v193, 0.2
  %v211 = vmax.f32 %v156, %v195
  %v212 = vmax.f32 %v158, %v196
  %v213 = vmax.f32 %v161, %v197
  %v214 = vmax.f32 %v163, %v198
  %v215 = vmax.f32 %v166, %v199
  %v216 = vmax.f32 %v168, %v200
  %v217 = vmax.f32 %v171, %v201
  %v218 = vmax.f32 %v173, %v202
  %v219 = vmax.f32 %v176, %v203
  %v220 = vmax.f32 %v178, %v204
  %v221 = vmax.f32 %v181, %v205
  %v222 = vmax.f32 %v183, %v206
  %v223 = vmax.f32 %v186, %v207
  %v224 = vmax.f32 %v188, %v208
  %v225 = vmax.f32 %v191, %v209
  %v226 = vmax.f32 %v193, %v210
  %v227 = vpack.c.bf16 %v211, %v211
  %v228 = vpack.c.bf16 %v212, %v212
  %v229 = vpack.c.bf16 %v213, %v213
  %v230 = vpack.c.bf16 %v214, %v214
  %v231 = vpack.c.bf16 %v215, %v215
  %v232 = vpack.c.bf16 %v216, %v216
  %v233 = vpack.c.bf16 %v217, %v217
  %v234 = vpack.c.bf16 %v218, %v218
  %v235 = vpack.c.bf16 %v219, %v219
  %v236 = vpack.c.bf16 %v220, %v220
  %v237 = vpack.c.bf16 %v221, %v221
  %v238 = vpack.c.bf16 %v222, %v222
  %v239 = vpack.c.bf16 %v223, %v223
  %v240 = vpack.c.bf16 %v224, %v224
  %v241 = vpack.c.bf16 %v225, %v225
  %v242 = vpack.c.bf16 %v226, %v226
  %vm243 = vcmask 125952
  %244 = vst.msk [vmem:[%s3] sm:$0xf] %vm243, %v227
  %245 = vst.msk [vmem:[%s3 + $0x4] sm:$0xf] %vm243, %v228
  %246 = vst.msk [vmem:[%s3 + $0x8] sm:$0xf] %vm243, %v229
  %247 = vst.msk [vmem:[%s3 + $0xc] sm:$0xf] %vm243, %v230
  %248 = vst.msk [vmem:[%s3 + $0x10] sm:$0xf] %vm243, %v231
  %249 = vst.msk [vmem:[%s3 + $0x14] sm:$0xf] %vm243, %v232
  %250 = vst.msk [vmem:[%s3 + $0x18] sm:$0xf] %vm243, %v233
  %251 = vst.msk [vmem:[%s3 + $0x1c] sm:$0xf] %vm243, %v234
  %252 = vst.msk [vmem:[%s3 + $0x20] sm:$0xf] %vm243, %v235
  %253 = vst.msk [vmem:[%s3 + $0x24] sm:$0xf] %vm243, %v236
  %254 = vst.msk [vmem:[%s3 + $0x28] sm:$0xf] %vm243, %v237
  %255 = vst.msk [vmem:[%s3 + $0x2c] sm:$0xf] %vm243, %v238
  %256 = vst.msk [vmem:[%s3 + $0x30] sm:$0xf] %vm243, %v239
  %257 = vst.msk [vmem:[%s3 + $0x34] sm:$0xf] %vm243, %v240
  %258 = vst.msk [vmem:[%s3 + $0x38] sm:$0xf] %vm243, %v241
  %259 = vst.msk [vmem:[%s3 + $0x3c] sm:$0xf] %vm243, %v242
  // Predicated region
  $region14: #{audio_cond_unet_forward.11} parent=0 // pred_check
    _
  $region15: #{audio_cond_unet_forward.11} parent=0 // pred_check_branch
    %261 = sbr.rel (0) target = $region17
  $region16: #{audio_cond_unet_forward.11} parent=0 // pred_region
    _
  $region17: #{audio_cond_unet_forward.11} parent=0 // pred_fallthru
    _
  // Predicated region
  $region18: #{audio_cond_unet_forward.11} parent=0 // pred_check
    _
  $region19: #{audio_cond_unet_forward.11} parent=0 // pred_check_branch
    %263 = sbr.rel (0) target = $region21
  $region20: #{audio_cond_unet_forward.11} parent=0 // pred_region
    _
  $region21: #{audio_cond_unet_forward.11} parent=0 // pred_fallthru
    _

// kernel: audio_cond_unet_forward.12
$region0: #{audio_cond_unet_forward.12}
  #allocation0 [shape = 'u32[]', space=smem, size = 0x4, offset = 0x4, fixed_abs, tag = 'smem constant byte address 0x4 - core index']
  #allocation1 [shape = 'u32[72,128]{1,0:T(1,128)}', space=vmem, size = 0x9000, scoped, tag = 'internal scratch']
  %s0 = inlined_call_operand.vmem [shape: bf16[32,256], index: 0, kind: input, shape index: {}]
  %s1 = inlined_call_operand.vmem [shape: bf16[256,32], index: 1, kind: input, shape index: {}]
  %s2 = inlined_call_operand.vmem [shape: f32[1,32], index: 2, kind: input, shape index: {}]
  %s3 = inlined_call_operand.vmem [shape: bf16[32,32], index: 3, kind: output, shape index: {}]
  %s4 = sld [smem:[#allocation0]]
  $region22: #{audio_cond_unet_forward.12} parent=0
    _
  %s6 = ssub.s32 1, %s4
  %s7 = scalar_select 0, %s6, %s4
  // Predicated region
  $region2: #{audio_cond_unet_forward.12} parent=0 // pred_check
    _
  $region3: #{audio_cond_unet_forward.12} parent=0 // pred_check_branch
    %9 = sbr.rel (0) target = $region5
  $region4: #{audio_cond_unet_forward.12} parent=0 // pred_region
    _
  $region5: #{audio_cond_unet_forward.12} parent=0 // pred_fallthru
    _
  // Predicated region
  $region6: #{audio_cond_unet_forward.12} parent=0 // pred_check
    _
  $region7: #{audio_cond_unet_forward.12} parent=0 // pred_check_branch
    %11 = sbr.rel (0) target = $region9
  $region8: #{audio_cond_unet_forward.12} parent=0 // pred_region
    _
  $region9: #{audio_cond_unet_forward.12} parent=0 // pred_fallthru
    _
  // Predicated region
  $region10: #{audio_cond_unet_forward.12} parent=0 // pred_check
    _
  $region11: #{audio_cond_unet_forward.12} parent=0 // pred_check_branch
    %13 = sbr.rel (0) target = $region13
  $region12: #{audio_cond_unet_forward.12} parent=0 // pred_region
    _
  $region13: #{audio_cond_unet_forward.12} parent=0 // pred_fallthru
    _
  %v14 = vld [vmem:[%s0] sm:$0xff]
  %v15 = vld [vmem:[%s0 + $0x8] sm:$0xff]
  %v16 = vld [vmem:[%s0 + $0x10] sm:$0xff]
  %v17 = vld [vmem:[%s0 + $0x18] sm:$0xff]
  %v18 = vld [vmem:[%s1] sm:$0xf]
  %v19 = vld [vmem:[%s1 + $0x4] sm:$0xf]
  %v20 = vld [vmem:[%s1 + $0x8] sm:$0xf]
  %v21 = vld [vmem:[%s1 + $0xc] sm:$0xf]
  %v22 = vld [vmem:[%s1 + $0x10] sm:$0xf]
  %v23 = vld [vmem:[%s1 + $0x14] sm:$0xf]
  %v24 = vld [vmem:[%s1 + $0x18] sm:$0xf]
  %v25 = vld [vmem:[%s1 + $0x1c] sm:$0xf]
  %v26 = vld [vmem:[%s1 + $0x20] sm:$0xf]
  %v27 = vld [vmem:[%s1 + $0x24] sm:$0xf]
  %v28 = vld [vmem:[%s1 + $0x28] sm:$0xf]
  %v29 = vld [vmem:[%s1 + $0x2c] sm:$0xf]
  %v30 = vld [vmem:[%s1 + $0x30] sm:$0xf]
  %v31 = vld [vmem:[%s1 + $0x34] sm:$0xf]
  %v32 = vld [vmem:[%s1 + $0x38] sm:$0xf]
  %v33 = vld [vmem:[%s1 + $0x3c] sm:$0xf]
  %v34 = vld [vmem:[%s1 + $0x40] sm:$0xf]
  %v35 = vld [vmem:[%s1 + $0x44] sm:$0xf]
  %v36 = vld [vmem:[%s1 + $0x48] sm:$0xf]
  %v37 = vld [vmem:[%s1 + $0x4c] sm:$0xf]
  %v38 = vld [vmem:[%s1 + $0x50] sm:$0xf]
  %v39 = vld [vmem:[%s1 + $0x54] sm:$0xf]
  %v40 = vld [vmem:[%s1 + $0x58] sm:$0xf]
  %v41 = vld [vmem:[%s1 + $0x5c] sm:$0xf]
  %v42 = vld [vmem:[%s1 + $0x60] sm:$0xf]
  %v43 = vld [vmem:[%s1 + $0x64] sm:$0xf]
  %v44 = vld [vmem:[%s1 + $0x68] sm:$0xf]
  %v45 = vld [vmem:[%s1 + $0x6c] sm:$0xf]
  %v46 = vld [vmem:[%s1 + $0x70] sm:$0xf]
  %v47 = vld [vmem:[%s1 + $0x74] sm:$0xf]
  %v48 = vld [vmem:[%s1 + $0x78] sm:$0xf]
  %v49 = vld [vmem:[%s1 + $0x7c] sm:$0xf]
  %v50 = vld [vmem:[%s2] sm:$0x1]
  %v52 = vperm.slane %v50, 0
  %v58 = vunpack.c.l.b16 %v14
  %v59 = vunpack.c.h.b16 %v14
  %v60 = vunpack.c.l.b16 %v15
  %v61 = vunpack.c.h.b16 %v15
  %v62 = vunpack.c.l.b16 %v16
  %v63 = vunpack.c.h.b16 %v16
  %v64 = vunpack.c.l.b16 %v17
  %v65 = vunpack.c.h.b16 %v17
  %v66 = vpack.c.b16 %v60, %v58
  %v67 = vpack.c.b16 %v61, %v59
  %v68 = vpack.c.b16 %v64, %v62
  %v69 = vpack.c.b16 %v65, %v63
  %v106 = vunpack.c.l.b16 %v18
  %v107 = vunpack.c.l.b16 %v19
  %v108 = vunpack.c.l.b16 %v20
  %v109 = vunpack.c.l.b16 %v21
  %v110 = vunpack.c.l.b16 %v22
  %v111 = vunpack.c.l.b16 %v23
  %v112 = vunpack.c.l.b16 %v24
  %v113 = vunpack.c.l.b16 %v25
  %v114 = vunpack.c.l.b16 %v26
  %v115 = vunpack.c.l.b16 %v27
  %v116 = vunpack.c.l.b16 %v28
  %v117 = vunpack.c.l.b16 %v29
  %v118 = vunpack.c.l.b16 %v30
  %v119 = vunpack.c.l.b16 %v31
  %v120 = vunpack.c.l.b16 %v32
  %v121 = vunpack.c.l.b16 %v33
  %v122 = vunpack.c.l.b16 %v34
  %v123 = vunpack.c.l.b16 %v35
  %v124 = vunpack.c.l.b16 %v36
  %v125 = vunpack.c.l.b16 %v37
  %v126 = vunpack.c.l.b16 %v38
  %v127 = vunpack.c.l.b16 %v39
  %v128 = vunpack.c.l.b16 %v40
  %v129 = vunpack.c.l.b16 %v41
  %v130 = vunpack.c.l.b16 %v42
  %v131 = vunpack.c.l.b16 %v43
  %v132 = vunpack.c.l.b16 %v44
  %v133 = vunpack.c.l.b16 %v45
  %v134 = vunpack.c.l.b16 %v46
  %v135 = vunpack.c.l.b16 %v47
  %v136 = vunpack.c.l.b16 %v48
  %v137 = vunpack.c.l.b16 %v49
  %v138 = vpack.c.b16 %v107, %v106
  %v139 = vpack.c.b16 %v109, %v108
  %v140 = vpack.c.b16 %v111, %v110
  %v141 = vpack.c.b16 %v113, %v112
  %v142 = vpack.c.b16 %v115, %v114
  %v143 = vpack.c.b16 %v117, %v116
  %v144 = vpack.c.b16 %v119, %v118
  %v145 = vpack.c.b16 %v121, %v120
  %v146 = vpack.c.b16 %v123, %v122
  %v147 = vpack.c.b16 %v125, %v124
  %v148 = vpack.c.b16 %v127, %v126
  %v149 = vpack.c.b16 %v129, %v128
  %v150 = vpack.c.b16 %v131, %v130
  %v151 = vpack.c.b16 %v133, %v132
  %v152 = vpack.c.b16 %v135, %v134
  %v153 = vpack.c.b16 %v137, %v136
  %170 = vmatpush.bf16.msra.mxu0 %v145
  %171 = vmatpush.bf16.msra.mxu0 %v144
  %172 = vmatpush.bf16.msra.mxu0 %v143
  %173 = vmatpush.bf16.msra.mxu0 %v142
  %174 = vmatpush.bf16.msra.mxu0 %v141
  %175 = vmatpush.bf16.msra.mxu0 %v140
  %176 = vmatpush.bf16.msra.mxu0 %v139
  %177 = vmatpush.bf16.msra.mxu0 %v138
  %178 = vmatmul.bf16.gmra.mxu0 %v66
  %v179 = vpop.f32.mrf.mxu0
  %v180 = vadd.f32 %v52, %v179
  %v181 = vpop.f32.mrf.mxu0
  %v182 = vadd.f32 %v52, %v181
  %183 = vmatmul.bf16.gmra.mxu0 %v68
  %v184 = vpop.f32.mrf.mxu0
  %v185 = vadd.f32 %v52, %v184
  %v186 = vpop.f32.mrf.mxu0
  %v187 = vadd.f32 %v52, %v186
  %188 = vdwg.mxu0
  %189 = vmatpush.bf16.msra.mxu0 %v153
  %190 = vmatpush.bf16.msra.mxu0 %v152
  %191 = vmatpush.bf16.msra.mxu0 %v151
  %192 = vmatpush.bf16.msra.mxu0 %v150
  %193 = vmatpush.bf16.msra.mxu0 %v149
  %194 = vmatpush.bf16.msra.mxu0 %v148
  %195 = vmatpush.bf16.msra.mxu0 %v147
  %196 = vmatpush.bf16.msra.mxu0 %v146
  %197 = vmatmul.bf16.gmra.mxu0 %v67
  %v198 = vpop.f32.mrf.mxu0
  %v199 = vadd.f32 %v180, %v198
  %v200 = vpop.f32.mrf.mxu0
  %v201 = vadd.f32 %v182, %v200
  %202 = vmatmul.bf16.gmra.mxu0 %v69
  %v203 = vpop.f32.mrf.mxu0
  %v204 = vadd.f32 %v185, %v203
  %v205 = vpop.f32.mrf.mxu0
  %v206 = vadd.f32 %v187, %v205
  %207 = vdwg.mxu0
  %v208 = vmul.f32 %v199, 0.2
  %v209 = vmul.f32 %v201, 0.2
  %v210 = vmul.f32 %v204, 0.2
  %v211 = vmul.f32 %v206, 0.2
  %v212 = vmax.f32 %v199, %v208
  %v213 = vmax.f32 %v201, %v209
  %v214 = vmax.f32 %v204, %v210
  %v215 = vmax.f32 %v206, %v211
  %v216 = vpack.c.bf16 %v212, %v212
  %v217 = vpack.c.bf16 %v213, %v213
  %v218 = vpack.c.bf16 %v214, %v214
  %v219 = vpack.c.bf16 %v215, %v215
  %vm220 = vcmask 257024
  %221 = vst.msk [vmem:[%s3] sm:$0xf] %vm220, %v216
  %222 = vst.msk [vmem:[%s3 + $0x4] sm:$0xf] %vm220, %v217
  %223 = vst.msk [vmem:[%s3 + $0x8] sm:$0xf] %vm220, %v218
  %224 = vst.msk [vmem:[%s3 + $0xc] sm:$0xf] %vm220, %v219
  // Predicated region
  $region14: #{audio_cond_unet_forward.12} parent=0 // pred_check
    _
  $region15: #{audio_cond_unet_forward.12} parent=0 // pred_check_branch
    %226 = sbr.rel (0) target = $region17
  $region16: #{audio_cond_unet_forward.12} parent=0 // pred_region
    _
  $region17: #{audio_cond_unet_forward.12} parent=0 // pred_fallthru
    _
  // Predicated region
  $region18: #{audio_cond_unet_forward.12} parent=0 // pred_check
    _
  $region19: #{audio_cond_unet_forward.12} parent=0 // pred_check_branch
    %228 = sbr.rel (0) target = $region21
  $region20: #{audio_cond_unet_forward.12} parent=0 // pred_region
    _
  $region21: #{audio_cond_unet_forward.12} parent=0 // pred_fallthru
    _

// kernel: audio_cond_unet_forward.13
$region0: #{audio_cond_unet_forward.13}
  #allocation0 [shape = 'u32[]', space=smem, size = 0x4, offset = 0x4, fixed_abs, tag = 'smem constant byte address 0x4 - core index']
  #allocation1 [shape = 'u32[72,128]{1,0:T(1,128)}', space=vmem, size = 0x9000, scoped, tag = 'internal scratch']
  %s0 = inlined_call_operand.vmem [shape: bf16[8,512], index: 0, kind: input, shape index: {}]
  %s1 = inlined_call_operand.vmem [shape: bf16[512,64], index: 1, kind: input, shape index: {}]
  %s2 = inlined_call_operand.vmem [shape: f32[1,64], index: 2, kind: input, shape index: {}]
  %s3 = inlined_call_operand.vmem [shape: bf16[8,64], index: 3, kind: output, shape index: {}]
  %s4 = sld [smem:[#allocation0]]
  $region22: #{audio_cond_unet_forward.13} parent=0
    _
  %s6 = ssub.s32 1, %s4
  %s7 = scalar_select 0, %s6, %s4
  // Predicated region
  $region2: #{audio_cond_unet_forward.13} parent=0 // pred_check
    _
  $region3: #{audio_cond_unet_forward.13} parent=0 // pred_check_branch
    %9 = sbr.rel (0) target = $region5
  $region4: #{audio_cond_unet_forward.13} parent=0 // pred_region
    _
  $region5: #{audio_cond_unet_forward.13} parent=0 // pred_fallthru
    _
  // Predicated region
  $region6: #{audio_cond_unet_forward.13} parent=0 // pred_check
    _
  $region7: #{audio_cond_unet_forward.13} parent=0 // pred_check_branch
    %11 = sbr.rel (0) target = $region9
  $region8: #{audio_cond_unet_forward.13} parent=0 // pred_region
    _
  $region9: #{audio_cond_unet_forward.13} parent=0 // pred_fallthru
    _
  // Predicated region
  $region10: #{audio_cond_unet_forward.13} parent=0 // pred_check
    _
  $region11: #{audio_cond_unet_forward.13} parent=0 // pred_check_branch
    %13 = sbr.rel (0) target = $region13
  $region12: #{audio_cond_unet_forward.13} parent=0 // pred_region
    _
  $region13: #{audio_cond_unet_forward.13} parent=0 // pred_fallthru
    _
  %v14 = vld [vmem:[%s0] sm:$0xff]
  %v15 = vld [vmem:[%s0 + $0x8] sm:$0xff]
  %v16 = vld [vmem:[%s1] sm:$0xf]
  %v17 = vld [vmem:[%s1 + $0x4] sm:$0xf]
  %v18 = vld [vmem:[%s1 + $0x8] sm:$0xf]
  %v19 = vld [vmem:[%s1 + $0xc] sm:$0xf]
  %v20 = vld [vmem:[%s1 + $0x10] sm:$0xf]
  %v21 = vld [vmem:[%s1 + $0x14] sm:$0xf]
  %v22 = vld [vmem:[%s1 + $0x18] sm:$0xf]
  %v23 = vld [vmem:[%s1 + $0x1c] sm:$0xf]
  %v24 = vld [vmem:[%s1 + $0x20] sm:$0xf]
  %v25 = vld [vmem:[%s1 + $0x24] sm:$0xf]
  %v26 = vld [vmem:[%s1 + $0x28] sm:$0xf]
  %v27 = vld [vmem:[%s1 + $0x2c] sm:$0xf]
  %v28 = vld [vmem:[%s1 + $0x30] sm:$0xf]
  %v29 = vld [vmem:[%s1 + $0x34] sm:$0xf]
  %v30 = vld [vmem:[%s1 + $0x38] sm:$0xf]
  %v31 = vld [vmem:[%s1 + $0x3c] sm:$0xf]
  %v32 = vld [vmem:[%s1 + $0x40] sm:$0xf]
  %v33 = vld [vmem:[%s1 + $0x44] sm:$0xf]
  %v34 = vld [vmem:[%s1 + $0x48] sm:$0xf]
  %v35 = vld [vmem:[%s1 + $0x4c] sm:$0xf]
  %v36 = vld [vmem:[%s1 + $0x50] sm:$0xf]
  %v37 = vld [vmem:[%s1 + $0x54] sm:$0xf]
  %v38 = vld [vmem:[%s1 + $0x58] sm:$0xf]
  %v39 = vld [vmem:[%s1 + $0x5c] sm:$0xf]
  %v40 = vld [vmem:[%s1 + $0x60] sm:$0xf]
  %v41 = vld [vmem:[%s1 + $0x64] sm:$0xf]
  %v42 = vld [vmem:[%s1 + $0x68] sm:$0xf]
  %v43 = vld [vmem:[%s1 + $0x6c] sm:$0xf]
  %v44 = vld [vmem:[%s1 + $0x70] sm:$0xf]
  %v45 = vld [vmem:[%s1 + $0x74] sm:$0xf]
  %v46 = vld [vmem:[%s1 + $0x78] sm:$0xf]
  %v47 = vld [vmem:[%s1 + $0x7c] sm:$0xf]
  %v48 = vld [vmem:[%s1 + $0x80] sm:$0xf]
  %v49 = vld [vmem:[%s1 + $0x84] sm:$0xf]
  %v50 = vld [vmem:[%s1 + $0x88] sm:$0xf]
  %v51 = vld [vmem:[%s1 + $0x8c] sm:$0xf]
  %v52 = vld [vmem:[%s1 + $0x90] sm:$0xf]
  %v53 = vld [vmem:[%s1 + $0x94] sm:$0xf]
  %v54 = vld [vmem:[%s1 + $0x98] sm:$0xf]
  %v55 = vld [vmem:[%s1 + $0x9c] sm:$0xf]
  %v56 = vld [vmem:[%s1 + $0xa0] sm:$0xf]
  %v57 = vld [vmem:[%s1 + $0xa4] sm:$0xf]
  %v58 = vld [vmem:[%s1 + $0xa8] sm:$0xf]
  %v59 = vld [vmem:[%s1 + $0xac] sm:$0xf]
  %v60 = vld [vmem:[%s1 + $0xb0] sm:$0xf]
  %v61 = vld [vmem:[%s1 + $0xb4] sm:$0xf]
  %v62 = vld [vmem:[%s1 + $0xb8] sm:$0xf]
  %v63 = vld [vmem:[%s1 + $0xbc] sm:$0xf]
  %v64 = vld [vmem:[%s1 + $0xc0] sm:$0xf]
  %v65 = vld [vmem:[%s1 + $0xc4] sm:$0xf]
  %v66 = vld [vmem:[%s1 + $0xc8] sm:$0xf]
  %v67 = vld [vmem:[%s1 + $0xcc] sm:$0xf]
  %v68 = vld [vmem:[%s1 + $0xd0] sm:$0xf]
  %v69 = vld [vmem:[%s1 + $0xd4] sm:$0xf]
  %v70 = vld [vmem:[%s1 + $0xd8] sm:$0xf]
  %v71 = vld [vmem:[%s1 + $0xdc] sm:$0xf]
  %v72 = vld [vmem:[%s1 + $0xe0] sm:$0xf]
  %v73 = vld [vmem:[%s1 + $0xe4] sm:$0xf]
  %v74 = vld [vmem:[%s1 + $0xe8] sm:$0xf]
  %v75 = vld [vmem:[%s1 + $0xec] sm:$0xf]
  %v76 = vld [vmem:[%s1 + $0xf0] sm:$0xf]
  %v77 = vld [vmem:[%s1 + $0xf4] sm:$0xf]
  %v78 = vld [vmem:[%s1 + $0xf8] sm:$0xf]
  %v79 = vld [vmem:[%s1 + $0xfc] sm:$0xf]
  %v80 = vld [vmem:[%s2] sm:$0x1]
  %v82 = vperm.slane %v80, 0
  %v86 = vunpack.c.l.b16 %v14
  %v87 = vunpack.c.h.b16 %v14
  %v88 = vunpack.c.l.b16 %v15
  %v89 = vunpack.c.h.b16 %v15
  %v90 = vpack.c.b16 %v86, %v86
  %v91 = vpack.c.b16 %v87, %v87
  %v92 = vpack.c.b16 %v88, %v88
  %v93 = vpack.c.b16 %v89, %v89
  %v162 = vunpack.c.l.b16 %v16
  %v163 = vunpack.c.l.b16 %v17
  %v164 = vunpack.c.l.b16 %v18
  %v165 = vunpack.c.l.b16 %v19
  %v166 = vunpack.c.l.b16 %v20
  %v167 = vunpack.c.l.b16 %v21
  %v168 = vunpack.c.l.b16 %v22
  %v169 = vunpack.c.l.b16 %v23
  %v170 = vunpack.c.l.b16 %v24
  %v171 = vunpack.c.l.b16 %v25
  %v172 = vunpack.c.l.b16 %v26
  %v173 = vunpack.c.l.b16 %v27
  %v174 = vunpack.c.l.b16 %v28
  %v175 = vunpack.c.l.b16 %v29
  %v176 = vunpack.c.l.b16 %v30
  %v177 = vunpack.c.l.b16 %v31
  %v178 = vunpack.c.l.b16 %v32
  %v179 = vunpack.c.l.b16 %v33
  %v180 = vunpack.c.l.b16 %v34
  %v181 = vunpack.c.l.b16 %v35
  %v182 = vunpack.c.l.b16 %v36
  %v183 = vunpack.c.l.b16 %v37
  %v184 = vunpack.c.l.b16 %v38
  %v185 = vunpack.c.l.b16 %v39
  %v186 = vunpack.c.l.b16 %v40
  %v187 = vunpack.c.l.b16 %v41
  %v188 = vunpack.c.l.b16 %v42
  %v189 = vunpack.c.l.b16 %v43
  %v190 = vunpack.c.l.b16 %v44
  %v191 = vunpack.c.l.b16 %v45
  %v192 = vunpack.c.l.b16 %v46
  %v193 = vunpack.c.l.b16 %v47
  %v194 = vunpack.c.l.b16 %v48
  %v195 = vunpack.c.l.b16 %v49
  %v196 = vunpack.c.l.b16 %v50
  %v197 = vunpack.c.l.b16 %v51
  %v198 = vunpack.c.l.b16 %v52
  %v199 = vunpack.c.l.b16 %v53
  %v200 = vunpack.c.l.b16 %v54
  %v201 = vunpack.c.l.b16 %v55
  %v202 = vunpack.c.l.b16 %v56
  %v203 = vunpack.c.l.b16 %v57
  %v204 = vunpack.c.l.b16 %v58
  %v205 = vunpack.c.l.b16 %v59
  %v206 = vunpack.c.l.b16 %v60
  %v207 = vunpack.c.l.b16 %v61
  %v208 = vunpack.c.l.b16 %v62
  %v209 = vunpack.c.l.b16 %v63
  %v210 = vunpack.c.l.b16 %v64
  %v211 = vunpack.c.l.b16 %v65
  %v212 = vunpack.c.l.b16 %v66
  %v213 = vunpack.c.l.b16 %v67
  %v214 = vunpack.c.l.b16 %v68
  %v215 = vunpack.c.l.b16 %v69
  %v216 = vunpack.c.l.b16 %v70
  %v217 = vunpack.c.l.b16 %v71
  %v218 = vunpack.c.l.b16 %v72
  %v219 = vunpack.c.l.b16 %v73
  %v220 = vunpack.c.l.b16 %v74
  %v221 = vunpack.c.l.b16 %v75
  %v222 = vunpack.c.l.b16 %v76
  %v223 = vunpack.c.l.b16 %v77
  %v224 = vunpack.c.l.b16 %v78
  %v225 = vunpack.c.l.b16 %v79
  %v226 = vpack.c.b16 %v163, %v162
  %v227 = vpack.c.b16 %v165, %v164
  %v228 = vpack.c.b16 %v167, %v166
  %v229 = vpack.c.b16 %v169, %v168
  %v230 = vpack.c.b16 %v171, %v170
  %v231 = vpack.c.b16 %v173, %v172
  %v232 = vpack.c.b16 %v175, %v174
  %v233 = vpack.c.b16 %v177, %v176
  %v234 = vpack.c.b16 %v179, %v178
  %v235 = vpack.c.b16 %v181, %v180
  %v236 = vpack.c.b16 %v183, %v182
  %v237 = vpack.c.b16 %v185, %v184
  %v238 = vpack.c.b16 %v187, %v186
  %v239 = vpack.c.b16 %v189, %v188
  %v240 = vpack.c.b16 %v191, %v190
  %v241 = vpack.c.b16 %v193, %v192
  %v242 = vpack.c.b16 %v195, %v194
  %v243 = vpack.c.b16 %v197, %v196
  %v244 = vpack.c.b16 %v199, %v198
  %v245 = vpack.c.b16 %v201, %v200
  %v246 = vpack.c.b16 %v203, %v202
  %v247 = vpack.c.b16 %v205, %v204
  %v248 = vpack.c.b16 %v207, %v206
  %v249 = vpack.c.b16 %v209, %v208
  %v250 = vpack.c.b16 %v211, %v210
  %v251 = vpack.c.b16 %v213, %v212
  %v252 = vpack.c.b16 %v215, %v214
  %v253 = vpack.c.b16 %v217, %v216
  %v254 = vpack.c.b16 %v219, %v218
  %v255 = vpack.c.b16 %v221, %v220
  %v256 = vpack.c.b16 %v223, %v222
  %v257 = vpack.c.b16 %v225, %v224
  %290 = vmatpush.bf16.msra.mxu0 %v233
  %291 = vmatpush.bf16.msra.mxu0 %v232
  %292 = vmatpush.bf16.msra.mxu0 %v231
  %293 = vmatpush.bf16.msra.mxu0 %v230
  %294 = vmatpush.bf16.msra.mxu0 %v229
  %295 = vmatpush.bf16.msra.mxu0 %v228
  %296 = vmatpush.bf16.msra.mxu0 %v227
  %297 = vmatpush.bf16.msra.mxu0 %v226
  %298 = vmatmul.bf16.gmra.mxu0 %v90
  %v299 = vpop.f32.mrf.mxu0
  %v300 = vadd.f32 %v82, %v299
  %v301 = vpop.f32.mrf.mxu0
  %302 = vdwg.mxu0
  %303 = vmatpush.bf16.msra.mxu0 %v241
  %304 = vmatpush.bf16.msra.mxu0 %v240
  %305 = vmatpush.bf16.msra.mxu0 %v239
  %306 = vmatpush.bf16.msra.mxu0 %v238
  %307 = vmatpush.bf16.msra.mxu0 %v237
  %308 = vmatpush.bf16.msra.mxu0 %v236
  %309 = vmatpush.bf16.msra.mxu0 %v235
  %310 = vmatpush.bf16.msra.mxu0 %v234
  %311 = vmatmul.bf16.gmra.mxu0 %v91
  %v312 = vpop.f32.mrf.mxu0
  %v313 = vadd.f32 %v300, %v312
  %v314 = vpop.f32.mrf.mxu0
  %315 = vdwg.mxu0
  %316 = vmatpush.bf16.msra.mxu0 %v249
  %317 = vmatpush.bf16.msra.mxu0 %v248
  %318 = vmatpush.bf16.msra.mxu0 %v247
  %319 = vmatpush.bf16.msra.mxu0 %v246
  %320 = vmatpush.bf16.msra.mxu0 %v245
  %321 = vmatpush.bf16.msra.mxu0 %v244
  %322 = vmatpush.bf16.msra.mxu0 %v243
  %323 = vmatpush.bf16.msra.mxu0 %v242
  %324 = vmatmul.bf16.gmra.mxu0 %v92
  %v325 = vpop.f32.mrf.mxu0
  %v326 = vadd.f32 %v313, %v325
  %v327 = vpop.f32.mrf.mxu0
  %328 = vdwg.mxu0
  %329 = vmatpush.bf16.msra.mxu0 %v257
  %330 = vmatpush.bf16.msra.mxu0 %v256
  %331 = vmatpush.bf16.msra.mxu0 %v255
  %332 = vmatpush.bf16.msra.mxu0 %v254
  %333 = vmatpush.bf16.msra.mxu0 %v253
  %334 = vmatpush.bf16.msra.mxu0 %v252
  %335 = vmatpush.bf16.msra.mxu0 %v251
  %336 = vmatpush.bf16.msra.mxu0 %v250
  %337 = vmatmul.bf16.gmra.mxu0 %v93
  %v338 = vpop.f32.mrf.mxu0
  %v339 = vadd.f32 %v326, %v338
  %v340 = vpop.f32.mrf.mxu0
  %341 = vdwg.mxu0
  %v342 = vmul.f32 %v339, 0.2
  %v343 = vmax.f32 %v339, %v342
  %v344 = vpack.c.bf16 %v343, %v343
  %vm345 = vcmask 519168
  %346 = vst.msk [vmem:[%s3] sm:$0xf] %vm345, %v344
  // Predicated region
  $region14: #{audio_cond_unet_forward.13} parent=0 // pred_check
    _
  $region15: #{audio_cond_unet_forward.13} parent=0 // pred_check_branch
    %348 = sbr.rel (0) target = $region17
  $region16: #{audio_cond_unet_forward.13} parent=0 // pred_region
    _
  $region17: #{audio_cond_unet_forward.13} parent=0 // pred_fallthru
    _
  // Predicated region
  $region18: #{audio_cond_unet_forward.13} parent=0 // pred_check
    _
  $region19: #{audio_cond_unet_forward.13} parent=0 // pred_check_branch
    %350 = sbr.rel (0) target = $region21
  $region20: #{audio_cond_unet_forward.13} parent=0 // pred_region
    _
  $region21: #{audio_cond_unet_forward.13} parent=0 // pred_fallthru
    _

// kernel: audio_cond_unet_forward.14
$region0: #{audio_cond_unet_forward.14}
  #allocation0 [shape = 'u32[]', space=smem, size = 0x4, offset = 0x4, fixed_abs, tag = 'smem constant byte address 0x4 - core index']
  #allocation1 [shape = 'u32[72,128]{1,0:T(1,128)}', space=vmem, size = 0x9000, scoped, tag = 'internal scratch']
  %s0 = inlined_call_operand.vmem [shape: bf16[2,1024], index: 0, kind: input, shape index: {}]
  %s1 = inlined_call_operand.vmem [shape: bf16[1024,64], index: 1, kind: input, shape index: {}]
  %s2 = inlined_call_operand.vmem [shape: f32[1,64], index: 2, kind: input, shape index: {}]
  %s3 = inlined_call_operand.vmem [shape: bf16[2,64], index: 3, kind: output, shape index: {}]
  %s4 = sld [smem:[#allocation0]]
  $region22: #{audio_cond_unet_forward.14} parent=0
    _
  %s6 = ssub.s32 1, %s4
  %s7 = scalar_select 0, %s6, %s4
  // Predicated region
  $region2: #{audio_cond_unet_forward.14} parent=0 // pred_check
    _
  $region3: #{audio_cond_unet_forward.14} parent=0 // pred_check_branch
    %9 = sbr.rel (0) target = $region5
  $region4: #{audio_cond_unet_forward.14} parent=0 // pred_region
    _
  $region5: #{audio_cond_unet_forward.14} parent=0 // pred_fallthru
    _
  // Predicated region
  $region6: #{audio_cond_unet_forward.14} parent=0 // pred_check
    _
  $region7: #{audio_cond_unet_forward.14} parent=0 // pred_check_branch
    %11 = sbr.rel (0) target = $region9
  $region8: #{audio_cond_unet_forward.14} parent=0 // pred_region
    _
  $region9: #{audio_cond_unet_forward.14} parent=0 // pred_fallthru
    _
  // Predicated region
  $region10: #{audio_cond_unet_forward.14} parent=0 // pred_check
    _
  $region11: #{audio_cond_unet_forward.14} parent=0 // pred_check_branch
    %13 = sbr.rel (0) target = $region13
  $region12: #{audio_cond_unet_forward.14} parent=0 // pred_region
    _
  $region13: #{audio_cond_unet_forward.14} parent=0 // pred_fallthru
    _
  %v14 = vld [vmem:[%s0] sm:$0xff]
  %v15 = vld [vmem:[%s1] sm:$0xf]
  %v16 = vld [vmem:[%s1 + $0x4] sm:$0xf]
  %v17 = vld [vmem:[%s1 + $0x8] sm:$0xf]
  %v18 = vld [vmem:[%s1 + $0xc] sm:$0xf]
  %v19 = vld [vmem:[%s1 + $0x10] sm:$0xf]
  %v20 = vld [vmem:[%s1 + $0x14] sm:$0xf]
  %v21 = vld [vmem:[%s1 + $0x18] sm:$0xf]
  %v22 = vld [vmem:[%s1 + $0x1c] sm:$0xf]
  %v23 = vld [vmem:[%s1 + $0x20] sm:$0xf]
  %v24 = vld [vmem:[%s1 + $0x24] sm:$0xf]
  %v25 = vld [vmem:[%s1 + $0x28] sm:$0xf]
  %v26 = vld [vmem:[%s1 + $0x2c] sm:$0xf]
  %v27 = vld [vmem:[%s1 + $0x30] sm:$0xf]
  %v28 = vld [vmem:[%s1 + $0x34] sm:$0xf]
  %v29 = vld [vmem:[%s1 + $0x38] sm:$0xf]
  %v30 = vld [vmem:[%s1 + $0x3c] sm:$0xf]
  %v31 = vld [vmem:[%s1 + $0x40] sm:$0xf]
  %v32 = vld [vmem:[%s1 + $0x44] sm:$0xf]
  %v33 = vld [vmem:[%s1 + $0x48] sm:$0xf]
  %v34 = vld [vmem:[%s1 + $0x4c] sm:$0xf]
  %v35 = vld [vmem:[%s1 + $0x50] sm:$0xf]
  %v36 = vld [vmem:[%s1 + $0x54] sm:$0xf]
  %v37 = vld [vmem:[%s1 + $0x58] sm:$0xf]
  %v38 = vld [vmem:[%s1 + $0x5c] sm:$0xf]
  %v39 = vld [vmem:[%s1 + $0x60] sm:$0xf]
  %v40 = vld [vmem:[%s1 + $0x64] sm:$0xf]
  %v41 = vld [vmem:[%s1 + $0x68] sm:$0xf]
  %v42 = vld [vmem:[%s1 + $0x6c] sm:$0xf]
  %v43 = vld [vmem:[%s1 + $0x70] sm:$0xf]
  %v44 = vld [vmem:[%s1 + $0x74] sm:$0xf]
  %v45 = vld [vmem:[%s1 + $0x78] sm:$0xf]
  %v46 = vld [vmem:[%s1 + $0x7c] sm:$0xf]
  %v47 = vld [vmem:[%s1 + $0x80] sm:$0xf]
  %v48 = vld [vmem:[%s1 + $0x84] sm:$0xf]
  %v49 = vld [vmem:[%s1 + $0x88] sm:$0xf]
  %v50 = vld [vmem:[%s1 + $0x8c] sm:$0xf]
  %v51 = vld [vmem:[%s1 + $0x90] sm:$0xf]
  %v52 = vld [vmem:[%s1 + $0x94] sm:$0xf]
  %v53 = vld [vmem:[%s1 + $0x98] sm:$0xf]
  %v54 = vld [vmem:[%s1 + $0x9c] sm:$0xf]
  %v55 = vld [vmem:[%s1 + $0xa0] sm:$0xf]
  %v56 = vld [vmem:[%s1 + $0xa4] sm:$0xf]
  %v57 = vld [vmem:[%s1 + $0xa8] sm:$0xf]
  %v58 = vld [vmem:[%s1 + $0xac] sm:$0xf]
  %v59 = vld [vmem:[%s1 + $0xb0] sm:$0xf]
  %v60 = vld [vmem:[%s1 + $0xb4] sm:$0xf]
  %v61 = vld [vmem:[%s1 + $0xb8] sm:$0xf]
  %v62 = vld [vmem:[%s1 + $0xbc] sm:$0xf]
  %v63 = vld [vmem:[%s1 + $0xc0] sm:$0xf]
  %v64 = vld [vmem:[%s1 + $0xc4] sm:$0xf]
  %v65 = vld [vmem:[%s1 + $0xc8] sm:$0xf]
  %v66 = vld [vmem:[%s1 + $0xcc] sm:$0xf]
  %v67 = vld [vmem:[%s1 + $0xd0] sm:$0xf]
  %v68 = vld [vmem:[%s1 + $0xd4] sm:$0xf]
  %v69 = vld [vmem:[%s1 + $0xd8] sm:$0xf]
  %v70 = vld [vmem:[%s1 + $0xdc] sm:$0xf]
  %v71 = vld [vmem:[%s1 + $0xe0] sm:$0xf]
  %v72 = vld [vmem:[%s1 + $0xe4] sm:$0xf]
  %v73 = vld [vmem:[%s1 + $0xe8] sm:$0xf]
  %v74 = vld [vmem:[%s1 + $0xec] sm:$0xf]
  %v75 = vld [vmem:[%s1 + $0xf0] sm:$0xf]
  %v76 = vld [vmem:[%s1 + $0xf4] sm:$0xf]
  %v77 = vld [vmem:[%s1 + $0xf8] sm:$0xf]
  %v78 = vld [vmem:[%s1 + $0xfc] sm:$0xf]
  %v79 = vld [vmem:[%s1 + $0x100] sm:$0xf]
  %v80 = vld [vmem:[%s1 + $0x104] sm:$0xf]
  %v81 = vld [vmem:[%s1 + $0x108] sm:$0xf]
  %v82 = vld [vmem:[%s1 + $0x10c] sm:$0xf]
  %v83 = vld [vmem:[%s1 + $0x110] sm:$0xf]
  %v84 = vld [vmem:[%s1 + $0x114] sm:$0xf]
  %v85 = vld [vmem:[%s1 + $0x118] sm:$0xf]
  %v86 = vld [vmem:[%s1 + $0x11c] sm:$0xf]
  %v87 = vld [vmem:[%s1 + $0x120] sm:$0xf]
  %v88 = vld [vmem:[%s1 + $0x124] sm:$0xf]
  %v89 = vld [vmem:[%s1 + $0x128] sm:$0xf]
  %v90 = vld [vmem:[%s1 + $0x12c] sm:$0xf]
  %v91 = vld [vmem:[%s1 + $0x130] sm:$0xf]
  %v92 = vld [vmem:[%s1 + $0x134] sm:$0xf]
  %v93 = vld [vmem:[%s1 + $0x138] sm:$0xf]
  %v94 = vld [vmem:[%s1 + $0x13c] sm:$0xf]
  %v95 = vld [vmem:[%s1 + $0x140] sm:$0xf]
  %v96 = vld [vmem:[%s1 + $0x144] sm:$0xf]
  %v97 = vld [vmem:[%s1 + $0x148] sm:$0xf]
  %v98 = vld [vmem:[%s1 + $0x14c] sm:$0xf]
  %v99 = vld [vmem:[%s1 + $0x150] sm:$0xf]
  %v100 = vld [vmem:[%s1 + $0x154] sm:$0xf]
  %v101 = vld [vmem:[%s1 + $0x158] sm:$0xf]
  %v102 = vld [vmem:[%s1 + $0x15c] sm:$0xf]
  %v103 = vld [vmem:[%s1 + $0x160] sm:$0xf]
  %v104 = vld [vmem:[%s1 + $0x164] sm:$0xf]
  %v105 = vld [vmem:[%s1 + $0x168] sm:$0xf]
  %v106 = vld [vmem:[%s1 + $0x16c] sm:$0xf]
  %v107 = vld [vmem:[%s1 + $0x170] sm:$0xf]
  %v108 = vld [vmem:[%s1 + $0x174] sm:$0xf]
  %v109 = vld [vmem:[%s1 + $0x178] sm:$0xf]
  %v110 = vld [vmem:[%s1 + $0x17c] sm:$0xf]
  %v111 = vld [vmem:[%s1 + $0x180] sm:$0xf]
  %v112 = vld [vmem:[%s1 + $0x184] sm:$0xf]
  %v113 = vld [vmem:[%s1 + $0x188] sm:$0xf]
  %v114 = vld [vmem:[%s1 + $0x18c] sm:$0xf]
  %v115 = vld [vmem:[%s1 + $0x190] sm:$0xf]
  %v116 = vld [vmem:[%s1 + $0x194] sm:$0xf]
  %v117 = vld [vmem:[%s1 + $0x198] sm:$0xf]
  %v118 = vld [vmem:[%s1 + $0x19c] sm:$0xf]
  %v119 = vld [vmem:[%s1 + $0x1a0] sm:$0xf]
  %v120 = vld [vmem:[%s1 + $0x1a4] sm:$0xf]
  %v121 = vld [vmem:[%s1 + $0x1a8] sm:$0xf]
  %v122 = vld [vmem:[%s1 + $0x1ac] sm:$0xf]
  %v123 = vld [vmem:[%s1 + $0x1b0] sm:$0xf]
  %v124 = vld [vmem:[%s1 + $0x1b4] sm:$0xf]
  %v125 = vld [vmem:[%s1 + $0x1b8] sm:$0xf]
  %v126 = vld [vmem:[%s1 + $0x1bc] sm:$0xf]
  %v127 = vld [vmem:[%s1 + $0x1c0] sm:$0xf]
  %v128 = vld [vmem:[%s1 + $0x1c4] sm:$0xf]
  %v129 = vld [vmem:[%s1 + $0x1c8] sm:$0xf]
  %v130 = vld [vmem:[%s1 + $0x1cc] sm:$0xf]
  %v131 = vld [vmem:[%s1 + $0x1d0] sm:$0xf]
  %v132 = vld [vmem:[%s1 + $0x1d4] sm:$0xf]
  %v133 = vld [vmem:[%s1 + $0x1d8] sm:$0xf]
  %v134 = vld [vmem:[%s1 + $0x1dc] sm:$0xf]
  %v135 = vld [vmem:[%s1 + $0x1e0] sm:$0xf]
  %v136 = vld [vmem:[%s1 + $0x1e4] sm:$0xf]
  %v137 = vld [vmem:[%s1 + $0x1e8] sm:$0xf]
  %v138 = vld [vmem:[%s1 + $0x1ec] sm:$0xf]
  %v139 = vld [vmem:[%s1 + $0x1f0] sm:$0xf]
  %v140 = vld [vmem:[%s1 + $0x1f4] sm:$0xf]
  %v141 = vld [vmem:[%s1 + $0x1f8] sm:$0xf]
  %v142 = vld [vmem:[%s1 + $0x1fc] sm:$0xf]
  %v143 = vld [vmem:[%s2] sm:$0x1]
  %v145 = vperm.slane %v143, 0
  %148 = vst [vmem:[#allocation1] ss:$9 sm:$0xff] %v14
  %v149 = vld [vmem:[#allocation1] sm:$0xff]
  %v150 = vld [vmem:[#allocation1 + $0x9] sm:$0xff]
  %v151 = vld [vmem:[#allocation1 + $0x12] sm:$0xff]
  %v152 = vld [vmem:[#allocation1 + $0x1b] sm:$0xff]
  %v153 = vld [vmem:[#allocation1 + $0x24] sm:$0xff]
  %v154 = vld [vmem:[#allocation1 + $0x2d] sm:$0xff]
  %v155 = vld [vmem:[#allocation1 + $0x36] sm:$0xff]
  %v156 = vld [vmem:[#allocation1 + $0x3f] sm:$0xff]
  %v293 = vunpack.c.l.b16 %v15
  %v294 = vunpack.c.l.b16 %v16
  %v295 = vunpack.c.l.b16 %v17
  %v296 = vunpack.c.l.b16 %v18
  %v297 = vunpack.c.l.b16 %v19
  %v298 = vunpack.c.l.b16 %v20
  %v299 = vunpack.c.l.b16 %v21
  %v300 = vunpack.c.l.b16 %v22
  %v301 = vunpack.c.l.b16 %v23
  %v302 = vunpack.c.l.b16 %v24
  %v303 = vunpack.c.l.b16 %v25
  %v304 = vunpack.c.l.b16 %v26
  %v305 = vunpack.c.l.b16 %v27
  %v306 = vunpack.c.l.b16 %v28
  %v307 = vunpack.c.l.b16 %v29
  %v308 = vunpack.c.l.b16 %v30
  %v309 = vunpack.c.l.b16 %v31
  %v310 = vunpack.c.l.b16 %v32
  %v311 = vunpack.c.l.b16 %v33
  %v312 = vunpack.c.l.b16 %v34
  %v313 = vunpack.c.l.b16 %v35
  %v314 = vunpack.c.l.b16 %v36
  %v315 = vunpack.c.l.b16 %v37
  %v316 = vunpack.c.l.b16 %v38
  %v317 = vunpack.c.l.b16 %v39
  %v318 = vunpack.c.l.b16 %v40
  %v319 = vunpack.c.l.b16 %v41
  %v320 = vunpack.c.l.b16 %v42
  %v321 = vunpack.c.l.b16 %v43
  %v322 = vunpack.c.l.b16 %v44
  %v323 = vunpack.c.l.b16 %v45
  %v324 = vunpack.c.l.b16 %v46
  %v325 = vunpack.c.l.b16 %v47
  %v326 = vunpack.c.l.b16 %v48
  %v327 = vunpack.c.l.b16 %v49
  %v328 = vunpack.c.l.b16 %v50
  %v329 = vunpack.c.l.b16 %v51
  %v330 = vunpack.c.l.b16 %v52
  %v331 = vunpack.c.l.b16 %v53
  %v332 = vunpack.c.l.b16 %v54
  %v333 = vunpack.c.l.b16 %v55
  %v334 = vunpack.c.l.b16 %v56
  %v335 = vunpack.c.l.b16 %v57
  %v336 = vunpack.c.l.b16 %v58
  %v337 = vunpack.c.l.b16 %v59
  %v338 = vunpack.c.l.b16 %v60
  %v339 = vunpack.c.l.b16 %v61
  %v340 = vunpack.c.l.b16 %v62
  %v341 = vunpack.c.l.b16 %v63
  %v342 = vunpack.c.l.b16 %v64
  %v343 = vunpack.c.l.b16 %v65
  %v344 = vunpack.c.l.b16 %v66
  %v345 = vunpack.c.l.b16 %v67
  %v346 = vunpack.c.l.b16 %v68
  %v347 = vunpack.c.l.b16 %v69
  %v348 = vunpack.c.l.b16 %v70
  %v349 = vunpack.c.l.b16 %v71
  %v350 = vunpack.c.l.b16 %v72
  %v351 = vunpack.c.l.b16 %v73
  %v352 = vunpack.c.l.b16 %v74
  %v353 = vunpack.c.l.b16 %v75
  %v354 = vunpack.c.l.b16 %v76
  %v355 = vunpack.c.l.b16 %v77
  %v356 = vunpack.c.l.b16 %v78
  %v357 = vunpack.c.l.b16 %v79
  %v358 = vunpack.c.l.b16 %v80
  %v359 = vunpack.c.l.b16 %v81
  %v360 = vunpack.c.l.b16 %v82
  %v361 = vunpack.c.l.b16 %v83
  %v362 = vunpack.c.l.b16 %v84
  %v363 = vunpack.c.l.b16 %v85
  %v364 = vunpack.c.l.b16 %v86
  %v365 = vunpack.c.l.b16 %v87
  %v366 = vunpack.c.l.b16 %v88
  %v367 = vunpack.c.l.b16 %v89
  %v368 = vunpack.c.l.b16 %v90
  %v369 = vunpack.c.l.b16 %v91
  %v370 = vunpack.c.l.b16 %v92
  %v371 = vunpack.c.l.b16 %v93
  %v372 = vunpack.c.l.b16 %v94
  %v373 = vunpack.c.l.b16 %v95
  %v374 = vunpack.c.l.b16 %v96
  %v375 = vunpack.c.l.b16 %v97
  %v376 = vunpack.c.l.b16 %v98
  %v377 = vunpack.c.l.b16 %v99
  %v378 = vunpack.c.l.b16 %v100
  %v379 = vunpack.c.l.b16 %v101
  %v380 = vunpack.c.l.b16 %v102
  %v381 = vunpack.c.l.b16 %v103
  %v382 = vunpack.c.l.b16 %v104
  %v383 = vunpack.c.l.b16 %v105
  %v384 = vunpack.c.l.b16 %v106
  %v385 = vunpack.c.l.b16 %v107
  %v386 = vunpack.c.l.b16 %v108
  %v387 = vunpack.c.l.b16 %v109
  %v388 = vunpack.c.l.b16 %v110
  %v389 = vunpack.c.l.b16 %v111
  %v390 = vunpack.c.l.b16 %v112
  %v391 = vunpack.c.l.b16 %v113
  %v392 = vunpack.c.l.b16 %v114
  %v393 = vunpack.c.l.b16 %v115
  %v394 = vunpack.c.l.b16 %v116
  %v395 = vunpack.c.l.b16 %v117
  %v396 = vunpack.c.l.b16 %v118
  %v397 = vunpack.c.l.b16 %v119
  %v398 = vunpack.c.l.b16 %v120
  %v399 = vunpack.c.l.b16 %v121
  %v400 = vunpack.c.l.b16 %v122
  %v401 = vunpack.c.l.b16 %v123
  %v402 = vunpack.c.l.b16 %v124
  %v403 = vunpack.c.l.b16 %v125
  %v404 = vunpack.c.l.b16 %v126
  %v405 = vunpack.c.l.b16 %v127
  %v406 = vunpack.c.l.b16 %v128
  %v407 = vunpack.c.l.b16 %v129
  %v408 = vunpack.c.l.b16 %v130
  %v409 = vunpack.c.l.b16 %v131
  %v410 = vunpack.c.l.b16 %v132
  %v411 = vunpack.c.l.b16 %v133
  %v412 = vunpack.c.l.b16 %v134
  %v413 = vunpack.c.l.b16 %v135
  %v414 = vunpack.c.l.b16 %v136
  %v415 = vunpack.c.l.b16 %v137
  %v416 = vunpack.c.l.b16 %v138
  %v417 = vunpack.c.l.b16 %v139
  %v418 = vunpack.c.l.b16 %v140
  %v419 = vunpack.c.l.b16 %v141
  %v420 = vunpack.c.l.b16 %v142
  %v421 = vpack.c.b16 %v294, %v293
  %v422 = vpack.c.b16 %v296, %v295
  %v423 = vpack.c.b16 %v298, %v297
  %v424 = vpack.c.b16 %v300, %v299
  %v425 = vpack.c.b16 %v302, %v301
  %v426 = vpack.c.b16 %v304, %v303
  %v427 = vpack.c.b16 %v306, %v305
  %v428 = vpack.c.b16 %v308, %v307
  %v429 = vpack.c.b16 %v310, %v309
  %v430 = vpack.c.b16 %v312, %v311
  %v431 = vpack.c.b16 %v314, %v313
  %v432 = vpack.c.b16 %v316, %v315
  %v433 = vpack.c.b16 %v318, %v317
  %v434 = vpack.c.b16 %v320, %v319
  %v435 = vpack.c.b16 %v322, %v321
  %v436 = vpack.c.b16 %v324, %v323
  %v437 = vpack.c.b16 %v326, %v325
  %v438 = vpack.c.b16 %v328, %v327
  %v439 = vpack.c.b16 %v330, %v329
  %v440 = vpack.c.b16 %v332, %v331
  %v441 = vpack.c.b16 %v334, %v333
  %v442 = vpack.c.b16 %v336, %v335
  %v443 = vpack.c.b16 %v338, %v337
  %v444 = vpack.c.b16 %v340, %v339
  %v445 = vpack.c.b16 %v342, %v341
  %v446 = vpack.c.b16 %v344, %v343
  %v447 = vpack.c.b16 %v346, %v345
  %v448 = vpack.c.b16 %v348, %v347
  %v449 = vpack.c.b16 %v350, %v349
  %v450 = vpack.c.b16 %v352, %v351
  %v451 = vpack.c.b16 %v354, %v353
  %v452 = vpack.c.b16 %v356, %v355
  %v453 = vpack.c.b16 %v358, %v357
  %v454 = vpack.c.b16 %v360, %v359
  %v455 = vpack.c.b16 %v362, %v361
  %v456 = vpack.c.b16 %v364, %v363
  %v457 = vpack.c.b16 %v366, %v365
  %v458 = vpack.c.b16 %v368, %v367
  %v459 = vpack.c.b16 %v370, %v369
  %v460 = vpack.c.b16 %v372, %v371
  %v461 = vpack.c.b16 %v374, %v373
  %v462 = vpack.c.b16 %v376, %v375
  %v463 = vpack.c.b16 %v378, %v377
  %v464 = vpack.c.b16 %v380, %v379
  %v465 = vpack.c.b16 %v382, %v381
  %v466 = vpack.c.b16 %v384, %v383
  %v467 = vpack.c.b16 %v386, %v385
  %v468 = vpack.c.b16 %v388, %v387
  %v469 = vpack.c.b16 %v390, %v389
  %v470 = vpack.c.b16 %v392, %v391
  %v471 = vpack.c.b16 %v394, %v393
  %v472 = vpack.c.b16 %v396, %v395
  %v473 = vpack.c.b16 %v398, %v397
  %v474 = vpack.c.b16 %v400, %v399
  %v475 = vpack.c.b16 %v402, %v401
  %v476 = vpack.c.b16 %v404, %v403
  %v477 = vpack.c.b16 %v406, %v405
  %v478 = vpack.c.b16 %v408, %v407
  %v479 = vpack.c.b16 %v410, %v409
  %v480 = vpack.c.b16 %v412, %v411
  %v481 = vpack.c.b16 %v414, %v413
  %v482 = vpack.c.b16 %v416, %v415
  %v483 = vpack.c.b16 %v418, %v417
  %v484 = vpack.c.b16 %v420, %v419
  %549 = vmatpush.bf16.msra.mxu0 %v428
  %550 = vmatpush.bf16.msra.mxu0 %v427
  %551 = vmatpush.bf16.msra.mxu0 %v426
  %552 = vmatpush.bf16.msra.mxu0 %v425
  %553 = vmatpush.bf16.msra.mxu0 %v424
  %554 = vmatpush.bf16.msra.mxu0 %v423
  %555 = vmatpush.bf16.msra.mxu0 %v422
  %556 = vmatpush.bf16.msra.mxu0 %v421
  %557 = vmatmul.bf16.gmra.mxu0 %v149
  %v558 = vpop.f32.mrf.mxu0
  %v559 = vadd.f32 %v145, %v558
  %v560 = vpop.f32.mrf.mxu0
  %561 = vdwg.mxu0
  %562 = vmatpush.bf16.msra.mxu0 %v436
  %563 = vmatpush.bf16.msra.mxu0 %v435
  %564 = vmatpush.bf16.msra.mxu0 %v434
  %565 = vmatpush.bf16.msra.mxu0 %v433
  %566 = vmatpush.bf16.msra.mxu0 %v432
  %567 = vmatpush.bf16.msra.mxu0 %v431
  %568 = vmatpush.bf16.msra.mxu0 %v430
  %569 = vmatpush.bf16.msra.mxu0 %v429
  %570 = vmatmul.bf16.gmra.mxu0 %v150
  %v571 = vpop.f32.mrf.mxu0
  %v572 = vadd.f32 %v559, %v571
  %v573 = vpop.f32.mrf.mxu0
  %574 = vdwg.mxu0
  %575 = vmatpush.bf16.msra.mxu0 %v444
  %576 = vmatpush.bf16.msra.mxu0 %v443
  %577 = vmatpush.bf16.msra.mxu0 %v442
  %578 = vmatpush.bf16.msra.mxu0 %v441
  %579 = vmatpush.bf16.msra.mxu0 %v440
  %580 = vmatpush.bf16.msra.mxu0 %v439
  %581 = vmatpush.bf16.msra.mxu0 %v438
  %582 = vmatpush.bf16.msra.mxu0 %v437
  %583 = vmatmul.bf16.gmra.mxu0 %v151
  %v584 = vpop.f32.mrf.mxu0
  %v585 = vadd.f32 %v572, %v584
  %v586 = vpop.f32.mrf.mxu0
  %587 = vdwg.mxu0
  %588 = vmatpush.bf16.msra.mxu0 %v452
  %589 = vmatpush.bf16.msra.mxu0 %v451
  %590 = vmatpush.bf16.msra.mxu0 %v450
  %591 = vmatpush.bf16.msra.mxu0 %v449
  %592 = vmatpush.bf16.msra.mxu0 %v448
  %593 = vmatpush.bf16.msra.mxu0 %v447
  %594 = vmatpush.bf16.msra.mxu0 %v446
  %595 = vmatpush.bf16.msra.mxu0 %v445
  %596 = vmatmul.bf16.gmra.mxu0 %v152
  %v597 = vpop.f32.mrf.mxu0
  %v598 = vadd.f32 %v585, %v597
  %v599 = vpop.f32.mrf.mxu0
  %600 = vdwg.mxu0
  %601 = vmatpush.bf16.msra.mxu0 %v460
  %602 = vmatpush.bf16.msra.mxu0 %v459
  %603 = vmatpush.bf16.msra.mxu0 %v458
  %604 = vmatpush.bf16.msra.mxu0 %v457
  %605 = vmatpush.bf16.msra.mxu0 %v456
  %606 = vmatpush.bf16.msra.mxu0 %v455
  %607 = vmatpush.bf16.msra.mxu0 %v454
  %608 = vmatpush.bf16.msra.mxu0 %v453
  %609 = vmatmul.bf16.gmra.mxu0 %v153
  %v610 = vpop.f32.mrf.mxu0
  %v611 = vadd.f32 %v598, %v610
  %v612 = vpop.f32.mrf.mxu0
  %613 = vdwg.mxu0
  %614 = vmatpush.bf16.msra.mxu0 %v468
  %615 = vmatpush.bf16.msra.mxu0 %v467
  %616 = vmatpush.bf16.msra.mxu0 %v466
  %617 = vmatpush.bf16.msra.mxu0 %v465
  %618 = vmatpush.bf16.msra.mxu0 %v464
  %619 = vmatpush.bf16.msra.mxu0 %v463
  %620 = vmatpush.bf16.msra.mxu0 %v462
  %621 = vmatpush.bf16.msra.mxu0 %v461
  %622 = vmatmul.bf16.gmra.mxu0 %v154
  %v623 = vpop.f32.mrf.mxu0
  %v624 = vadd.f32 %v611, %v623
  %v625 = vpop.f32.mrf.mxu0
  %626 = vdwg.mxu0
  %627 = vmatpush.bf16.msra.mxu0 %v476
  %628 = vmatpush.bf16.msra.mxu0 %v475
  %629 = vmatpush.bf16.msra.mxu0 %v474
  %630 = vmatpush.bf16.msra.mxu0 %v473
  %631 = vmatpush.bf16.msra.mxu0 %v472
  %632 = vmatpush.bf16.msra.mxu0 %v471
  %633 = vmatpush.bf16.msra.mxu0 %v470
  %634 = vmatpush.bf16.msra.mxu0 %v469
  %635 = vmatmul.bf16.gmra.mxu0 %v155
  %v636 = vpop.f32.mrf.mxu0
  %v637 = vadd.f32 %v624, %v636
  %v638 = vpop.f32.mrf.mxu0
  %639 = vdwg.mxu0
  %640 = vmatpush.bf16.msra.mxu0 %v484
  %641 = vmatpush.bf16.msra.mxu0 %v483
  %642 = vmatpush.bf16.msra.mxu0 %v482
  %643 = vmatpush.bf16.msra.mxu0 %v481
  %644 = vmatpush.bf16.msra.mxu0 %v480
  %645 = vmatpush.bf16.msra.mxu0 %v479
  %646 = vmatpush.bf16.msra.mxu0 %v478
  %647 = vmatpush.bf16.msra.mxu0 %v477
  %648 = vmatmul.bf16.gmra.mxu0 %v156
  %v649 = vpop.f32.mrf.mxu0
  %v650 = vadd.f32 %v637, %v649
  %v651 = vpop.f32.mrf.mxu0
  %652 = vdwg.mxu0
  %v653 = vmul.f32 %v650, 0.2
  %v654 = vmax.f32 %v650, %v653
  %v655 = vpack.c.bf16 %v654, %v654
  %vm656 = vcmask 516096
  %657 = vst.msk [vmem:[%s3] sm:$0x1] %vm656, %v655
  // Predicated region
  $region14: #{audio_cond_unet_forward.14} parent=0 // pred_check
    _
  $region15: #{audio_cond_unet_forward.14} parent=0 // pred_check_branch
    %659 = sbr.rel (0) target = $region17
  $region16: #{audio_cond_unet_forward.14} parent=0 // pred_region
    _
  $region17: #{audio_cond_unet_forward.14} parent=0 // pred_fallthru
    _
  // Predicated region
  $region18: #{audio_cond_unet_forward.14} parent=0 // pred_check
    _
  $region19: #{audio_cond_unet_forward.14} parent=0 // pred_check_branch
    %661 = sbr.rel (0) target = $region21
  $region20: #{audio_cond_unet_forward.14} parent=0 // pred_region
    _
  $region21: #{audio_cond_unet_forward.14} parent=0 // pred_fallthru
    _

// kernel: audio_cond_unet_forward.16
$region0: #{audio_cond_unet_forward.16}
  #allocation0 [shape = 'u32[]', space=smem, size = 0x4, offset = 0x4, fixed_abs, tag = 'smem constant byte address 0x4 - core index']
  #allocation1 [shape = 'u32[72,128]{1,0:T(1,128)}', space=vmem, size = 0x9000, scoped, tag = 'internal scratch']
  %s0 = inlined_call_operand.vmem [shape: bf16[8,1152], index: 0, kind: input, shape index: {}]
  %s1 = inlined_call_operand.vmem [shape: bf16[1152,128], index: 1, kind: input, shape index: {}]
  %s2 = inlined_call_operand.vmem [shape: f32[1,128], index: 2, kind: input, shape index: {}]
  %s3 = inlined_call_operand.vmem [shape: bf16[8,128], index: 3, kind: output, shape index: {}]
  %s4 = sld [smem:[#allocation0]]
  $region22: #{audio_cond_unet_forward.16} parent=0
    _
  %s6 = ssub.s32 1, %s4
  %s7 = scalar_select 0, %s6, %s4
  // Predicated region
  $region2: #{audio_cond_unet_forward.16} parent=0 // pred_check
    _
  $region3: #{audio_cond_unet_forward.16} parent=0 // pred_check_branch
    %9 = sbr.rel (0) target = $region5
  $region4: #{audio_cond_unet_forward.16} parent=0 // pred_region
    _
  $region5: #{audio_cond_unet_forward.16} parent=0 // pred_fallthru
    _
  // Predicated region
  $region6: #{audio_cond_unet_forward.16} parent=0 // pred_check
    _
  $region7: #{audio_cond_unet_forward.16} parent=0 // pred_check_branch
    %11 = sbr.rel (0) target = $region9
  $region8: #{audio_cond_unet_forward.16} parent=0 // pred_region
    _
  $region9: #{audio_cond_unet_forward.16} parent=0 // pred_fallthru
    _
  // Predicated region
  $region10: #{audio_cond_unet_forward.16} parent=0 // pred_check
    _
  $region11: #{audio_cond_unet_forward.16} parent=0 // pred_check_branch
    %13 = sbr.rel (0) target = $region13
  $region12: #{audio_cond_unet_forward.16} parent=0 // pred_region
    _
  $region13: #{audio_cond_unet_forward.16} parent=0 // pred_fallthru
    _
  %v14 = vld [vmem:[%s0] sm:$0xff]
  %v15 = vld [vmem:[%s0 + $0x8] sm:$0xff]
  %v16 = vld [vmem:[%s0 + $0x10] sm:$0xff]
  %v17 = vld [vmem:[%s0 + $0x18] sm:$0xff]
  %v18 = vld [vmem:[%s0 + $0x20] sm:$0xf]
  %v19 = vld [vmem:[%s1] sm:$0xf]
  %v20 = vld [vmem:[%s1 + $0x4] sm:$0xf]
  %v21 = vld [vmem:[%s1 + $0x8] sm:$0xf]
  %v22 = vld [vmem:[%s1 + $0xc] sm:$0xf]
  %v23 = vld [vmem:[%s1 + $0x10] sm:$0xf]
  %v24 = vld [vmem:[%s1 + $0x14] sm:$0xf]
  %v25 = vld [vmem:[%s1 + $0x18] sm:$0xf]
  %v26 = vld [vmem:[%s1 + $0x1c] sm:$0xf]
  %v27 = vld [vmem:[%s1 + $0x20] sm:$0xf]
  %v28 = vld [vmem:[%s1 + $0x24] sm:$0xf]
  %v29 = vld [vmem:[%s1 + $0x28] sm:$0xf]
  %v30 = vld [vmem:[%s1 + $0x2c] sm:$0xf]
  %v31 = vld [vmem:[%s1 + $0x30] sm:$0xf]
  %v32 = vld [vmem:[%s1 + $0x34] sm:$0xf]
  %v33 = vld [vmem:[%s1 + $0x38] sm:$0xf]
  %v34 = vld [vmem:[%s1 + $0x3c] sm:$0xf]
  %v35 = vld [vmem:[%s1 + $0x40] sm:$0xf]
  %v36 = vld [vmem:[%s1 + $0x44] sm:$0xf]
  %v37 = vld [vmem:[%s1 + $0x48] sm:$0xf]
  %v38 = vld [vmem:[%s1 + $0x4c] sm:$0xf]
  %v39 = vld [vmem:[%s1 + $0x50] sm:$0xf]
  %v40 = vld [vmem:[%s1 + $0x54] sm:$0xf]
  %v41 = vld [vmem:[%s1 + $0x58] sm:$0xf]
  %v42 = vld [vmem:[%s1 + $0x5c] sm:$0xf]
  %v43 = vld [vmem:[%s1 + $0x60] sm:$0xf]
  %v44 = vld [vmem:[%s1 + $0x64] sm:$0xf]
  %v45 = vld [vmem:[%s1 + $0x68] sm:$0xf]
  %v46 = vld [vmem:[%s1 + $0x6c] sm:$0xf]
  %v47 = vld [vmem:[%s1 + $0x70] sm:$0xf]
  %v48 = vld [vmem:[%s1 + $0x74] sm:$0xf]
  %v49 = vld [vmem:[%s1 + $0x78] sm:$0xf]
  %v50 = vld [vmem:[%s1 + $0x7c] sm:$0xf]
  %v51 = vld [vmem:[%s1 + $0x80] sm:$0xf]
  %v52 = vld [vmem:[%s1 + $0x84] sm:$0xf]
  %v53 = vld [vmem:[%s1 + $0x88] sm:$0xf]
  %v54 = vld [vmem:[%s1 + $0x8c] sm:$0xf]
  %v55 = vld [vmem:[%s1 + $0x90] sm:$0xf]
  %v56 = vld [vmem:[%s1 + $0x94] sm:$0xf]
  %v57 = vld [vmem:[%s1 + $0x98] sm:$0xf]
  %v58 = vld [vmem:[%s1 + $0x9c] sm:$0xf]
  %v59 = vld [vmem:[%s1 + $0xa0] sm:$0xf]
  %v60 = vld [vmem:[%s1 + $0xa4] sm:$0xf]
  %v61 = vld [vmem:[%s1 + $0xa8] sm:$0xf]
  %v62 = vld [vmem:[%s1 + $0xac] sm:$0xf]
  %v63 = vld [vmem:[%s1 + $0xb0] sm:$0xf]
  %v64 = vld [vmem:[%s1 + $0xb4] sm:$0xf]
  %v65 = vld [vmem:[%s1 + $0xb8] sm:$0xf]
  %v66 = vld [vmem:[%s1 + $0xbc] sm:$0xf]
  %v67 = vld [vmem:[%s1 + $0xc0] sm:$0xf]
  %v68 = vld [vmem:[%s1 + $0xc4] sm:$0xf]
  %v69 = vld [vmem:[%s1 + $0xc8] sm:$0xf]
  %v70 = vld [vmem:[%s1 + $0xcc] sm:$0xf]
  %v71 = vld [vmem:[%s1 + $0xd0] sm:$0xf]
  %v72 = vld [vmem:[%s1 + $0xd4] sm:$0xf]
  %v73 = vld [vmem:[%s1 + $0xd8] sm:$0xf]
  %v74 = vld [vmem:[%s1 + $0xdc] sm:$0xf]
  %v75 = vld [vmem:[%s1 + $0xe0] sm:$0xf]
  %v76 = vld [vmem:[%s1 + $0xe4] sm:$0xf]
  %v77 = vld [vmem:[%s1 + $0xe8] sm:$0xf]
  %v78 = vld [vmem:[%s1 + $0xec] sm:$0xf]
  %v79 = vld [vmem:[%s1 + $0xf0] sm:$0xf]
  %v80 = vld [vmem:[%s1 + $0xf4] sm:$0xf]
  %v81 = vld [vmem:[%s1 + $0xf8] sm:$0xf]
  %v82 = vld [vmem:[%s1 + $0xfc] sm:$0xf]
  %v83 = vld [vmem:[%s1 + $0x100] sm:$0xf]
  %v84 = vld [vmem:[%s1 + $0x104] sm:$0xf]
  %v85 = vld [vmem:[%s1 + $0x108] sm:$0xf]
  %v86 = vld [vmem:[%s1 + $0x10c] sm:$0xf]
  %v87 = vld [vmem:[%s1 + $0x110] sm:$0xf]
  %v88 = vld [vmem:[%s1 + $0x114] sm:$0xf]
  %v89 = vld [vmem:[%s1 + $0x118] sm:$0xf]
  %v90 = vld [vmem:[%s1 + $0x11c] sm:$0xf]
  %v91 = vld [vmem:[%s1 + $0x120] sm:$0xf]
  %v92 = vld [vmem:[%s1 + $0x124] sm:$0xf]
  %v93 = vld [vmem:[%s1 + $0x128] sm:$0xf]
  %v94 = vld [vmem:[%s1 + $0x12c] sm:$0xf]
  %v95 = vld [vmem:[%s1 + $0x130] sm:$0xf]
  %v96 = vld [vmem:[%s1 + $0x134] sm:$0xf]
  %v97 = vld [vmem:[%s1 + $0x138] sm:$0xf]
  %v98 = vld [vmem:[%s1 + $0x13c] sm:$0xf]
  %v99 = vld [vmem:[%s1 + $0x140] sm:$0xf]
  %v100 = vld [vmem:[%s1 + $0x144] sm:$0xf]
  %v101 = vld [vmem:[%s1 + $0x148] sm:$0xf]
  %v102 = vld [vmem:[%s1 + $0x14c] sm:$0xf]
  %v103 = vld [vmem:[%s1 + $0x150] sm:$0xf]
  %v104 = vld [vmem:[%s1 + $0x154] sm:$0xf]
  %v105 = vld [vmem:[%s1 + $0x158] sm:$0xf]
  %v106 = vld [vmem:[%s1 + $0x15c] sm:$0xf]
  %v107 = vld [vmem:[%s1 + $0x160] sm:$0xf]
  %v108 = vld [vmem:[%s1 + $0x164] sm:$0xf]
  %v109 = vld [vmem:[%s1 + $0x168] sm:$0xf]
  %v110 = vld [vmem:[%s1 + $0x16c] sm:$0xf]
  %v111 = vld [vmem:[%s1 + $0x170] sm:$0xf]
  %v112 = vld [vmem:[%s1 + $0x174] sm:$0xf]
  %v113 = vld [vmem:[%s1 + $0x178] sm:$0xf]
  %v114 = vld [vmem:[%s1 + $0x17c] sm:$0xf]
  %v115 = vld [vmem:[%s1 + $0x180] sm:$0xf]
  %v116 = vld [vmem:[%s1 + $0x184] sm:$0xf]
  %v117 = vld [vmem:[%s1 + $0x188] sm:$0xf]
  %v118 = vld [vmem:[%s1 + $0x18c] sm:$0xf]
  %v119 = vld [vmem:[%s1 + $0x190] sm:$0xf]
  %v120 = vld [vmem:[%s1 + $0x194] sm:$0xf]
  %v121 = vld [vmem:[%s1 + $0x198] sm:$0xf]
  %v122 = vld [vmem:[%s1 + $0x19c] sm:$0xf]
  %v123 = vld [vmem:[%s1 + $0x1a0] sm:$0xf]
  %v124 = vld [vmem:[%s1 + $0x1a4] sm:$0xf]
  %v125 = vld [vmem:[%s1 + $0x1a8] sm:$0xf]
  %v126 = vld [vmem:[%s1 + $0x1ac] sm:$0xf]
  %v127 = vld [vmem:[%s1 + $0x1b0] sm:$0xf]
  %v128 = vld [vmem:[%s1 + $0x1b4] sm:$0xf]
  %v129 = vld [vmem:[%s1 + $0x1b8] sm:$0xf]
  %v130 = vld [vmem:[%s1 + $0x1bc] sm:$0xf]
  %v131 = vld [vmem:[%s1 + $0x1c0] sm:$0xf]
  %v132 = vld [vmem:[%s1 + $0x1c4] sm:$0xf]
  %v133 = vld [vmem:[%s1 + $0x1c8] sm:$0xf]
  %v134 = vld [vmem:[%s1 + $0x1cc] sm:$0xf]
  %v135 = vld [vmem:[%s1 + $0x1d0] sm:$0xf]
  %v136 = vld [vmem:[%s1 + $0x1d4] sm:$0xf]
  %v137 = vld [vmem:[%s1 + $0x1d8] sm:$0xf]
  %v138 = vld [vmem:[%s1 + $0x1dc] sm:$0xf]
  %v139 = vld [vmem:[%s1 + $0x1e0] sm:$0xf]
  %v140 = vld [vmem:[%s1 + $0x1e4] sm:$0xf]
  %v141 = vld [vmem:[%s1 + $0x1e8] sm:$0xf]
  %v142 = vld [vmem:[%s1 + $0x1ec] sm:$0xf]
  %v143 = vld [vmem:[%s1 + $0x1f0] sm:$0xf]
  %v144 = vld [vmem:[%s1 + $0x1f4] sm:$0xf]
  %v145 = vld [vmem:[%s1 + $0x1f8] sm:$0xf]
  %v146 = vld [vmem:[%s1 + $0x1fc] sm:$0xf]
  %v147 = vld [vmem:[%s1 + $0x200] sm:$0xf]
  %v148 = vld [vmem:[%s1 + $0x204] sm:$0xf]
  %v149 = vld [vmem:[%s1 + $0x208] sm:$0xf]
  %v150 = vld [vmem:[%s1 + $0x20c] sm:$0xf]
  %v151 = vld [vmem:[%s1 + $0x210] sm:$0xf]
  %v152 = vld [vmem:[%s1 + $0x214] sm:$0xf]
  %v153 = vld [vmem:[%s1 + $0x218] sm:$0xf]
  %v154 = vld [vmem:[%s1 + $0x21c] sm:$0xf]
  %v155 = vld [vmem:[%s1 + $0x220] sm:$0xf]
  %v156 = vld [vmem:[%s1 + $0x224] sm:$0xf]
  %v157 = vld [vmem:[%s1 + $0x228] sm:$0xf]
  %v158 = vld [vmem:[%s1 + $0x22c] sm:$0xf]
  %v159 = vld [vmem:[%s1 + $0x230] sm:$0xf]
  %v160 = vld [vmem:[%s1 + $0x234] sm:$0xf]
  %v161 = vld [vmem:[%s1 + $0x238] sm:$0xf]
  %v162 = vld [vmem:[%s1 + $0x23c] sm:$0xf]
  %v163 = vld [vmem:[%s2] sm:$0x1]
  %v165 = vperm.slane %v163, 0
  %v172 = vunpack.c.l.b16 %v14
  %v173 = vunpack.c.h.b16 %v14
  %v174 = vunpack.c.l.b16 %v15
  %v175 = vunpack.c.h.b16 %v15
  %v176 = vunpack.c.l.b16 %v16
  %v177 = vunpack.c.h.b16 %v16
  %v178 = vunpack.c.l.b16 %v17
  %v179 = vunpack.c.h.b16 %v17
  %v180 = vunpack.c.l.b16 %v18
  %v181 = vpack.c.b16 %v172, %v172
  %v182 = vpack.c.b16 %v173, %v173
  %v183 = vpack.c.b16 %v174, %v174
  %v184 = vpack.c.b16 %v175, %v175
  %v185 = vpack.c.b16 %v176, %v176
  %v186 = vpack.c.b16 %v177, %v177
  %v187 = vpack.c.b16 %v178, %v178
  %v188 = vpack.c.b16 %v179, %v179
  %v189 = vpack.c.b16 %v180, %v180
  %v343 = vunpack.c.l.b16 %v19
  %v344 = vunpack.c.l.b16 %v20
  %v345 = vunpack.c.l.b16 %v21
  %v346 = vunpack.c.l.b16 %v22
  %v347 = vunpack.c.l.b16 %v23
  %v348 = vunpack.c.l.b16 %v24
  %v349 = vunpack.c.l.b16 %v25
  %v350 = vunpack.c.l.b16 %v26
  %v351 = vunpack.c.l.b16 %v27
  %v352 = vunpack.c.l.b16 %v28
  %v353 = vunpack.c.l.b16 %v29
  %v354 = vunpack.c.l.b16 %v30
  %v355 = vunpack.c.l.b16 %v31
  %v356 = vunpack.c.l.b16 %v32
  %v357 = vunpack.c.l.b16 %v33
  %v358 = vunpack.c.l.b16 %v34
  %v359 = vunpack.c.l.b16 %v35
  %v360 = vunpack.c.l.b16 %v36
  %v361 = vunpack.c.l.b16 %v37
  %v362 = vunpack.c.l.b16 %v38
  %v363 = vunpack.c.l.b16 %v39
  %v364 = vunpack.c.l.b16 %v40
  %v365 = vunpack.c.l.b16 %v41
  %v366 = vunpack.c.l.b16 %v42
  %v367 = vunpack.c.l.b16 %v43
  %v368 = vunpack.c.l.b16 %v44
  %v369 = vunpack.c.l.b16 %v45
  %v370 = vunpack.c.l.b16 %v46
  %v371 = vunpack.c.l.b16 %v47
  %v372 = vunpack.c.l.b16 %v48
  %v373 = vunpack.c.l.b16 %v49
  %v374 = vunpack.c.l.b16 %v50
  %v375 = vunpack.c.l.b16 %v51
  %v376 = vunpack.c.l.b16 %v52
  %v377 = vunpack.c.l.b16 %v53
  %v378 = vunpack.c.l.b16 %v54
  %v379 = vunpack.c.l.b16 %v55
  %v380 = vunpack.c.l.b16 %v56
  %v381 = vunpack.c.l.b16 %v57
  %v382 = vunpack.c.l.b16 %v58
  %v383 = vunpack.c.l.b16 %v59
  %v384 = vunpack.c.l.b16 %v60
  %v385 = vunpack.c.l.b16 %v61
  %v386 = vunpack.c.l.b16 %v62
  %v387 = vunpack.c.l.b16 %v63
  %v388 = vunpack.c.l.b16 %v64
  %v389 = vunpack.c.l.b16 %v65
  %v390 = vunpack.c.l.b16 %v66
  %v391 = vunpack.c.l.b16 %v67
  %v392 = vunpack.c.l.b16 %v68
  %v393 = vunpack.c.l.b16 %v69
  %v394 = vunpack.c.l.b16 %v70
  %v395 = vunpack.c.l.b16 %v71
  %v396 = vunpack.c.l.b16 %v72
  %v397 = vunpack.c.l.b16 %v73
  %v398 = vunpack.c.l.b16 %v74
  %v399 = vunpack.c.l.b16 %v75
  %v400 = vunpack.c.l.b16 %v76
  %v401 = vunpack.c.l.b16 %v77
  %v402 = vunpack.c.l.b16 %v78
  %v403 = vunpack.c.l.b16 %v79
  %v404 = vunpack.c.l.b16 %v80
  %v405 = vunpack.c.l.b16 %v81
  %v406 = vunpack.c.l.b16 %v82
  %v407 = vunpack.c.l.b16 %v83
  %v408 = vunpack.c.l.b16 %v84
  %v409 = vunpack.c.l.b16 %v85
  %v410 = vunpack.c.l.b16 %v86
  %v411 = vunpack.c.l.b16 %v87
  %v412 = vunpack.c.l.b16 %v88
  %v413 = vunpack.c.l.b16 %v89
  %v414 = vunpack.c.l.b16 %v90
  %v415 = vunpack.c.l.b16 %v91
  %v416 = vunpack.c.l.b16 %v92
  %v417 = vunpack.c.l.b16 %v93
  %v418 = vunpack.c.l.b16 %v94
  %v419 = vunpack.c.l.b16 %v95
  %v420 = vunpack.c.l.b16 %v96
  %v421 = vunpack.c.l.b16 %v97
  %v422 = vunpack.c.l.b16 %v98
  %v423 = vunpack.c.l.b16 %v99
  %v424 = vunpack.c.l.b16 %v100
  %v425 = vunpack.c.l.b16 %v101
  %v426 = vunpack.c.l.b16 %v102
  %v427 = vunpack.c.l.b16 %v103
  %v428 = vunpack.c.l.b16 %v104
  %v429 = vunpack.c.l.b16 %v105
  %v430 = vunpack.c.l.b16 %v106
  %v431 = vunpack.c.l.b16 %v107
  %v432 = vunpack.c.l.b16 %v108
  %v433 = vunpack.c.l.b16 %v109
  %v434 = vunpack.c.l.b16 %v110
  %v435 = vunpack.c.l.b16 %v111
  %v436 = vunpack.c.l.b16 %v112
  %v437 = vunpack.c.l.b16 %v113
  %v438 = vunpack.c.l.b16 %v114
  %v439 = vunpack.c.l.b16 %v115
  %v440 = vunpack.c.l.b16 %v116
  %v441 = vunpack.c.l.b16 %v117
  %v442 = vunpack.c.l.b16 %v118
  %v443 = vunpack.c.l.b16 %v119
  %v444 = vunpack.c.l.b16 %v120
  %v445 = vunpack.c.l.b16 %v121
  %v446 = vunpack.c.l.b16 %v122
  %v447 = vunpack.c.l.b16 %v123
  %v448 = vunpack.c.l.b16 %v124
  %v449 = vunpack.c.l.b16 %v125
  %v450 = vunpack.c.l.b16 %v126
  %v451 = vunpack.c.l.b16 %v127
  %v452 = vunpack.c.l.b16 %v128
  %v453 = vunpack.c.l.b16 %v129
  %v454 = vunpack.c.l.b16 %v130
  %v455 = vunpack.c.l.b16 %v131
  %v456 = vunpack.c.l.b16 %v132
  %v457 = vunpack.c.l.b16 %v133
  %v458 = vunpack.c.l.b16 %v134
  %v459 = vunpack.c.l.b16 %v135
  %v460 = vunpack.c.l.b16 %v136
  %v461 = vunpack.c.l.b16 %v137
  %v462 = vunpack.c.l.b16 %v138
  %v463 = vunpack.c.l.b16 %v139
  %v464 = vunpack.c.l.b16 %v140
  %v465 = vunpack.c.l.b16 %v141
  %v466 = vunpack.c.l.b16 %v142
  %v467 = vunpack.c.l.b16 %v143
  %v468 = vunpack.c.l.b16 %v144
  %v469 = vunpack.c.l.b16 %v145
  %v470 = vunpack.c.l.b16 %v146
  %v471 = vunpack.c.l.b16 %v147
  %v472 = vunpack.c.l.b16 %v148
  %v473 = vunpack.c.l.b16 %v149
  %v474 = vunpack.c.l.b16 %v150
  %v475 = vunpack.c.l.b16 %v151
  %v476 = vunpack.c.l.b16 %v152
  %v477 = vunpack.c.l.b16 %v153
  %v478 = vunpack.c.l.b16 %v154
  %v479 = vunpack.c.l.b16 %v155
  %v480 = vunpack.c.l.b16 %v156
  %v481 = vunpack.c.l.b16 %v157
  %v482 = vunpack.c.l.b16 %v158
  %v483 = vunpack.c.l.b16 %v159
  %v484 = vunpack.c.l.b16 %v160
  %v485 = vunpack.c.l.b16 %v161
  %v486 = vunpack.c.l.b16 %v162
  %v487 = vpack.c.b16 %v344, %v343
  %v488 = vpack.c.b16 %v346, %v345
  %v489 = vpack.c.b16 %v348, %v347
  %v490 = vpack.c.b16 %v350, %v349
  %v491 = vpack.c.b16 %v352, %v351
  %v492 = vpack.c.b16 %v354, %v353
  %v493 = vpack.c.b16 %v356, %v355
  %v494 = vpack.c.b16 %v358, %v357
  %v495 = vpack.c.b16 %v360, %v359
  %v496 = vpack.c.b16 %v362, %v361
  %v497 = vpack.c.b16 %v364, %v363
  %v498 = vpack.c.b16 %v366, %v365
  %v499 = vpack.c.b16 %v368, %v367
  %v500 = vpack.c.b16 %v370, %v369
  %v501 = vpack.c.b16 %v372, %v371
  %v502 = vpack.c.b16 %v374, %v373
  %v503 = vpack.c.b16 %v376, %v375
  %v504 = vpack.c.b16 %v378, %v377
  %v505 = vpack.c.b16 %v380, %v379
  %v506 = vpack.c.b16 %v382, %v381
  %v507 = vpack.c.b16 %v384, %v383
  %v508 = vpack.c.b16 %v386, %v385
  %v509 = vpack.c.b16 %v388, %v387
  %v510 = vpack.c.b16 %v390, %v389
  %v511 = vpack.c.b16 %v392, %v391
  %v512 = vpack.c.b16 %v394, %v393
  %v513 = vpack.c.b16 %v396, %v395
  %v514 = vpack.c.b16 %v398, %v397
  %v515 = vpack.c.b16 %v400, %v399
  %v516 = vpack.c.b16 %v402, %v401
  %v517 = vpack.c.b16 %v404, %v403
  %v518 = vpack.c.b16 %v406, %v405
  %v519 = vpack.c.b16 %v408, %v407
  %v520 = vpack.c.b16 %v410, %v409
  %v521 = vpack.c.b16 %v412, %v411
  %v522 = vpack.c.b16 %v414, %v413
  %v523 = vpack.c.b16 %v416, %v415
  %v524 = vpack.c.b16 %v418, %v417
  %v525 = vpack.c.b16 %v420, %v419
  %v526 = vpack.c.b16 %v422, %v421
  %v527 = vpack.c.b16 %v424, %v423
  %v528 = vpack.c.b16 %v426, %v425
  %v529 = vpack.c.b16 %v428, %v427
  %v530 = vpack.c.b16 %v430, %v429
  %v531 = vpack.c.b16 %v432, %v431
  %v532 = vpack.c.b16 %v434, %v433
  %v533 = vpack.c.b16 %v436, %v435
  %v534 = vpack.c.b16 %v438, %v437
  %v535 = vpack.c.b16 %v440, %v439
  %v536 = vpack.c.b16 %v442, %v441
  %v537 = vpack.c.b16 %v444, %v443
  %v538 = vpack.c.b16 %v446, %v445
  %v539 = vpack.c.b16 %v448, %v447
  %v540 = vpack.c.b16 %v450, %v449
  %v541 = vpack.c.b16 %v452, %v451
  %v542 = vpack.c.b16 %v454, %v453
  %v543 = vpack.c.b16 %v456, %v455
  %v544 = vpack.c.b16 %v458, %v457
  %v545 = vpack.c.b16 %v460, %v459
  %v546 = vpack.c.b16 %v462, %v461
  %v547 = vpack.c.b16 %v464, %v463
  %v548 = vpack.c.b16 %v466, %v465
  %v549 = vpack.c.b16 %v468, %v467
  %v550 = vpack.c.b16 %v470, %v469
  %v551 = vpack.c.b16 %v472, %v471
  %v552 = vpack.c.b16 %v474, %v473
  %v553 = vpack.c.b16 %v476, %v475
  %v554 = vpack.c.b16 %v478, %v477
  %v555 = vpack.c.b16 %v480, %v479
  %v556 = vpack.c.b16 %v482, %v481
  %v557 = vpack.c.b16 %v484, %v483
  %v558 = vpack.c.b16 %v486, %v485
  %631 = vmatpush.bf16.msra.mxu0 %v494
  %632 = vmatpush.bf16.msra.mxu0 %v493
  %633 = vmatpush.bf16.msra.mxu0 %v492
  %634 = vmatpush.bf16.msra.mxu0 %v491
  %635 = vmatpush.bf16.msra.mxu0 %v490
  %636 = vmatpush.bf16.msra.mxu0 %v489
  %637 = vmatpush.bf16.msra.mxu0 %v488
  %638 = vmatpush.bf16.msra.mxu0 %v487
  %639 = vmatmul.bf16.gmra.mxu0 %v181
  %v640 = vpop.f32.mrf.mxu0
  %v641 = vadd.f32 %v165, %v640
  %v642 = vpop.f32.mrf.mxu0
  %643 = vdwg.mxu0
  %644 = vmatpush.bf16.msra.mxu0 %v502
  %645 = vmatpush.bf16.msra.mxu0 %v501
  %646 = vmatpush.bf16.msra.mxu0 %v500
  %647 = vmatpush.bf16.msra.mxu0 %v499
  %648 = vmatpush.bf16.msra.mxu0 %v498
  %649 = vmatpush.bf16.msra.mxu0 %v497
  %650 = vmatpush.bf16.msra.mxu0 %v496
  %651 = vmatpush.bf16.msra.mxu0 %v495
  %652 = vmatmul.bf16.gmra.mxu0 %v182
  %v653 = vpop.f32.mrf.mxu0
  %v654 = vadd.f32 %v641, %v653
  %v655 = vpop.f32.mrf.mxu0
  %656 = vdwg.mxu0
  %657 = vmatpush.bf16.msra.mxu0 %v510
  %658 = vmatpush.bf16.msra.mxu0 %v509
  %659 = vmatpush.bf16.msra.mxu0 %v508
  %660 = vmatpush.bf16.msra.mxu0 %v507
  %661 = vmatpush.bf16.msra.mxu0 %v506
  %662 = vmatpush.bf16.msra.mxu0 %v505
  %663 = vmatpush.bf16.msra.mxu0 %v504
  %664 = vmatpush.bf16.msra.mxu0 %v503
  %665 = vmatmul.bf16.gmra.mxu0 %v183
  %v666 = vpop.f32.mrf.mxu0
  %v667 = vadd.f32 %v654, %v666
  %v668 = vpop.f32.mrf.mxu0
  %669 = vdwg.mxu0
  %670 = vmatpush.bf16.msra.mxu0 %v518
  %671 = vmatpush.bf16.msra.mxu0 %v517
  %672 = vmatpush.bf16.msra.mxu0 %v516
  %673 = vmatpush.bf16.msra.mxu0 %v515
  %674 = vmatpush.bf16.msra.mxu0 %v514
  %675 = vmatpush.bf16.msra.mxu0 %v513
  %676 = vmatpush.bf16.msra.mxu0 %v512
  %677 = vmatpush.bf16.msra.mxu0 %v511
  %678 = vmatmul.bf16.gmra.mxu0 %v184
  %v679 = vpop.f32.mrf.mxu0
  %v680 = vadd.f32 %v667, %v679
  %v681 = vpop.f32.mrf.mxu0
  %682 = vdwg.mxu0
  %683 = vmatpush.bf16.msra.mxu0 %v526
  %684 = vmatpush.bf16.msra.mxu0 %v525
  %685 = vmatpush.bf16.msra.mxu0 %v524
  %686 = vmatpush.bf16.msra.mxu0 %v523
  %687 = vmatpush.bf16.msra.mxu0 %v522
  %688 = vmatpush.bf16.msra.mxu0 %v521
  %689 = vmatpush.bf16.msra.mxu0 %v520
  %690 = vmatpush.bf16.msra.mxu0 %v519
  %691 = vmatmul.bf16.gmra.mxu0 %v185
  %v692 = vpop.f32.mrf.mxu0
  %v693 = vadd.f32 %v680, %v692
  %v694 = vpop.f32.mrf.mxu0
  %695 = vdwg.mxu0
  %696 = vmatpush.bf16.msra.mxu0 %v534
  %697 = vmatpush.bf16.msra.mxu0 %v533
  %698 = vmatpush.bf16.msra.mxu0 %v532
  %699 = vmatpush.bf16.msra.mxu0 %v531
  %700 = vmatpush.bf16.msra.mxu0 %v530
  %701 = vmatpush.bf16.msra.mxu0 %v529
  %702 = vmatpush.bf16.msra.mxu0 %v528
  %703 = vmatpush.bf16.msra.mxu0 %v527
  %704 = vmatmul.bf16.gmra.mxu0 %v186
  %v705 = vpop.f32.mrf.mxu0
  %v706 = vadd.f32 %v693, %v705
  %v707 = vpop.f32.mrf.mxu0
  %708 = vdwg.mxu0
  %709 = vmatpush.bf16.msra.mxu0 %v542
  %710 = vmatpush.bf16.msra.mxu0 %v541
  %711 = vmatpush.bf16.msra.mxu0 %v540
  %712 = vmatpush.bf16.msra.mxu0 %v539
  %713 = vmatpush.bf16.msra.mxu0 %v538
  %714 = vmatpush.bf16.msra.mxu0 %v537
  %715 = vmatpush.bf16.msra.mxu0 %v536
  %716 = vmatpush.bf16.msra.mxu0 %v535
  %717 = vmatmul.bf16.gmra.mxu0 %v187
  %v718 = vpop.f32.mrf.mxu0
  %v719 = vadd.f32 %v706, %v718
  %v720 = vpop.f32.mrf.mxu0
  %721 = vdwg.mxu0
  %722 = vmatpush.bf16.msra.mxu0 %v550
  %723 = vmatpush.bf16.msra.mxu0 %v549
  %724 = vmatpush.bf16.msra.mxu0 %v548
  %725 = vmatpush.bf16.msra.mxu0 %v547
  %726 = vmatpush.bf16.msra.mxu0 %v546
  %727 = vmatpush.bf16.msra.mxu0 %v545
  %728 = vmatpush.bf16.msra.mxu0 %v544
  %729 = vmatpush.bf16.msra.mxu0 %v543
  %730 = vmatmul.bf16.gmra.mxu0 %v188
  %v731 = vpop.f32.mrf.mxu0
  %v732 = vadd.f32 %v719, %v731
  %v733 = vpop.f32.mrf.mxu0
  %734 = vdwg.mxu0
  %735 = vmatpush.bf16.msra.mxu0 %v558
  %736 = vmatpush.bf16.msra.mxu0 %v557
  %737 = vmatpush.bf16.msra.mxu0 %v556
  %738 = vmatpush.bf16.msra.mxu0 %v555
  %739 = vmatpush.bf16.msra.mxu0 %v554
  %740 = vmatpush.bf16.msra.mxu0 %v553
  %741 = vmatpush.bf16.msra.mxu0 %v552
  %742 = vmatpush.bf16.msra.mxu0 %v551
  %743 = vmatmul.bf16.gmra.mxu0 %v189
  %v744 = vpop.f32.mrf.mxu0
  %v745 = vadd.f32 %v732, %v744
  %v746 = vpop.f32.mrf.mxu0
  %747 = vdwg.mxu0
  %v748 = vmax.f32 %v745, 0.0
  %v749 = vpack.c.bf16 %v748, %v748
  %750 = vst [vmem:[%s3] sm:$0xf] %v749
  // Predicated region
  $region14: #{audio_cond_unet_forward.16} parent=0 // pred_check
    _
  $region15: #{audio_cond_unet_forward.16} parent=0 // pred_check_branch
    %752 = sbr.rel (0) target = $region17
  $region16: #{audio_cond_unet_forward.16} parent=0 // pred_region
    _
  $region17: #{audio_cond_unet_forward.16} parent=0 // pred_fallthru
    _
  // Predicated region
  $region18: #{audio_cond_unet_forward.16} parent=0 // pred_check
    _
  $region19: #{audio_cond_unet_forward.16} parent=0 // pred_check_branch
    %754 = sbr.rel (0) target = $region21
  $region20: #{audio_cond_unet_forward.16} parent=0 // pred_region
    _
  $region21: #{audio_cond_unet_forward.16} parent=0 // pred_fallthru
    _

// kernel: audio_cond_unet_forward.15
$region0: #{audio_cond_unet_forward.15}
  #allocation0 [shape = 'u32[]', space=smem, size = 0x4, offset = 0x4, fixed_abs, tag = 'smem constant byte address 0x4 - core index']
  #allocation1 [shape = 'u32[72,128]{1,0:T(1,128)}', space=vmem, size = 0x9000, scoped, tag = 'internal scratch']
  %s0 = inlined_call_operand.vmem [shape: bf16[2,864], index: 0, kind: input, shape index: {}]
  %s1 = inlined_call_operand.vmem [shape: bf16[864,256], index: 1, kind: input, shape index: {}]
  %s2 = inlined_call_operand.vmem [shape: f32[1,256], index: 2, kind: input, shape index: {}]
  %s3 = inlined_call_operand.vmem [shape: bf16[2,256], index: 3, kind: output, shape index: {}]
  %s4 = sld [smem:[#allocation0]]
  $region22: #{audio_cond_unet_forward.15} parent=0
    _
  %s6 = ssub.s32 1, %s4
  %s7 = scalar_select 0, %s6, %s4
  // Predicated region
  $region2: #{audio_cond_unet_forward.15} parent=0 // pred_check
    _
  $region3: #{audio_cond_unet_forward.15} parent=0 // pred_check_branch
    %9 = sbr.rel (0) target = $region5
  $region4: #{audio_cond_unet_forward.15} parent=0 // pred_region
    _
  $region5: #{audio_cond_unet_forward.15} parent=0 // pred_fallthru
    _
  // Predicated region
  $region6: #{audio_cond_unet_forward.15} parent=0 // pred_check
    _
  $region7: #{audio_cond_unet_forward.15} parent=0 // pred_check_branch
    %11 = sbr.rel (0) target = $region9
  $region8: #{audio_cond_unet_forward.15} parent=0 // pred_region
    _
  $region9: #{audio_cond_unet_forward.15} parent=0 // pred_fallthru
    _
  // Predicated region
  $region10: #{audio_cond_unet_forward.15} parent=0 // pred_check
    _
  $region11: #{audio_cond_unet_forward.15} parent=0 // pred_check_branch
    %13 = sbr.rel (0) target = $region13
  $region12: #{audio_cond_unet_forward.15} parent=0 // pred_region
    _
  $region13: #{audio_cond_unet_forward.15} parent=0 // pred_fallthru
    _
  %v15 = vld [vmem:[%s0] sm:$0x7f]
  %v16 = vld [vmem:[%s1] sm:$0xff]
  %v17 = vld [vmem:[%s1 + $0x8] sm:$0xff]
  %v18 = vld [vmem:[%s1 + $0x10] sm:$0xff]
  %v19 = vld [vmem:[%s1 + $0x18] sm:$0xff]
  %v20 = vld [vmem:[%s1 + $0x20] sm:$0xff]
  %v21 = vld [vmem:[%s1 + $0x28] sm:$0xff]
  %v22 = vld [vmem:[%s1 + $0x30] sm:$0xff]
  %v23 = vld [vmem:[%s1 + $0x38] sm:$0xff]
  %v24 = vld [vmem:[%s1 + $0x40] sm:$0xff]
  %v25 = vld [vmem:[%s1 + $0x48] sm:$0xff]
  %v26 = vld [vmem:[%s1 + $0x50] sm:$0xff]
  %v27 = vld [vmem:[%s1 + $0x58] sm:$0xff]
  %v28 = vld [vmem:[%s1 + $0x60] sm:$0xff]
  %v29 = vld [vmem:[%s1 + $0x68] sm:$0xff]
  %v30 = vld [vmem:[%s1 + $0x70] sm:$0xff]
  %v31 = vld [vmem:[%s1 + $0x78] sm:$0xff]
  %v32 = vld [vmem:[%s1 + $0x80] sm:$0xff]
  %v33 = vld [vmem:[%s1 + $0x88] sm:$0xff]
  %v34 = vld [vmem:[%s1 + $0x90] sm:$0xff]
  %v35 = vld [vmem:[%s1 + $0x98] sm:$0xff]
  %v36 = vld [vmem:[%s1 + $0xa0] sm:$0xff]
  %v37 = vld [vmem:[%s1 + $0xa8] sm:$0xff]
  %v38 = vld [vmem:[%s1 + $0xb0] sm:$0xff]
  %v39 = vld [vmem:[%s1 + $0xb8] sm:$0xff]
  %v40 = vld [vmem:[%s1 + $0xc0] sm:$0xff]
  %v41 = vld [vmem:[%s1 + $0xc8] sm:$0xff]
  %v42 = vld [vmem:[%s1 + $0xd0] sm:$0xff]
  %v43 = vld [vmem:[%s1 + $0xd8] sm:$0xff]
  %v44 = vld [vmem:[%s1 + $0xe0] sm:$0xff]
  %v45 = vld [vmem:[%s1 + $0xe8] sm:$0xff]
  %v46 = vld [vmem:[%s1 + $0xf0] sm:$0xff]
  %v47 = vld [vmem:[%s1 + $0xf8] sm:$0xff]
  %v48 = vld [vmem:[%s1 + $0x100] sm:$0xff]
  %v49 = vld [vmem:[%s1 + $0x108] sm:$0xff]
  %v50 = vld [vmem:[%s1 + $0x110] sm:$0xff]
  %v51 = vld [vmem:[%s1 + $0x118] sm:$0xff]
  %v52 = vld [vmem:[%s1 + $0x120] sm:$0xff]
  %v53 = vld [vmem:[%s1 + $0x128] sm:$0xff]
  %v54 = vld [vmem:[%s1 + $0x130] sm:$0xff]
  %v55 = vld [vmem:[%s1 + $0x138] sm:$0xff]
  %v56 = vld [vmem:[%s1 + $0x140] sm:$0xff]
  %v57 = vld [vmem:[%s1 + $0x148] sm:$0xff]
  %v58 = vld [vmem:[%s1 + $0x150] sm:$0xff]
  %v59 = vld [vmem:[%s1 + $0x158] sm:$0xff]
  %v60 = vld [vmem:[%s1 + $0x160] sm:$0xff]
  %v61 = vld [vmem:[%s1 + $0x168] sm:$0xff]
  %v62 = vld [vmem:[%s1 + $0x170] sm:$0xff]
  %v63 = vld [vmem:[%s1 + $0x178] sm:$0xff]
  %v64 = vld [vmem:[%s1 + $0x180] sm:$0xff]
  %v65 = vld [vmem:[%s1 + $0x188] sm:$0xff]
  %v66 = vld [vmem:[%s1 + $0x190] sm:$0xff]
  %v67 = vld [vmem:[%s1 + $0x198] sm:$0xff]
  %v68 = vld [vmem:[%s1 + $0x1a0] sm:$0xff]
  %v69 = vld [vmem:[%s1 + $0x1a8] sm:$0xff]
  %v70 = vld [vmem:[%s1 + $0x1b0] sm:$0xff]
  %v71 = vld [vmem:[%s1 + $0x1b8] sm:$0xff]
  %v72 = vld [vmem:[%s1 + $0x1c0] sm:$0xff]
  %v73 = vld [vmem:[%s1 + $0x1c8] sm:$0xff]
  %v74 = vld [vmem:[%s1 + $0x1d0] sm:$0xff]
  %v75 = vld [vmem:[%s1 + $0x1d8] sm:$0xff]
  %v76 = vld [vmem:[%s1 + $0x1e0] sm:$0xff]
  %v77 = vld [vmem:[%s1 + $0x1e8] sm:$0xff]
  %v78 = vld [vmem:[%s1 + $0x1f0] sm:$0xff]
  %v79 = vld [vmem:[%s1 + $0x1f8] sm:$0xff]
  %v80 = vld [vmem:[%s1 + $0x200] sm:$0xff]
  %v81 = vld [vmem:[%s1 + $0x208] sm:$0xff]
  %v82 = vld [vmem:[%s1 + $0x210] sm:$0xff]
  %v83 = vld [vmem:[%s1 + $0x218] sm:$0xff]
  %v84 = vld [vmem:[%s1 + $0x220] sm:$0xff]
  %v85 = vld [vmem:[%s1 + $0x228] sm:$0xff]
  %v86 = vld [vmem:[%s1 + $0x230] sm:$0xff]
  %v87 = vld [vmem:[%s1 + $0x238] sm:$0xff]
  %v88 = vld [vmem:[%s1 + $0x240] sm:$0xff]
  %v89 = vld [vmem:[%s1 + $0x248] sm:$0xff]
  %v90 = vld [vmem:[%s1 + $0x250] sm:$0xff]
  %v91 = vld [vmem:[%s1 + $0x258] sm:$0xff]
  %v92 = vld [vmem:[%s1 + $0x260] sm:$0xff]
  %v93 = vld [vmem:[%s1 + $0x268] sm:$0xff]
  %v94 = vld [vmem:[%s1 + $0x270] sm:$0xff]
  %v95 = vld [vmem:[%s1 + $0x278] sm:$0xff]
  %v96 = vld [vmem:[%s1 + $0x280] sm:$0xff]
  %v97 = vld [vmem:[%s1 + $0x288] sm:$0xff]
  %v98 = vld [vmem:[%s1 + $0x290] sm:$0xff]
  %v99 = vld [vmem:[%s1 + $0x298] sm:$0xff]
  %v100 = vld [vmem:[%s1 + $0x2a0] sm:$0xff]
  %v101 = vld [vmem:[%s1 + $0x2a8] sm:$0xff]
  %v102 = vld [vmem:[%s1 + $0x2b0] sm:$0xff]
  %v103 = vld [vmem:[%s1 + $0x2b8] sm:$0xff]
  %v104 = vld [vmem:[%s1 + $0x2c0] sm:$0xff]
  %v105 = vld [vmem:[%s1 + $0x2c8] sm:$0xff]
  %v106 = vld [vmem:[%s1 + $0x2d0] sm:$0xff]
  %v107 = vld [vmem:[%s1 + $0x2d8] sm:$0xff]
  %v108 = vld [vmem:[%s1 + $0x2e0] sm:$0xff]
  %v109 = vld [vmem:[%s1 + $0x2e8] sm:$0xff]
  %v110 = vld [vmem:[%s1 + $0x2f0] sm:$0xff]
  %v111 = vld [vmem:[%s1 + $0x2f8] sm:$0xff]
  %v112 = vld [vmem:[%s1 + $0x300] sm:$0xff]
  %v113 = vld [vmem:[%s1 + $0x308] sm:$0xff]
  %v114 = vld [vmem:[%s1 + $0x310] sm:$0xff]
  %v115 = vld [vmem:[%s1 + $0x318] sm:$0xff]
  %v116 = vld [vmem:[%s1 + $0x320] sm:$0xff]
  %v117 = vld [vmem:[%s1 + $0x328] sm:$0xff]
  %v118 = vld [vmem:[%s1 + $0x330] sm:$0xff]
  %v119 = vld [vmem:[%s1 + $0x338] sm:$0xff]
  %v120 = vld [vmem:[%s1 + $0x340] sm:$0xff]
  %v121 = vld [vmem:[%s1 + $0x348] sm:$0xff]
  %v122 = vld [vmem:[%s1 + $0x350] sm:$0xff]
  %v123 = vld [vmem:[%s1 + $0x358] sm:$0xff]
  %v124 = vld [vmem:[%s2] sm:$0x3]
  %v126 = vperm.slane %v124, 0
  %v127 = vperm.slane %v124, 1
  %131 = vst [vmem:[#allocation1] ss:$9 sm:$0xff] %v15
  %v132 = vld [vmem:[#allocation1] sm:$0xff]
  %v133 = vld [vmem:[#allocation1 + $0x9] sm:$0xff]
  %v134 = vld [vmem:[#allocation1 + $0x12] sm:$0xff]
  %v135 = vld [vmem:[#allocation1 + $0x1b] sm:$0xff]
  %v136 = vld [vmem:[#allocation1 + $0x24] sm:$0xff]
  %v137 = vld [vmem:[#allocation1 + $0x2d] sm:$0xff]
  %v138 = vld [vmem:[#allocation1 + $0x36] sm:$0xff]
  %v253 = vunpack.c.l.b16 %v16
  %v254 = vunpack.c.h.b16 %v16
  %v255 = vunpack.c.l.b16 %v17
  %v256 = vunpack.c.h.b16 %v17
  %v257 = vunpack.c.l.b16 %v18
  %v258 = vunpack.c.h.b16 %v18
  %v259 = vunpack.c.l.b16 %v19
  %v260 = vunpack.c.h.b16 %v19
  %v261 = vunpack.c.l.b16 %v20
  %v262 = vunpack.c.h.b16 %v20
  %v263 = vunpack.c.l.b16 %v21
  %v264 = vunpack.c.h.b16 %v21
  %v265 = vunpack.c.l.b16 %v22
  %v266 = vunpack.c.h.b16 %v22
  %v267 = vunpack.c.l.b16 %v23
  %v268 = vunpack.c.h.b16 %v23
  %v269 = vunpack.c.l.b16 %v24
  %v270 = vunpack.c.h.b16 %v24
  %v271 = vunpack.c.l.b16 %v25
  %v272 = vunpack.c.h.b16 %v25
  %v273 = vunpack.c.l.b16 %v26
  %v274 = vunpack.c.h.b16 %v26
  %v275 = vunpack.c.l.b16 %v27
  %v276 = vunpack.c.h.b16 %v27
  %v277 = vunpack.c.l.b16 %v28
  %v278 = vunpack.c.h.b16 %v28
  %v279 = vunpack.c.l.b16 %v29
  %v280 = vunpack.c.h.b16 %v29
  %v281 = vunpack.c.l.b16 %v30
  %v282 = vunpack.c.h.b16 %v30
  %v283 = vunpack.c.l.b16 %v31
  %v284 = vunpack.c.h.b16 %v31
  %v285 = vunpack.c.l.b16 %v32
  %v286 = vunpack.c.h.b16 %v32
  %v287 = vunpack.c.l.b16 %v33
  %v288 = vunpack.c.h.b16 %v33
  %v289 = vunpack.c.l.b16 %v34
  %v290 = vunpack.c.h.b16 %v34
  %v291 = vunpack.c.l.b16 %v35
  %v292 = vunpack.c.h.b16 %v35
  %v293 = vunpack.c.l.b16 %v36
  %v294 = vunpack.c.h.b16 %v36
  %v295 = vunpack.c.l.b16 %v37
  %v296 = vunpack.c.h.b16 %v37
  %v297 = vunpack.c.l.b16 %v38
  %v298 = vunpack.c.h.b16 %v38
  %v299 = vunpack.c.l.b16 %v39
  %v300 = vunpack.c.h.b16 %v39
  %v301 = vunpack.c.l.b16 %v40
  %v302 = vunpack.c.h.b16 %v40
  %v303 = vunpack.c.l.b16 %v41
  %v304 = vunpack.c.h.b16 %v41
  %v305 = vunpack.c.l.b16 %v42
  %v306 = vunpack.c.h.b16 %v42
  %v307 = vunpack.c.l.b16 %v43
  %v308 = vunpack.c.h.b16 %v43
  %v309 = vunpack.c.l.b16 %v44
  %v310 = vunpack.c.h.b16 %v44
  %v311 = vunpack.c.l.b16 %v45
  %v312 = vunpack.c.h.b16 %v45
  %v313 = vunpack.c.l.b16 %v46
  %v314 = vunpack.c.h.b16 %v46
  %v315 = vunpack.c.l.b16 %v47
  %v316 = vunpack.c.h.b16 %v47
  %v317 = vunpack.c.l.b16 %v48
  %v318 = vunpack.c.h.b16 %v48
  %v319 = vunpack.c.l.b16 %v49
  %v320 = vunpack.c.h.b16 %v49
  %v321 = vunpack.c.l.b16 %v50
  %v322 = vunpack.c.h.b16 %v50
  %v323 = vunpack.c.l.b16 %v51
  %v324 = vunpack.c.h.b16 %v51
  %v325 = vunpack.c.l.b16 %v52
  %v326 = vunpack.c.h.b16 %v52
  %v327 = vunpack.c.l.b16 %v53
  %v328 = vunpack.c.h.b16 %v53
  %v329 = vunpack.c.l.b16 %v54
  %v330 = vunpack.c.h.b16 %v54
  %v331 = vunpack.c.l.b16 %v55
  %v332 = vunpack.c.h.b16 %v55
  %v333 = vunpack.c.l.b16 %v56
  %v334 = vunpack.c.h.b16 %v56
  %v335 = vunpack.c.l.b16 %v57
  %v336 = vunpack.c.h.b16 %v57
  %v337 = vunpack.c.l.b16 %v58
  %v338 = vunpack.c.h.b16 %v58
  %v339 = vunpack.c.l.b16 %v59
  %v340 = vunpack.c.h.b16 %v59
  %v341 = vunpack.c.l.b16 %v60
  %v342 = vunpack.c.h.b16 %v60
  %v343 = vunpack.c.l.b16 %v61
  %v344 = vunpack.c.h.b16 %v61
  %v345 = vunpack.c.l.b16 %v62
  %v346 = vunpack.c.h.b16 %v62
  %v347 = vunpack.c.l.b16 %v63
  %v348 = vunpack.c.h.b16 %v63
  %v349 = vunpack.c.l.b16 %v64
  %v350 = vunpack.c.h.b16 %v64
  %v351 = vunpack.c.l.b16 %v65
  %v352 = vunpack.c.h.b16 %v65
  %v353 = vunpack.c.l.b16 %v66
  %v354 = vunpack.c.h.b16 %v66
  %v355 = vunpack.c.l.b16 %v67
  %v356 = vunpack.c.h.b16 %v67
  %v357 = vunpack.c.l.b16 %v68
  %v358 = vunpack.c.h.b16 %v68
  %v359 = vunpack.c.l.b16 %v69
  %v360 = vunpack.c.h.b16 %v69
  %v361 = vunpack.c.l.b16 %v70
  %v362 = vunpack.c.h.b16 %v70
  %v363 = vunpack.c.l.b16 %v71
  %v364 = vunpack.c.h.b16 %v71
  %v365 = vunpack.c.l.b16 %v72
  %v366 = vunpack.c.h.b16 %v72
  %v367 = vunpack.c.l.b16 %v73
  %v368 = vunpack.c.h.b16 %v73
  %v369 = vunpack.c.l.b16 %v74
  %v370 = vunpack.c.h.b16 %v74
  %v371 = vunpack.c.l.b16 %v75
  %v372 = vunpack.c.h.b16 %v75
  %v373 = vunpack.c.l.b16 %v76
  %v374 = vunpack.c.h.b16 %v76
  %v375 = vunpack.c.l.b16 %v77
  %v376 = vunpack.c.h.b16 %v77
  %v377 = vunpack.c.l.b16 %v78
  %v378 = vunpack.c.h.b16 %v78
  %v379 = vunpack.c.l.b16 %v79
  %v380 = vunpack.c.h.b16 %v79
  %v381 = vunpack.c.l.b16 %v80
  %v382 = vunpack.c.h.b16 %v80
  %v383 = vunpack.c.l.b16 %v81
  %v384 = vunpack.c.h.b16 %v81
  %v385 = vunpack.c.l.b16 %v82
  %v386 = vunpack.c.h.b16 %v82
  %v387 = vunpack.c.l.b16 %v83
  %v388 = vunpack.c.h.b16 %v83
  %v389 = vunpack.c.l.b16 %v84
  %v390 = vunpack.c.h.b16 %v84
  %v391 = vunpack.c.l.b16 %v85
  %v392 = vunpack.c.h.b16 %v85
  %v393 = vunpack.c.l.b16 %v86
  %v394 = vunpack.c.h.b16 %v86
  %v395 = vunpack.c.l.b16 %v87
  %v396 = vunpack.c.h.b16 %v87
  %v397 = vunpack.c.l.b16 %v88
  %v398 = vunpack.c.h.b16 %v88
  %v399 = vunpack.c.l.b16 %v89
  %v400 = vunpack.c.h.b16 %v89
  %v401 = vunpack.c.l.b16 %v90
  %v402 = vunpack.c.h.b16 %v90
  %v403 = vunpack.c.l.b16 %v91
  %v404 = vunpack.c.h.b16 %v91
  %v405 = vunpack.c.l.b16 %v92
  %v406 = vunpack.c.h.b16 %v92
  %v407 = vunpack.c.l.b16 %v93
  %v408 = vunpack.c.h.b16 %v93
  %v409 = vunpack.c.l.b16 %v94
  %v410 = vunpack.c.h.b16 %v94
  %v411 = vunpack.c.l.b16 %v95
  %v412 = vunpack.c.h.b16 %v95
  %v413 = vunpack.c.l.b16 %v96
  %v414 = vunpack.c.h.b16 %v96
  %v415 = vunpack.c.l.b16 %v97
  %v416 = vunpack.c.h.b16 %v97
  %v417 = vunpack.c.l.b16 %v98
  %v418 = vunpack.c.h.b16 %v98
  %v419 = vunpack.c.l.b16 %v99
  %v420 = vunpack.c.h.b16 %v99
  %v421 = vunpack.c.l.b16 %v100
  %v422 = vunpack.c.h.b16 %v100
  %v423 = vunpack.c.l.b16 %v101
  %v424 = vunpack.c.h.b16 %v101
  %v425 = vunpack.c.l.b16 %v102
  %v426 = vunpack.c.h.b16 %v102
  %v427 = vunpack.c.l.b16 %v103
  %v428 = vunpack.c.h.b16 %v103
  %v429 = vunpack.c.l.b16 %v104
  %v430 = vunpack.c.h.b16 %v104
  %v431 = vunpack.c.l.b16 %v105
  %v432 = vunpack.c.h.b16 %v105
  %v433 = vunpack.c.l.b16 %v106
  %v434 = vunpack.c.h.b16 %v106
  %v435 = vunpack.c.l.b16 %v107
  %v436 = vunpack.c.h.b16 %v107
  %v437 = vunpack.c.l.b16 %v108
  %v438 = vunpack.c.h.b16 %v108
  %v439 = vunpack.c.l.b16 %v109
  %v440 = vunpack.c.h.b16 %v109
  %v441 = vunpack.c.l.b16 %v110
  %v442 = vunpack.c.h.b16 %v110
  %v443 = vunpack.c.l.b16 %v111
  %v444 = vunpack.c.h.b16 %v111
  %v445 = vunpack.c.l.b16 %v112
  %v446 = vunpack.c.h.b16 %v112
  %v447 = vunpack.c.l.b16 %v113
  %v448 = vunpack.c.h.b16 %v113
  %v449 = vunpack.c.l.b16 %v114
  %v450 = vunpack.c.h.b16 %v114
  %v451 = vunpack.c.l.b16 %v115
  %v452 = vunpack.c.h.b16 %v115
  %v453 = vunpack.c.l.b16 %v116
  %v454 = vunpack.c.h.b16 %v116
  %v455 = vunpack.c.l.b16 %v117
  %v456 = vunpack.c.h.b16 %v117
  %v457 = vunpack.c.l.b16 %v118
  %v458 = vunpack.c.h.b16 %v118
  %v459 = vunpack.c.l.b16 %v119
  %v460 = vunpack.c.h.b16 %v119
  %v461 = vunpack.c.l.b16 %v120
  %v462 = vunpack.c.h.b16 %v120
  %v463 = vunpack.c.l.b16 %v121
  %v464 = vunpack.c.h.b16 %v121
  %v465 = vunpack.c.l.b16 %v122
  %v466 = vunpack.c.h.b16 %v122
  %v467 = vunpack.c.l.b16 %v123
  %v468 = vunpack.c.h.b16 %v123
  %v469 = vpack.c.b16 %v255, %v253
  %v470 = vpack.c.b16 %v256, %v254
  %v471 = vpack.c.b16 %v259, %v257
  %v472 = vpack.c.b16 %v260, %v258
  %v473 = vpack.c.b16 %v263, %v261
  %v474 = vpack.c.b16 %v264, %v262
  %v475 = vpack.c.b16 %v267, %v265
  %v476 = vpack.c.b16 %v268, %v266
  %v477 = vpack.c.b16 %v271, %v269
  %v478 = vpack.c.b16 %v272, %v270
  %v479 = vpack.c.b16 %v275, %v273
  %v480 = vpack.c.b16 %v276, %v274
  %v481 = vpack.c.b16 %v279, %v277
  %v482 = vpack.c.b16 %v280, %v278
  %v483 = vpack.c.b16 %v283, %v281
  %v484 = vpack.c.b16 %v284, %v282
  %v485 = vpack.c.b16 %v287, %v285
  %v486 = vpack.c.b16 %v288, %v286
  %v487 = vpack.c.b16 %v291, %v289
  %v488 = vpack.c.b16 %v292, %v290
  %v489 = vpack.c.b16 %v295, %v293
  %v490 = vpack.c.b16 %v296, %v294
  %v491 = vpack.c.b16 %v299, %v297
  %v492 = vpack.c.b16 %v300, %v298
  %v493 = vpack.c.b16 %v303, %v301
  %v494 = vpack.c.b16 %v304, %v302
  %v495 = vpack.c.b16 %v307, %v305
  %v496 = vpack.c.b16 %v308, %v306
  %v497 = vpack.c.b16 %v311, %v309
  %v498 = vpack.c.b16 %v312, %v310
  %v499 = vpack.c.b16 %v315, %v313
  %v500 = vpack.c.b16 %v316, %v314
  %v501 = vpack.c.b16 %v319, %v317
  %v502 = vpack.c.b16 %v320, %v318
  %v503 = vpack.c.b16 %v323, %v321
  %v504 = vpack.c.b16 %v324, %v322
  %v505 = vpack.c.b16 %v327, %v325
  %v506 = vpack.c.b16 %v328, %v326
  %v507 = vpack.c.b16 %v331, %v329
  %v508 = vpack.c.b16 %v332, %v330
  %v509 = vpack.c.b16 %v335, %v333
  %v510 = vpack.c.b16 %v336, %v334
  %v511 = vpack.c.b16 %v339, %v337
  %v512 = vpack.c.b16 %v340, %v338
  %v513 = vpack.c.b16 %v343, %v341
  %v514 = vpack.c.b16 %v344, %v342
  %v515 = vpack.c.b16 %v347, %v345
  %v516 = vpack.c.b16 %v348, %v346
  %v517 = vpack.c.b16 %v351, %v349
  %v518 = vpack.c.b16 %v352, %v350
  %v519 = vpack.c.b16 %v355, %v353
  %v520 = vpack.c.b16 %v356, %v354
  %v521 = vpack.c.b16 %v359, %v357
  %v522 = vpack.c.b16 %v360, %v358
  %v523 = vpack.c.b16 %v363, %v361
  %v524 = vpack.c.b16 %v364, %v362
  %v525 = vpack.c.b16 %v367, %v365
  %v526 = vpack.c.b16 %v368, %v366
  %v527 = vpack.c.b16 %v371, %v369
  %v528 = vpack.c.b16 %v372, %v370
  %v529 = vpack.c.b16 %v375, %v373
  %v530 = vpack.c.b16 %v376, %v374
  %v531 = vpack.c.b16 %v379, %v377
  %v532 = vpack.c.b16 %v380, %v378
  %v533 = vpack.c.b16 %v383, %v381
  %v534 = vpack.c.b16 %v384, %v382
  %v535 = vpack.c.b16 %v387, %v385
  %v536 = vpack.c.b16 %v388, %v386
  %v537 = vpack.c.b16 %v391, %v389
  %v538 = vpack.c.b16 %v392, %v390
  %v539 = vpack.c.b16 %v395, %v393
  %v540 = vpack.c.b16 %v396, %v394
  %v541 = vpack.c.b16 %v399, %v397
  %v542 = vpack.c.b16 %v400, %v398
  %v543 = vpack.c.b16 %v403, %v401
  %v544 = vpack.c.b16 %v404, %v402
  %v545 = vpack.c.b16 %v407, %v405
  %v546 = vpack.c.b16 %v408, %v406
  %v547 = vpack.c.b16 %v411, %v409
  %v548 = vpack.c.b16 %v412, %v410
  %v549 = vpack.c.b16 %v415, %v413
  %v550 = vpack.c.b16 %v416, %v414
  %v551 = vpack.c.b16 %v419, %v417
  %v552 = vpack.c.b16 %v420, %v418
  %v553 = vpack.c.b16 %v423, %v421
  %v554 = vpack.c.b16 %v424, %v422
  %v555 = vpack.c.b16 %v427, %v425
  %v556 = vpack.c.b16 %v428, %v426
  %v557 = vpack.c.b16 %v431, %v429
  %v558 = vpack.c.b16 %v432, %v430
  %v559 = vpack.c.b16 %v435, %v433
  %v560 = vpack.c.b16 %v436, %v434
  %v561 = vpack.c.b16 %v439, %v437
  %v562 = vpack.c.b16 %v440, %v438
  %v563 = vpack.c.b16 %v443, %v441
  %v564 = vpack.c.b16 %v444, %v442
  %v565 = vpack.c.b16 %v447, %v445
  %v566 = vpack.c.b16 %v448, %v446
  %v567 = vpack.c.b16 %v451, %v449
  %v568 = vpack.c.b16 %v452, %v450
  %v569 = vpack.c.b16 %v455, %v453
  %v570 = vpack.c.b16 %v456, %v454
  %v571 = vpack.c.b16 %v459, %v457
  %v572 = vpack.c.b16 %v460, %v458
  %v573 = vpack.c.b16 %v463, %v461
  %v574 = vpack.c.b16 %v464, %v462
  %v575 = vpack.c.b16 %v467, %v465
  %v576 = vpack.c.b16 %v468, %v466
  %vm685 = vcmask 785408
  %v686 = vsel %vm685, %v138, 0
  %688 = vmatpush.bf16.msra.mxu0 %v483
  %689 = vmatpush.bf16.msra.mxu0 %v481
  %690 = vmatpush.bf16.msra.mxu0 %v479
  %691 = vmatpush.bf16.msra.mxu0 %v477
  %692 = vmatpush.bf16.msra.mxu0 %v475
  %693 = vmatpush.bf16.msra.mxu0 %v473
  %694 = vmatpush.bf16.msra.mxu0 %v471
  %695 = vmatpush.bf16.msra.mxu0 %v469
  %696 = vmatmul.bf16.gmra.mxu0 %v132
  %v697 = vpop.f32.mrf.mxu0
  %v698 = vadd.f32 %v126, %v697
  %v699 = vpop.f32.mrf.mxu0
  %700 = vdwg.mxu0
  %701 = vmatpush.bf16.msra.mxu0 %v499
  %702 = vmatpush.bf16.msra.mxu0 %v497
  %703 = vmatpush.bf16.msra.mxu0 %v495
  %704 = vmatpush.bf16.msra.mxu0 %v493
  %705 = vmatpush.bf16.msra.mxu0 %v491
  %706 = vmatpush.bf16.msra.mxu0 %v489
  %707 = vmatpush.bf16.msra.mxu0 %v487
  %708 = vmatpush.bf16.msra.mxu0 %v485
  %709 = vmatmul.bf16.gmra.mxu0 %v133
  %v710 = vpop.f32.mrf.mxu0
  %v711 = vadd.f32 %v698, %v710
  %v712 = vpop.f32.mrf.mxu0
  %713 = vdwg.mxu0
  %714 = vmatpush.bf16.msra.mxu0 %v515
  %715 = vmatpush.bf16.msra.mxu0 %v513
  %716 = vmatpush.bf16.msra.mxu0 %v511
  %717 = vmatpush.bf16.msra.mxu0 %v509
  %718 = vmatpush.bf16.msra.mxu0 %v507
  %719 = vmatpush.bf16.msra.mxu0 %v505
  %720 = vmatpush.bf16.msra.mxu0 %v503
  %721 = vmatpush.bf16.msra.mxu0 %v501
  %722 = vmatmul.bf16.gmra.mxu0 %v134
  %v723 = vpop.f32.mrf.mxu0
  %v724 = vadd.f32 %v711, %v723
  %v725 = vpop.f32.mrf.mxu0
  %726 = vdwg.mxu0
  %727 = vmatpush.bf16.msra.mxu0 %v531
  %728 = vmatpush.bf16.msra.mxu0 %v529
  %729 = vmatpush.bf16.msra.mxu0 %v527
  %730 = vmatpush.bf16.msra.mxu0 %v525
  %731 = vmatpush.bf16.msra.mxu0 %v523
  %732 = vmatpush.bf16.msra.mxu0 %v521
  %733 = vmatpush.bf16.msra.mxu0 %v519
  %734 = vmatpush.bf16.msra.mxu0 %v517
  %735 = vmatmul.bf16.gmra.mxu0 %v135
  %v736 = vpop.f32.mrf.mxu0
  %v737 = vadd.f32 %v724, %v736
  %v738 = vpop.f32.mrf.mxu0
  %739 = vdwg.mxu0
  %740 = vmatpush.bf16.msra.mxu0 %v547
  %741 = vmatpush.bf16.msra.mxu0 %v545
  %742 = vmatpush.bf16.msra.mxu0 %v543
  %743 = vmatpush.bf16.msra.mxu0 %v541
  %744 = vmatpush.bf16.msra.mxu0 %v539
  %745 = vmatpush.bf16.msra.mxu0 %v537
  %746 = vmatpush.bf16.msra.mxu0 %v535
  %747 = vmatpush.bf16.msra.mxu0 %v533
  %748 = vmatmul.bf16.gmra.mxu0 %v136
  %v749 = vpop.f32.mrf.mxu0
  %v750 = vadd.f32 %v737, %v749
  %v751 = vpop.f32.mrf.mxu0
  %752 = vdwg.mxu0
  %753 = vmatpush.bf16.msra.mxu0 %v563
  %754 = vmatpush.bf16.msra.mxu0 %v561
  %755 = vmatpush.bf16.msra.mxu0 %v559
  %756 = vmatpush.bf16.msra.mxu0 %v557
  %757 = vmatpush.bf16.msra.mxu0 %v555
  %758 = vmatpush.bf16.msra.mxu0 %v553
  %759 = vmatpush.bf16.msra.mxu0 %v551
  %760 = vmatpush.bf16.msra.mxu0 %v549
  %761 = vmatmul.bf16.gmra.mxu0 %v137
  %v762 = vpop.f32.mrf.mxu0
  %v763 = vadd.f32 %v750, %v762
  %v764 = vpop.f32.mrf.mxu0
  %765 = vdwg.mxu0
  %766 = vmatpush.bf16.msra.mxu0 0
  %767 = vmatpush.bf16.msra.mxu0 0
  %768 = vmatpush.bf16.msra.mxu0 %v575
  %769 = vmatpush.bf16.msra.mxu0 %v573
  %770 = vmatpush.bf16.msra.mxu0 %v571
  %771 = vmatpush.bf16.msra.mxu0 %v569
  %772 = vmatpush.bf16.msra.mxu0 %v567
  %773 = vmatpush.bf16.msra.mxu0 %v565
  %774 = vmatmul.bf16.gmra.mxu0 %v686
  %v775 = vpop.f32.mrf.mxu0
  %v776 = vadd.f32 %v763, %v775
  %v777 = vpop.f32.mrf.mxu0
  %778 = vdwg.mxu0
  %779 = vmatpush.bf16.msra.mxu0 %v484
  %780 = vmatpush.bf16.msra.mxu0 %v482
  %781 = vmatpush.bf16.msra.mxu0 %v480
  %782 = vmatpush.bf16.msra.mxu0 %v478
  %783 = vmatpush.bf16.msra.mxu0 %v476
  %784 = vmatpush.bf16.msra.mxu0 %v474
  %785 = vmatpush.bf16.msra.mxu0 %v472
  %786 = vmatpush.bf16.msra.mxu0 %v470
  %787 = vmatmul.bf16.gmra.mxu0 %v132
  %v788 = vpop.f32.mrf.mxu0
  %v789 = vadd.f32 %v127, %v788
  %v790 = vpop.f32.mrf.mxu0
  %791 = vdwg.mxu0
  %792 = vmatpush.bf16.msra.mxu0 %v500
  %793 = vmatpush.bf16.msra.mxu0 %v498
  %794 = vmatpush.bf16.msra.mxu0 %v496
  %795 = vmatpush.bf16.msra.mxu0 %v494
  %796 = vmatpush.bf16.msra.mxu0 %v492
  %797 = vmatpush.bf16.msra.mxu0 %v490
  %798 = vmatpush.bf16.msra.mxu0 %v488
  %799 = vmatpush.bf16.msra.mxu0 %v486
  %800 = vmatmul.bf16.gmra.mxu0 %v133
  %v801 = vpop.f32.mrf.mxu0
  %v802 = vadd.f32 %v789, %v801
  %v803 = vpop.f32.mrf.mxu0
  %804 = vdwg.mxu0
  %805 = vmatpush.bf16.msra.mxu0 %v516
  %806 = vmatpush.bf16.msra.mxu0 %v514
  %807 = vmatpush.bf16.msra.mxu0 %v512
  %808 = vmatpush.bf16.msra.mxu0 %v510
  %809 = vmatpush.bf16.msra.mxu0 %v508
  %810 = vmatpush.bf16.msra.mxu0 %v506
  %811 = vmatpush.bf16.msra.mxu0 %v504
  %812 = vmatpush.bf16.msra.mxu0 %v502
  %813 = vmatmul.bf16.gmra.mxu0 %v134
  %v814 = vpop.f32.mrf.mxu0
  %v815 = vadd.f32 %v802, %v814
  %v816 = vpop.f32.mrf.mxu0
  %817 = vdwg.mxu0
  %818 = vmatpush.bf16.msra.mxu0 %v532
  %819 = vmatpush.bf16.msra.mxu0 %v530
  %820 = vmatpush.bf16.msra.mxu0 %v528
  %821 = vmatpush.bf16.msra.mxu0 %v526
  %822 = vmatpush.bf16.msra.mxu0 %v524
  %823 = vmatpush.bf16.msra.mxu0 %v522
  %824 = vmatpush.bf16.msra.mxu0 %v520
  %825 = vmatpush.bf16.msra.mxu0 %v518
  %826 = vmatmul.bf16.gmra.mxu0 %v135
  %v827 = vpop.f32.mrf.mxu0
  %v828 = vadd.f32 %v815, %v827
  %v829 = vpop.f32.mrf.mxu0
  %830 = vdwg.mxu0
  %831 = vmatpush.bf16.msra.mxu0 %v548
  %832 = vmatpush.bf16.msra.mxu0 %v546
  %833 = vmatpush.bf16.msra.mxu0 %v544
  %834 = vmatpush.bf16.msra.mxu0 %v542
  %835 = vmatpush.bf16.msra.mxu0 %v540
  %836 = vmatpush.bf16.msra.mxu0 %v538
  %837 = vmatpush.bf16.msra.mxu0 %v536
  %838 = vmatpush.bf16.msra.mxu0 %v534
  %839 = vmatmul.bf16.gmra.mxu0 %v136
  %v840 = vpop.f32.mrf.mxu0
  %v841 = vadd.f32 %v828, %v840
  %v842 = vpop.f32.mrf.mxu0
  %843 = vdwg.mxu0
  %844 = vmatpush.bf16.msra.mxu0 %v564
  %845 = vmatpush.bf16.msra.mxu0 %v562
  %846 = vmatpush.bf16.msra.mxu0 %v560
  %847 = vmatpush.bf16.msra.mxu0 %v558
  %848 = vmatpush.bf16.msra.mxu0 %v556
  %849 = vmatpush.bf16.msra.mxu0 %v554
  %850 = vmatpush.bf16.msra.mxu0 %v552
  %851 = vmatpush.bf16.msra.mxu0 %v550
  %852 = vmatmul.bf16.gmra.mxu0 %v137
  %v853 = vpop.f32.mrf.mxu0
  %v854 = vadd.f32 %v841, %v853
  %v855 = vpop.f32.mrf.mxu0
  %856 = vdwg.mxu0
  %857 = vmatpush.bf16.msra.mxu0 0
  %858 = vmatpush.bf16.msra.mxu0 0
  %859 = vmatpush.bf16.msra.mxu0 %v576
  %860 = vmatpush.bf16.msra.mxu0 %v574
  %861 = vmatpush.bf16.msra.mxu0 %v572
  %862 = vmatpush.bf16.msra.mxu0 %v570
  %863 = vmatpush.bf16.msra.mxu0 %v568
  %864 = vmatpush.bf16.msra.mxu0 %v566
  %865 = vmatmul.bf16.gmra.mxu0 %v686
  %v866 = vpop.f32.mrf.mxu0
  %v867 = vadd.f32 %v854, %v866
  %v868 = vpop.f32.mrf.mxu0
  %869 = vdwg.mxu0
  %v870 = vmax.f32 %v776, 0.0
  %v871 = vmax.f32 %v867, 0.0
  %v872 = vpack.c.bf16 %v871, %v870
  %v874 = vrot.slane %v872, 3
  %vm875 = vcmask 1040384
  %v878 = vsel %vm875, %v872, %v874
  %880 = vst [vmem:[%s3] sm:$0x3] %v878
  // Predicated region
  $region14: #{audio_cond_unet_forward.15} parent=0 // pred_check
    _
  $region15: #{audio_cond_unet_forward.15} parent=0 // pred_check_branch
    %882 = sbr.rel (0) target = $region17
  $region16: #{audio_cond_unet_forward.15} parent=0 // pred_region
    _
  $region17: #{audio_cond_unet_forward.15} parent=0 // pred_fallthru
    _
  // Predicated region
  $region18: #{audio_cond_unet_forward.15} parent=0 // pred_check
    _
  $region19: #{audio_cond_unet_forward.15} parent=0 // pred_check_branch
    %884 = sbr.rel (0) target = $region21
  $region20: #{audio_cond_unet_forward.15} parent=0 // pred_region
    _
  $region21: #{audio_cond_unet_forward.15} parent=0 // pred_fallthru
    _

// kernel: audio_cond_unet_forward.17
$region0: #{audio_cond_unet_forward.17}
  #allocation0 [shape = 'u32[]', space=smem, size = 0x4, offset = 0x4, fixed_abs, tag = 'smem constant byte address 0x4 - core index']
  #allocation1 [shape = 'u32[72,128]{1,0:T(1,128)}', space=vmem, size = 0x9000, scoped, tag = 'internal scratch']
  %s0 = inlined_call_operand.vmem [shape: bf16[32,576], index: 0, kind: input, shape index: {}]
  %s1 = inlined_call_operand.vmem [shape: bf16[576,64], index: 1, kind: input, shape index: {}]
  %s2 = inlined_call_operand.vmem [shape: f32[1,64], index: 2, kind: input, shape index: {}]
  %s3 = inlined_call_operand.vmem [shape: bf16[32,64], index: 3, kind: output, shape index: {}]
  %s4 = sld [smem:[#allocation0]]
  $region22: #{audio_cond_unet_forward.17} parent=0
    _
  %s6 = ssub.s32 1, %s4
  %s7 = scalar_select 0, %s6, %s4
  // Predicated region
  $region2: #{audio_cond_unet_forward.17} parent=0 // pred_check
    _
  $region3: #{audio_cond_unet_forward.17} parent=0 // pred_check_branch
    %9 = sbr.rel (0) target = $region5
  $region4: #{audio_cond_unet_forward.17} parent=0 // pred_region
    _
  $region5: #{audio_cond_unet_forward.17} parent=0 // pred_fallthru
    _
  // Predicated region
  $region6: #{audio_cond_unet_forward.17} parent=0 // pred_check
    _
  $region7: #{audio_cond_unet_forward.17} parent=0 // pred_check_branch
    %11 = sbr.rel (0) target = $region9
  $region8: #{audio_cond_unet_forward.17} parent=0 // pred_region
    _
  $region9: #{audio_cond_unet_forward.17} parent=0 // pred_fallthru
    _
  // Predicated region
  $region10: #{audio_cond_unet_forward.17} parent=0 // pred_check
    _
  $region11: #{audio_cond_unet_forward.17} parent=0 // pred_check_branch
    %13 = sbr.rel (0) target = $region13
  $region12: #{audio_cond_unet_forward.17} parent=0 // pred_region
    _
  $region13: #{audio_cond_unet_forward.17} parent=0 // pred_fallthru
    _
  %v15 = vld [vmem:[%s0] sm:$0xff]
  %v16 = vld [vmem:[%s0 + $0x8] sm:$0xff]
  %v17 = vld [vmem:[%s0 + $0x10] sm:$0xf]
  %v18 = vld [vmem:[%s0 + $0x14] sm:$0xff]
  %v19 = vld [vmem:[%s0 + $0x1c] sm:$0xff]
  %v20 = vld [vmem:[%s0 + $0x24] sm:$0xf]
  %v21 = vld [vmem:[%s0 + $0x28] sm:$0xff]
  %v22 = vld [vmem:[%s0 + $0x30] sm:$0xff]
  %v23 = vld [vmem:[%s0 + $0x38] sm:$0xf]
  %v24 = vld [vmem:[%s0 + $0x3c] sm:$0xff]
  %v25 = vld [vmem:[%s0 + $0x44] sm:$0xff]
  %v26 = vld [vmem:[%s0 + $0x4c] sm:$0xf]
  %v27 = vld [vmem:[%s1] sm:$0xf]
  %v28 = vld [vmem:[%s1 + $0x4] sm:$0xf]
  %v29 = vld [vmem:[%s1 + $0x8] sm:$0xf]
  %v30 = vld [vmem:[%s1 + $0xc] sm:$0xf]
  %v31 = vld [vmem:[%s1 + $0x10] sm:$0xf]
  %v32 = vld [vmem:[%s1 + $0x14] sm:$0xf]
  %v33 = vld [vmem:[%s1 + $0x18] sm:$0xf]
  %v34 = vld [vmem:[%s1 + $0x1c] sm:$0xf]
  %v35 = vld [vmem:[%s1 + $0x20] sm:$0xf]
  %v36 = vld [vmem:[%s1 + $0x24] sm:$0xf]
  %v37 = vld [vmem:[%s1 + $0x28] sm:$0xf]
  %v38 = vld [vmem:[%s1 + $0x2c] sm:$0xf]
  %v39 = vld [vmem:[%s1 + $0x30] sm:$0xf]
  %v40 = vld [vmem:[%s1 + $0x34] sm:$0xf]
  %v41 = vld [vmem:[%s1 + $0x38] sm:$0xf]
  %v42 = vld [vmem:[%s1 + $0x3c] sm:$0xf]
  %v43 = vld [vmem:[%s1 + $0x40] sm:$0xf]
  %v44 = vld [vmem:[%s1 + $0x44] sm:$0xf]
  %v45 = vld [vmem:[%s1 + $0x48] sm:$0xf]
  %v46 = vld [vmem:[%s1 + $0x4c] sm:$0xf]
  %v47 = vld [vmem:[%s1 + $0x50] sm:$0xf]
  %v48 = vld [vmem:[%s1 + $0x54] sm:$0xf]
  %v49 = vld [vmem:[%s1 + $0x58] sm:$0xf]
  %v50 = vld [vmem:[%s1 + $0x5c] sm:$0xf]
  %v51 = vld [vmem:[%s1 + $0x60] sm:$0xf]
  %v52 = vld [vmem:[%s1 + $0x64] sm:$0xf]
  %v53 = vld [vmem:[%s1 + $0x68] sm:$0xf]
  %v54 = vld [vmem:[%s1 + $0x6c] sm:$0xf]
  %v55 = vld [vmem:[%s1 + $0x70] sm:$0xf]
  %v56 = vld [vmem:[%s1 + $0x74] sm:$0xf]
  %v57 = vld [vmem:[%s1 + $0x78] sm:$0xf]
  %v58 = vld [vmem:[%s1 + $0x7c] sm:$0xf]
  %v59 = vld [vmem:[%s1 + $0x80] sm:$0xf]
  %v60 = vld [vmem:[%s1 + $0x84] sm:$0xf]
  %v61 = vld [vmem:[%s1 + $0x88] sm:$0xf]
  %v62 = vld [vmem:[%s1 + $0x8c] sm:$0xf]
  %v63 = vld [vmem:[%s1 + $0x90] sm:$0xf]
  %v64 = vld [vmem:[%s1 + $0x94] sm:$0xf]
  %v65 = vld [vmem:[%s1 + $0x98] sm:$0xf]
  %v66 = vld [vmem:[%s1 + $0x9c] sm:$0xf]
  %v67 = vld [vmem:[%s1 + $0xa0] sm:$0xf]
  %v68 = vld [vmem:[%s1 + $0xa4] sm:$0xf]
  %v69 = vld [vmem:[%s1 + $0xa8] sm:$0xf]
  %v70 = vld [vmem:[%s1 + $0xac] sm:$0xf]
  %v71 = vld [vmem:[%s1 + $0xb0] sm:$0xf]
  %v72 = vld [vmem:[%s1 + $0xb4] sm:$0xf]
  %v73 = vld [vmem:[%s1 + $0xb8] sm:$0xf]
  %v74 = vld [vmem:[%s1 + $0xbc] sm:$0xf]
  %v75 = vld [vmem:[%s1 + $0xc0] sm:$0xf]
  %v76 = vld [vmem:[%s1 + $0xc4] sm:$0xf]
  %v77 = vld [vmem:[%s1 + $0xc8] sm:$0xf]
  %v78 = vld [vmem:[%s1 + $0xcc] sm:$0xf]
  %v79 = vld [vmem:[%s1 + $0xd0] sm:$0xf]
  %v80 = vld [vmem:[%s1 + $0xd4] sm:$0xf]
  %v81 = vld [vmem:[%s1 + $0xd8] sm:$0xf]
  %v82 = vld [vmem:[%s1 + $0xdc] sm:$0xf]
  %v83 = vld [vmem:[%s1 + $0xe0] sm:$0xf]
  %v84 = vld [vmem:[%s1 + $0xe4] sm:$0xf]
  %v85 = vld [vmem:[%s1 + $0xe8] sm:$0xf]
  %v86 = vld [vmem:[%s1 + $0xec] sm:$0xf]
  %v87 = vld [vmem:[%s1 + $0xf0] sm:$0xf]
  %v88 = vld [vmem:[%s1 + $0xf4] sm:$0xf]
  %v89 = vld [vmem:[%s1 + $0xf8] sm:$0xf]
  %v90 = vld [vmem:[%s1 + $0xfc] sm:$0xf]
  %v91 = vld [vmem:[%s1 + $0x100] sm:$0xf]
  %v92 = vld [vmem:[%s1 + $0x104] sm:$0xf]
  %v93 = vld [vmem:[%s1 + $0x108] sm:$0xf]
  %v94 = vld [vmem:[%s1 + $0x10c] sm:$0xf]
  %v95 = vld [vmem:[%s1 + $0x110] sm:$0xf]
  %v96 = vld [vmem:[%s1 + $0x114] sm:$0xf]
  %v97 = vld [vmem:[%s1 + $0x118] sm:$0xf]
  %v98 = vld [vmem:[%s1 + $0x11c] sm:$0xf]
  %v99 = vld [vmem:[%s2] sm:$0x1]
  %v101 = vperm.slane %v99, 0
  %v115 = vunpack.c.l.b16 %v15
  %v116 = vunpack.c.h.b16 %v15
  %v117 = vunpack.c.l.b16 %v16
  %v118 = vunpack.c.h.b16 %v16
  %v119 = vunpack.c.l.b16 %v17
  %v120 = vunpack.c.l.b16 %v18
  %v121 = vunpack.c.h.b16 %v18
  %v122 = vunpack.c.l.b16 %v19
  %v123 = vunpack.c.h.b16 %v19
  %v124 = vunpack.c.l.b16 %v20
  %v125 = vunpack.c.l.b16 %v21
  %v126 = vunpack.c.h.b16 %v21
  %v127 = vunpack.c.l.b16 %v22
  %v128 = vunpack.c.h.b16 %v22
  %v129 = vunpack.c.l.b16 %v23
  %v130 = vunpack.c.l.b16 %v24
  %v131 = vunpack.c.h.b16 %v24
  %v132 = vunpack.c.l.b16 %v25
  %v133 = vunpack.c.h.b16 %v25
  %v134 = vunpack.c.l.b16 %v26
  %v135 = vpack.c.b16 %v120, %v115
  %v136 = vpack.c.b16 %v121, %v116
  %v137 = vpack.c.b16 %v122, %v117
  %v138 = vpack.c.b16 %v123, %v118
  %v139 = vpack.c.b16 %v124, %v119
  %v140 = vpack.c.b16 %v130, %v125
  %v141 = vpack.c.b16 %v131, %v126
  %v142 = vpack.c.b16 %v132, %v127
  %v143 = vpack.c.b16 %v133, %v128
  %v144 = vpack.c.b16 %v134, %v129
  %v225 = vunpack.c.l.b16 %v27
  %v226 = vunpack.c.l.b16 %v28
  %v227 = vunpack.c.l.b16 %v29
  %v228 = vunpack.c.l.b16 %v30
  %v229 = vunpack.c.l.b16 %v31
  %v230 = vunpack.c.l.b16 %v32
  %v231 = vunpack.c.l.b16 %v33
  %v232 = vunpack.c.l.b16 %v34
  %v233 = vunpack.c.l.b16 %v35
  %v234 = vunpack.c.l.b16 %v36
  %v235 = vunpack.c.l.b16 %v37
  %v236 = vunpack.c.l.b16 %v38
  %v237 = vunpack.c.l.b16 %v39
  %v238 = vunpack.c.l.b16 %v40
  %v239 = vunpack.c.l.b16 %v41
  %v240 = vunpack.c.l.b16 %v42
  %v241 = vunpack.c.l.b16 %v43
  %v242 = vunpack.c.l.b16 %v44
  %v243 = vunpack.c.l.b16 %v45
  %v244 = vunpack.c.l.b16 %v46
  %v245 = vunpack.c.l.b16 %v47
  %v246 = vunpack.c.l.b16 %v48
  %v247 = vunpack.c.l.b16 %v49
  %v248 = vunpack.c.l.b16 %v50
  %v249 = vunpack.c.l.b16 %v51
  %v250 = vunpack.c.l.b16 %v52
  %v251 = vunpack.c.l.b16 %v53
  %v252 = vunpack.c.l.b16 %v54
  %v253 = vunpack.c.l.b16 %v55
  %v254 = vunpack.c.l.b16 %v56
  %v255 = vunpack.c.l.b16 %v57
  %v256 = vunpack.c.l.b16 %v58
  %v257 = vunpack.c.l.b16 %v59
  %v258 = vunpack.c.l.b16 %v60
  %v259 = vunpack.c.l.b16 %v61
  %v260 = vunpack.c.l.b16 %v62
  %v261 = vunpack.c.l.b16 %v63
  %v262 = vunpack.c.l.b16 %v64
  %v263 = vunpack.c.l.b16 %v65
  %v264 = vunpack.c.l.b16 %v66
  %v265 = vunpack.c.l.b16 %v67
  %v266 = vunpack.c.l.b16 %v68
  %v267 = vunpack.c.l.b16 %v69
  %v268 = vunpack.c.l.b16 %v70
  %v269 = vunpack.c.l.b16 %v71
  %v270 = vunpack.c.l.b16 %v72
  %v271 = vunpack.c.l.b16 %v73
  %v272 = vunpack.c.l.b16 %v74
  %v273 = vunpack.c.l.b16 %v75
  %v274 = vunpack.c.l.b16 %v76
  %v275 = vunpack.c.l.b16 %v77
  %v276 = vunpack.c.l.b16 %v78
  %v277 = vunpack.c.l.b16 %v79
  %v278 = vunpack.c.l.b16 %v80
  %v279 = vunpack.c.l.b16 %v81
  %v280 = vunpack.c.l.b16 %v82
  %v281 = vunpack.c.l.b16 %v83
  %v282 = vunpack.c.l.b16 %v84
  %v283 = vunpack.c.l.b16 %v85
  %v284 = vunpack.c.l.b16 %v86
  %v285 = vunpack.c.l.b16 %v87
  %v286 = vunpack.c.l.b16 %v88
  %v287 = vunpack.c.l.b16 %v89
  %v288 = vunpack.c.l.b16 %v90
  %v289 = vunpack.c.l.b16 %v91
  %v290 = vunpack.c.l.b16 %v92
  %v291 = vunpack.c.l.b16 %v93
  %v292 = vunpack.c.l.b16 %v94
  %v293 = vunpack.c.l.b16 %v95
  %v294 = vunpack.c.l.b16 %v96
  %v295 = vunpack.c.l.b16 %v97
  %v296 = vunpack.c.l.b16 %v98
  %v297 = vpack.c.b16 %v226, %v225
  %v298 = vpack.c.b16 %v228, %v227
  %v299 = vpack.c.b16 %v230, %v229
  %v300 = vpack.c.b16 %v232, %v231
  %v301 = vpack.c.b16 %v234, %v233
  %v302 = vpack.c.b16 %v236, %v235
  %v303 = vpack.c.b16 %v238, %v237
  %v304 = vpack.c.b16 %v240, %v239
  %v305 = vpack.c.b16 %v242, %v241
  %v306 = vpack.c.b16 %v244, %v243
  %v307 = vpack.c.b16 %v246, %v245
  %v308 = vpack.c.b16 %v248, %v247
  %v309 = vpack.c.b16 %v250, %v249
  %v310 = vpack.c.b16 %v252, %v251
  %v311 = vpack.c.b16 %v254, %v253
  %v312 = vpack.c.b16 %v256, %v255
  %v313 = vpack.c.b16 %v258, %v257
  %v314 = vpack.c.b16 %v260, %v259
  %v315 = vpack.c.b16 %v262, %v261
  %v316 = vpack.c.b16 %v264, %v263
  %v317 = vpack.c.b16 %v266, %v265
  %v318 = vpack.c.b16 %v268, %v267
  %v319 = vpack.c.b16 %v270, %v269
  %v320 = vpack.c.b16 %v272, %v271
  %v321 = vpack.c.b16 %v274, %v273
  %v322 = vpack.c.b16 %v276, %v275
  %v323 = vpack.c.b16 %v278, %v277
  %v324 = vpack.c.b16 %v280, %v279
  %v325 = vpack.c.b16 %v282, %v281
  %v326 = vpack.c.b16 %v284, %v283
  %v327 = vpack.c.b16 %v286, %v285
  %v328 = vpack.c.b16 %v288, %v287
  %v329 = vpack.c.b16 %v290, %v289
  %v330 = vpack.c.b16 %v292, %v291
  %v331 = vpack.c.b16 %v294, %v293
  %v332 = vpack.c.b16 %v296, %v295
  %vm369 = vcmask 523264
  %v371 = vsel %vm369, %v139, 0
  %v374 = vsel %vm369, %v144, 0
  %376 = vmatpush.bf16.msra.mxu0 %v304
  %377 = vmatpush.bf16.msra.mxu0 %v303
  %378 = vmatpush.bf16.msra.mxu0 %v302
  %379 = vmatpush.bf16.msra.mxu0 %v301
  %380 = vmatpush.bf16.msra.mxu0 %v300
  %381 = vmatpush.bf16.msra.mxu0 %v299
  %382 = vmatpush.bf16.msra.mxu0 %v298
  %383 = vmatpush.bf16.msra.mxu0 %v297
  %384 = vmatmul.bf16.gmra.mxu0 %v135
  %v385 = vpop.f32.mrf.mxu0
  %v386 = vadd.f32 %v101, %v385
  %v387 = vpop.f32.mrf.mxu0
  %v388 = vadd.f32 %v101, %v387
  %389 = vmatmul.bf16.gmra.mxu0 %v140
  %v390 = vpop.f32.mrf.mxu0
  %v391 = vadd.f32 %v101, %v390
  %v392 = vpop.f32.mrf.mxu0
  %v393 = vadd.f32 %v101, %v392
  %394 = vdwg.mxu0
  %395 = vmatpush.bf16.msra.mxu0 %v312
  %396 = vmatpush.bf16.msra.mxu0 %v311
  %397 = vmatpush.bf16.msra.mxu0 %v310
  %398 = vmatpush.bf16.msra.mxu0 %v309
  %399 = vmatpush.bf16.msra.mxu0 %v308
  %400 = vmatpush.bf16.msra.mxu0 %v307
  %401 = vmatpush.bf16.msra.mxu0 %v306
  %402 = vmatpush.bf16.msra.mxu0 %v305
  %403 = vmatmul.bf16.gmra.mxu0 %v136
  %v404 = vpop.f32.mrf.mxu0
  %v405 = vadd.f32 %v386, %v404
  %v406 = vpop.f32.mrf.mxu0
  %v407 = vadd.f32 %v388, %v406
  %408 = vmatmul.bf16.gmra.mxu0 %v141
  %v409 = vpop.f32.mrf.mxu0
  %v410 = vadd.f32 %v391, %v409
  %v411 = vpop.f32.mrf.mxu0
  %v412 = vadd.f32 %v393, %v411
  %413 = vdwg.mxu0
  %414 = vmatpush.bf16.msra.mxu0 %v320
  %415 = vmatpush.bf16.msra.mxu0 %v319
  %416 = vmatpush.bf16.msra.mxu0 %v318
  %417 = vmatpush.bf16.msra.mxu0 %v317
  %418 = vmatpush.bf16.msra.mxu0 %v316
  %419 = vmatpush.bf16.msra.mxu0 %v315
  %420 = vmatpush.bf16.msra.mxu0 %v314
  %421 = vmatpush.bf16.msra.mxu0 %v313
  %422 = vmatmul.bf16.gmra.mxu0 %v137
  %v423 = vpop.f32.mrf.mxu0
  %v424 = vadd.f32 %v405, %v423
  %v425 = vpop.f32.mrf.mxu0
  %v426 = vadd.f32 %v407, %v425
  %427 = vmatmul.bf16.gmra.mxu0 %v142
  %v428 = vpop.f32.mrf.mxu0
  %v429 = vadd.f32 %v410, %v428
  %v430 = vpop.f32.mrf.mxu0
  %v431 = vadd.f32 %v412, %v430
  %432 = vdwg.mxu0
  %433 = vmatpush.bf16.msra.mxu0 %v328
  %434 = vmatpush.bf16.msra.mxu0 %v327
  %435 = vmatpush.bf16.msra.mxu0 %v326
  %436 = vmatpush.bf16.msra.mxu0 %v325
  %437 = vmatpush.bf16.msra.mxu0 %v324
  %438 = vmatpush.bf16.msra.mxu0 %v323
  %439 = vmatpush.bf16.msra.mxu0 %v322
  %440 = vmatpush.bf16.msra.mxu0 %v321
  %441 = vmatmul.bf16.gmra.mxu0 %v138
  %v442 = vpop.f32.mrf.mxu0
  %v443 = vadd.f32 %v424, %v442
  %v444 = vpop.f32.mrf.mxu0
  %v445 = vadd.f32 %v426, %v444
  %446 = vmatmul.bf16.gmra.mxu0 %v143
  %v447 = vpop.f32.mrf.mxu0
  %v448 = vadd.f32 %v429, %v447
  %v449 = vpop.f32.mrf.mxu0
  %v450 = vadd.f32 %v431, %v449
  %451 = vdwg.mxu0
  %452 = vmatpush.bf16.msra.mxu0 0
  %453 = vmatpush.bf16.msra.mxu0 0
  %454 = vmatpush.bf16.msra.mxu0 0
  %455 = vmatpush.bf16.msra.mxu0 0
  %456 = vmatpush.bf16.msra.mxu0 %v332
  %457 = vmatpush.bf16.msra.mxu0 %v331
  %458 = vmatpush.bf16.msra.mxu0 %v330
  %459 = vmatpush.bf16.msra.mxu0 %v329
  %460 = vmatmul.bf16.gmra.mxu0 %v371
  %v461 = vpop.f32.mrf.mxu0
  %v462 = vadd.f32 %v443, %v461
  %v463 = vpop.f32.mrf.mxu0
  %v464 = vadd.f32 %v445, %v463
  %465 = vmatmul.bf16.gmra.mxu0 %v374
  %v466 = vpop.f32.mrf.mxu0
  %v467 = vadd.f32 %v448, %v466
  %v468 = vpop.f32.mrf.mxu0
  %v469 = vadd.f32 %v450, %v468
  %470 = vdwg.mxu0
  %v471 = vmax.f32 %v462, 0.0
  %v472 = vmax.f32 %v464, 0.0
  %v473 = vmax.f32 %v467, 0.0
  %v474 = vmax.f32 %v469, 0.0
  %v475 = vpack.c.bf16 %v471, %v471
  %v476 = vpack.c.bf16 %v472, %v472
  %v477 = vpack.c.bf16 %v473, %v473
  %v478 = vpack.c.bf16 %v474, %v474
  %vm479 = vcmask 519168
  %480 = vst.msk [vmem:[%s3] sm:$0xf] %vm479, %v475
  %481 = vst.msk [vmem:[%s3 + $0x4] sm:$0xf] %vm479, %v476
  %482 = vst.msk [vmem:[%s3 + $0x8] sm:$0xf] %vm479, %v477
  %483 = vst.msk [vmem:[%s3 + $0xc] sm:$0xf] %vm479, %v478
  // Predicated region
  $region14: #{audio_cond_unet_forward.17} parent=0 // pred_check
    _
  $region15: #{audio_cond_unet_forward.17} parent=0 // pred_check_branch
    %485 = sbr.rel (0) target = $region17
  $region16: #{audio_cond_unet_forward.17} parent=0 // pred_region
    _
  $region17: #{audio_cond_unet_forward.17} parent=0 // pred_fallthru
    _
  // Predicated region
  $region18: #{audio_cond_unet_forward.17} parent=0 // pred_check
    _
  $region19: #{audio_cond_unet_forward.17} parent=0 // pred_check_branch
    %487 = sbr.rel (0) target = $region21
  $region20: #{audio_cond_unet_forward.17} parent=0 // pred_region
    _
  $region21: #{audio_cond_unet_forward.17} parent=0 // pred_fallthru
    _

// kernel: audio_cond_unet_forward.18
$region0: #{audio_cond_unet_forward.18}
  #allocation0 [shape = 'u32[]', space=smem, size = 0x4, offset = 0x4, fixed_abs, tag = 'smem constant byte address 0x4 - core index']
  #allocation1 [shape = 'u32[72,128]{1,0:T(1,128)}', space=vmem, size = 0x9000, scoped, tag = 'internal scratch']
  %s0 = inlined_call_operand.vmem [shape: bf16[128,288], index: 0, kind: input, shape index: {}]
  %s1 = inlined_call_operand.vmem [shape: bf16[288,32], index: 1, kind: input, shape index: {}]
  %s2 = inlined_call_operand.vmem [shape: f32[1,32], index: 2, kind: input, shape index: {}]
  %s3 = inlined_call_operand.vmem [shape: bf16[128,32], index: 3, kind: output, shape index: {}]
  %s4 = sld [smem:[#allocation0]]
  $region22: #{audio_cond_unet_forward.18} parent=0
    _
  %s6 = ssub.s32 1, %s4
  %s7 = scalar_select 0, %s6, %s4
  // Predicated region
  $region2: #{audio_cond_unet_forward.18} parent=0 // pred_check
    _
  $region3: #{audio_cond_unet_forward.18} parent=0 // pred_check_branch
    %9 = sbr.rel (0) target = $region5
  $region4: #{audio_cond_unet_forward.18} parent=0 // pred_region
    _
  $region5: #{audio_cond_unet_forward.18} parent=0 // pred_fallthru
    _
  // Predicated region
  $region6: #{audio_cond_unet_forward.18} parent=0 // pred_check
    _
  $region7: #{audio_cond_unet_forward.18} parent=0 // pred_check_branch
    %11 = sbr.rel (0) target = $region9
  $region8: #{audio_cond_unet_forward.18} parent=0 // pred_region
    _
  $region9: #{audio_cond_unet_forward.18} parent=0 // pred_fallthru
    _
  // Predicated region
  $region10: #{audio_cond_unet_forward.18} parent=0 // pred_check
    _
  $region11: #{audio_cond_unet_forward.18} parent=0 // pred_check_branch
    %13 = sbr.rel (0) target = $region13
  $region12: #{audio_cond_unet_forward.18} parent=0 // pred_region
    _
  $region13: #{audio_cond_unet_forward.18} parent=0 // pred_fallthru
    _
  %v15 = vld [vmem:[%s0] sm:$0xff]
  %v16 = vld [vmem:[%s0 + $0x8] sm:$0xf]
  %v17 = vld [vmem:[%s0 + $0xc] sm:$0xff]
  %v18 = vld [vmem:[%s0 + $0x14] sm:$0xf]
  %v19 = vld [vmem:[%s0 + $0x18] sm:$0xff]
  %v20 = vld [vmem:[%s0 + $0x20] sm:$0xf]
  %v21 = vld [vmem:[%s0 + $0x24] sm:$0xff]
  %v22 = vld [vmem:[%s0 + $0x2c] sm:$0xf]
  %v23 = vld [vmem:[%s0 + $0x30] sm:$0xff]
  %v24 = vld [vmem:[%s0 + $0x38] sm:$0xf]
  %v25 = vld [vmem:[%s0 + $0x3c] sm:$0xff]
  %v26 = vld [vmem:[%s0 + $0x44] sm:$0xf]
  %v27 = vld [vmem:[%s0 + $0x48] sm:$0xff]
  %v28 = vld [vmem:[%s0 + $0x50] sm:$0xf]
  %v29 = vld [vmem:[%s0 + $0x54] sm:$0xff]
  %v30 = vld [vmem:[%s0 + $0x5c] sm:$0xf]
  %v31 = vld [vmem:[%s0 + $0x60] sm:$0xff]
  %v32 = vld [vmem:[%s0 + $0x68] sm:$0xf]
  %v33 = vld [vmem:[%s0 + $0x6c] sm:$0xff]
  %v34 = vld [vmem:[%s0 + $0x74] sm:$0xf]
  %v35 = vld [vmem:[%s0 + $0x78] sm:$0xff]
  %v36 = vld [vmem:[%s0 + $0x80] sm:$0xf]
  %v37 = vld [vmem:[%s0 + $0x84] sm:$0xff]
  %v38 = vld [vmem:[%s0 + $0x8c] sm:$0xf]
  %v39 = vld [vmem:[%s0 + $0x90] sm:$0xff]
  %v40 = vld [vmem:[%s0 + $0x98] sm:$0xf]
  %v41 = vld [vmem:[%s0 + $0x9c] sm:$0xff]
  %v42 = vld [vmem:[%s0 + $0xa4] sm:$0xf]
  %v43 = vld [vmem:[%s0 + $0xa8] sm:$0xff]
  %v44 = vld [vmem:[%s0 + $0xb0] sm:$0xf]
  %v45 = vld [vmem:[%s0 + $0xb4] sm:$0xff]
  %v46 = vld [vmem:[%s0 + $0xbc] sm:$0xf]
  %v47 = vld [vmem:[%s1] sm:$0xf]
  %v48 = vld [vmem:[%s1 + $0x4] sm:$0xf]
  %v49 = vld [vmem:[%s1 + $0x8] sm:$0xf]
  %v50 = vld [vmem:[%s1 + $0xc] sm:$0xf]
  %v51 = vld [vmem:[%s1 + $0x10] sm:$0xf]
  %v52 = vld [vmem:[%s1 + $0x14] sm:$0xf]
  %v53 = vld [vmem:[%s1 + $0x18] sm:$0xf]
  %v54 = vld [vmem:[%s1 + $0x1c] sm:$0xf]
  %v55 = vld [vmem:[%s1 + $0x20] sm:$0xf]
  %v56 = vld [vmem:[%s1 + $0x24] sm:$0xf]
  %v57 = vld [vmem:[%s1 + $0x28] sm:$0xf]
  %v58 = vld [vmem:[%s1 + $0x2c] sm:$0xf]
  %v59 = vld [vmem:[%s1 + $0x30] sm:$0xf]
  %v60 = vld [vmem:[%s1 + $0x34] sm:$0xf]
  %v61 = vld [vmem:[%s1 + $0x38] sm:$0xf]
  %v62 = vld [vmem:[%s1 + $0x3c] sm:$0xf]
  %v63 = vld [vmem:[%s1 + $0x40] sm:$0xf]
  %v64 = vld [vmem:[%s1 + $0x44] sm:$0xf]
  %v65 = vld [vmem:[%s1 + $0x48] sm:$0xf]
  %v66 = vld [vmem:[%s1 + $0x4c] sm:$0xf]
  %v67 = vld [vmem:[%s1 + $0x50] sm:$0xf]
  %v68 = vld [vmem:[%s1 + $0x54] sm:$0xf]
  %v69 = vld [vmem:[%s1 + $0x58] sm:$0xf]
  %v70 = vld [vmem:[%s1 + $0x5c] sm:$0xf]
  %v71 = vld [vmem:[%s1 + $0x60] sm:$0xf]
  %v72 = vld [vmem:[%s1 + $0x64] sm:$0xf]
  %v73 = vld [vmem:[%s1 + $0x68] sm:$0xf]
  %v74 = vld [vmem:[%s1 + $0x6c] sm:$0xf]
  %v75 = vld [vmem:[%s1 + $0x70] sm:$0xf]
  %v76 = vld [vmem:[%s1 + $0x74] sm:$0xf]
  %v77 = vld [vmem:[%s1 + $0x78] sm:$0xf]
  %v78 = vld [vmem:[%s1 + $0x7c] sm:$0xf]
  %v79 = vld [vmem:[%s1 + $0x80] sm:$0xf]
  %v80 = vld [vmem:[%s1 + $0x84] sm:$0xf]
  %v81 = vld [vmem:[%s1 + $0x88] sm:$0xf]
  %v82 = vld [vmem:[%s1 + $0x8c] sm:$0xf]
  %v83 = vld [vmem:[%s2] sm:$0x1]
  %v85 = vperm.slane %v83, 0
  %v119 = vunpack.c.l.b16 %v15
  %v120 = vunpack.c.h.b16 %v15
  %v121 = vunpack.c.l.b16 %v16
  %v122 = vunpack.c.l.b16 %v17
  %v123 = vunpack.c.h.b16 %v17
  %v124 = vunpack.c.l.b16 %v18
  %v125 = vunpack.c.l.b16 %v19
  %v126 = vunpack.c.h.b16 %v19
  %v127 = vunpack.c.l.b16 %v20
  %v128 = vunpack.c.l.b16 %v21
  %v129 = vunpack.c.h.b16 %v21
  %v130 = vunpack.c.l.b16 %v22
  %v131 = vunpack.c.l.b16 %v23
  %v132 = vunpack.c.h.b16 %v23
  %v133 = vunpack.c.l.b16 %v24
  %v134 = vunpack.c.l.b16 %v25
  %v135 = vunpack.c.h.b16 %v25
  %v136 = vunpack.c.l.b16 %v26
  %v137 = vunpack.c.l.b16 %v27
  %v138 = vunpack.c.h.b16 %v27
  %v139 = vunpack.c.l.b16 %v28
  %v140 = vunpack.c.l.b16 %v29
  %v141 = vunpack.c.h.b16 %v29
  %v142 = vunpack.c.l.b16 %v30
  %v143 = vunpack.c.l.b16 %v31
  %v144 = vunpack.c.h.b16 %v31
  %v145 = vunpack.c.l.b16 %v32
  %v146 = vunpack.c.l.b16 %v33
  %v147 = vunpack.c.h.b16 %v33
  %v148 = vunpack.c.l.b16 %v34
  %v149 = vunpack.c.l.b16 %v35
  %v150 = vunpack.c.h.b16 %v35
  %v151 = vunpack.c.l.b16 %v36
  %v152 = vunpack.c.l.b16 %v37
  %v153 = vunpack.c.h.b16 %v37
  %v154 = vunpack.c.l.b16 %v38
  %v155 = vunpack.c.l.b16 %v39
  %v156 = vunpack.c.h.b16 %v39
  %v157 = vunpack.c.l.b16 %v40
  %v158 = vunpack.c.l.b16 %v41
  %v159 = vunpack.c.h.b16 %v41
  %v160 = vunpack.c.l.b16 %v42
  %v161 = vunpack.c.l.b16 %v43
  %v162 = vunpack.c.h.b16 %v43
  %v163 = vunpack.c.l.b16 %v44
  %v164 = vunpack.c.l.b16 %v45
  %v165 = vunpack.c.h.b16 %v45
  %v166 = vunpack.c.l.b16 %v46
  %v167 = vpack.c.b16 %v122, %v119
  %v168 = vpack.c.b16 %v123, %v120
  %v169 = vpack.c.b16 %v124, %v121
  %v170 = vpack.c.b16 %v128, %v125
  %v171 = vpack.c.b16 %v129, %v126
  %v172 = vpack.c.b16 %v130, %v127
  %v173 = vpack.c.b16 %v134, %v131
  %v174 = vpack.c.b16 %v135, %v132
  %v175 = vpack.c.b16 %v136, %v133
  %v176 = vpack.c.b16 %v140, %v137
  %v177 = vpack.c.b16 %v141, %v138
  %v178 = vpack.c.b16 %v142, %v139
  %v179 = vpack.c.b16 %v146, %v143
  %v180 = vpack.c.b16 %v147, %v144
  %v181 = vpack.c.b16 %v148, %v145
  %v182 = vpack.c.b16 %v152, %v149
  %v183 = vpack.c.b16 %v153, %v150
  %v184 = vpack.c.b16 %v154, %v151
  %v185 = vpack.c.b16 %v158, %v155
  %v186 = vpack.c.b16 %v159, %v156
  %v187 = vpack.c.b16 %v160, %v157
  %v188 = vpack.c.b16 %v164, %v161
  %v189 = vpack.c.b16 %v165, %v162
  %v190 = vpack.c.b16 %v166, %v163
  %v243 = vunpack.c.l.b16 %v47
  %v244 = vunpack.c.l.b16 %v48
  %v245 = vunpack.c.l.b16 %v49
  %v246 = vunpack.c.l.b16 %v50
  %v247 = vunpack.c.l.b16 %v51
  %v248 = vunpack.c.l.b16 %v52
  %v249 = vunpack.c.l.b16 %v53
  %v250 = vunpack.c.l.b16 %v54
  %v251 = vunpack.c.l.b16 %v55
  %v252 = vunpack.c.l.b16 %v56
  %v253 = vunpack.c.l.b16 %v57
  %v254 = vunpack.c.l.b16 %v58
  %v255 = vunpack.c.l.b16 %v59
  %v256 = vunpack.c.l.b16 %v60
  %v257 = vunpack.c.l.b16 %v61
  %v258 = vunpack.c.l.b16 %v62
  %v259 = vunpack.c.l.b16 %v63
  %v260 = vunpack.c.l.b16 %v64
  %v261 = vunpack.c.l.b16 %v65
  %v262 = vunpack.c.l.b16 %v66
  %v263 = vunpack.c.l.b16 %v67
  %v264 = vunpack.c.l.b16 %v68
  %v265 = vunpack.c.l.b16 %v69
  %v266 = vunpack.c.l.b16 %v70
  %v267 = vunpack.c.l.b16 %v71
  %v268 = vunpack.c.l.b16 %v72
  %v269 = vunpack.c.l.b16 %v73
  %v270 = vunpack.c.l.b16 %v74
  %v271 = vunpack.c.l.b16 %v75
  %v272 = vunpack.c.l.b16 %v76
  %v273 = vunpack.c.l.b16 %v77
  %v274 = vunpack.c.l.b16 %v78
  %v275 = vunpack.c.l.b16 %v79
  %v276 = vunpack.c.l.b16 %v80
  %v277 = vunpack.c.l.b16 %v81
  %v278 = vunpack.c.l.b16 %v82
  %v279 = vpack.c.b16 %v244, %v243
  %v280 = vpack.c.b16 %v246, %v245
  %v281 = vpack.c.b16 %v248, %v247
  %v282 = vpack.c.b16 %v250, %v249
  %v283 = vpack.c.b16 %v252, %v251
  %v284 = vpack.c.b16 %v254, %v253
  %v285 = vpack.c.b16 %v256, %v255
  %v286 = vpack.c.b16 %v258, %v257
  %v287 = vpack.c.b16 %v260, %v259
  %v288 = vpack.c.b16 %v262, %v261
  %v289 = vpack.c.b16 %v264, %v263
  %v290 = vpack.c.b16 %v266, %v265
  %v291 = vpack.c.b16 %v268, %v267
  %v292 = vpack.c.b16 %v270, %v269
  %v293 = vpack.c.b16 %v272, %v271
  %v294 = vpack.c.b16 %v274, %v273
  %v295 = vpack.c.b16 %v276, %v275
  %v296 = vpack.c.b16 %v278, %v277
  %vm315 = vcmask 261120
  %v317 = vsel %vm315, %v169, 0
  %v320 = vsel %vm315, %v172, 0
  %v323 = vsel %vm315, %v175, 0
  %v326 = vsel %vm315, %v178, 0
  %v329 = vsel %vm315, %v181, 0
  %v332 = vsel %vm315, %v184, 0
  %v335 = vsel %vm315, %v187, 0
  %v338 = vsel %vm315, %v190, 0
  %340 = vmatpush.bf16.msra.mxu0 %v286
  %341 = vmatpush.bf16.msra.mxu0 %v285
  %342 = vmatpush.bf16.msra.mxu0 %v284
  %343 = vmatpush.bf16.msra.mxu0 %v283
  %344 = vmatpush.bf16.msra.mxu0 %v282
  %345 = vmatpush.bf16.msra.mxu0 %v281
  %346 = vmatpush.bf16.msra.mxu0 %v280
  %347 = vmatpush.bf16.msra.mxu0 %v279
  %348 = vmatmul.bf16.gmra.mxu0 %v167
  %v349 = vpop.f32.mrf.mxu0
  %v350 = vadd.f32 %v85, %v349
  %v351 = vpop.f32.mrf.mxu0
  %v352 = vadd.f32 %v85, %v351
  %353 = vmatmul.bf16.gmra.mxu0 %v170
  %v354 = vpop.f32.mrf.mxu0
  %v355 = vadd.f32 %v85, %v354
  %v356 = vpop.f32.mrf.mxu0
  %v357 = vadd.f32 %v85, %v356
  %358 = vmatmul.bf16.gmra.mxu0 %v173
  %v359 = vpop.f32.mrf.mxu0
  %v360 = vadd.f32 %v85, %v359
  %v361 = vpop.f32.mrf.mxu0
  %v362 = vadd.f32 %v85, %v361
  %363 = vmatmul.bf16.gmra.mxu0 %v176
  %v364 = vpop.f32.mrf.mxu0
  %v365 = vadd.f32 %v85, %v364
  %v366 = vpop.f32.mrf.mxu0
  %v367 = vadd.f32 %v85, %v366
  %368 = vmatmul.bf16.gmra.mxu0 %v179
  %v369 = vpop.f32.mrf.mxu0
  %v370 = vadd.f32 %v85, %v369
  %v371 = vpop.f32.mrf.mxu0
  %v372 = vadd.f32 %v85, %v371
  %373 = vmatmul.bf16.gmra.mxu0 %v182
  %v374 = vpop.f32.mrf.mxu0
  %v375 = vadd.f32 %v85, %v374
  %v376 = vpop.f32.mrf.mxu0
  %v377 = vadd.f32 %v85, %v376
  %378 = vmatmul.bf16.gmra.mxu0 %v185
  %v379 = vpop.f32.mrf.mxu0
  %v380 = vadd.f32 %v85, %v379
  %v381 = vpop.f32.mrf.mxu0
  %v382 = vadd.f32 %v85, %v381
  %383 = vmatmul.bf16.gmra.mxu0 %v188
  %v384 = vpop.f32.mrf.mxu0
  %v385 = vadd.f32 %v85, %v384
  %v386 = vpop.f32.mrf.mxu0
  %v387 = vadd.f32 %v85, %v386
  %388 = vdwg.mxu0
  %389 = vmatpush.bf16.msra.mxu0 %v294
  %390 = vmatpush.bf16.msra.mxu0 %v293
  %391 = vmatpush.bf16.msra.mxu0 %v292
  %392 = vmatpush.bf16.msra.mxu0 %v291
  %393 = vmatpush.bf16.msra.mxu0 %v290
  %394 = vmatpush.bf16.msra.mxu0 %v289
  %395 = vmatpush.bf16.msra.mxu0 %v288
  %396 = vmatpush.bf16.msra.mxu0 %v287
  %397 = vmatmul.bf16.gmra.mxu0 %v168
  %v398 = vpop.f32.mrf.mxu0
  %v399 = vadd.f32 %v350, %v398
  %v400 = vpop.f32.mrf.mxu0
  %v401 = vadd.f32 %v352, %v400
  %402 = vmatmul.bf16.gmra.mxu0 %v171
  %v403 = vpop.f32.mrf.mxu0
  %v404 = vadd.f32 %v355, %v403
  %v405 = vpop.f32.mrf.mxu0
  %v406 = vadd.f32 %v357, %v405
  %407 = vmatmul.bf16.gmra.mxu0 %v174
  %v408 = vpop.f32.mrf.mxu0
  %v409 = vadd.f32 %v360, %v408
  %v410 = vpop.f32.mrf.mxu0
  %v411 = vadd.f32 %v362, %v410
  %412 = vmatmul.bf16.gmra.mxu0 %v177
  %v413 = vpop.f32.mrf.mxu0
  %v414 = vadd.f32 %v365, %v413
  %v415 = vpop.f32.mrf.mxu0
  %v416 = vadd.f32 %v367, %v415
  %417 = vmatmul.bf16.gmra.mxu0 %v180
  %v418 = vpop.f32.mrf.mxu0
  %v419 = vadd.f32 %v370, %v418
  %v420 = vpop.f32.mrf.mxu0
  %v421 = vadd.f32 %v372, %v420
  %422 = vmatmul.bf16.gmra.mxu0 %v183
  %v423 = vpop.f32.mrf.mxu0
  %v424 = vadd.f32 %v375, %v423
  %v425 = vpop.f32.mrf.mxu0
  %v426 = vadd.f32 %v377, %v425
  %427 = vmatmul.bf16.gmra.mxu0 %v186
  %v428 = vpop.f32.mrf.mxu0
  %v429 = vadd.f32 %v380, %v428
  %v430 = vpop.f32.mrf.mxu0
  %v431 = vadd.f32 %v382, %v430
  %432 = vmatmul.bf16.gmra.mxu0 %v189
  %v433 = vpop.f32.mrf.mxu0
  %v434 = vadd.f32 %v385, %v433
  %v435 = vpop.f32.mrf.mxu0
  %v436 = vadd.f32 %v387, %v435
  %437 = vdwg.mxu0
  %438 = vmatpush.bf16.msra.mxu0 0
  %439 = vmatpush.bf16.msra.mxu0 0
  %440 = vmatpush.bf16.msra.mxu0 0
  %441 = vmatpush.bf16.msra.mxu0 0
  %442 = vmatpush.bf16.msra.mxu0 0
  %443 = vmatpush.bf16.msra.mxu0 0
  %444 = vmatpush.bf16.msra.mxu0 %v296
  %445 = vmatpush.bf16.msra.mxu0 %v295
  %446 = vmatmul.bf16.gmra.mxu0 %v317
  %v447 = vpop.f32.mrf.mxu0
  %v448 = vadd.f32 %v399, %v447
  %v449 = vpop.f32.mrf.mxu0
  %v450 = vadd.f32 %v401, %v449
  %451 = vmatmul.bf16.gmra.mxu0 %v320
  %v452 = vpop.f32.mrf.mxu0
  %v453 = vadd.f32 %v404, %v452
  %v454 = vpop.f32.mrf.mxu0
  %v455 = vadd.f32 %v406, %v454
  %456 = vmatmul.bf16.gmra.mxu0 %v323
  %v457 = vpop.f32.mrf.mxu0
  %v458 = vadd.f32 %v409, %v457
  %v459 = vpop.f32.mrf.mxu0
  %v460 = vadd.f32 %v411, %v459
  %461 = vmatmul.bf16.gmra.mxu0 %v326
  %v462 = vpop.f32.mrf.mxu0
  %v463 = vadd.f32 %v414, %v462
  %v464 = vpop.f32.mrf.mxu0
  %v465 = vadd.f32 %v416, %v464
  %466 = vmatmul.bf16.gmra.mxu0 %v329
  %v467 = vpop.f32.mrf.mxu0
  %v468 = vadd.f32 %v419, %v467
  %v469 = vpop.f32.mrf.mxu0
  %v470 = vadd.f32 %v421, %v469
  %471 = vmatmul.bf16.gmra.mxu0 %v332
  %v472 = vpop.f32.mrf.mxu0
  %v473 = vadd.f32 %v424, %v472
  %v474 = vpop.f32.mrf.mxu0
  %v475 = vadd.f32 %v426, %v474
  %476 = vmatmul.bf16.gmra.mxu0 %v335
  %v477 = vpop.f32.mrf.mxu0
  %v478 = vadd.f32 %v429, %v477
  %v479 = vpop.f32.mrf.mxu0
  %v480 = vadd.f32 %v431, %v479
  %481 = vmatmul.bf16.gmra.mxu0 %v338
  %v482 = vpop.f32.mrf.mxu0
  %v483 = vadd.f32 %v434, %v482
  %v484 = vpop.f32.mrf.mxu0
  %v485 = vadd.f32 %v436, %v484
  %486 = vdwg.mxu0
  %v487 = vmax.f32 %v448, 0.0
  %v488 = vmax.f32 %v450, 0.0
  %v489 = vmax.f32 %v453, 0.0
  %v490 = vmax.f32 %v455, 0.0
  %v491 = vmax.f32 %v458, 0.0
  %v492 = vmax.f32 %v460, 0.0
  %v493 = vmax.f32 %v463, 0.0
  %v494 = vmax.f32 %v465, 0.0
  %v495 = vmax.f32 %v468, 0.0
  %v496 = vmax.f32 %v470, 0.0
  %v497 = vmax.f32 %v473, 0.0
  %v498 = vmax.f32 %v475, 0.0
  %v499 = vmax.f32 %v478, 0.0
  %v500 = vmax.f32 %v480, 0.0
  %v501 = vmax.f32 %v483, 0.0
  %v502 = vmax.f32 %v485, 0.0
  %v503 = vpack.c.bf16 %v487, %v487
  %v504 = vpack.c.bf16 %v488, %v488
  %v505 = vpack.c.bf16 %v489, %v489
  %v506 = vpack.c.bf16 %v490, %v490
  %v507 = vpack.c.bf16 %v491, %v491
  %v508 = vpack.c.bf16 %v492, %v492
  %v509 = vpack.c.bf16 %v493, %v493
  %v510 = vpack.c.bf16 %v494, %v494
  %v511 = vpack.c.bf16 %v495, %v495
  %v512 = vpack.c.bf16 %v496, %v496
  %v513 = vpack.c.bf16 %v497, %v497
  %v514 = vpack.c.bf16 %v498, %v498
  %v515 = vpack.c.bf16 %v499, %v499
  %v516 = vpack.c.bf16 %v500, %v500
  %v517 = vpack.c.bf16 %v501, %v501
  %v518 = vpack.c.bf16 %v502, %v502
  %vm519 = vcmask 257024
  %520 = vst.msk [vmem:[%s3] sm:$0xf] %vm519, %v503
  %521 = vst.msk [vmem:[%s3 + $0x4] sm:$0xf] %vm519, %v504
  %522 = vst.msk [vmem:[%s3 + $0x8] sm:$0xf] %vm519, %v505
  %523 = vst.msk [vmem:[%s3 + $0xc] sm:$0xf] %vm519, %v506
  %524 = vst.msk [vmem:[%s3 + $0x10] sm:$0xf] %vm519, %v507
  %525 = vst.msk [vmem:[%s3 + $0x14] sm:$0xf] %vm519, %v508
  %526 = vst.msk [vmem:[%s3 + $0x18] sm:$0xf] %vm519, %v509
  %527 = vst.msk [vmem:[%s3 + $0x1c] sm:$0xf] %vm519, %v510
  %528 = vst.msk [vmem:[%s3 + $0x20] sm:$0xf] %vm519, %v511
  %529 = vst.msk [vmem:[%s3 + $0x24] sm:$0xf] %vm519, %v512
  %530 = vst.msk [vmem:[%s3 + $0x28] sm:$0xf] %vm519, %v513
  %531 = vst.msk [vmem:[%s3 + $0x2c] sm:$0xf] %vm519, %v514
  %532 = vst.msk [vmem:[%s3 + $0x30] sm:$0xf] %vm519, %v515
  %533 = vst.msk [vmem:[%s3 + $0x34] sm:$0xf] %vm519, %v516
  %534 = vst.msk [vmem:[%s3 + $0x38] sm:$0xf] %vm519, %v517
  %535 = vst.msk [vmem:[%s3 + $0x3c] sm:$0xf] %vm519, %v518
  // Predicated region
  $region14: #{audio_cond_unet_forward.18} parent=0 // pred_check
    _
  $region15: #{audio_cond_unet_forward.18} parent=0 // pred_check_branch
    %537 = sbr.rel (0) target = $region17
  $region16: #{audio_cond_unet_forward.18} parent=0 // pred_region
    _
  $region17: #{audio_cond_unet_forward.18} parent=0 // pred_fallthru
    _
  // Predicated region
  $region18: #{audio_cond_unet_forward.18} parent=0 // pred_check
    _
  $region19: #{audio_cond_unet_forward.18} parent=0 // pred_check_branch
    %539 = sbr.rel (0) target = $region21
  $region20: #{audio_cond_unet_forward.18} parent=0 // pred_region
    _
  $region21: #{audio_cond_unet_forward.18} parent=0 // pred_fallthru
    _

// kernel: audio_cond_unet_forward.19
$region0: #{audio_cond_unet_forward.19}
  #allocation0 [shape = 'u32[]', space=smem, size = 0x4, offset = 0x4, fixed_abs, tag = 'smem constant byte address 0x4 - core index']
  #allocation1 [shape = 'u32[72,128]{1,0:T(1,128)}', space=vmem, size = 0x9000, scoped, tag = 'internal scratch']
  %s0 = inlined_call_operand.vmem [shape: bf16[512,144], index: 0, kind: input, shape index: {}]
  %s1 = inlined_call_operand.vmem [shape: bf16[144,4], index: 1, kind: input, shape index: {}]
  %s2 = inlined_call_operand.vmem [shape: bf16[144,4], index: 2, kind: input, shape index: {}]
  %s3 = inlined_call_operand.vmem [shape: f32[1,4], index: 3, kind: input, shape index: {}]
  %s4 = inlined_call_operand.vmem [shape: f32[1,4], index: 4, kind: input, shape index: {}]
  %s5 = inlined_call_operand.vmem [shape: f32[512,4], index: 5, kind: input, shape index: {}]
  %s6 = inlined_call_operand.vmem [shape: f32[512,4], index: 6, kind: input, shape index: {}]
  %s7 = inlined_call_operand.vmem [shape: f32[512,4], index: 7, kind: output, shape index: {0}]
  %s8 = inlined_call_operand.vmem [shape: f32[512,4], index: 8, kind: output, shape index: {1}]
  %9 = xla_tuple %s7, %s8
  %s10 = sld [smem:[#allocation0]]
  $region46: #{audio_cond_unet_forward.19} parent=0
    _
  %s12 = ssub.s32 1, %s10
  %s13 = scalar_select 0, %s12, %s10
  // Predicated region
  $region2: #{audio_cond_unet_forward.19} parent=0 // pred_check
    _
  $region3: #{audio_cond_unet_forward.19} parent=0 // pred_check_branch
    %15 = sbr.rel (0) target = $region5
  $region4: #{audio_cond_unet_forward.19} parent=0 // pred_region
    _
  $region5: #{audio_cond_unet_forward.19} parent=0 // pred_fallthru
    _
  // Predicated region
  $region6: #{audio_cond_unet_forward.19} parent=0 // pred_check
    _
  $region7: #{audio_cond_unet_forward.19} parent=0 // pred_check_branch
    %17 = sbr.rel (0) target = $region9
  $region8: #{audio_cond_unet_forward.19} parent=0 // pred_region
    _
  $region9: #{audio_cond_unet_forward.19} parent=0 // pred_fallthru
    _
  // Predicated region
  $region10: #{audio_cond_unet_forward.19} parent=0 // pred_check
    _
  $region11: #{audio_cond_unet_forward.19} parent=0 // pred_check_branch
    %19 = sbr.rel (0) target = $region13
  $region12: #{audio_cond_unet_forward.19} parent=0 // pred_region
    _
  $region13: #{audio_cond_unet_forward.19} parent=0 // pred_fallthru
    _
  // Predicated region
  $region14: #{audio_cond_unet_forward.19} parent=0 // pred_check
    _
  $region15: #{audio_cond_unet_forward.19} parent=0 // pred_check_branch
    %21 = sbr.rel (0) target = $region17
  $region16: #{audio_cond_unet_forward.19} parent=0 // pred_region
    _
  $region17: #{audio_cond_unet_forward.19} parent=0 // pred_fallthru
    _
  // Predicated region
  $region18: #{audio_cond_unet_forward.19} parent=0 // pred_check
    _
  $region19: #{audio_cond_unet_forward.19} parent=0 // pred_check_branch
    %23 = sbr.rel (0) target = $region21
  $region20: #{audio_cond_unet_forward.19} parent=0 // pred_region
    _
  $region21: #{audio_cond_unet_forward.19} parent=0 // pred_fallthru
    _
  // Predicated region
  $region22: #{audio_cond_unet_forward.19} parent=0 // pred_check
    _
  $region23: #{audio_cond_unet_forward.19} parent=0 // pred_check_branch
    %25 = sbr.rel (0) target = $region25
  $region24: #{audio_cond_unet_forward.19} parent=0 // pred_region
    _
  $region25: #{audio_cond_unet_forward.19} parent=0 // pred_fallthru
    _
  // Predicated region
  $region26: #{audio_cond_unet_forward.19} parent=0 // pred_check
    _
  $region27: #{audio_cond_unet_forward.19} parent=0 // pred_check_branch
    %27 = sbr.rel (0) target = $region29
  $region28: #{audio_cond_unet_forward.19} parent=0 // pred_region
    _
  $region29: #{audio_cond_unet_forward.19} parent=0 // pred_fallthru
    _
  %v29 = vld [vmem:[%s0] sm:$0xff]
  %v30 = vld [vmem:[%s0 + $0x8] sm:$0xff]
  %v31 = vld [vmem:[%s0 + $0x10] sm:$0xff]
  %v32 = vld [vmem:[%s0 + $0x18] sm:$0xff]
  %v33 = vld [vmem:[%s0 + $0x20] sm:$0xff]
  %v34 = vld [vmem:[%s0 + $0x28] sm:$0xff]
  %v35 = vld [vmem:[%s0 + $0x30] sm:$0xff]
  %v36 = vld [vmem:[%s0 + $0x38] sm:$0xff]
  %v37 = vld [vmem:[%s0 + $0x40] sm:$0xff]
  %v38 = vld [vmem:[%s0 + $0x48] sm:$0xff]
  %v39 = vld [vmem:[%s0 + $0x50] sm:$0xff]
  %v40 = vld [vmem:[%s0 + $0x58] sm:$0xff]
  %v41 = vld [vmem:[%s0 + $0x60] sm:$0xff]
  %v42 = vld [vmem:[%s0 + $0x68] sm:$0xff]
  %v43 = vld [vmem:[%s0 + $0x70] sm:$0xff]
  %v44 = vld [vmem:[%s0 + $0x78] sm:$0xff]
  %v45 = vld [vmem:[%s0 + $0x80] sm:$0xff]
  %v46 = vld [vmem:[%s0 + $0x88] sm:$0xff]
  %v47 = vld [vmem:[%s0 + $0x90] sm:$0xff]
  %v48 = vld [vmem:[%s0 + $0x98] sm:$0xff]
  %v49 = vld [vmem:[%s0 + $0xa0] sm:$0xff]
  %v50 = vld [vmem:[%s0 + $0xa8] sm:$0xff]
  %v51 = vld [vmem:[%s0 + $0xb0] sm:$0xff]
  %v52 = vld [vmem:[%s0 + $0xb8] sm:$0xff]
  %v53 = vld [vmem:[%s0 + $0xc0] sm:$0xff]
  %v54 = vld [vmem:[%s0 + $0xc8] sm:$0xff]
  %v55 = vld [vmem:[%s0 + $0xd0] sm:$0xff]
  %v56 = vld [vmem:[%s0 + $0xd8] sm:$0xff]
  %v57 = vld [vmem:[%s0 + $0xe0] sm:$0xff]
  %v58 = vld [vmem:[%s0 + $0xe8] sm:$0xff]
  %v59 = vld [vmem:[%s0 + $0xf0] sm:$0xff]
  %v60 = vld [vmem:[%s0 + $0xf8] sm:$0xff]
  %v61 = vld [vmem:[%s0 + $0x100] sm:$0xff]
  %v62 = vld [vmem:[%s0 + $0x108] sm:$0xff]
  %v63 = vld [vmem:[%s0 + $0x110] sm:$0xff]
  %v64 = vld [vmem:[%s0 + $0x118] sm:$0xff]
  %v65 = vld [vmem:[%s0 + $0x120] sm:$0xff]
  %v66 = vld [vmem:[%s0 + $0x128] sm:$0xff]
  %v67 = vld [vmem:[%s0 + $0x130] sm:$0xff]
  %v68 = vld [vmem:[%s0 + $0x138] sm:$0xff]
  %v69 = vld [vmem:[%s0 + $0x140] sm:$0xff]
  %v70 = vld [vmem:[%s0 + $0x148] sm:$0xff]
  %v71 = vld [vmem:[%s0 + $0x150] sm:$0xff]
  %v72 = vld [vmem:[%s0 + $0x158] sm:$0xff]
  %v73 = vld [vmem:[%s0 + $0x160] sm:$0xff]
  %v74 = vld [vmem:[%s0 + $0x168] sm:$0xff]
  %v75 = vld [vmem:[%s0 + $0x170] sm:$0xff]
  %v76 = vld [vmem:[%s0 + $0x178] sm:$0xff]
  %v77 = vld [vmem:[%s0 + $0x180] sm:$0xff]
  %v78 = vld [vmem:[%s0 + $0x188] sm:$0xff]
  %v79 = vld [vmem:[%s0 + $0x190] sm:$0xff]
  %v80 = vld [vmem:[%s0 + $0x198] sm:$0xff]
  %v81 = vld [vmem:[%s0 + $0x1a0] sm:$0xff]
  %v82 = vld [vmem:[%s0 + $0x1a8] sm:$0xff]
  %v83 = vld [vmem:[%s0 + $0x1b0] sm:$0xff]
  %v84 = vld [vmem:[%s0 + $0x1b8] sm:$0xff]
  %v85 = vld [vmem:[%s0 + $0x1c0] sm:$0xff]
  %v86 = vld [vmem:[%s0 + $0x1c8] sm:$0xff]
  %v87 = vld [vmem:[%s0 + $0x1d0] sm:$0xff]
  %v88 = vld [vmem:[%s0 + $0x1d8] sm:$0xff]
  %v89 = vld [vmem:[%s0 + $0x1e0] sm:$0xff]
  %v90 = vld [vmem:[%s0 + $0x1e8] sm:$0xff]
  %v91 = vld [vmem:[%s0 + $0x1f0] sm:$0xff]
  %v92 = vld [vmem:[%s0 + $0x1f8] sm:$0xff]
  %v93 = vld [vmem:[%s1] sm:$0xf]
  %v94 = vld [vmem:[%s1 + $0x4] sm:$0xf]
  %v95 = vld [vmem:[%s1 + $0x8] sm:$0xf]
  %v96 = vld [vmem:[%s1 + $0xc] sm:$0xf]
  %v97 = vld [vmem:[%s1 + $0x10] sm:$0xf]
  %v98 = vld [vmem:[%s1 + $0x14] sm:$0xf]
  %v99 = vld [vmem:[%s1 + $0x18] sm:$0xf]
  %v100 = vld [vmem:[%s1 + $0x1c] sm:$0xf]
  %v101 = vld [vmem:[%s1 + $0x20] sm:$0xf]
  %v102 = vld [vmem:[%s1 + $0x24] sm:$0xf]
  %v103 = vld [vmem:[%s1 + $0x28] sm:$0xf]
  %v104 = vld [vmem:[%s1 + $0x2c] sm:$0xf]
  %v105 = vld [vmem:[%s1 + $0x30] sm:$0xf]
  %v106 = vld [vmem:[%s1 + $0x34] sm:$0xf]
  %v107 = vld [vmem:[%s1 + $0x38] sm:$0xf]
  %v108 = vld [vmem:[%s1 + $0x3c] sm:$0xf]
  %v109 = vld [vmem:[%s1 + $0x40] sm:$0xf]
  %v110 = vld [vmem:[%s1 + $0x44] sm:$0xf]
  %v111 = vld [vmem:[%s3] sm:$0x1]
  %v113 = vperm.slane %v111, 0
  %v179 = vunpack.c.l.b16 %v29
  %v180 = vunpack.c.h.b16 %v29
  %v181 = vunpack.c.l.b16 %v30
  %v182 = vunpack.c.h.b16 %v30
  %v183 = vunpack.c.l.b16 %v31
  %v184 = vunpack.c.h.b16 %v31
  %v185 = vunpack.c.l.b16 %v32
  %v186 = vunpack.c.h.b16 %v32
  %v187 = vunpack.c.l.b16 %v33
  %v188 = vunpack.c.h.b16 %v33
  %v189 = vunpack.c.l.b16 %v34
  %v190 = vunpack.c.h.b16 %v34
  %v191 = vunpack.c.l.b16 %v35
  %v192 = vunpack.c.h.b16 %v35
  %v193 = vunpack.c.l.b16 %v36
  %v194 = vunpack.c.h.b16 %v36
  %v195 = vunpack.c.l.b16 %v37
  %v196 = vunpack.c.h.b16 %v37
  %v197 = vunpack.c.l.b16 %v38
  %v198 = vunpack.c.h.b16 %v38
  %v199 = vunpack.c.l.b16 %v39
  %v200 = vunpack.c.h.b16 %v39
  %v201 = vunpack.c.l.b16 %v40
  %v202 = vunpack.c.h.b16 %v40
  %v203 = vunpack.c.l.b16 %v41
  %v204 = vunpack.c.h.b16 %v41
  %v205 = vunpack.c.l.b16 %v42
  %v206 = vunpack.c.h.b16 %v42
  %v207 = vunpack.c.l.b16 %v43
  %v208 = vunpack.c.h.b16 %v43
  %v209 = vunpack.c.l.b16 %v44
  %v210 = vunpack.c.h.b16 %v44
  %v211 = vunpack.c.l.b16 %v45
  %v212 = vunpack.c.h.b16 %v45
  %v213 = vunpack.c.l.b16 %v46
  %v214 = vunpack.c.h.b16 %v46
  %v215 = vunpack.c.l.b16 %v47
  %v216 = vunpack.c.h.b16 %v47
  %v217 = vunpack.c.l.b16 %v48
  %v218 = vunpack.c.h.b16 %v48
  %v219 = vunpack.c.l.b16 %v49
  %v220 = vunpack.c.h.b16 %v49
  %v221 = vunpack.c.l.b16 %v50
  %v222 = vunpack.c.h.b16 %v50
  %v223 = vunpack.c.l.b16 %v51
  %v224 = vunpack.c.h.b16 %v51
  %v225 = vunpack.c.l.b16 %v52
  %v226 = vunpack.c.h.b16 %v52
  %v227 = vunpack.c.l.b16 %v53
  %v228 = vunpack.c.h.b16 %v53
  %v229 = vunpack.c.l.b16 %v54
  %v230 = vunpack.c.h.b16 %v54
  %v231 = vunpack.c.l.b16 %v55
  %v232 = vunpack.c.h.b16 %v55
  %v233 = vunpack.c.l.b16 %v56
  %v234 = vunpack.c.h.b16 %v56
  %v235 = vunpack.c.l.b16 %v57
  %v236 = vunpack.c.h.b16 %v57
  %v237 = vunpack.c.l.b16 %v58
  %v238 = vunpack.c.h.b16 %v58
  %v239 = vunpack.c.l.b16 %v59
  %v240 = vunpack.c.h.b16 %v59
  %v241 = vunpack.c.l.b16 %v60
  %v242 = vunpack.c.h.b16 %v60
  %v243 = vunpack.c.l.b16 %v61
  %v244 = vunpack.c.h.b16 %v61
  %v245 = vunpack.c.l.b16 %v62
  %v246 = vunpack.c.h.b16 %v62
  %v247 = vunpack.c.l.b16 %v63
  %v248 = vunpack.c.h.b16 %v63
  %v249 = vunpack.c.l.b16 %v64
  %v250 = vunpack.c.h.b16 %v64
  %v251 = vunpack.c.l.b16 %v65
  %v252 = vunpack.c.h.b16 %v65
  %v253 = vunpack.c.l.b16 %v66
  %v254 = vunpack.c.h.b16 %v66
  %v255 = vunpack.c.l.b16 %v67
  %v256 = vunpack.c.h.b16 %v67
  %v257 = vunpack.c.l.b16 %v68
  %v258 = vunpack.c.h.b16 %v68
  %v259 = vunpack.c.l.b16 %v69
  %v260 = vunpack.c.h.b16 %v69
  %v261 = vunpack.c.l.b16 %v70
  %v262 = vunpack.c.h.b16 %v70
  %v263 = vunpack.c.l.b16 %v71
  %v264 = vunpack.c.h.b16 %v71
  %v265 = vunpack.c.l.b16 %v72
  %v266 = vunpack.c.h.b16 %v72
  %v267 = vunpack.c.l.b16 %v73
  %v268 = vunpack.c.h.b16 %v73
  %v269 = vunpack.c.l.b16 %v74
  %v270 = vunpack.c.h.b16 %v74
  %v271 = vunpack.c.l.b16 %v75
  %v272 = vunpack.c.h.b16 %v75
  %v273 = vunpack.c.l.b16 %v76
  %v274 = vunpack.c.h.b16 %v76
  %v275 = vunpack.c.l.b16 %v77
  %v276 = vunpack.c.h.b16 %v77
  %v277 = vunpack.c.l.b16 %v78
  %v278 = vunpack.c.h.b16 %v78
  %v279 = vunpack.c.l.b16 %v79
  %v280 = vunpack.c.h.b16 %v79
  %v281 = vunpack.c.l.b16 %v80
  %v282 = vunpack.c.h.b16 %v80
  %v283 = vunpack.c.l.b16 %v81
  %v284 = vunpack.c.h.b16 %v81
  %v285 = vunpack.c.l.b16 %v82
  %v286 = vunpack.c.h.b16 %v82
  %v287 = vunpack.c.l.b16 %v83
  %v288 = vunpack.c.h.b16 %v83
  %v289 = vunpack.c.l.b16 %v84
  %v290 = vunpack.c.h.b16 %v84
  %v291 = vunpack.c.l.b16 %v85
  %v292 = vunpack.c.h.b16 %v85
  %v293 = vunpack.c.l.b16 %v86
  %v294 = vunpack.c.h.b16 %v86
  %v295 = vunpack.c.l.b16 %v87
  %v296 = vunpack.c.h.b16 %v87
  %v297 = vunpack.c.l.b16 %v88
  %v298 = vunpack.c.h.b16 %v88
  %v299 = vunpack.c.l.b16 %v89
  %v300 = vunpack.c.h.b16 %v89
  %v301 = vunpack.c.l.b16 %v90
  %v302 = vunpack.c.h.b16 %v90
  %v303 = vunpack.c.l.b16 %v91
  %v304 = vunpack.c.h.b16 %v91
  %v305 = vunpack.c.l.b16 %v92
  %v306 = vunpack.c.h.b16 %v92
  %v307 = vpack.c.b16 %v181, %v179
  %v308 = vpack.c.b16 %v182, %v180
  %v309 = vpack.c.b16 %v185, %v183
  %v310 = vpack.c.b16 %v186, %v184
  %v311 = vpack.c.b16 %v189, %v187
  %v312 = vpack.c.b16 %v190, %v188
  %v313 = vpack.c.b16 %v193, %v191
  %v314 = vpack.c.b16 %v194, %v192
  %v315 = vpack.c.b16 %v197, %v195
  %v316 = vpack.c.b16 %v198, %v196
  %v317 = vpack.c.b16 %v201, %v199
  %v318 = vpack.c.b16 %v202, %v200
  %v319 = vpack.c.b16 %v205, %v203
  %v320 = vpack.c.b16 %v206, %v204
  %v321 = vpack.c.b16 %v209, %v207
  %v322 = vpack.c.b16 %v210, %v208
  %v323 = vpack.c.b16 %v213, %v211
  %v324 = vpack.c.b16 %v214, %v212
  %v325 = vpack.c.b16 %v217, %v215
  %v326 = vpack.c.b16 %v218, %v216
  %v327 = vpack.c.b16 %v221, %v219
  %v328 = vpack.c.b16 %v222, %v220
  %v329 = vpack.c.b16 %v225, %v223
  %v330 = vpack.c.b16 %v226, %v224
  %v331 = vpack.c.b16 %v229, %v227
  %v332 = vpack.c.b16 %v230, %v228
  %v333 = vpack.c.b16 %v233, %v231
  %v334 = vpack.c.b16 %v234, %v232
  %v335 = vpack.c.b16 %v237, %v235
  %v336 = vpack.c.b16 %v238, %v236
  %v337 = vpack.c.b16 %v241, %v239
  %v338 = vpack.c.b16 %v242, %v240
  %v339 = vpack.c.b16 %v245, %v243
  %v340 = vpack.c.b16 %v246, %v244
  %v341 = vpack.c.b16 %v249, %v247
  %v342 = vpack.c.b16 %v250, %v248
  %v343 = vpack.c.b16 %v253, %v251
  %v344 = vpack.c.b16 %v254, %v252
  %v345 = vpack.c.b16 %v257, %v255
  %v346 = vpack.c.b16 %v258, %v256
  %v347 = vpack.c.b16 %v261, %v259
  %v348 = vpack.c.b16 %v262, %v260
  %v349 = vpack.c.b16 %v265, %v263
  %v350 = vpack.c.b16 %v266, %v264
  %v351 = vpack.c.b16 %v269, %v267
  %v352 = vpack.c.b16 %v270, %v268
  %v353 = vpack.c.b16 %v273, %v271
  %v354 = vpack.c.b16 %v274, %v272
  %v355 = vpack.c.b16 %v277, %v275
  %v356 = vpack.c.b16 %v278, %v276
  %v357 = vpack.c.b16 %v281, %v279
  %v358 = vpack.c.b16 %v282, %v280
  %v359 = vpack.c.b16 %v285, %v283
  %v360 = vpack.c.b16 %v286, %v284
  %v361 = vpack.c.b16 %v289, %v287
  %v362 = vpack.c.b16 %v290, %v288
  %v363 = vpack.c.b16 %v293, %v291
  %v364 = vpack.c.b16 %v294, %v292
  %v365 = vpack.c.b16 %v297, %v295
  %v366 = vpack.c.b16 %v298, %v296
  %v367 = vpack.c.b16 %v301, %v299
  %v368 = vpack.c.b16 %v302, %v300
  %v369 = vpack.c.b16 %v305, %v303
  %v370 = vpack.c.b16 %v306, %v304
  %v421 = vunpack.c.l.b16 %v93
  %v422 = vunpack.c.l.b16 %v94
  %v423 = vunpack.c.l.b16 %v95
  %v424 = vunpack.c.l.b16 %v96
  %v425 = vunpack.c.l.b16 %v97
  %v426 = vunpack.c.l.b16 %v98
  %v427 = vunpack.c.l.b16 %v99
  %v428 = vunpack.c.l.b16 %v100
  %v429 = vunpack.c.l.b16 %v101
  %v430 = vunpack.c.l.b16 %v102
  %v431 = vunpack.c.l.b16 %v103
  %v432 = vunpack.c.l.b16 %v104
  %v433 = vunpack.c.l.b16 %v105
  %v434 = vunpack.c.l.b16 %v106
  %v435 = vunpack.c.l.b16 %v107
  %v436 = vunpack.c.l.b16 %v108
  %v437 = vunpack.c.l.b16 %v109
  %v438 = vunpack.c.l.b16 %v110
  %v439 = vpack.c.b16 %v422, %v421
  %v440 = vpack.c.b16 %v424, %v423
  %v441 = vpack.c.b16 %v426, %v425
  %v442 = vpack.c.b16 %v428, %v427
  %v443 = vpack.c.b16 %v430, %v429
  %v444 = vpack.c.b16 %v432, %v431
  %v445 = vpack.c.b16 %v434, %v433
  %v446 = vpack.c.b16 %v436, %v435
  %v447 = vpack.c.b16 %v438, %v437
  %vm457 = vcmask 130048
  %v459 = vsel %vm457, %v308, 0
  %v462 = vsel %vm457, %v310, 0
  %v465 = vsel %vm457, %v312, 0
  %v468 = vsel %vm457, %v314, 0
  %v471 = vsel %vm457, %v316, 0
  %v474 = vsel %vm457, %v318, 0
  %v477 = vsel %vm457, %v320, 0
  %v480 = vsel %vm457, %v322, 0
  %v483 = vsel %vm457, %v324, 0
  %v486 = vsel %vm457, %v326, 0
  %v489 = vsel %vm457, %v328, 0
  %v492 = vsel %vm457, %v330, 0
  %v495 = vsel %vm457, %v332, 0
  %v498 = vsel %vm457, %v334, 0
  %v501 = vsel %vm457, %v336, 0
  %v504 = vsel %vm457, %v338, 0
  %v507 = vsel %vm457, %v340, 0
  %v510 = vsel %vm457, %v342, 0
  %v513 = vsel %vm457, %v344, 0
  %v516 = vsel %vm457, %v346, 0
  %v519 = vsel %vm457, %v348, 0
  %v522 = vsel %vm457, %v350, 0
  %v525 = vsel %vm457, %v352, 0
  %v528 = vsel %vm457, %v354, 0
  %v531 = vsel %vm457, %v356, 0
  %v534 = vsel %vm457, %v358, 0
  %v537 = vsel %vm457, %v360, 0
  %v540 = vsel %vm457, %v362, 0
  %v543 = vsel %vm457, %v364, 0
  %v546 = vsel %vm457, %v366, 0
  %v549 = vsel %vm457, %v368, 0
  %v552 = vsel %vm457, %v370, 0
  %554 = vmatpush.bf16.msra.mxu0 %v446
  %555 = vmatpush.bf16.msra.mxu0 %v445
  %556 = vmatpush.bf16.msra.mxu0 %v444
  %557 = vmatpush.bf16.msra.mxu0 %v443
  %558 = vmatpush.bf16.msra.mxu0 %v442
  %559 = vmatpush.bf16.msra.mxu0 %v441
  %560 = vmatpush.bf16.msra.mxu0 %v440
  %561 = vmatpush.bf16.msra.mxu0 %v439
  %562 = vmatmul.bf16.gmra.mxu0 %v307
  %v563 = vpop.f32.mrf.mxu0
  %v564 = vadd.f32 %v113, %v563
  %v565 = vpop.f32.mrf.mxu0
  %v566 = vadd.f32 %v113, %v565
  %567 = vmatmul.bf16.gmra.mxu0 %v309
  %v568 = vpop.f32.mrf.mxu0
  %v569 = vadd.f32 %v113, %v568
  %v570 = vpop.f32.mrf.mxu0
  %v571 = vadd.f32 %v113, %v570
  %572 = vmatmul.bf16.gmra.mxu0 %v311
  %v573 = vpop.f32.mrf.mxu0
  %v574 = vadd.f32 %v113, %v573
  %v575 = vpop.f32.mrf.mxu0
  %v576 = vadd.f32 %v113, %v575
  %577 = vmatmul.bf16.gmra.mxu0 %v313
  %v578 = vpop.f32.mrf.mxu0
  %v579 = vadd.f32 %v113, %v578
  %v580 = vpop.f32.mrf.mxu0
  %v581 = vadd.f32 %v113, %v580
  %582 = vmatmul.bf16.gmra.mxu0 %v315
  %v583 = vpop.f32.mrf.mxu0
  %v584 = vadd.f32 %v113, %v583
  %v585 = vpop.f32.mrf.mxu0
  %v586 = vadd.f32 %v113, %v585
  %587 = vmatmul.bf16.gmra.mxu0 %v317
  %v588 = vpop.f32.mrf.mxu0
  %v589 = vadd.f32 %v113, %v588
  %v590 = vpop.f32.mrf.mxu0
  %v591 = vadd.f32 %v113, %v590
  %592 = vmatmul.bf16.gmra.mxu0 %v319
  %v593 = vpop.f32.mrf.mxu0
  %v594 = vadd.f32 %v113, %v593
  %v595 = vpop.f32.mrf.mxu0
  %v596 = vadd.f32 %v113, %v595
  %597 = vmatmul.bf16.gmra.mxu0 %v321
  %v598 = vpop.f32.mrf.mxu0
  %v599 = vadd.f32 %v113, %v598
  %v600 = vpop.f32.mrf.mxu0
  %v601 = vadd.f32 %v113, %v600
  %602 = vmatmul.bf16.gmra.mxu0 %v323
  %v603 = vpop.f32.mrf.mxu0
  %v604 = vadd.f32 %v113, %v603
  %v605 = vpop.f32.mrf.mxu0
  %v606 = vadd.f32 %v113, %v605
  %607 = vmatmul.bf16.gmra.mxu0 %v325
  %v608 = vpop.f32.mrf.mxu0
  %v609 = vadd.f32 %v113, %v608
  %v610 = vpop.f32.mrf.mxu0
  %v611 = vadd.f32 %v113, %v610
  %612 = vmatmul.bf16.gmra.mxu0 %v327
  %v613 = vpop.f32.mrf.mxu0
  %v614 = vadd.f32 %v113, %v613
  %v615 = vpop.f32.mrf.mxu0
  %v616 = vadd.f32 %v113, %v615
  %617 = vmatmul.bf16.gmra.mxu0 %v329
  %v618 = vpop.f32.mrf.mxu0
  %v619 = vadd.f32 %v113, %v618
  %v620 = vpop.f32.mrf.mxu0
  %v621 = vadd.f32 %v113, %v620
  %622 = vmatmul.bf16.gmra.mxu0 %v331
  %v623 = vpop.f32.mrf.mxu0
  %v624 = vadd.f32 %v113, %v623
  %v625 = vpop.f32.mrf.mxu0
  %v626 = vadd.f32 %v113, %v625
  %627 = vmatmul.bf16.gmra.mxu0 %v333
  %v628 = vpop.f32.mrf.mxu0
  %v629 = vadd.f32 %v113, %v628
  %v630 = vpop.f32.mrf.mxu0
  %v631 = vadd.f32 %v113, %v630
  %632 = vmatmul.bf16.gmra.mxu0 %v335
  %v633 = vpop.f32.mrf.mxu0
  %v634 = vadd.f32 %v113, %v633
  %v635 = vpop.f32.mrf.mxu0
  %v636 = vadd.f32 %v113, %v635
  %637 = vmatmul.bf16.gmra.mxu0 %v337
  %v638 = vpop.f32.mrf.mxu0
  %v639 = vadd.f32 %v113, %v638
  %v640 = vpop.f32.mrf.mxu0
  %v641 = vadd.f32 %v113, %v640
  %642 = vmatmul.bf16.gmra.mxu0 %v339
  %v643 = vpop.f32.mrf.mxu0
  %v644 = vadd.f32 %v113, %v643
  %v645 = vpop.f32.mrf.mxu0
  %v646 = vadd.f32 %v113, %v645
  %647 = vmatmul.bf16.gmra.mxu0 %v341
  %v648 = vpop.f32.mrf.mxu0
  %v649 = vadd.f32 %v113, %v648
  %v650 = vpop.f32.mrf.mxu0
  %v651 = vadd.f32 %v113, %v650
  %652 = vmatmul.bf16.gmra.mxu0 %v343
  %v653 = vpop.f32.mrf.mxu0
  %v654 = vadd.f32 %v113, %v653
  %v655 = vpop.f32.mrf.mxu0
  %v656 = vadd.f32 %v113, %v655
  %657 = vmatmul.bf16.gmra.mxu0 %v345
  %v658 = vpop.f32.mrf.mxu0
  %v659 = vadd.f32 %v113, %v658
  %v660 = vpop.f32.mrf.mxu0
  %v661 = vadd.f32 %v113, %v660
  %662 = vmatmul.bf16.gmra.mxu0 %v347
  %v663 = vpop.f32.mrf.mxu0
  %v664 = vadd.f32 %v113, %v663
  %v665 = vpop.f32.mrf.mxu0
  %v666 = vadd.f32 %v113, %v665
  %667 = vmatmul.bf16.gmra.mxu0 %v349
  %v668 = vpop.f32.mrf.mxu0
  %v669 = vadd.f32 %v113, %v668
  %v670 = vpop.f32.mrf.mxu0
  %v671 = vadd.f32 %v113, %v670
  %672 = vmatmul.bf16.gmra.mxu0 %v351
  %v673 = vpop.f32.mrf.mxu0
  %v674 = vadd.f32 %v113, %v673
  %v675 = vpop.f32.mrf.mxu0
  %v676 = vadd.f32 %v113, %v675
  %677 = vmatmul.bf16.gmra.mxu0 %v353
  %v678 = vpop.f32.mrf.mxu0
  %v679 = vadd.f32 %v113, %v678
  %v680 = vpop.f32.mrf.mxu0
  %v681 = vadd.f32 %v113, %v680
  %682 = vmatmul.bf16.gmra.mxu0 %v355
  %v683 = vpop.f32.mrf.mxu0
  %v684 = vadd.f32 %v113, %v683
  %v685 = vpop.f32.mrf.mxu0
  %v686 = vadd.f32 %v113, %v685
  %687 = vmatmul.bf16.gmra.mxu0 %v357
  %v688 = vpop.f32.mrf.mxu0
  %v689 = vadd.f32 %v113, %v688
  %v690 = vpop.f32.mrf.mxu0
  %v691 = vadd.f32 %v113, %v690
  %692 = vmatmul.bf16.gmra.mxu0 %v359
  %v693 = vpop.f32.mrf.mxu0
  %v694 = vadd.f32 %v113, %v693
  %v695 = vpop.f32.mrf.mxu0
  %v696 = vadd.f32 %v113, %v695
  %697 = vmatmul.bf16.gmra.mxu0 %v361
  %v698 = vpop.f32.mrf.mxu0
  %v699 = vadd.f32 %v113, %v698
  %v700 = vpop.f32.mrf.mxu0
  %v701 = vadd.f32 %v113, %v700
  %702 = vmatmul.bf16.gmra.mxu0 %v363
  %v703 = vpop.f32.mrf.mxu0
  %v704 = vadd.f32 %v113, %v703
  %v705 = vpop.f32.mrf.mxu0
  %v706 = vadd.f32 %v113, %v705
  %707 = vmatmul.bf16.gmra.mxu0 %v365
  %v708 = vpop.f32.mrf.mxu0
  %v709 = vadd.f32 %v113, %v708
  %v710 = vpop.f32.mrf.mxu0
  %v711 = vadd.f32 %v113, %v710
  %712 = vmatmul.bf16.gmra.mxu0 %v367
  %v713 = vpop.f32.mrf.mxu0
  %v714 = vadd.f32 %v113, %v713
  %v715 = vpop.f32.mrf.mxu0
  %v716 = vadd.f32 %v113, %v715
  %717 = vmatmul.bf16.gmra.mxu0 %v369
  %v718 = vpop.f32.mrf.mxu0
  %v719 = vadd.f32 %v113, %v718
  %v720 = vpop.f32.mrf.mxu0
  %v721 = vadd.f32 %v113, %v720
  %722 = vdwg.mxu0
  %723 = vmatpush.bf16.msra.mxu0 0
  %724 = vmatpush.bf16.msra.mxu0 0
  %725 = vmatpush.bf16.msra.mxu0 0
  %726 = vmatpush.bf16.msra.mxu0 0
  %727 = vmatpush.bf16.msra.mxu0 0
  %728 = vmatpush.bf16.msra.mxu0 0
  %729 = vmatpush.bf16.msra.mxu0 0
  %730 = vmatpush.bf16.msra.mxu0 %v447
  %731 = vmatmul.bf16.gmra.mxu0 %v459
  %v732 = vpop.f32.mrf.mxu0
  %v733 = vadd.f32 %v564, %v732
  %v734 = vpop.f32.mrf.mxu0
  %v735 = vadd.f32 %v566, %v734
  %736 = vmatmul.bf16.gmra.mxu0 %v462
  %v737 = vpop.f32.mrf.mxu0
  %v738 = vadd.f32 %v569, %v737
  %v739 = vpop.f32.mrf.mxu0
  %v740 = vadd.f32 %v571, %v739
  %741 = vmatmul.bf16.gmra.mxu0 %v465
  %v742 = vpop.f32.mrf.mxu0
  %v743 = vadd.f32 %v574, %v742
  %v744 = vpop.f32.mrf.mxu0
  %v745 = vadd.f32 %v576, %v744
  %746 = vmatmul.bf16.gmra.mxu0 %v468
  %v747 = vpop.f32.mrf.mxu0
  %v748 = vadd.f32 %v579, %v747
  %v749 = vpop.f32.mrf.mxu0
  %v750 = vadd.f32 %v581, %v749
  %751 = vmatmul.bf16.gmra.mxu0 %v471
  %v752 = vpop.f32.mrf.mxu0
  %v753 = vadd.f32 %v584, %v752
  %v754 = vpop.f32.mrf.mxu0
  %v755 = vadd.f32 %v586, %v754
  %756 = vmatmul.bf16.gmra.mxu0 %v474
  %v757 = vpop.f32.mrf.mxu0
  %v758 = vadd.f32 %v589, %v757
  %v759 = vpop.f32.mrf.mxu0
  %v760 = vadd.f32 %v591, %v759
  %761 = vmatmul.bf16.gmra.mxu0 %v477
  %v762 = vpop.f32.mrf.mxu0
  %v763 = vadd.f32 %v594, %v762
  %v764 = vpop.f32.mrf.mxu0
  %v765 = vadd.f32 %v596, %v764
  %766 = vmatmul.bf16.gmra.mxu0 %v480
  %v767 = vpop.f32.mrf.mxu0
  %v768 = vadd.f32 %v599, %v767
  %v769 = vpop.f32.mrf.mxu0
  %v770 = vadd.f32 %v601, %v769
  %771 = vmatmul.bf16.gmra.mxu0 %v483
  %v772 = vpop.f32.mrf.mxu0
  %v773 = vadd.f32 %v604, %v772
  %v774 = vpop.f32.mrf.mxu0
  %v775 = vadd.f32 %v606, %v774
  %776 = vmatmul.bf16.gmra.mxu0 %v486
  %v777 = vpop.f32.mrf.mxu0
  %v778 = vadd.f32 %v609, %v777
  %v779 = vpop.f32.mrf.mxu0
  %v780 = vadd.f32 %v611, %v779
  %781 = vmatmul.bf16.gmra.mxu0 %v489
  %v782 = vpop.f32.mrf.mxu0
  %v783 = vadd.f32 %v614, %v782
  %v784 = vpop.f32.mrf.mxu0
  %v785 = vadd.f32 %v616, %v784
  %786 = vmatmul.bf16.gmra.mxu0 %v492
  %v787 = vpop.f32.mrf.mxu0
  %v788 = vadd.f32 %v619, %v787
  %v789 = vpop.f32.mrf.mxu0
  %v790 = vadd.f32 %v621, %v789
  %791 = vmatmul.bf16.gmra.mxu0 %v495
  %v792 = vpop.f32.mrf.mxu0
  %v793 = vadd.f32 %v624, %v792
  %v794 = vpop.f32.mrf.mxu0
  %v795 = vadd.f32 %v626, %v794
  %796 = vmatmul.bf16.gmra.mxu0 %v498
  %v797 = vpop.f32.mrf.mxu0
  %v798 = vadd.f32 %v629, %v797
  %v799 = vpop.f32.mrf.mxu0
  %v800 = vadd.f32 %v631, %v799
  %801 = vmatmul.bf16.gmra.mxu0 %v501
  %v802 = vpop.f32.mrf.mxu0
  %v803 = vadd.f32 %v634, %v802
  %v804 = vpop.f32.mrf.mxu0
  %v805 = vadd.f32 %v636, %v804
  %806 = vmatmul.bf16.gmra.mxu0 %v504
  %v807 = vpop.f32.mrf.mxu0
  %v808 = vadd.f32 %v639, %v807
  %v809 = vpop.f32.mrf.mxu0
  %v810 = vadd.f32 %v641, %v809
  %811 = vmatmul.bf16.gmra.mxu0 %v507
  %v812 = vpop.f32.mrf.mxu0
  %v813 = vadd.f32 %v644, %v812
  %v814 = vpop.f32.mrf.mxu0
  %v815 = vadd.f32 %v646, %v814
  %816 = vmatmul.bf16.gmra.mxu0 %v510
  %v817 = vpop.f32.mrf.mxu0
  %v818 = vadd.f32 %v649, %v817
  %v819 = vpop.f32.mrf.mxu0
  %v820 = vadd.f32 %v651, %v819
  %821 = vmatmul.bf16.gmra.mxu0 %v513
  %v822 = vpop.f32.mrf.mxu0
  %v823 = vadd.f32 %v654, %v822
  %v824 = vpop.f32.mrf.mxu0
  %v825 = vadd.f32 %v656, %v824
  %826 = vmatmul.bf16.gmra.mxu0 %v516
  %v827 = vpop.f32.mrf.mxu0
  %v828 = vadd.f32 %v659, %v827
  %v829 = vpop.f32.mrf.mxu0
  %v830 = vadd.f32 %v661, %v829
  %831 = vmatmul.bf16.gmra.mxu0 %v519
  %v832 = vpop.f32.mrf.mxu0
  %v833 = vadd.f32 %v664, %v832
  %v834 = vpop.f32.mrf.mxu0
  %v835 = vadd.f32 %v666, %v834
  %836 = vmatmul.bf16.gmra.mxu0 %v522
  %v837 = vpop.f32.mrf.mxu0
  %v838 = vadd.f32 %v669, %v837
  %v839 = vpop.f32.mrf.mxu0
  %v840 = vadd.f32 %v671, %v839
  %841 = vmatmul.bf16.gmra.mxu0 %v525
  %v842 = vpop.f32.mrf.mxu0
  %v843 = vadd.f32 %v674, %v842
  %v844 = vpop.f32.mrf.mxu0
  %v845 = vadd.f32 %v676, %v844
  %846 = vmatmul.bf16.gmra.mxu0 %v528
  %v847 = vpop.f32.mrf.mxu0
  %v848 = vadd.f32 %v679, %v847
  %v849 = vpop.f32.mrf.mxu0
  %v850 = vadd.f32 %v681, %v849
  %851 = vmatmul.bf16.gmra.mxu0 %v531
  %v852 = vpop.f32.mrf.mxu0
  %v853 = vadd.f32 %v684, %v852
  %v854 = vpop.f32.mrf.mxu0
  %v855 = vadd.f32 %v686, %v854
  %856 = vmatmul.bf16.gmra.mxu0 %v534
  %v857 = vpop.f32.mrf.mxu0
  %v858 = vadd.f32 %v689, %v857
  %v859 = vpop.f32.mrf.mxu0
  %v860 = vadd.f32 %v691, %v859
  %861 = vmatmul.bf16.gmra.mxu0 %v537
  %v862 = vpop.f32.mrf.mxu0
  %v863 = vadd.f32 %v694, %v862
  %v864 = vpop.f32.mrf.mxu0
  %v865 = vadd.f32 %v696, %v864
  %866 = vmatmul.bf16.gmra.mxu0 %v540
  %v867 = vpop.f32.mrf.mxu0
  %v868 = vadd.f32 %v699, %v867
  %v869 = vpop.f32.mrf.mxu0
  %v870 = vadd.f32 %v701, %v869
  %871 = vmatmul.bf16.gmra.mxu0 %v543
  %v872 = vpop.f32.mrf.mxu0
  %v873 = vadd.f32 %v704, %v872
  %v874 = vpop.f32.mrf.mxu0
  %v875 = vadd.f32 %v706, %v874
  %876 = vmatmul.bf16.gmra.mxu0 %v546
  %v877 = vpop.f32.mrf.mxu0
  %v878 = vadd.f32 %v709, %v877
  %v879 = vpop.f32.mrf.mxu0
  %v880 = vadd.f32 %v711, %v879
  %881 = vmatmul.bf16.gmra.mxu0 %v549
  %v882 = vpop.f32.mrf.mxu0
  %v883 = vadd.f32 %v714, %v882
  %v884 = vpop.f32.mrf.mxu0
  %v885 = vadd.f32 %v716, %v884
  %886 = vmatmul.bf16.gmra.mxu0 %v552
  %v887 = vpop.f32.mrf.mxu0
  %v888 = vadd.f32 %v719, %v887
  %v889 = vpop.f32.mrf.mxu0
  %v890 = vadd.f32 %v721, %v889
  %891 = vdwg.mxu0
  %v892 = vmul.f32 %v733, 0.5
  %v893 = vmul.f32 %v735, 0.5
  %v894 = vmul.f32 %v738, 0.5
  %v895 = vmul.f32 %v740, 0.5
  %v896 = vmul.f32 %v743, 0.5
  %v897 = vmul.f32 %v745, 0.5
  %v898 = vmul.f32 %v748, 0.5
  %v899 = vmul.f32 %v750, 0.5
  %v900 = vmul.f32 %v753, 0.5
  %v901 = vmul.f32 %v755, 0.5
  %v902 = vmul.f32 %v758, 0.5
  %v903 = vmul.f32 %v760, 0.5
  %v904 = vmul.f32 %v763, 0.5
  %v905 = vmul.f32 %v765, 0.5
  %v906 = vmul.f32 %v768, 0.5
  %v907 = vmul.f32 %v770, 0.5
  %v908 = vmul.f32 %v773, 0.5
  %v909 = vmul.f32 %v775, 0.5
  %v910 = vmul.f32 %v778, 0.5
  %v911 = vmul.f32 %v780, 0.5
  %v912 = vmul.f32 %v783, 0.5
  %v913 = vmul.f32 %v785, 0.5
  %v914 = vmul.f32 %v788, 0.5
  %v915 = vmul.f32 %v790, 0.5
  %v916 = vmul.f32 %v793, 0.5
  %v917 = vmul.f32 %v795, 0.5
  %v918 = vmul.f32 %v798, 0.5
  %v919 = vmul.f32 %v800, 0.5
  %v920 = vmul.f32 %v803, 0.5
  %v921 = vmul.f32 %v805, 0.5
  %v922 = vmul.f32 %v808, 0.5
  %v923 = vmul.f32 %v810, 0.5
  %v924 = vmul.f32 %v813, 0.5
  %v925 = vmul.f32 %v815, 0.5
  %v926 = vmul.f32 %v818, 0.5
  %v927 = vmul.f32 %v820, 0.5
  %v928 = vmul.f32 %v823, 0.5
  %v929 = vmul.f32 %v825, 0.5
  %v930 = vmul.f32 %v828, 0.5
  %v931 = vmul.f32 %v830, 0.5
  %v932 = vmul.f32 %v833, 0.5
  %v933 = vmul.f32 %v835, 0.5
  %v934 = vmul.f32 %v838, 0.5
  %v935 = vmul.f32 %v840, 0.5
  %v936 = vmul.f32 %v843, 0.5
  %v937 = vmul.f32 %v845, 0.5
  %v938 = vmul.f32 %v848, 0.5
  %v939 = vmul.f32 %v850, 0.5
  %v940 = vmul.f32 %v853, 0.5
  %v941 = vmul.f32 %v855, 0.5
  %v942 = vmul.f32 %v858, 0.5
  %v943 = vmul.f32 %v860, 0.5
  %v944 = vmul.f32 %v863, 0.5
  %v945 = vmul.f32 %v865, 0.5
  %v946 = vmul.f32 %v868, 0.5
  %v947 = vmul.f32 %v870, 0.5
  %v948 = vmul.f32 %v873, 0.5
  %v949 = vmul.f32 %v875, 0.5
  %v950 = vmul.f32 %v878, 0.5
  %v951 = vmul.f32 %v880, 0.5
  %v952 = vmul.f32 %v883, 0.5
  %v953 = vmul.f32 %v885, 0.5
  %v954 = vmul.f32 %v888, 0.5
  %v955 = vmul.f32 %v890, 0.5
  %v956 = vtanh.pop %v892
  %v957 = vtanh.pop %v893
  %v958 = vtanh.pop %v894
  %v959 = vtanh.pop %v895
  %v960 = vtanh.pop %v896
  %v961 = vtanh.pop %v897
  %v962 = vtanh.pop %v898
  %v963 = vtanh.pop %v899
  %v964 = vtanh.pop %v900
  %v965 = vtanh.pop %v901
  %v966 = vtanh.pop %v902
  %v967 = vtanh.pop %v903
  %v968 = vtanh.pop %v904
  %v969 = vtanh.pop %v905
  %v970 = vtanh.pop %v906
  %v971 = vtanh.pop %v907
  %v972 = vtanh.pop %v908
  %v973 = vtanh.pop %v909
  %v974 = vtanh.pop %v910
  %v975 = vtanh.pop %v911
  %v976 = vtanh.pop %v912
  %v977 = vtanh.pop %v913
  %v978 = vtanh.pop %v914
  %v979 = vtanh.pop %v915
  %v980 = vtanh.pop %v916
  %v981 = vtanh.pop %v917
  %v982 = vtanh.pop %v918
  %v983 = vtanh.pop %v919
  %v984 = vtanh.pop %v920
  %v985 = vtanh.pop %v921
  %v986 = vtanh.pop %v922
  %v987 = vtanh.pop %v923
  %v988 = vtanh.pop %v924
  %v989 = vtanh.pop %v925
  %v990 = vtanh.pop %v926
  %v991 = vtanh.pop %v927
  %v992 = vtanh.pop %v928
  %v993 = vtanh.pop %v929
  %v994 = vtanh.pop %v930
  %v995 = vtanh.pop %v931
  %v996 = vtanh.pop %v932
  %v997 = vtanh.pop %v933
  %v998 = vtanh.pop %v934
  %v999 = vtanh.pop %v935
  %v1000 = vtanh.pop %v936
  %v1001 = vtanh.pop %v937
  %v1002 = vtanh.pop %v938
  %v1003 = vtanh.pop %v939
  %v1004 = vtanh.pop %v940
  %v1005 = vtanh.pop %v941
  %v1006 = vtanh.pop %v942
  %v1007 = vtanh.pop %v943
  %v1008 = vtanh.pop %v944
  %v1009 = vtanh.pop %v945
  %v1010 = vtanh.pop %v946
  %v1011 = vtanh.pop %v947
  %v1012 = vtanh.pop %v948
  %v1013 = vtanh.pop %v949
  %v1014 = vtanh.pop %v950
  %v1015 = vtanh.pop %v951
  %v1016 = vtanh.pop %v952
  %v1017 = vtanh.pop %v953
  %v1018 = vtanh.pop %v954
  %v1019 = vtanh.pop %v955
  %v1020 = vld [vmem:[%s2] sm:$0xf]
  %v1021 = vld [vmem:[%s2 + $0x4] sm:$0xf]
  %v1022 = vld [vmem:[%s2 + $0x8] sm:$0xf]
  %v1023 = vld [vmem:[%s2 + $0xc] sm:$0xf]
  %v1024 = vld [vmem:[%s2 + $0x10] sm:$0xf]
  %v1025 = vld [vmem:[%s2 + $0x14] sm:$0xf]
  %v1026 = vld [vmem:[%s2 + $0x18] sm:$0xf]
  %v1027 = vld [vmem:[%s2 + $0x1c] sm:$0xf]
  %v1028 = vld [vmem:[%s2 + $0x20] sm:$0xf]
  %v1029 = vld [vmem:[%s2 + $0x24] sm:$0xf]
  %v1030 = vld [vmem:[%s2 + $0x28] sm:$0xf]
  %v1031 = vld [vmem:[%s2 + $0x2c] sm:$0xf]
  %v1032 = vld [vmem:[%s2 + $0x30] sm:$0xf]
  %v1033 = vld [vmem:[%s2 + $0x34] sm:$0xf]
  %v1034 = vld [vmem:[%s2 + $0x38] sm:$0xf]
  %v1035 = vld [vmem:[%s2 + $0x3c] sm:$0xf]
  %v1036 = vld [vmem:[%s2 + $0x40] sm:$0xf]
  %v1037 = vld [vmem:[%s2 + $0x44] sm:$0xf]
  %v1038 = vld [vmem:[%s4] sm:$0x1]
  %v1040 = vperm.slane %v1038, 0
  %v1060 = vunpack.c.l.b16 %v1020
  %v1061 = vunpack.c.l.b16 %v1021
  %v1062 = vunpack.c.l.b16 %v1022
  %v1063 = vunpack.c.l.b16 %v1023
  %v1064 = vunpack.c.l.b16 %v1024
  %v1065 = vunpack.c.l.b16 %v1025
  %v1066 = vunpack.c.l.b16 %v1026
  %v1067 = vunpack.c.l.b16 %v1027
  %v1068 = vunpack.c.l.b16 %v1028
  %v1069 = vunpack.c.l.b16 %v1029
  %v1070 = vunpack.c.l.b16 %v1030
  %v1071 = vunpack.c.l.b16 %v1031
  %v1072 = vunpack.c.l.b16 %v1032
  %v1073 = vunpack.c.l.b16 %v1033
  %v1074 = vunpack.c.l.b16 %v1034
  %v1075 = vunpack.c.l.b16 %v1035
  %v1076 = vunpack.c.l.b16 %v1036
  %v1077 = vunpack.c.l.b16 %v1037
  %v1078 = vpack.c.b16 %v1061, %v1060
  %v1079 = vpack.c.b16 %v1063, %v1062
  %v1080 = vpack.c.b16 %v1065, %v1064
  %v1081 = vpack.c.b16 %v1067, %v1066
  %v1082 = vpack.c.b16 %v1069, %v1068
  %v1083 = vpack.c.b16 %v1071, %v1070
  %v1084 = vpack.c.b16 %v1073, %v1072
  %v1085 = vpack.c.b16 %v1075, %v1074
  %v1086 = vpack.c.b16 %v1077, %v1076
  %1096 = vmatpush.bf16.msra.mxu0 %v1085
  %1097 = vmatpush.bf16.msra.mxu0 %v1084
  %1098 = vmatpush.bf16.msra.mxu0 %v1083
  %1099 = vmatpush.bf16.msra.mxu0 %v1082
  %1100 = vmatpush.bf16.msra.mxu0 %v1081
  %1101 = vmatpush.bf16.msra.mxu0 %v1080
  %1102 = vmatpush.bf16.msra.mxu0 %v1079
  %1103 = vmatpush.bf16.msra.mxu0 %v1078
  %1104 = vmatmul.bf16.gmra.mxu0 %v307
  %v1105 = vpop.f32.mrf.mxu0
  %v1106 = vadd.f32 %v1040, %v1105
  %v1107 = vpop.f32.mrf.mxu0
  %v1108 = vadd.f32 %v1040, %v1107
  %1109 = vmatmul.bf16.gmra.mxu0 %v309
  %v1110 = vpop.f32.mrf.mxu0
  %v1111 = vadd.f32 %v1040, %v1110
  %v1112 = vpop.f32.mrf.mxu0
  %v1113 = vadd.f32 %v1040, %v1112
  %1114 = vmatmul.bf16.gmra.mxu0 %v311
  %v1115 = vpop.f32.mrf.mxu0
  %v1116 = vadd.f32 %v1040, %v1115
  %v1117 = vpop.f32.mrf.mxu0
  %v1118 = vadd.f32 %v1040, %v1117
  %1119 = vmatmul.bf16.gmra.mxu0 %v313
  %v1120 = vpop.f32.mrf.mxu0
  %v1121 = vadd.f32 %v1040, %v1120
  %v1122 = vpop.f32.mrf.mxu0
  %v1123 = vadd.f32 %v1040, %v1122
  %1124 = vmatmul.bf16.gmra.mxu0 %v315
  %v1125 = vpop.f32.mrf.mxu0
  %v1126 = vadd.f32 %v1040, %v1125
  %v1127 = vpop.f32.mrf.mxu0
  %v1128 = vadd.f32 %v1040, %v1127
  %1129 = vmatmul.bf16.gmra.mxu0 %v317
  %v1130 = vpop.f32.mrf.mxu0
  %v1131 = vadd.f32 %v1040, %v1130
  %v1132 = vpop.f32.mrf.mxu0
  %v1133 = vadd.f32 %v1040, %v1132
  %1134 = vmatmul.bf16.gmra.mxu0 %v319
  %v1135 = vpop.f32.mrf.mxu0
  %v1136 = vadd.f32 %v1040, %v1135
  %v1137 = vpop.f32.mrf.mxu0
  %v1138 = vadd.f32 %v1040, %v1137
  %1139 = vmatmul.bf16.gmra.mxu0 %v321
  %v1140 = vpop.f32.mrf.mxu0
  %v1141 = vadd.f32 %v1040, %v1140
  %v1142 = vpop.f32.mrf.mxu0
  %v1143 = vadd.f32 %v1040, %v1142
  %1144 = vmatmul.bf16.gmra.mxu0 %v323
  %v1145 = vpop.f32.mrf.mxu0
  %v1146 = vadd.f32 %v1040, %v1145
  %v1147 = vpop.f32.mrf.mxu0
  %v1148 = vadd.f32 %v1040, %v1147
  %1149 = vmatmul.bf16.gmra.mxu0 %v325
  %v1150 = vpop.f32.mrf.mxu0
  %v1151 = vadd.f32 %v1040, %v1150
  %v1152 = vpop.f32.mrf.mxu0
  %v1153 = vadd.f32 %v1040, %v1152
  %1154 = vmatmul.bf16.gmra.mxu0 %v327
  %v1155 = vpop.f32.mrf.mxu0
  %v1156 = vadd.f32 %v1040, %v1155
  %v1157 = vpop.f32.mrf.mxu0
  %v1158 = vadd.f32 %v1040, %v1157
  %1159 = vmatmul.bf16.gmra.mxu0 %v329
  %v1160 = vpop.f32.mrf.mxu0
  %v1161 = vadd.f32 %v1040, %v1160
  %v1162 = vpop.f32.mrf.mxu0
  %v1163 = vadd.f32 %v1040, %v1162
  %1164 = vmatmul.bf16.gmra.mxu0 %v331
  %v1165 = vpop.f32.mrf.mxu0
  %v1166 = vadd.f32 %v1040, %v1165
  %v1167 = vpop.f32.mrf.mxu0
  %v1168 = vadd.f32 %v1040, %v1167
  %1169 = vmatmul.bf16.gmra.mxu0 %v333
  %v1170 = vpop.f32.mrf.mxu0
  %v1171 = vadd.f32 %v1040, %v1170
  %v1172 = vpop.f32.mrf.mxu0
  %v1173 = vadd.f32 %v1040, %v1172
  %1174 = vmatmul.bf16.gmra.mxu0 %v335
  %v1175 = vpop.f32.mrf.mxu0
  %v1176 = vadd.f32 %v1040, %v1175
  %v1177 = vpop.f32.mrf.mxu0
  %v1178 = vadd.f32 %v1040, %v1177
  %1179 = vmatmul.bf16.gmra.mxu0 %v337
  %v1180 = vpop.f32.mrf.mxu0
  %v1181 = vadd.f32 %v1040, %v1180
  %v1182 = vpop.f32.mrf.mxu0
  %v1183 = vadd.f32 %v1040, %v1182
  %1184 = vmatmul.bf16.gmra.mxu0 %v339
  %v1185 = vpop.f32.mrf.mxu0
  %v1186 = vadd.f32 %v1040, %v1185
  %v1187 = vpop.f32.mrf.mxu0
  %v1188 = vadd.f32 %v1040, %v1187
  %1189 = vmatmul.bf16.gmra.mxu0 %v341
  %v1190 = vpop.f32.mrf.mxu0
  %v1191 = vadd.f32 %v1040, %v1190
  %v1192 = vpop.f32.mrf.mxu0
  %v1193 = vadd.f32 %v1040, %v1192
  %1194 = vmatmul.bf16.gmra.mxu0 %v343
  %v1195 = vpop.f32.mrf.mxu0
  %v1196 = vadd.f32 %v1040, %v1195
  %v1197 = vpop.f32.mrf.mxu0
  %v1198 = vadd.f32 %v1040, %v1197
  %1199 = vmatmul.bf16.gmra.mxu0 %v345
  %v1200 = vpop.f32.mrf.mxu0
  %v1201 = vadd.f32 %v1040, %v1200
  %v1202 = vpop.f32.mrf.mxu0
  %v1203 = vadd.f32 %v1040, %v1202
  %1204 = vmatmul.bf16.gmra.mxu0 %v347
  %v1205 = vpop.f32.mrf.mxu0
  %v1206 = vadd.f32 %v1040, %v1205
  %v1207 = vpop.f32.mrf.mxu0
  %v1208 = vadd.f32 %v1040, %v1207
  %1209 = vmatmul.bf16.gmra.mxu0 %v349
  %v1210 = vpop.f32.mrf.mxu0
  %v1211 = vadd.f32 %v1040, %v1210
  %v1212 = vpop.f32.mrf.mxu0
  %v1213 = vadd.f32 %v1040, %v1212
  %1214 = vmatmul.bf16.gmra.mxu0 %v351
  %v1215 = vpop.f32.mrf.mxu0
  %v1216 = vadd.f32 %v1040, %v1215
  %v1217 = vpop.f32.mrf.mxu0
  %v1218 = vadd.f32 %v1040, %v1217
  %1219 = vmatmul.bf16.gmra.mxu0 %v353
  %v1220 = vpop.f32.mrf.mxu0
  %v1221 = vadd.f32 %v1040, %v1220
  %v1222 = vpop.f32.mrf.mxu0
  %v1223 = vadd.f32 %v1040, %v1222
  %1224 = vmatmul.bf16.gmra.mxu0 %v355
  %v1225 = vpop.f32.mrf.mxu0
  %v1226 = vadd.f32 %v1040, %v1225
  %v1227 = vpop.f32.mrf.mxu0
  %v1228 = vadd.f32 %v1040, %v1227
  %1229 = vmatmul.bf16.gmra.mxu0 %v357
  %v1230 = vpop.f32.mrf.mxu0
  %v1231 = vadd.f32 %v1040, %v1230
  %v1232 = vpop.f32.mrf.mxu0
  %v1233 = vadd.f32 %v1040, %v1232
  %1234 = vmatmul.bf16.gmra.mxu0 %v359
  %v1235 = vpop.f32.mrf.mxu0
  %v1236 = vadd.f32 %v1040, %v1235
  %v1237 = vpop.f32.mrf.mxu0
  %v1238 = vadd.f32 %v1040, %v1237
  %1239 = vmatmul.bf16.gmra.mxu0 %v361
  %v1240 = vpop.f32.mrf.mxu0
  %v1241 = vadd.f32 %v1040, %v1240
  %v1242 = vpop.f32.mrf.mxu0
  %v1243 = vadd.f32 %v1040, %v1242
  %1244 = vmatmul.bf16.gmra.mxu0 %v363
  %v1245 = vpop.f32.mrf.mxu0
  %v1246 = vadd.f32 %v1040, %v1245
  %v1247 = vpop.f32.mrf.mxu0
  %v1248 = vadd.f32 %v1040, %v1247
  %1249 = vmatmul.bf16.gmra.mxu0 %v365
  %v1250 = vpop.f32.mrf.mxu0
  %v1251 = vadd.f32 %v1040, %v1250
  %v1252 = vpop.f32.mrf.mxu0
  %v1253 = vadd.f32 %v1040, %v1252
  %1254 = vmatmul.bf16.gmra.mxu0 %v367
  %v1255 = vpop.f32.mrf.mxu0
  %v1256 = vadd.f32 %v1040, %v1255
  %v1257 = vpop.f32.mrf.mxu0
  %v1258 = vadd.f32 %v1040, %v1257
  %1259 = vmatmul.bf16.gmra.mxu0 %v369
  %v1260 = vpop.f32.mrf.mxu0
  %v1261 = vadd.f32 %v1040, %v1260
  %v1262 = vpop.f32.mrf.mxu0
  %v1263 = vadd.f32 %v1040, %v1262
  %1264 = vdwg.mxu0
  %1265 = vmatpush.bf16.msra.mxu0 0
  %1266 = vmatpush.bf16.msra.mxu0 0
  %1267 = vmatpush.bf16.msra.mxu0 0
  %1268 = vmatpush.bf16.msra.mxu0 0
  %1269 = vmatpush.bf16.msra.mxu0 0
  %1270 = vmatpush.bf16.msra.mxu0 0
  %1271 = vmatpush.bf16.msra.mxu0 0
  %1272 = vmatpush.bf16.msra.mxu0 %v1086
  %1273 = vmatmul.bf16.gmra.mxu0 %v459
  %v1274 = vpop.f32.mrf.mxu0
  %v1275 = vadd.f32 %v1106, %v1274
  %v1276 = vpop.f32.mrf.mxu0
  %v1277 = vadd.f32 %v1108, %v1276
  %1278 = vmatmul.bf16.gmra.mxu0 %v462
  %v1279 = vpop.f32.mrf.mxu0
  %v1280 = vadd.f32 %v1111, %v1279
  %v1281 = vpop.f32.mrf.mxu0
  %v1282 = vadd.f32 %v1113, %v1281
  %1283 = vmatmul.bf16.gmra.mxu0 %v465
  %v1284 = vpop.f32.mrf.mxu0
  %v1285 = vadd.f32 %v1116, %v1284
  %v1286 = vpop.f32.mrf.mxu0
  %v1287 = vadd.f32 %v1118, %v1286
  %1288 = vmatmul.bf16.gmra.mxu0 %v468
  %v1289 = vpop.f32.mrf.mxu0
  %v1290 = vadd.f32 %v1121, %v1289
  %v1291 = vpop.f32.mrf.mxu0
  %v1292 = vadd.f32 %v1123, %v1291
  %1293 = vmatmul.bf16.gmra.mxu0 %v471
  %v1294 = vpop.f32.mrf.mxu0
  %v1295 = vadd.f32 %v1126, %v1294
  %v1296 = vpop.f32.mrf.mxu0
  %v1297 = vadd.f32 %v1128, %v1296
  %1298 = vmatmul.bf16.gmra.mxu0 %v474
  %v1299 = vpop.f32.mrf.mxu0
  %v1300 = vadd.f32 %v1131, %v1299
  %v1301 = vpop.f32.mrf.mxu0
  %v1302 = vadd.f32 %v1133, %v1301
  %1303 = vmatmul.bf16.gmra.mxu0 %v477
  %v1304 = vpop.f32.mrf.mxu0
  %v1305 = vadd.f32 %v1136, %v1304
  %v1306 = vpop.f32.mrf.mxu0
  %v1307 = vadd.f32 %v1138, %v1306
  %1308 = vmatmul.bf16.gmra.mxu0 %v480
  %v1309 = vpop.f32.mrf.mxu0
  %v1310 = vadd.f32 %v1141, %v1309
  %v1311 = vpop.f32.mrf.mxu0
  %v1312 = vadd.f32 %v1143, %v1311
  %1313 = vmatmul.bf16.gmra.mxu0 %v483
  %v1314 = vpop.f32.mrf.mxu0
  %v1315 = vadd.f32 %v1146, %v1314
  %v1316 = vpop.f32.mrf.mxu0
  %v1317 = vadd.f32 %v1148, %v1316
  %1318 = vmatmul.bf16.gmra.mxu0 %v486
  %v1319 = vpop.f32.mrf.mxu0
  %v1320 = vadd.f32 %v1151, %v1319
  %v1321 = vpop.f32.mrf.mxu0
  %v1322 = vadd.f32 %v1153, %v1321
  %1323 = vmatmul.bf16.gmra.mxu0 %v489
  %v1324 = vpop.f32.mrf.mxu0
  %v1325 = vadd.f32 %v1156, %v1324
  %v1326 = vpop.f32.mrf.mxu0
  %v1327 = vadd.f32 %v1158, %v1326
  %1328 = vmatmul.bf16.gmra.mxu0 %v492
  %v1329 = vpop.f32.mrf.mxu0
  %v1330 = vadd.f32 %v1161, %v1329
  %v1331 = vpop.f32.mrf.mxu0
  %v1332 = vadd.f32 %v1163, %v1331
  %1333 = vmatmul.bf16.gmra.mxu0 %v495
  %v1334 = vpop.f32.mrf.mxu0
  %v1335 = vadd.f32 %v1166, %v1334
  %v1336 = vpop.f32.mrf.mxu0
  %v1337 = vadd.f32 %v1168, %v1336
  %1338 = vmatmul.bf16.gmra.mxu0 %v498
  %v1339 = vpop.f32.mrf.mxu0
  %v1340 = vadd.f32 %v1171, %v1339
  %v1341 = vpop.f32.mrf.mxu0
  %v1342 = vadd.f32 %v1173, %v1341
  %1343 = vmatmul.bf16.gmra.mxu0 %v501
  %v1344 = vpop.f32.mrf.mxu0
  %v1345 = vadd.f32 %v1176, %v1344
  %v1346 = vpop.f32.mrf.mxu0
  %v1347 = vadd.f32 %v1178, %v1346
  %1348 = vmatmul.bf16.gmra.mxu0 %v504
  %v1349 = vpop.f32.mrf.mxu0
  %v1350 = vadd.f32 %v1181, %v1349
  %v1351 = vpop.f32.mrf.mxu0
  %v1352 = vadd.f32 %v1183, %v1351
  %1353 = vmatmul.bf16.gmra.mxu0 %v507
  %v1354 = vpop.f32.mrf.mxu0
  %v1355 = vadd.f32 %v1186, %v1354
  %v1356 = vpop.f32.mrf.mxu0
  %v1357 = vadd.f32 %v1188, %v1356
  %1358 = vmatmul.bf16.gmra.mxu0 %v510
  %v1359 = vpop.f32.mrf.mxu0
  %v1360 = vadd.f32 %v1191, %v1359
  %v1361 = vpop.f32.mrf.mxu0
  %v1362 = vadd.f32 %v1193, %v1361
  %1363 = vmatmul.bf16.gmra.mxu0 %v513
  %v1364 = vpop.f32.mrf.mxu0
  %v1365 = vadd.f32 %v1196, %v1364
  %v1366 = vpop.f32.mrf.mxu0
  %v1367 = vadd.f32 %v1198, %v1366
  %1368 = vmatmul.bf16.gmra.mxu0 %v516
  %v1369 = vpop.f32.mrf.mxu0
  %v1370 = vadd.f32 %v1201, %v1369
  %v1371 = vpop.f32.mrf.mxu0
  %v1372 = vadd.f32 %v1203, %v1371
  %1373 = vmatmul.bf16.gmra.mxu0 %v519
  %v1374 = vpop.f32.mrf.mxu0
  %v1375 = vadd.f32 %v1206, %v1374
  %v1376 = vpop.f32.mrf.mxu0
  %v1377 = vadd.f32 %v1208, %v1376
  %1378 = vmatmul.bf16.gmra.mxu0 %v522
  %v1379 = vpop.f32.mrf.mxu0
  %v1380 = vadd.f32 %v1211, %v1379
  %v1381 = vpop.f32.mrf.mxu0
  %v1382 = vadd.f32 %v1213, %v1381
  %1383 = vmatmul.bf16.gmra.mxu0 %v525
  %v1384 = vpop.f32.mrf.mxu0
  %v1385 = vadd.f32 %v1216, %v1384
  %v1386 = vpop.f32.mrf.mxu0
  %v1387 = vadd.f32 %v1218, %v1386
  %1388 = vmatmul.bf16.gmra.mxu0 %v528
  %v1389 = vpop.f32.mrf.mxu0
  %v1390 = vadd.f32 %v1221, %v1389
  %v1391 = vpop.f32.mrf.mxu0
  %v1392 = vadd.f32 %v1223, %v1391
  %1393 = vmatmul.bf16.gmra.mxu0 %v531
  %v1394 = vpop.f32.mrf.mxu0
  %v1395 = vadd.f32 %v1226, %v1394
  %v1396 = vpop.f32.mrf.mxu0
  %v1397 = vadd.f32 %v1228, %v1396
  %1398 = vmatmul.bf16.gmra.mxu0 %v534
  %v1399 = vpop.f32.mrf.mxu0
  %v1400 = vadd.f32 %v1231, %v1399
  %v1401 = vpop.f32.mrf.mxu0
  %v1402 = vadd.f32 %v1233, %v1401
  %1403 = vmatmul.bf16.gmra.mxu0 %v537
  %v1404 = vpop.f32.mrf.mxu0
  %v1405 = vadd.f32 %v1236, %v1404
  %v1406 = vpop.f32.mrf.mxu0
  %v1407 = vadd.f32 %v1238, %v1406
  %1408 = vmatmul.bf16.gmra.mxu0 %v540
  %v1409 = vpop.f32.mrf.mxu0
  %v1410 = vadd.f32 %v1241, %v1409
  %v1411 = vpop.f32.mrf.mxu0
  %v1412 = vadd.f32 %v1243, %v1411
  %1413 = vmatmul.bf16.gmra.mxu0 %v543
  %v1414 = vpop.f32.mrf.mxu0
  %v1415 = vadd.f32 %v1246, %v1414
  %v1416 = vpop.f32.mrf.mxu0
  %v1417 = vadd.f32 %v1248, %v1416
  %1418 = vmatmul.bf16.gmra.mxu0 %v546
  %v1419 = vpop.f32.mrf.mxu0
  %v1420 = vadd.f32 %v1251, %v1419
  %v1421 = vpop.f32.mrf.mxu0
  %v1422 = vadd.f32 %v1253, %v1421
  %1423 = vmatmul.bf16.gmra.mxu0 %v549
  %v1424 = vpop.f32.mrf.mxu0
  %v1425 = vadd.f32 %v1256, %v1424
  %v1426 = vpop.f32.mrf.mxu0
  %v1427 = vadd.f32 %v1258, %v1426
  %1428 = vmatmul.bf16.gmra.mxu0 %v552
  %v1429 = vpop.f32.mrf.mxu0
  %v1430 = vadd.f32 %v1261, %v1429
  %v1431 = vpop.f32.mrf.mxu0
  %v1432 = vadd.f32 %v1263, %v1431
  %1433 = vdwg.mxu0
  %v1434 = vmul.f32 %v1275, 0.5
  %v1435 = vmul.f32 %v1277, 0.5
  %v1436 = vmul.f32 %v1280, 0.5
  %v1437 = vmul.f32 %v1282, 0.5
  %v1438 = vmul.f32 %v1285, 0.5
  %v1439 = vmul.f32 %v1287, 0.5
  %v1440 = vmul.f32 %v1290, 0.5
  %v1441 = vmul.f32 %v1292, 0.5
  %v1442 = vmul.f32 %v1295, 0.5
  %v1443 = vmul.f32 %v1297, 0.5
  %v1444 = vmul.f32 %v1300, 0.5
  %v1445 = vmul.f32 %v1302, 0.5
  %v1446 = vmul.f32 %v1305, 0.5
  %v1447 = vmul.f32 %v1307, 0.5
  %v1448 = vmul.f32 %v1310, 0.5
  %v1449 = vmul.f32 %v1312, 0.5
  %v1450 = vmul.f32 %v1315, 0.5
  %v1451 = vmul.f32 %v1317, 0.5
  %v1452 = vmul.f32 %v1320, 0.5
  %v1453 = vmul.f32 %v1322, 0.5
  %v1454 = vmul.f32 %v1325, 0.5
  %v1455 = vmul.f32 %v1327, 0.5
  %v1456 = vmul.f32 %v1330, 0.5
  %v1457 = vmul.f32 %v1332, 0.5
  %v1458 = vmul.f32 %v1335, 0.5
  %v1459 = vmul.f32 %v1337, 0.5
  %v1460 = vmul.f32 %v1340, 0.5
  %v1461 = vmul.f32 %v1342, 0.5
  %v1462 = vmul.f32 %v1345, 0.5
  %v1463 = vmul.f32 %v1347, 0.5
  %v1464 = vmul.f32 %v1350, 0.5
  %v1465 = vmul.f32 %v1352, 0.5
  %v1466 = vmul.f32 %v1355, 0.5
  %v1467 = vmul.f32 %v1357, 0.5
  %v1468 = vmul.f32 %v1360, 0.5
  %v1469 = vmul.f32 %v1362, 0.5
  %v1470 = vmul.f32 %v1365, 0.5
  %v1471 = vmul.f32 %v1367, 0.5
  %v1472 = vmul.f32 %v1370, 0.5
  %v1473 = vmul.f32 %v1372, 0.5
  %v1474 = vmul.f32 %v1375, 0.5
  %v1475 = vmul.f32 %v1377, 0.5
  %v1476 = vmul.f32 %v1380, 0.5
  %v1477 = vmul.f32 %v1382, 0.5
  %v1478 = vmul.f32 %v1385, 0.5
  %v1479 = vmul.f32 %v1387, 0.5
  %v1480 = vmul.f32 %v1390, 0.5
  %v1481 = vmul.f32 %v1392, 0.5
  %v1482 = vmul.f32 %v1395, 0.5
  %v1483 = vmul.f32 %v1397, 0.5
  %v1484 = vmul.f32 %v1400, 0.5
  %v1485 = vmul.f32 %v1402, 0.5
  %v1486 = vmul.f32 %v1405, 0.5
  %v1487 = vmul.f32 %v1407, 0.5
  %v1488 = vmul.f32 %v1410, 0.5
  %v1489 = vmul.f32 %v1412, 0.5
  %v1490 = vmul.f32 %v1415, 0.5
  %v1491 = vmul.f32 %v1417, 0.5
  %v1492 = vmul.f32 %v1420, 0.5
  %v1493 = vmul.f32 %v1422, 0.5
  %v1494 = vmul.f32 %v1425, 0.5
  %v1495 = vmul.f32 %v1427, 0.5
  %v1496 = vmul.f32 %v1430, 0.5
  %v1497 = vmul.f32 %v1432, 0.5
  %v1498 = vtanh.pop %v1434
  %v1499 = vtanh.pop %v1435
  %v1500 = vtanh.pop %v1436
  %v1501 = vtanh.pop %v1437
  %v1502 = vtanh.pop %v1438
  %v1503 = vtanh.pop %v1439
  %v1504 = vtanh.pop %v1440
  %v1505 = vtanh.pop %v1441
  %v1506 = vtanh.pop %v1442
  %v1507 = vtanh.pop %v1443
  %v1508 = vtanh.pop %v1444
  %v1509 = vtanh.pop %v1445
  %v1510 = vtanh.pop %v1446
  %v1511 = vtanh.pop %v1447
  %v1512 = vtanh.pop %v1448
  %v1513 = vtanh.pop %v1449
  %v1514 = vtanh.pop %v1450
  %v1515 = vtanh.pop %v1451
  %v1516 = vtanh.pop %v1452
  %v1517 = vtanh.pop %v1453
  %v1518 = vtanh.pop %v1454
  %v1519 = vtanh.pop %v1455
  %v1520 = vtanh.pop %v1456
  %v1521 = vtanh.pop %v1457
  %v1522 = vtanh.pop %v1458
  %v1523 = vtanh.pop %v1459
  %v1524 = vtanh.pop %v1460
  %v1525 = vtanh.pop %v1461
  %v1526 = vtanh.pop %v1462
  %v1527 = vtanh.pop %v1463
  %v1528 = vtanh.pop %v1464
  %v1529 = vtanh.pop %v1465
  %v1530 = vtanh.pop %v1466
  %v1531 = vtanh.pop %v1467
  %v1532 = vtanh.pop %v1468
  %v1533 = vtanh.pop %v1469
  %v1534 = vtanh.pop %v1470
  %v1535 = vtanh.pop %v1471
  %v1536 = vtanh.pop %v1472
  %v1537 = vtanh.pop %v1473
  %v1538 = vtanh.pop %v1474
  %v1539 = vtanh.pop %v1475
  %v1540 = vtanh.pop %v1476
  %v1541 = vtanh.pop %v1477
  %v1542 = vtanh.pop %v1478
  %v1543 = vtanh.pop %v1479
  %v1544 = vtanh.pop %v1480
  %v1545 = vtanh.pop %v1481
  %v1546 = vtanh.pop %v1482
  %v1547 = vtanh.pop %v1483
  %v1548 = vtanh.pop %v1484
  %v1549 = vtanh.pop %v1485
  %v1550 = vtanh.pop %v1486
  %v1551 = vtanh.pop %v1487
  %v1552 = vtanh.pop %v1488
  %v1553 = vtanh.pop %v1489
  %v1554 = vtanh.pop %v1490
  %v1555 = vtanh.pop %v1491
  %v1556 = vtanh.pop %v1492
  %v1557 = vtanh.pop %v1493
  %v1558 = vtanh.pop %v1494
  %v1559 = vtanh.pop %v1495
  %v1560 = vtanh.pop %v1496
  %v1561 = vtanh.pop %v1497
  %v1562 = vld [vmem:[%s5] sm:$0xff]
  %v1563 = vld [vmem:[%s5 + $0x8] sm:$0xff]
  %v1564 = vld [vmem:[%s5 + $0x10] sm:$0xff]
  %v1565 = vld [vmem:[%s5 + $0x18] sm:$0xff]
  %v1566 = vld [vmem:[%s5 + $0x20] sm:$0xff]
  %v1567 = vld [vmem:[%s5 + $0x28] sm:$0xff]
  %v1568 = vld [vmem:[%s5 + $0x30] sm:$0xff]
  %v1569 = vld [vmem:[%s5 + $0x38] sm:$0xff]
  %v1570 = vld [vmem:[%s5 + $0x40] sm:$0xff]
  %v1571 = vld [vmem:[%s5 + $0x48] sm:$0xff]
  %v1572 = vld [vmem:[%s5 + $0x50] sm:$0xff]
  %v1573 = vld [vmem:[%s5 + $0x58] sm:$0xff]
  %v1574 = vld [vmem:[%s5 + $0x60] sm:$0xff]
  %v1575 = vld [vmem:[%s5 + $0x68] sm:$0xff]
  %v1576 = vld [vmem:[%s5 + $0x70] sm:$0xff]
  %v1577 = vld [vmem:[%s5 + $0x78] sm:$0xff]
  %v1578 = vld [vmem:[%s5 + $0x80] sm:$0xff]
  %v1579 = vld [vmem:[%s5 + $0x88] sm:$0xff]
  %v1580 = vld [vmem:[%s5 + $0x90] sm:$0xff]
  %v1581 = vld [vmem:[%s5 + $0x98] sm:$0xff]
  %v1582 = vld [vmem:[%s5 + $0xa0] sm:$0xff]
  %v1583 = vld [vmem:[%s5 + $0xa8] sm:$0xff]
  %v1584 = vld [vmem:[%s5 + $0xb0] sm:$0xff]
  %v1585 = vld [vmem:[%s5 + $0xb8] sm:$0xff]
  %v1586 = vld [vmem:[%s5 + $0xc0] sm:$0xff]
  %v1587 = vld [vmem:[%s5 + $0xc8] sm:$0xff]
  %v1588 = vld [vmem:[%s5 + $0xd0] sm:$0xff]
  %v1589 = vld [vmem:[%s5 + $0xd8] sm:$0xff]
  %v1590 = vld [vmem:[%s5 + $0xe0] sm:$0xff]
  %v1591 = vld [vmem:[%s5 + $0xe8] sm:$0xff]
  %v1592 = vld [vmem:[%s5 + $0xf0] sm:$0xff]
  %v1593 = vld [vmem:[%s5 + $0xf8] sm:$0xff]
  %v1594 = vld [vmem:[%s5 + $0x100] sm:$0xff]
  %v1595 = vld [vmem:[%s5 + $0x108] sm:$0xff]
  %v1596 = vld [vmem:[%s5 + $0x110] sm:$0xff]
  %v1597 = vld [vmem:[%s5 + $0x118] sm:$0xff]
  %v1598 = vld [vmem:[%s5 + $0x120] sm:$0xff]
  %v1599 = vld [vmem:[%s5 + $0x128] sm:$0xff]
  %v1600 = vld [vmem:[%s5 + $0x130] sm:$0xff]
  %v1601 = vld [vmem:[%s5 + $0x138] sm:$0xff]
  %v1602 = vld [vmem:[%s5 + $0x140] sm:$0xff]
  %v1603 = vld [vmem:[%s5 + $0x148] sm:$0xff]
  %v1604 = vld [vmem:[%s5 + $0x150] sm:$0xff]
  %v1605 = vld [vmem:[%s5 + $0x158] sm:$0xff]
  %v1606 = vld [vmem:[%s5 + $0x160] sm:$0xff]
  %v1607 = vld [vmem:[%s5 + $0x168] sm:$0xff]
  %v1608 = vld [vmem:[%s5 + $0x170] sm:$0xff]
  %v1609 = vld [vmem:[%s5 + $0x178] sm:$0xff]
  %v1610 = vld [vmem:[%s5 + $0x180] sm:$0xff]
  %v1611 = vld [vmem:[%s5 + $0x188] sm:$0xff]
  %v1612 = vld [vmem:[%s5 + $0x190] sm:$0xff]
  %v1613 = vld [vmem:[%s5 + $0x198] sm:$0xff]
  %v1614 = vld [vmem:[%s5 + $0x1a0] sm:$0xff]
  %v1615 = vld [vmem:[%s5 + $0x1a8] sm:$0xff]
  %v1616 = vld [vmem:[%s5 + $0x1b0] sm:$0xff]
  %v1617 = vld [vmem:[%s5 + $0x1b8] sm:$0xff]
  %v1618 = vld [vmem:[%s5 + $0x1c0] sm:$0xff]
  %v1619 = vld [vmem:[%s5 + $0x1c8] sm:$0xff]
  %v1620 = vld [vmem:[%s5 + $0x1d0] sm:$0xff]
  %v1621 = vld [vmem:[%s5 + $0x1d8] sm:$0xff]
  %v1622 = vld [vmem:[%s5 + $0x1e0] sm:$0xff]
  %v1623 = vld [vmem:[%s5 + $0x1e8] sm:$0xff]
  %v1624 = vld [vmem:[%s5 + $0x1f0] sm:$0xff]
  %v1625 = vld [vmem:[%s5 + $0x1f8] sm:$0xff]
  %v1626 = vld [vmem:[%s6] sm:$0xff]
  %v1627 = vld [vmem:[%s6 + $0x8] sm:$0xff]
  %v1628 = vld [vmem:[%s6 + $0x10] sm:$0xff]
  %v1629 = vld [vmem:[%s6 + $0x18] sm:$0xff]
  %v1630 = vld [vmem:[%s6 + $0x20] sm:$0xff]
  %v1631 = vld [vmem:[%s6 + $0x28] sm:$0xff]
  %v1632 = vld [vmem:[%s6 + $0x30] sm:$0xff]
  %v1633 = vld [vmem:[%s6 + $0x38] sm:$0xff]
  %v1634 = vld [vmem:[%s6 + $0x40] sm:$0xff]
  %v1635 = vld [vmem:[%s6 + $0x48] sm:$0xff]
  %v1636 = vld [vmem:[%s6 + $0x50] sm:$0xff]
  %v1637 = vld [vmem:[%s6 + $0x58] sm:$0xff]
  %v1638 = vld [vmem:[%s6 + $0x60] sm:$0xff]
  %v1639 = vld [vmem:[%s6 + $0x68] sm:$0xff]
  %v1640 = vld [vmem:[%s6 + $0x70] sm:$0xff]
  %v1641 = vld [vmem:[%s6 + $0x78] sm:$0xff]
  %v1642 = vld [vmem:[%s6 + $0x80] sm:$0xff]
  %v1643 = vld [vmem:[%s6 + $0x88] sm:$0xff]
  %v1644 = vld [vmem:[%s6 + $0x90] sm:$0xff]
  %v1645 = vld [vmem:[%s6 + $0x98] sm:$0xff]
  %v1646 = vld [vmem:[%s6 + $0xa0] sm:$0xff]
  %v1647 = vld [vmem:[%s6 + $0xa8] sm:$0xff]
  %v1648 = vld [vmem:[%s6 + $0xb0] sm:$0xff]
  %v1649 = vld [vmem:[%s6 + $0xb8] sm:$0xff]
  %v1650 = vld [vmem:[%s6 + $0xc0] sm:$0xff]
  %v1651 = vld [vmem:[%s6 + $0xc8] sm:$0xff]
  %v1652 = vld [vmem:[%s6 + $0xd0] sm:$0xff]
  %v1653 = vld [vmem:[%s6 + $0xd8] sm:$0xff]
  %v1654 = vld [vmem:[%s6 + $0xe0] sm:$0xff]
  %v1655 = vld [vmem:[%s6 + $0xe8] sm:$0xff]
  %v1656 = vld [vmem:[%s6 + $0xf0] sm:$0xff]
  %v1657 = vld [vmem:[%s6 + $0xf8] sm:$0xff]
  %v1658 = vld [vmem:[%s6 + $0x100] sm:$0xff]
  %v1659 = vld [vmem:[%s6 + $0x108] sm:$0xff]
  %v1660 = vld [vmem:[%s6 + $0x110] sm:$0xff]
  %v1661 = vld [vmem:[%s6 + $0x118] sm:$0xff]
  %v1662 = vld [vmem:[%s6 + $0x120] sm:$0xff]
  %v1663 = vld [vmem:[%s6 + $0x128] sm:$0xff]
  %v1664 = vld [vmem:[%s6 + $0x130] sm:$0xff]
  %v1665 = vld [vmem:[%s6 + $0x138] sm:$0xff]
  %v1666 = vld [vmem:[%s6 + $0x140] sm:$0xff]
  %v1667 = vld [vmem:[%s6 + $0x148] sm:$0xff]
  %v1668 = vld [vmem:[%s6 + $0x150] sm:$0xff]
  %v1669 = vld [vmem:[%s6 + $0x158] sm:$0xff]
  %v1670 = vld [vmem:[%s6 + $0x160] sm:$0xff]
  %v1671 = vld [vmem:[%s6 + $0x168] sm:$0xff]
  %v1672 = vld [vmem:[%s6 + $0x170] sm:$0xff]
  %v1673 = vld [vmem:[%s6 + $0x178] sm:$0xff]
  %v1674 = vld [vmem:[%s6 + $0x180] sm:$0xff]
  %v1675 = vld [vmem:[%s6 + $0x188] sm:$0xff]
  %v1676 = vld [vmem:[%s6 + $0x190] sm:$0xff]
  %v1677 = vld [vmem:[%s6 + $0x198] sm:$0xff]
  %v1678 = vld [vmem:[%s6 + $0x1a0] sm:$0xff]
  %v1679 = vld [vmem:[%s6 + $0x1a8] sm:$0xff]
  %v1680 = vld [vmem:[%s6 + $0x1b0] sm:$0xff]
  %v1681 = vld [vmem:[%s6 + $0x1b8] sm:$0xff]
  %v1682 = vld [vmem:[%s6 + $0x1c0] sm:$0xff]
  %v1683 = vld [vmem:[%s6 + $0x1c8] sm:$0xff]
  %v1684 = vld [vmem:[%s6 + $0x1d0] sm:$0xff]
  %v1685 = vld [vmem:[%s6 + $0x1d8] sm:$0xff]
  %v1686 = vld [vmem:[%s6 + $0x1e0] sm:$0xff]
  %v1687 = vld [vmem:[%s6 + $0x1e8] sm:$0xff]
  %v1688 = vld [vmem:[%s6 + $0x1f0] sm:$0xff]
  %v1689 = vld [vmem:[%s6 + $0x1f8] sm:$0xff]
  %v1690 = vmul.f32 %v1562, %v956
  %v1691 = vmul.f32 %v1563, %v957
  %v1692 = vmul.f32 %v1564, %v958
  %v1693 = vmul.f32 %v1565, %v959
  %v1694 = vmul.f32 %v1566, %v960
  %v1695 = vmul.f32 %v1567, %v961
  %v1696 = vmul.f32 %v1568, %v962
  %v1697 = vmul.f32 %v1569, %v963
  %v1698 = vmul.f32 %v1570, %v964
  %v1699 = vmul.f32 %v1571, %v965
  %v1700 = vmul.f32 %v1572, %v966
  %v1701 = vmul.f32 %v1573, %v967
  %v1702 = vmul.f32 %v1574, %v968
  %v1703 = vmul.f32 %v1575, %v969
  %v1704 = vmul.f32 %v1576, %v970
  %v1705 = vmul.f32 %v1577, %v971
  %v1706 = vmul.f32 %v1578, %v972
  %v1707 = vmul.f32 %v1579, %v973
  %v1708 = vmul.f32 %v1580, %v974
  %v1709 = vmul.f32 %v1581, %v975
  %v1710 = vmul.f32 %v1582, %v976
  %v1711 = vmul.f32 %v1583, %v977
  %v1712 = vmul.f32 %v1584, %v978
  %v1713 = vmul.f32 %v1585, %v979
  %v1714 = vmul.f32 %v1586, %v980
  %v1715 = vmul.f32 %v1587, %v981
  %v1716 = vmul.f32 %v1588, %v982
  %v1717 = vmul.f32 %v1589, %v983
  %v1718 = vmul.f32 %v1590, %v984
  %v1719 = vmul.f32 %v1591, %v985
  %v1720 = vmul.f32 %v1592, %v986
  %v1721 = vmul.f32 %v1593, %v987
  %v1722 = vmul.f32 %v1594, %v988
  %v1723 = vmul.f32 %v1595, %v989
  %v1724 = vmul.f32 %v1596, %v990
  %v1725 = vmul.f32 %v1597, %v991
  %v1726 = vmul.f32 %v1598, %v992
  %v1727 = vmul.f32 %v1599, %v993
  %v1728 = vmul.f32 %v1600, %v994
  %v1729 = vmul.f32 %v1601, %v995
  %v1730 = vmul.f32 %v1602, %v996
  %v1731 = vmul.f32 %v1603, %v997
  %v1732 = vmul.f32 %v1604, %v998
  %v1733 = vmul.f32 %v1605, %v999
  %v1734 = vmul.f32 %v1606, %v1000
  %v1735 = vmul.f32 %v1607, %v1001
  %v1736 = vmul.f32 %v1608, %v1002
  %v1737 = vmul.f32 %v1609, %v1003
  %v1738 = vmul.f32 %v1610, %v1004
  %v1739 = vmul.f32 %v1611, %v1005
  %v1740 = vmul.f32 %v1612, %v1006
  %v1741 = vmul.f32 %v1613, %v1007
  %v1742 = vmul.f32 %v1614, %v1008
  %v1743 = vmul.f32 %v1615, %v1009
  %v1744 = vmul.f32 %v1616, %v1010
  %v1745 = vmul.f32 %v1617, %v1011
  %v1746 = vmul.f32 %v1618, %v1012
  %v1747 = vmul.f32 %v1619, %v1013
  %v1748 = vmul.f32 %v1620, %v1014
  %v1749 = vmul.f32 %v1621, %v1015
  %v1750 = vmul.f32 %v1622, %v1016
  %v1751 = vmul.f32 %v1623, %v1017
  %v1752 = vmul.f32 %v1624, %v1018
  %v1753 = vmul.f32 %v1625, %v1019
  %v1754 = vmul.f32 %v1626, %v1498
  %v1755 = vmul.f32 %v1627, %v1499
  %v1756 = vmul.f32 %v1628, %v1500
  %v1757 = vmul.f32 %v1629, %v1501
  %v1758 = vmul.f32 %v1630, %v1502
  %v1759 = vmul.f32 %v1631, %v1503
  %v1760 = vmul.f32 %v1632, %v1504
  %v1761 = vmul.f32 %v1633, %v1505
  %v1762 = vmul.f32 %v1634, %v1506
  %v1763 = vmul.f32 %v1635, %v1507
  %v1764 = vmul.f32 %v1636, %v1508
  %v1765 = vmul.f32 %v1637, %v1509
  %v1766 = vmul.f32 %v1638, %v1510
  %v1767 = vmul.f32 %v1639, %v1511
  %v1768 = vmul.f32 %v1640, %v1512
  %v1769 = vmul.f32 %v1641, %v1513
  %v1770 = vmul.f32 %v1642, %v1514
  %v1771 = vmul.f32 %v1643, %v1515
  %v1772 = vmul.f32 %v1644, %v1516
  %v1773 = vmul.f32 %v1645, %v1517
  %v1774 = vmul.f32 %v1646, %v1518
  %v1775 = vmul.f32 %v1647, %v1519
  %v1776 = vmul.f32 %v1648, %v1520
  %v1777 = vmul.f32 %v1649, %v1521
  %v1778 = vmul.f32 %v1650, %v1522
  %v1779 = vmul.f32 %v1651, %v1523
  %v1780 = vmul.f32 %v1652, %v1524
  %v1781 = vmul.f32 %v1653, %v1525
  %v1782 = vmul.f32 %v1654, %v1526
  %v1783 = vmul.f32 %v1655, %v1527
  %v1784 = vmul.f32 %v1656, %v1528
  %v1785 = vmul.f32 %v1657, %v1529
  %v1786 = vmul.f32 %v1658, %v1530
  %v1787 = vmul.f32 %v1659, %v1531
  %v1788 = vmul.f32 %v1660, %v1532
  %v1789 = vmul.f32 %v1661, %v1533
  %v1790 = vmul.f32 %v1662, %v1534
  %v1791 = vmul.f32 %v1663, %v1535
  %v1792 = vmul.f32 %v1664, %v1536
  %v1793 = vmul.f32 %v1665, %v1537
  %v1794 = vmul.f32 %v1666, %v1538
  %v1795 = vmul.f32 %v1667, %v1539
  %v1796 = vmul.f32 %v1668, %v1540
  %v1797 = vmul.f32 %v1669, %v1541
  %v1798 = vmul.f32 %v1670, %v1542
  %v1799 = vmul.f32 %v1671, %v1543
  %v1800 = vmul.f32 %v1672, %v1544
  %v1801 = vmul.f32 %v1673, %v1545
  %v1802 = vmul.f32 %v1674, %v1546
  %v1803 = vmul.f32 %v1675, %v1547
  %v1804 = vmul.f32 %v1676, %v1548
  %v1805 = vmul.f32 %v1677, %v1549
  %v1806 = vmul.f32 %v1678, %v1550
  %v1807 = vmul.f32 %v1679, %v1551
  %v1808 = vmul.f32 %v1680, %v1552
  %v1809 = vmul.f32 %v1681, %v1553
  %v1810 = vmul.f32 %v1682, %v1554
  %v1811 = vmul.f32 %v1683, %v1555
  %v1812 = vmul.f32 %v1684, %v1556
  %v1813 = vmul.f32 %v1685, %v1557
  %v1814 = vmul.f32 %v1686, %v1558
  %v1815 = vmul.f32 %v1687, %v1559
  %v1816 = vmul.f32 %v1688, %v1560
  %v1817 = vmul.f32 %v1689, %v1561
  %v1818 = vsub.f32 %v1690, %v1754
  %v1819 = vsub.f32 %v1691, %v1755
  %v1820 = vsub.f32 %v1692, %v1756
  %v1821 = vsub.f32 %v1693, %v1757
  %v1822 = vsub.f32 %v1694, %v1758
  %v1823 = vsub.f32 %v1695, %v1759
  %v1824 = vsub.f32 %v1696, %v1760
  %v1825 = vsub.f32 %v1697, %v1761
  %v1826 = vsub.f32 %v1698, %v1762
  %v1827 = vsub.f32 %v1699, %v1763
  %v1828 = vsub.f32 %v1700, %v1764
  %v1829 = vsub.f32 %v1701, %v1765
  %v1830 = vsub.f32 %v1702, %v1766
  %v1831 = vsub.f32 %v1703, %v1767
  %v1832 = vsub.f32 %v1704, %v1768
  %v1833 = vsub.f32 %v1705, %v1769
  %v1834 = vsub.f32 %v1706, %v1770
  %v1835 = vsub.f32 %v1707, %v1771
  %v1836 = vsub.f32 %v1708, %v1772
  %v1837 = vsub.f32 %v1709, %v1773
  %v1838 = vsub.f32 %v1710, %v1774
  %v1839 = vsub.f32 %v1711, %v1775
  %v1840 = vsub.f32 %v1712, %v1776
  %v1841 = vsub.f32 %v1713, %v1777
  %v1842 = vsub.f32 %v1714, %v1778
  %v1843 = vsub.f32 %v1715, %v1779
  %v1844 = vsub.f32 %v1716, %v1780
  %v1845 = vsub.f32 %v1717, %v1781
  %v1846 = vsub.f32 %v1718, %v1782
  %v1847 = vsub.f32 %v1719, %v1783
  %v1848 = vsub.f32 %v1720, %v1784
  %v1849 = vsub.f32 %v1721, %v1785
  %v1850 = vsub.f32 %v1722, %v1786
  %v1851 = vsub.f32 %v1723, %v1787
  %v1852 = vsub.f32 %v1724, %v1788
  %v1853 = vsub.f32 %v1725, %v1789
  %v1854 = vsub.f32 %v1726, %v1790
  %v1855 = vsub.f32 %v1727, %v1791
  %v1856 = vsub.f32 %v1728, %v1792
  %v1857 = vsub.f32 %v1729, %v1793
  %v1858 = vsub.f32 %v1730, %v1794
  %v1859 = vsub.f32 %v1731, %v1795
  %v1860 = vsub.f32 %v1732, %v1796
  %v1861 = vsub.f32 %v1733, %v1797
  %v1862 = vsub.f32 %v1734, %v1798
  %v1863 = vsub.f32 %v1735, %v1799
  %v1864 = vsub.f32 %v1736, %v1800
  %v1865 = vsub.f32 %v1737, %v1801
  %v1866 = vsub.f32 %v1738, %v1802
  %v1867 = vsub.f32 %v1739, %v1803
  %v1868 = vsub.f32 %v1740, %v1804
  %v1869 = vsub.f32 %v1741, %v1805
  %v1870 = vsub.f32 %v1742, %v1806
  %v1871 = vsub.f32 %v1743, %v1807
  %v1872 = vsub.f32 %v1744, %v1808
  %v1873 = vsub.f32 %v1745, %v1809
  %v1874 = vsub.f32 %v1746, %v1810
  %v1875 = vsub.f32 %v1747, %v1811
  %v1876 = vsub.f32 %v1748, %v1812
  %v1877 = vsub.f32 %v1749, %v1813
  %v1878 = vsub.f32 %v1750, %v1814
  %v1879 = vsub.f32 %v1751, %v1815
  %v1880 = vsub.f32 %v1752, %v1816
  %v1881 = vsub.f32 %v1753, %v1817
  %vm1882 = vcmask 31744
  %1883 = vst.msk [vmem:[%s7] sm:$0xff] %vm1882, %v1818
  %1884 = vst.msk [vmem:[%s7 + $0x8] sm:$0xff] %vm1882, %v1819
  %1885 = vst.msk [vmem:[%s7 + $0x10] sm:$0xff] %vm1882, %v1820
  %1886 = vst.msk [vmem:[%s7 + $0x18] sm:$0xff] %vm1882, %v1821
  %1887 = vst.msk [vmem:[%s7 + $0x20] sm:$0xff] %vm1882, %v1822
  %1888 = vst.msk [vmem:[%s7 + $0x28] sm:$0xff] %vm1882, %v1823
  %1889 = vst.msk [vmem:[%s7 + $0x30] sm:$0xff] %vm1882, %v1824
  %1890 = vst.msk [vmem:[%s7 + $0x38] sm:$0xff] %vm1882, %v1825
  %1891 = vst.msk [vmem:[%s7 + $0x40] sm:$0xff] %vm1882, %v1826
  %1892 = vst.msk [vmem:[%s7 + $0x48] sm:$0xff] %vm1882, %v1827
  %1893 = vst.msk [vmem:[%s7 + $0x50] sm:$0xff] %vm1882, %v1828
  %1894 = vst.msk [vmem:[%s7 + $0x58] sm:$0xff] %vm1882, %v1829
  %1895 = vst.msk [vmem:[%s7 + $0x60] sm:$0xff] %vm1882, %v1830
  %1896 = vst.msk [vmem:[%s7 + $0x68] sm:$0xff] %vm1882, %v1831
  %1897 = vst.msk [vmem:[%s7 + $0x70] sm:$0xff] %vm1882, %v1832
  %1898 = vst.msk [vmem:[%s7 + $0x78] sm:$0xff] %vm1882, %v1833
  %1899 = vst.msk [vmem:[%s7 + $0x80] sm:$0xff] %vm1882, %v1834
  %1900 = vst.msk [vmem:[%s7 + $0x88] sm:$0xff] %vm1882, %v1835
  %1901 = vst.msk [vmem:[%s7 + $0x90] sm:$0xff] %vm1882, %v1836
  %1902 = vst.msk [vmem:[%s7 + $0x98] sm:$0xff] %vm1882, %v1837
  %1903 = vst.msk [vmem:[%s7 + $0xa0] sm:$0xff] %vm1882, %v1838
  %1904 = vst.msk [vmem:[%s7 + $0xa8] sm:$0xff] %vm1882, %v1839
  %1905 = vst.msk [vmem:[%s7 + $0xb0] sm:$0xff] %vm1882, %v1840
  %1906 = vst.msk [vmem:[%s7 + $0xb8] sm:$0xff] %vm1882, %v1841
  %1907 = vst.msk [vmem:[%s7 + $0xc0] sm:$0xff] %vm1882, %v1842
  %1908 = vst.msk [vmem:[%s7 + $0xc8] sm:$0xff] %vm1882, %v1843
  %1909 = vst.msk [vmem:[%s7 + $0xd0] sm:$0xff] %vm1882, %v1844
  %1910 = vst.msk [vmem:[%s7 + $0xd8] sm:$0xff] %vm1882, %v1845
  %1911 = vst.msk [vmem:[%s7 + $0xe0] sm:$0xff] %vm1882, %v1846
  %1912 = vst.msk [vmem:[%s7 + $0xe8] sm:$0xff] %vm1882, %v1847
  %1913 = vst.msk [vmem:[%s7 + $0xf0] sm:$0xff] %vm1882, %v1848
  %1914 = vst.msk [vmem:[%s7 + $0xf8] sm:$0xff] %vm1882, %v1849
  %1915 = vst.msk [vmem:[%s7 + $0x100] sm:$0xff] %vm1882, %v1850
  %1916 = vst.msk [vmem:[%s7 + $0x108] sm:$0xff] %vm1882, %v1851
  %1917 = vst.msk [vmem:[%s7 + $0x110] sm:$0xff] %vm1882, %v1852
  %1918 = vst.msk [vmem:[%s7 + $0x118] sm:$0xff] %vm1882, %v1853
  %1919 = vst.msk [vmem:[%s7 + $0x120] sm:$0xff] %vm1882, %v1854
  %1920 = vst.msk [vmem:[%s7 + $0x128] sm:$0xff] %vm1882, %v1855
  %1921 = vst.msk [vmem:[%s7 + $0x130] sm:$0xff] %vm1882, %v1856
  %1922 = vst.msk [vmem:[%s7 + $0x138] sm:$0xff] %vm1882, %v1857
  %1923 = vst.msk [vmem:[%s7 + $0x140] sm:$0xff] %vm1882, %v1858
  %1924 = vst.msk [vmem:[%s7 + $0x148] sm:$0xff] %vm1882, %v1859
  %1925 = vst.msk [vmem:[%s7 + $0x150] sm:$0xff] %vm1882, %v1860
  %1926 = vst.msk [vmem:[%s7 + $0x158] sm:$0xff] %vm1882, %v1861
  %1927 = vst.msk [vmem:[%s7 + $0x160] sm:$0xff] %vm1882, %v1862
  %1928 = vst.msk [vmem:[%s7 + $0x168] sm:$0xff] %vm1882, %v1863
  %1929 = vst.msk [vmem:[%s7 + $0x170] sm:$0xff] %vm1882, %v1864
  %1930 = vst.msk [vmem:[%s7 + $0x178] sm:$0xff] %vm1882, %v1865
  %1931 = vst.msk [vmem:[%s7 + $0x180] sm:$0xff] %vm1882, %v1866
  %1932 = vst.msk [vmem:[%s7 + $0x188] sm:$0xff] %vm1882, %v1867
  %1933 = vst.msk [vmem:[%s7 + $0x190] sm:$0xff] %vm1882, %v1868
  %1934 = vst.msk [vmem:[%s7 + $0x198] sm:$0xff] %vm1882, %v1869
  %1935 = vst.msk [vmem:[%s7 + $0x1a0] sm:$0xff] %vm1882, %v1870
  %1936 = vst.msk [vmem:[%s7 + $0x1a8] sm:$0xff] %vm1882, %v1871
  %1937 = vst.msk [vmem:[%s7 + $0x1b0] sm:$0xff] %vm1882, %v1872
  %1938 = vst.msk [vmem:[%s7 + $0x1b8] sm:$0xff] %vm1882, %v1873
  %1939 = vst.msk [vmem:[%s7 + $0x1c0] sm:$0xff] %vm1882, %v1874
  %1940 = vst.msk [vmem:[%s7 + $0x1c8] sm:$0xff] %vm1882, %v1875
  %1941 = vst.msk [vmem:[%s7 + $0x1d0] sm:$0xff] %vm1882, %v1876
  %1942 = vst.msk [vmem:[%s7 + $0x1d8] sm:$0xff] %vm1882, %v1877
  %1943 = vst.msk [vmem:[%s7 + $0x1e0] sm:$0xff] %vm1882, %v1878
  %1944 = vst.msk [vmem:[%s7 + $0x1e8] sm:$0xff] %vm1882, %v1879
  %1945 = vst.msk [vmem:[%s7 + $0x1f0] sm:$0xff] %vm1882, %v1880
  %1946 = vst.msk [vmem:[%s7 + $0x1f8] sm:$0xff] %vm1882, %v1881
  %v1947 = vmul.f32 %v1562, %v1498
  %v1948 = vmul.f32 %v1563, %v1499
  %v1949 = vmul.f32 %v1564, %v1500
  %v1950 = vmul.f32 %v1565, %v1501
  %v1951 = vmul.f32 %v1566, %v1502
  %v1952 = vmul.f32 %v1567, %v1503
  %v1953 = vmul.f32 %v1568, %v1504
  %v1954 = vmul.f32 %v1569, %v1505
  %v1955 = vmul.f32 %v1570, %v1506
  %v1956 = vmul.f32 %v1571, %v1507
  %v1957 = vmul.f32 %v1572, %v1508
  %v1958 = vmul.f32 %v1573, %v1509
  %v1959 = vmul.f32 %v1574, %v1510
  %v1960 = vmul.f32 %v1575, %v1511
  %v1961 = vmul.f32 %v1576, %v1512
  %v1962 = vmul.f32 %v1577, %v1513
  %v1963 = vmul.f32 %v1578, %v1514
  %v1964 = vmul.f32 %v1579, %v1515
  %v1965 = vmul.f32 %v1580, %v1516
  %v1966 = vmul.f32 %v1581, %v1517
  %v1967 = vmul.f32 %v1582, %v1518
  %v1968 = vmul.f32 %v1583, %v1519
  %v1969 = vmul.f32 %v1584, %v1520
  %v1970 = vmul.f32 %v1585, %v1521
  %v1971 = vmul.f32 %v1586, %v1522
  %v1972 = vmul.f32 %v1587, %v1523
  %v1973 = vmul.f32 %v1588, %v1524
  %v1974 = vmul.f32 %v1589, %v1525
  %v1975 = vmul.f32 %v1590, %v1526
  %v1976 = vmul.f32 %v1591, %v1527
  %v1977 = vmul.f32 %v1592, %v1528
  %v1978 = vmul.f32 %v1593, %v1529
  %v1979 = vmul.f32 %v1594, %v1530
  %v1980 = vmul.f32 %v1595, %v1531
  %v1981 = vmul.f32 %v1596, %v1532
  %v1982 = vmul.f32 %v1597, %v1533
  %v1983 = vmul.f32 %v1598, %v1534
  %v1984 = vmul.f32 %v1599, %v1535
  %v1985 = vmul.f32 %v1600, %v1536
  %v1986 = vmul.f32 %v1601, %v1537
  %v1987 = vmul.f32 %v1602, %v1538
  %v1988 = vmul.f32 %v1603, %v1539
  %v1989 = vmul.f32 %v1604, %v1540
  %v1990 = vmul.f32 %v1605, %v1541
  %v1991 = vmul.f32 %v1606, %v1542
  %v1992 = vmul.f32 %v1607, %v1543
  %v1993 = vmul.f32 %v1608, %v1544
  %v1994 = vmul.f32 %v1609, %v1545
  %v1995 = vmul.f32 %v1610, %v1546
  %v1996 = vmul.f32 %v1611, %v1547
  %v1997 = vmul.f32 %v1612, %v1548
  %v1998 = vmul.f32 %v1613, %v1549
  %v1999 = vmul.f32 %v1614, %v1550
  %v2000 = vmul.f32 %v1615, %v1551
  %v2001 = vmul.f32 %v1616, %v1552
  %v2002 = vmul.f32 %v1617, %v1553
  %v2003 = vmul.f32 %v1618, %v1554
  %v2004 = vmul.f32 %v1619, %v1555
  %v2005 = vmul.f32 %v1620, %v1556
  %v2006 = vmul.f32 %v1621, %v1557
  %v2007 = vmul.f32 %v1622, %v1558
  %v2008 = vmul.f32 %v1623, %v1559
  %v2009 = vmul.f32 %v1624, %v1560
  %v2010 = vmul.f32 %v1625, %v1561
  %v2011 = vmul.f32 %v1626, %v956
  %v2012 = vmul.f32 %v1627, %v957
  %v2013 = vmul.f32 %v1628, %v958
  %v2014 = vmul.f32 %v1629, %v959
  %v2015 = vmul.f32 %v1630, %v960
  %v2016 = vmul.f32 %v1631, %v961
  %v2017 = vmul.f32 %v1632, %v962
  %v2018 = vmul.f32 %v1633, %v963
  %v2019 = vmul.f32 %v1634, %v964
  %v2020 = vmul.f32 %v1635, %v965
  %v2021 = vmul.f32 %v1636, %v966
  %v2022 = vmul.f32 %v1637, %v967
  %v2023 = vmul.f32 %v1638, %v968
  %v2024 = vmul.f32 %v1639, %v969
  %v2025 = vmul.f32 %v1640, %v970
  %v2026 = vmul.f32 %v1641, %v971
  %v2027 = vmul.f32 %v1642, %v972
  %v2028 = vmul.f32 %v1643, %v973
  %v2029 = vmul.f32 %v1644, %v974
  %v2030 = vmul.f32 %v1645, %v975
  %v2031 = vmul.f32 %v1646, %v976
  %v2032 = vmul.f32 %v1647, %v977
  %v2033 = vmul.f32 %v1648, %v978
  %v2034 = vmul.f32 %v1649, %v979
  %v2035 = vmul.f32 %v1650, %v980
  %v2036 = vmul.f32 %v1651, %v981
  %v2037 = vmul.f32 %v1652, %v982
  %v2038 = vmul.f32 %v1653, %v983
  %v2039 = vmul.f32 %v1654, %v984
  %v2040 = vmul.f32 %v1655, %v985
  %v2041 = vmul.f32 %v1656, %v986
  %v2042 = vmul.f32 %v1657, %v987
  %v2043 = vmul.f32 %v1658, %v988
  %v2044 = vmul.f32 %v1659, %v989
  %v2045 = vmul.f32 %v1660, %v990
  %v2046 = vmul.f32 %v1661, %v991
  %v2047 = vmul.f32 %v1662, %v992
  %v2048 = vmul.f32 %v1663, %v993
  %v2049 = vmul.f32 %v1664, %v994
  %v2050 = vmul.f32 %v1665, %v995
  %v2051 = vmul.f32 %v1666, %v996
  %v2052 = vmul.f32 %v1667, %v997
  %v2053 = vmul.f32 %v1668, %v998
  %v2054 = vmul.f32 %v1669, %v999
  %v2055 = vmul.f32 %v1670, %v1000
  %v2056 = vmul.f32 %v1671, %v1001
  %v2057 = vmul.f32 %v1672, %v1002
  %v2058 = vmul.f32 %v1673, %v1003
  %v2059 = vmul.f32 %v1674, %v1004
  %v2060 = vmul.f32 %v1675, %v1005
  %v2061 = vmul.f32 %v1676, %v1006
  %v2062 = vmul.f32 %v1677, %v1007
  %v2063 = vmul.f32 %v1678, %v1008
  %v2064 = vmul.f32 %v1679, %v1009
  %v2065 = vmul.f32 %v1680, %v1010
  %v2066 = vmul.f32 %v1681, %v1011
  %v2067 = vmul.f32 %v1682, %v1012
  %v2068 = vmul.f32 %v1683, %v1013
  %v2069 = vmul.f32 %v1684, %v1014
  %v2070 = vmul.f32 %v1685, %v1015
  %v2071 = vmul.f32 %v1686, %v1016
  %v2072 = vmul.f32 %v1687, %v1017
  %v2073 = vmul.f32 %v1688, %v1018
  %v2074 = vmul.f32 %v1689, %v1019
  %v2075 = vadd.f32 %v1947, %v2011
  %v2076 = vadd.f32 %v1948, %v2012
  %v2077 = vadd.f32 %v1949, %v2013
  %v2078 = vadd.f32 %v1950, %v2014
  %v2079 = vadd.f32 %v1951, %v2015
  %v2080 = vadd.f32 %v1952, %v2016
  %v2081 = vadd.f32 %v1953, %v2017
  %v2082 = vadd.f32 %v1954, %v2018
  %v2083 = vadd.f32 %v1955, %v2019
  %v2084 = vadd.f32 %v1956, %v2020
  %v2085 = vadd.f32 %v1957, %v2021
  %v2086 = vadd.f32 %v1958, %v2022
  %v2087 = vadd.f32 %v1959, %v2023
  %v2088 = vadd.f32 %v1960, %v2024
  %v2089 = vadd.f32 %v1961, %v2025
  %v2090 = vadd.f32 %v1962, %v2026
  %v2091 = vadd.f32 %v1963, %v2027
  %v2092 = vadd.f32 %v1964, %v2028
  %v2093 = vadd.f32 %v1965, %v2029
  %v2094 = vadd.f32 %v1966, %v2030
  %v2095 = vadd.f32 %v1967, %v2031
  %v2096 = vadd.f32 %v1968, %v2032
  %v2097 = vadd.f32 %v1969, %v2033
  %v2098 = vadd.f32 %v1970, %v2034
  %v2099 = vadd.f32 %v1971, %v2035
  %v2100 = vadd.f32 %v1972, %v2036
  %v2101 = vadd.f32 %v1973, %v2037
  %v2102 = vadd.f32 %v1974, %v2038
  %v2103 = vadd.f32 %v1975, %v2039
  %v2104 = vadd.f32 %v1976, %v2040
  %v2105 = vadd.f32 %v1977, %v2041
  %v2106 = vadd.f32 %v1978, %v2042
  %v2107 = vadd.f32 %v1979, %v2043
  %v2108 = vadd.f32 %v1980, %v2044
  %v2109 = vadd.f32 %v1981, %v2045
  %v2110 = vadd.f32 %v1982, %v2046
  %v2111 = vadd.f32 %v1983, %v2047
  %v2112 = vadd.f32 %v1984, %v2048
  %v2113 = vadd.f32 %v1985, %v2049
  %v2114 = vadd.f32 %v1986, %v2050
  %v2115 = vadd.f32 %v1987, %v2051
  %v2116 = vadd.f32 %v1988, %v2052
  %v2117 = vadd.f32 %v1989, %v2053
  %v2118 = vadd.f32 %v1990, %v2054
  %v2119 = vadd.f32 %v1991, %v2055
  %v2120 = vadd.f32 %v1992, %v2056
  %v2121 = vadd.f32 %v1993, %v2057
  %v2122 = vadd.f32 %v1994, %v2058
  %v2123 = vadd.f32 %v1995, %v2059
  %v2124 = vadd.f32 %v1996, %v2060
  %v2125 = vadd.f32 %v1997, %v2061
  %v2126 = vadd.f32 %v1998, %v2062
  %v2127 = vadd.f32 %v1999, %v2063
  %v2128 = vadd.f32 %v2000, %v2064
  %v2129 = vadd.f32 %v2001, %v2065
  %v2130 = vadd.f32 %v2002, %v2066
  %v2131 = vadd.f32 %v2003, %v2067
  %v2132 = vadd.f32 %v2004, %v2068
  %v2133 = vadd.f32 %v2005, %v2069
  %v2134 = vadd.f32 %v2006, %v2070
  %v2135 = vadd.f32 %v2007, %v2071
  %v2136 = vadd.f32 %v2008, %v2072
  %v2137 = vadd.f32 %v2009, %v2073
  %v2138 = vadd.f32 %v2010, %v2074
  %2139 = vst.msk [vmem:[%s8] sm:$0xff] %vm1882, %v2075
  %2140 = vst.msk [vmem:[%s8 + $0x8] sm:$0xff] %vm1882, %v2076
  %2141 = vst.msk [vmem:[%s8 + $0x10] sm:$0xff] %vm1882, %v2077
  %2142 = vst.msk [vmem:[%s8 + $0x18] sm:$0xff] %vm1882, %v2078
  %2143 = vst.msk [vmem:[%s8 + $0x20] sm:$0xff] %vm1882, %v2079
  %2144 = vst.msk [vmem:[%s8 + $0x28] sm:$0xff] %vm1882, %v2080
  %2145 = vst.msk [vmem:[%s8 + $0x30] sm:$0xff] %vm1882, %v2081
  %2146 = vst.msk [vmem:[%s8 + $0x38] sm:$0xff] %vm1882, %v2082
  %2147 = vst.msk [vmem:[%s8 + $0x40] sm:$0xff] %vm1882, %v2083
  %2148 = vst.msk [vmem:[%s8 + $0x48] sm:$0xff] %vm1882, %v2084
  %2149 = vst.msk [vmem:[%s8 + $0x50] sm:$0xff] %vm1882, %v2085
  %2150 = vst.msk [vmem:[%s8 + $0x58] sm:$0xff] %vm1882, %v2086
  %2151 = vst.msk [vmem:[%s8 + $0x60] sm:$0xff] %vm1882, %v2087
  %2152 = vst.msk [vmem:[%s8 + $0x68] sm:$0xff] %vm1882, %v2088
  %2153 = vst.msk [vmem:[%s8 + $0x70] sm:$0xff] %vm1882, %v2089
  %2154 = vst.msk [vmem:[%s8 + $0x78] sm:$0xff] %vm1882, %v2090
  %2155 = vst.msk [vmem:[%s8 + $0x80] sm:$0xff] %vm1882, %v2091
  %2156 = vst.msk [vmem:[%s8 + $0x88] sm:$0xff] %vm1882, %v2092
  %2157 = vst.msk [vmem:[%s8 + $0x90] sm:$0xff] %vm1882, %v2093
  %2158 = vst.msk [vmem:[%s8 + $0x98] sm:$0xff] %vm1882, %v2094
  %2159 = vst.msk [vmem:[%s8 + $0xa0] sm:$0xff] %vm1882, %v2095
  %2160 = vst.msk [vmem:[%s8 + $0xa8] sm:$0xff] %vm1882, %v2096
  %2161 = vst.msk [vmem:[%s8 + $0xb0] sm:$0xff] %vm1882, %v2097
  %2162 = vst.msk [vmem:[%s8 + $0xb8] sm:$0xff] %vm1882, %v2098
  %2163 = vst.msk [vmem:[%s8 + $0xc0] sm:$0xff] %vm1882, %v2099
  %2164 = vst.msk [vmem:[%s8 + $0xc8] sm:$0xff] %vm1882, %v2100
  %2165 = vst.msk [vmem:[%s8 + $0xd0] sm:$0xff] %vm1882, %v2101
  %2166 = vst.msk [vmem:[%s8 + $0xd8] sm:$0xff] %vm1882, %v2102
  %2167 = vst.msk [vmem:[%s8 + $0xe0] sm:$0xff] %vm1882, %v2103
  %2168 = vst.msk [vmem:[%s8 + $0xe8] sm:$0xff] %vm1882, %v2104
  %2169 = vst.msk [vmem:[%s8 + $0xf0] sm:$0xff] %vm1882, %v2105
  %2170 = vst.msk [vmem:[%s8 + $0xf8] sm:$0xff] %vm1882, %v2106
  %2171 = vst.msk [vmem:[%s8 + $0x100] sm:$0xff] %vm1882, %v2107
  %2172 = vst.msk [vmem:[%s8 + $0x108] sm:$0xff] %vm1882, %v2108
  %2173 = vst.msk [vmem:[%s8 + $0x110] sm:$0xff] %vm1882, %v2109
  %2174 = vst.msk [vmem:[%s8 + $0x118] sm:$0xff] %vm1882, %v2110
  %2175 = vst.msk [vmem:[%s8 + $0x120] sm:$0xff] %vm1882, %v2111
  %2176 = vst.msk [vmem:[%s8 + $0x128] sm:$0xff] %vm1882, %v2112
  %2177 = vst.msk [vmem:[%s8 + $0x130] sm:$0xff] %vm1882, %v2113
  %2178 = vst.msk [vmem:[%s8 + $0x138] sm:$0xff] %vm1882, %v2114
  %2179 = vst.msk [vmem:[%s8 + $0x140] sm:$0xff] %vm1882, %v2115
  %2180 = vst.msk [vmem:[%s8 + $0x148] sm:$0xff] %vm1882, %v2116
  %2181 = vst.msk [vmem:[%s8 + $0x150] sm:$0xff] %vm1882, %v2117
  %2182 = vst.msk [vmem:[%s8 + $0x158] sm:$0xff] %vm1882, %v2118
  %2183 = vst.msk [vmem:[%s8 + $0x160] sm:$0xff] %vm1882, %v2119
  %2184 = vst.msk [vmem:[%s8 + $0x168] sm:$0xff] %vm1882, %v2120
  %2185 = vst.msk [vmem:[%s8 + $0x170] sm:$0xff] %vm1882, %v2121
  %2186 = vst.msk [vmem:[%s8 + $0x178] sm:$0xff] %vm1882, %v2122
  %2187 = vst.msk [vmem:[%s8 + $0x180] sm:$0xff] %vm1882, %v2123
  %2188 = vst.msk [vmem:[%s8 + $0x188] sm:$0xff] %vm1882, %v2124
  %2189 = vst.msk [vmem:[%s8 + $0x190] sm:$0xff] %vm1882, %v2125
  %2190 = vst.msk [vmem:[%s8 + $0x198] sm:$0xff] %vm1882, %v2126
  %2191 = vst.msk [vmem:[%s8 + $0x1a0] sm:$0xff] %vm1882, %v2127
  %2192 = vst.msk [vmem:[%s8 + $0x1a8] sm:$0xff] %vm1882, %v2128
  %2193 = vst.msk [vmem:[%s8 + $0x1b0] sm:$0xff] %vm1882, %v2129
  %2194 = vst.msk [vmem:[%s8 + $0x1b8] sm:$0xff] %vm1882, %v2130
  %2195 = vst.msk [vmem:[%s8 + $0x1c0] sm:$0xff] %vm1882, %v2131
  %2196 = vst.msk [vmem:[%s8 + $0x1c8] sm:$0xff] %vm1882, %v2132
  %2197 = vst.msk [vmem:[%s8 + $0x1d0] sm:$0xff] %vm1882, %v2133
  %2198 = vst.msk [vmem:[%s8 + $0x1d8] sm:$0xff] %vm1882, %v2134
  %2199 = vst.msk [vmem:[%s8 + $0x1e0] sm:$0xff] %vm1882, %v2135
  %2200 = vst.msk [vmem:[%s8 + $0x1e8] sm:$0xff] %vm1882, %v2136
  %2201 = vst.msk [vmem:[%s8 + $0x1f0] sm:$0xff] %vm1882, %v2137
  %2202 = vst.msk [vmem:[%s8 + $0x1f8] sm:$0xff] %vm1882, %v2138
  // Predicated region
  $region30: #{audio_cond_unet_forward.19} parent=0 // pred_check
    _
  $region31: #{audio_cond_unet_forward.19} parent=0 // pred_check_branch
    %2204 = sbr.rel (0) target = $region33
  $region32: #{audio_cond_unet_forward.19} parent=0 // pred_region
    _
  $region33: #{audio_cond_unet_forward.19} parent=0 // pred_fallthru
    _
  // Predicated region
  $region34: #{audio_cond_unet_forward.19} parent=0 // pred_check
    _
  $region35: #{audio_cond_unet_forward.19} parent=0 // pred_check_branch
    %2206 = sbr.rel (0) target = $region37
  $region36: #{audio_cond_unet_forward.19} parent=0 // pred_region
    _
  $region37: #{audio_cond_unet_forward.19} parent=0 // pred_fallthru
    _
  // Predicated region
  $region38: #{audio_cond_unet_forward.19} parent=0 // pred_check
    _
  $region39: #{audio_cond_unet_forward.19} parent=0 // pred_check_branch
    %2208 = sbr.rel (0) target = $region41
  $region40: #{audio_cond_unet_forward.19} parent=0 // pred_region
    _
  $region41: #{audio_cond_unet_forward.19} parent=0 // pred_fallthru
    _
  // Predicated region
  $region42: #{audio_cond_unet_forward.19} parent=0 // pred_check
    _
  $region43: #{audio_cond_unet_forward.19} parent=0 // pred_check_branch
    %2210 = sbr.rel (0) target = $region45
  $region44: #{audio_cond_unet_forward.19} parent=0 // pred_region
    _
  $region45: #{audio_cond_unet_forward.19} parent=0 // pred_fallthru
    _

</llo_original>
